<compile_context>
chip_gen: v7x
topology: tpu7x:2x2x1
jax: 0.10.0
libtpu: 0.0.40
codegen_flags: <defaults>
</compile_context>

<pallas_src>
import jax
import jax.numpy as jnp
from jax import lax
from jax.experimental import pallas as pl
from jax.experimental.pallas import tpu as pltpu

# Contract dim 1 of lhs (B, D_in) with dim 1 of rhs (D_out, D_in) -> (B, D_out),
# i.e. h @ W.T with no explicit transpose.
_DN = (((1,), (1,)), ((), ()))


def fcnn_kernel(x_ref,
                w0_ref, w1_ref, w2_ref, w3_ref, w4_ref,
                b0_ref, b1_ref, b2_ref, b3_ref, b4_ref,
                out_ref):
    """5-layer MLP fused into one kernel. One batch tile per grid step; all weights VMEM-resident."""
    tb = x_ref.shape[0]
    # bf16 activations need >=16 sublanes; fall back to f32 matmul for tiny tiles.
    use_bf16_act = tb >= 16

    def matmul(h_f32, w_ref):
        if use_bf16_act:
            lhs = h_f32.astype(jnp.bfloat16)
            rhs = w_ref[...]                       # already bf16
        else:
            lhs = h_f32
            rhs = w_ref[...].astype(jnp.float32)
        return lax.dot_general(lhs, rhs, dimension_numbers=_DN,
                               preferred_element_type=jnp.float32)

    h = x_ref[...].astype(jnp.float32)

    # Layers 0..3: Linear -> ReLU  (Dropout is identity in eval mode)
    for w_ref, b_ref in ((w0_ref, b0_ref), (w1_ref, b1_ref),
                         (w2_ref, b2_ref), (w3_ref, b3_ref)):
        h = jnp.maximum(matmul(h, w_ref) + b_ref[...], 0.0)

    # Final Linear (no activation)
    h = matmul(h, w4_ref) + b4_ref[...]

    out_ref[...] = h.astype(out_ref.dtype)


def fcnn_forward(x, weights, biases, *, block_b=128):
    """x: (B, D) float32.  weights[i]: (D, D) PyTorch layout (out, in).  biases[i]: (D,)."""
    B, D = x.shape

    # Weights stay in (out, in) layout -- no transpose pass over HBM.
    # Cast to bf16 once (weight-streaming traffic is the dominant cost at small B).
    wts = [w.astype(jnp.bfloat16) for w in weights]
    bss = [b.reshape(1, D).astype(jnp.float32) for b in biases]

    # Pick the largest batch tile <= block_b that divides B (fallback: whole batch).
    tb = B
    for cand in (block_b, 256, 128, 64, 32, 16, 8):
        if cand <= B and B % cand == 0:
            tb = cand
            break
    grid = (B // tb,)

    x_spec = pl.BlockSpec((tb, D), lambda i: (i, 0))
    w_spec = pl.BlockSpec((D, D), lambda i: (0, 0))   # constant block -> stays resident
    b_spec = pl.BlockSpec((1, D), lambda i: (0, 0))
    out_spec = pl.BlockSpec((tb, D), lambda i: (i, 0))

    # VMEM budget derived from actual buffers (x2 for double-buffering + headroom),
    # capped below v7x's 64 MiB physical VMEM.
    w_bytes = 5 * D * D * 2            # bf16 weights
    b_bytes = 5 * D * 4                # f32 biases
    act_bytes = 2 * tb * D * 4         # x tile + out tile (f32)
    vmem_need = 2 * (w_bytes + b_bytes + act_bytes) + (4 << 20)
    vmem_limit = int(min(max(vmem_need, 16 << 20), 48 << 20))

    return pl.pallas_call(
        fcnn_kernel,
        out_shape=jax.ShapeDtypeStruct((B, D), x.dtype),
        grid=grid,
        in_specs=[x_spec] + [w_spec] * 5 + [b_spec] * 5,
        out_specs=out_spec,
        compiler_params=pltpu.CompilerParams(
            dimension_semantics=("parallel",),     # megacore sharding of batch tiles (v7x)
            vmem_limit_bytes=vmem_limit,
        ),
    )(x, *wts, *bss)


def init_params(key, data_num):
    """Deterministic init matching PyTorch nn.Linear default: U(-1/sqrt(in), 1/sqrt(in))."""
    weights, biases = [], []
    bound = 1.0 / jnp.sqrt(float(data_num))
    for i in range(5):
        kw, kb = jax.random.split(jax.random.fold_in(key, i))
        w = jax.random.uniform(kw, (data_num, data_num), jnp.float32, -bound, bound)
        b = jax.random.uniform(kb, (data_num,), jnp.float32, -bound, bound)
        weights.append(w)
        biases.append(b)
    return weights, biases


if __name__ == "__main__":
    # data_num=512 matches the module default; B=256 gives a 2-tile batch grid.
    B, D = 256, 512
    key = jax.random.PRNGKey(0)
    kx, kp = jax.random.split(key)

    x = jax.random.normal(kx, (B, D), dtype=jnp.float32)
    weights, biases = init_params(kp, D)

    out = jax.block_until_ready(fcnn_forward(x, weights, biases))

    # Shape must match x.view(B, -1) of the PyTorch module (identity for 2-D input).
    assert out.shape == (B, D), out.shape

    # Plain-JAX reference with the same bf16-weight / bf16-activation, f32-accumulate
    # numerics (eval-mode dropout = identity).
    h = x
    for i in range(5):
        z = lax.dot_general(h.astype(jnp.bfloat16),
                            weights[i].astype(jnp.bfloat16),
                            dimension_numbers=_DN,
                            preferred_element_type=jnp.float32) + biases[i]
        h = jnp.maximum(z, 0.0) if i < 4 else z
    ref = h

    assert jnp.allclose(out, ref, atol=1e-2, rtol=1e-2), \
        float(jnp.max(jnp.abs(out - ref)))

    print("KERNEL_OK")
</pallas_src>

<mosaic_0001>
module attributes {stable_mosaic.version = 11 : i64} {
  func.func @fcnn_kernel(%arg0: i32, %arg1: memref<128x512xf32, #tpu.memory_space<vmem>>, %arg2: memref<512x512xbf16, #tpu.memory_space<vmem>>, %arg3: memref<512x512xbf16, #tpu.memory_space<vmem>>, %arg4: memref<512x512xbf16, #tpu.memory_space<vmem>>, %arg5: memref<512x512xbf16, #tpu.memory_space<vmem>>, %arg6: memref<512x512xbf16, #tpu.memory_space<vmem>>, %arg7: memref<1x512xf32, #tpu.memory_space<vmem>>, %arg8: memref<1x512xf32, #tpu.memory_space<vmem>>, %arg9: memref<1x512xf32, #tpu.memory_space<vmem>>, %arg10: memref<1x512xf32, #tpu.memory_space<vmem>>, %arg11: memref<1x512xf32, #tpu.memory_space<vmem>>, %arg12: memref<128x512xf32, #tpu.memory_space<vmem>>) attributes {dimension_semantics = [#tpu.dimension_semantics<parallel>], iteration_bounds = array<i64: 2>, scalar_prefetch = 0 : i64, scratch_operands = 0 : i64, tpu.core_type = #tpu.core_type<tc>, window_params = [{transform_indices = @transform_0, window_bounds = array<i64: 128, 512>}, {pipeline_mode = #tpu.pipeline_mode<synchronous>, transform_indices = @transform_1, window_bounds = array<i64: 512, 512>}, {pipeline_mode = #tpu.pipeline_mode<synchronous>, transform_indices = @transform_2, window_bounds = array<i64: 512, 512>}, {pipeline_mode = #tpu.pipeline_mode<synchronous>, transform_indices = @transform_3, window_bounds = array<i64: 512, 512>}, {pipeline_mode = #tpu.pipeline_mode<synchronous>, transform_indices = @transform_4, window_bounds = array<i64: 512, 512>}, {pipeline_mode = #tpu.pipeline_mode<synchronous>, transform_indices = @transform_5, window_bounds = array<i64: 512, 512>}, {pipeline_mode = #tpu.pipeline_mode<synchronous>, transform_indices = @transform_6, window_bounds = array<i64: 1, 512>}, {pipeline_mode = #tpu.pipeline_mode<synchronous>, transform_indices = @transform_7, window_bounds = array<i64: 1, 512>}, {pipeline_mode = #tpu.pipeline_mode<synchronous>, transform_indices = @transform_8, window_bounds = array<i64: 1, 512>}, {pipeline_mode = #tpu.pipeline_mode<synchronous>, transform_indices = @transform_9, window_bounds = array<i64: 1, 512>}, {pipeline_mode = #tpu.pipeline_mode<synchronous>, transform_indices = @transform_10, window_bounds = array<i64: 1, 512>}, {transform_indices = @transform_11, window_bounds = array<i64: 128, 512>}]} {
    %c0 = arith.constant 0 : index
    %c0_0 = arith.constant 0 : index
    %0 = vector.load %arg1[%c0, %c0_0] : memref<128x512xf32, #tpu.memory_space<vmem>>, vector<128x512xf32>
    %1 = arith.truncf %0 : vector<128x512xf32> to vector<128x512xbf16>
    %c0_1 = arith.constant 0 : index
    %c0_2 = arith.constant 0 : index
    %2 = vector.load %arg2[%c0_1, %c0_2] : memref<512x512xbf16, #tpu.memory_space<vmem>>, vector<512x512xbf16>
    %cst = arith.constant dense<0.000000e+00> : vector<128x512xf32>
    %3 = tpu.matmul %1, %2, %cst {dimension_numbers = #tpu.dot_dimension_numbers<[1], [1], [0], [0], [0, 0, 1, 0], [], []>} : vector<128x512xbf16>, vector<512x512xbf16>, vector<128x512xf32> -> vector<128x512xf32>
    %c0_3 = arith.constant 0 : index
    %c0_4 = arith.constant 0 : index
    %4 = vector.load %arg7[%c0_3, %c0_4] : memref<1x512xf32, #tpu.memory_space<vmem>>, vector<1x512xf32>
    %5 = vector.broadcast %4 : vector<1x512xf32> to vector<128x512xf32>
    %6 = arith.addf %3, %5 : vector<128x512xf32>
    %cst_5 = arith.constant 0.000000e+00 : f32
    %7 = vector.broadcast %cst_5 : f32 to vector<128x512xf32>
    %8 = arith.maximumf %6, %7 : vector<128x512xf32>
    %9 = arith.truncf %8 : vector<128x512xf32> to vector<128x512xbf16>
    %c0_6 = arith.constant 0 : index
    %c0_7 = arith.constant 0 : index
    %10 = vector.load %arg3[%c0_6, %c0_7] : memref<512x512xbf16, #tpu.memory_space<vmem>>, vector<512x512xbf16>
    %cst_8 = arith.constant dense<0.000000e+00> : vector<128x512xf32>
    %11 = tpu.matmul %9, %10, %cst_8 {dimension_numbers = #tpu.dot_dimension_numbers<[1], [1], [0], [0], [0, 0, 1, 0], [], []>} : vector<128x512xbf16>, vector<512x512xbf16>, vector<128x512xf32> -> vector<128x512xf32>
    %c0_9 = arith.constant 0 : index
    %c0_10 = arith.constant 0 : index
    %12 = vector.load %arg8[%c0_9, %c0_10] : memref<1x512xf32, #tpu.memory_space<vmem>>, vector<1x512xf32>
    %13 = vector.broadcast %12 : vector<1x512xf32> to vector<128x512xf32>
    %14 = arith.addf %11, %13 : vector<128x512xf32>
    %cst_11 = arith.constant 0.000000e+00 : f32
    %15 = vector.broadcast %cst_11 : f32 to vector<128x512xf32>
    %16 = arith.maximumf %14, %15 : vector<128x512xf32>
    %17 = arith.truncf %16 : vector<128x512xf32> to vector<128x512xbf16>
    %c0_12 = arith.constant 0 : index
    %c0_13 = arith.constant 0 : index
    %18 = vector.load %arg4[%c0_12, %c0_13] : memref<512x512xbf16, #tpu.memory_space<vmem>>, vector<512x512xbf16>
    %cst_14 = arith.constant dense<0.000000e+00> : vector<128x512xf32>
    %19 = tpu.matmul %17, %18, %cst_14 {dimension_numbers = #tpu.dot_dimension_numbers<[1], [1], [0], [0], [0, 0, 1, 0], [], []>} : vector<128x512xbf16>, vector<512x512xbf16>, vector<128x512xf32> -> vector<128x512xf32>
    %c0_15 = arith.constant 0 : index
    %c0_16 = arith.constant 0 : index
    %20 = vector.load %arg9[%c0_15, %c0_16] : memref<1x512xf32, #tpu.memory_space<vmem>>, vector<1x512xf32>
    %21 = vector.broadcast %20 : vector<1x512xf32> to vector<128x512xf32>
    %22 = arith.addf %19, %21 : vector<128x512xf32>
    %cst_17 = arith.constant 0.000000e+00 : f32
    %23 = vector.broadcast %cst_17 : f32 to vector<128x512xf32>
    %24 = arith.maximumf %22, %23 : vector<128x512xf32>
    %25 = arith.truncf %24 : vector<128x512xf32> to vector<128x512xbf16>
    %c0_18 = arith.constant 0 : index
    %c0_19 = arith.constant 0 : index
    %26 = vector.load %arg5[%c0_18, %c0_19] : memref<512x512xbf16, #tpu.memory_space<vmem>>, vector<512x512xbf16>
    %cst_20 = arith.constant dense<0.000000e+00> : vector<128x512xf32>
    %27 = tpu.matmul %25, %26, %cst_20 {dimension_numbers = #tpu.dot_dimension_numbers<[1], [1], [0], [0], [0, 0, 1, 0], [], []>} : vector<128x512xbf16>, vector<512x512xbf16>, vector<128x512xf32> -> vector<128x512xf32>
    %c0_21 = arith.constant 0 : index
    %c0_22 = arith.constant 0 : index
    %28 = vector.load %arg10[%c0_21, %c0_22] : memref<1x512xf32, #tpu.memory_space<vmem>>, vector<1x512xf32>
    %29 = vector.broadcast %28 : vector<1x512xf32> to vector<128x512xf32>
    %30 = arith.addf %27, %29 : vector<128x512xf32>
    %cst_23 = arith.constant 0.000000e+00 : f32
    %31 = vector.broadcast %cst_23 : f32 to vector<128x512xf32>
    %32 = arith.maximumf %30, %31 : vector<128x512xf32>
    %33 = arith.truncf %32 : vector<128x512xf32> to vector<128x512xbf16>
    %c0_24 = arith.constant 0 : index
    %c0_25 = arith.constant 0 : index
    %34 = vector.load %arg6[%c0_24, %c0_25] : memref<512x512xbf16, #tpu.memory_space<vmem>>, vector<512x512xbf16>
    %cst_26 = arith.constant dense<0.000000e+00> : vector<128x512xf32>
    %35 = tpu.matmul %33, %34, %cst_26 {dimension_numbers = #tpu.dot_dimension_numbers<[1], [1], [0], [0], [0, 0, 1, 0], [], []>} : vector<128x512xbf16>, vector<512x512xbf16>, vector<128x512xf32> -> vector<128x512xf32>
    %c0_27 = arith.constant 0 : index
    %c0_28 = arith.constant 0 : index
    %36 = vector.load %arg11[%c0_27, %c0_28] : memref<1x512xf32, #tpu.memory_space<vmem>>, vector<1x512xf32>
    %37 = vector.broadcast %36 : vector<1x512xf32> to vector<128x512xf32>
    %38 = arith.addf %35, %37 : vector<128x512xf32>
    %c0_29 = arith.constant 0 : index
    %c0_30 = arith.constant 0 : index
    %39 = vector.load %arg12[%c0_29, %c0_30] : memref<128x512xf32, #tpu.memory_space<vmem>>, vector<128x512xf32>
    tpu.vector_store %arg12[%c0_29, %c0_30], %38 {strides = array<i32>} : memref<128x512xf32, #tpu.memory_space<vmem>>, vector<128x512xf32>,
    return
  }
  func.func @transform_0(%arg0: i32) -> (i32, i32) {
    %c0_i32 = arith.constant 0 : i32
    %c0_i32_0 = arith.constant 0 : i32
    return %arg0, %c0_i32 : i32, i32
  }
  func.func @transform_1(%arg0: i32) -> (i32, i32) {
    %c0_i32 = arith.constant 0 : i32
    %c0_i32_0 = arith.constant 0 : i32
    %c0_i32_1 = arith.constant 0 : i32
    return %c0_i32, %c0_i32_0 : i32, i32
  }
  func.func @transform_2(%arg0: i32) -> (i32, i32) {
    %c0_i32 = arith.constant 0 : i32
    %c0_i32_0 = arith.constant 0 : i32
    %c0_i32_1 = arith.constant 0 : i32
    return %c0_i32, %c0_i32_0 : i32, i32
  }
  func.func @transform_3(%arg0: i32) -> (i32, i32) {
    %c0_i32 = arith.constant 0 : i32
    %c0_i32_0 = arith.constant 0 : i32
    %c0_i32_1 = arith.constant 0 : i32
    return %c0_i32, %c0_i32_0 : i32, i32
  }
  func.func @transform_4(%arg0: i32) -> (i32, i32) {
    %c0_i32 = arith.constant 0 : i32
    %c0_i32_0 = arith.constant 0 : i32
    %c0_i32_1 = arith.constant 0 : i32
    return %c0_i32, %c0_i32_0 : i32, i32
  }
  func.func @transform_5(%arg0: i32) -> (i32, i32) {
    %c0_i32 = arith.constant 0 : i32
    %c0_i32_0 = arith.constant 0 : i32
    %c0_i32_1 = arith.constant 0 : i32
    return %c0_i32, %c0_i32_0 : i32, i32
  }
  func.func @transform_6(%arg0: i32) -> (i32, i32) {
    %c0_i32 = arith.constant 0 : i32
    %c0_i32_0 = arith.constant 0 : i32
    %c0_i32_1 = arith.constant 0 : i32
    return %c0_i32, %c0_i32_0 : i32, i32
  }
  func.func @transform_7(%arg0: i32) -> (i32, i32) {
    %c0_i32 = arith.constant 0 : i32
    %c0_i32_0 = arith.constant 0 : i32
    %c0_i32_1 = arith.constant 0 : i32
    return %c0_i32, %c0_i32_0 : i32, i32
  }
  func.func @transform_8(%arg0: i32) -> (i32, i32) {
    %c0_i32 = arith.constant 0 : i32
    %c0_i32_0 = arith.constant 0 : i32
    %c0_i32_1 = arith.constant 0 : i32
    return %c0_i32, %c0_i32_0 : i32, i32
  }
  func.func @transform_9(%arg0: i32) -> (i32, i32) {
    %c0_i32 = arith.constant 0 : i32
    %c0_i32_0 = arith.constant 0 : i32
    %c0_i32_1 = arith.constant 0 : i32
    return %c0_i32, %c0_i32_0 : i32, i32
  }
  func.func @transform_10(%arg0: i32) -> (i32, i32) {
    %c0_i32 = arith.constant 0 : i32
    %c0_i32_0 = arith.constant 0 : i32
    %c0_i32_1 = arith.constant 0 : i32
    return %c0_i32, %c0_i32_0 : i32, i32
  }
  func.func @transform_11(%arg0: i32) -> (i32, i32) {
    %c0_i32 = arith.constant 0 : i32
    %c0_i32_0 = arith.constant 0 : i32
    return %arg0, %c0_i32 : i32, i32
  }
}

</mosaic_0001>

<llo_original>
// kernel: tpu_custom_call.1
$region0: #{tpu_custom_call.1}
  #allocation0 [shape = 'u32[]', space=smem, size = 0x4, offset = 0x4, fixed_abs, tag = 'smem constant byte address 0x4 - core index']
  #allocation1 [shape = 'u32[144,128]{1,0:T(1,128)}', space=vmem, size = 0x12000, scoped, tag = 'internal scratch']
  %s0 = inlined_call_operand.hbm [shape: f32[256,512], index: 0, kind: input, shape index: {}]
  %s1 = inlined_call_operand.hbm [shape: bf16[512,512], index: 1, kind: input, shape index: {}]
  %s2 = inlined_call_operand.hbm [shape: bf16[512,512], index: 2, kind: input, shape index: {}]
  %s3 = inlined_call_operand.hbm [shape: bf16[512,512], index: 3, kind: input, shape index: {}]
  %s4 = inlined_call_operand.hbm [shape: bf16[512,512], index: 4, kind: input, shape index: {}]
  %s5 = inlined_call_operand.hbm [shape: bf16[512,512], index: 5, kind: input, shape index: {}]
  %s6 = inlined_call_operand.vmem [shape: f32[1,512], index: 6, kind: input, shape index: {}]
  %s7 = inlined_call_operand.vmem [shape: f32[1,512], index: 7, kind: input, shape index: {}]
  %s8 = inlined_call_operand.vmem [shape: f32[1,512], index: 8, kind: input, shape index: {}]
  %s9 = inlined_call_operand.vmem [shape: f32[1,512], index: 9, kind: input, shape index: {}]
  %s10 = inlined_call_operand.vmem [shape: f32[1,512], index: 10, kind: input, shape index: {}]
  %s11 = inlined_call_operand.hbm [shape: f32[256,512], index: 11, kind: output, shape index: {}]
  %s12 = sld [smem:[#allocation0]]
  $region101: #{tpu_custom_call.1} parent=0
    _
  %s14 = ssub.s32 1, %s12
  %s15 = scalar_select 0, %s14, %s12
  $region1: #{tpu_custom_call.1} parent=0
    #allocation2 [shape = 'u8[524288]{0}', space=vmem, size = 0x80000, scoped, tag = 'input window, operand 0']
    #allocation3 [shape = 's32[2]{0}', space=sflag, size = 0x8, scoped, tag = 'scoped memory for tpu_custom_call.1']
    #allocation4 [shape = 's32[2]{0}', space=sflag, size = 0x8, scoped, tag = 'scoped memory for tpu_custom_call.1']
    #allocation5 [shape = 'u8[524288]{0}', space=vmem, size = 0x80000, scoped, tag = 'input window, operand 1, single buffered']
    #allocation6 [shape = 's32[1]{0}', space=sflag, size = 0x4, scoped, tag = 'scoped memory for tpu_custom_call.1']
    #allocation7 [shape = 'u8[524288]{0}', space=vmem, size = 0x80000, scoped, tag = 'input window, operand 2, single buffered']
    #allocation8 [shape = 'u8[524288]{0}', space=vmem, size = 0x80000, scoped, tag = 'input window, operand 3, single buffered']
    #allocation9 [shape = 's32[1]{0}', space=sflag, size = 0x4, scoped, tag = 'scoped memory for tpu_custom_call.1']
    #allocation10 [shape = 'u8[524288]{0}', space=vmem, size = 0x80000, scoped, tag = 'input window, operand 4, single buffered']
    #allocation11 [shape = 'u8[524288]{0}', space=vmem, size = 0x80000, scoped, tag = 'input window, operand 5, single buffered']
    #allocation12 [shape = 's32[1]{0}', space=sflag, size = 0x4, scoped, tag = 'scoped memory for tpu_custom_call.1']
    #allocation13 [shape = 'u8[524288]{0}', space=vmem, size = 0x80000, scoped, tag = 'output window, operand 0']
    %16 = vsyncpa [#allocation3], 0
    %s17 = scalar_lea.sflag [#allocation3], 1
    %18 = vsyncpa %s17, 0
    %19 = vsyncpa [#allocation6], 0
    %20 = vsyncpa [#allocation9], 0
    %21 = vsyncpa [#allocation12], 0
    %22 = vsyncpa [#allocation4], 0
    %s23 = scalar_lea.sflag [#allocation4], 1
    %24 = vsyncpa %s23, 0
    loop: start=0, step=1, limit=4
    $region2: #{tpu_custom_call.1} parent=1 // loop_pre_header
      _
    $region3: #{tpu_custom_call.1} parent=1 // loop_header
      %s26 = sphi 0, %s30
      %p27 = scmp.ge.s32.totalorder %s26, 4
      %s36 = sphi 0, %s38
      %s39 = sphi 0, %s36
      %s40 = sphi 0, %s39
      %s56 = sphi 0, %s40
      %s60 = sphi 0, %s60
      %s62 = sphi 0, %s60
      %s63 = sphi 0, %s62
      %s77 = sphi 0, %s63
      %s81 = sphi 0, %s81
      %s83 = sphi 0, %s81
      %s84 = sphi 0, %s83
      %s98 = sphi 0, %s84
      %s102 = sphi 0, %s102
      %s104 = sphi 0, %s102
      %s105 = sphi 0, %s104
      %s119 = sphi 0, %s105
      %s123 = sphi 0, %s123
      %s125 = sphi 0, %s123
      %s126 = sphi 0, %s125
      %s140 = sphi 0, %s126
      %s144 = sphi 0, %s144
      %s146 = sphi 0, %s144
      %s147 = sphi 0, %s146
      %s161 = sphi 0, %s147
      %s165 = sphi 0, %s165
      %s167 = sphi 0, %s165
      %s168 = sphi 0, %s167
      %s182 = sphi 0, %s168
      %s186 = sphi 0, %s186
      %s188 = sphi 0, %s186
      %s189 = sphi 0, %s188
      %s203 = sphi 0, %s189
      %s207 = sphi 0, %s207
      %s209 = sphi 0, %s207
      %s210 = sphi 0, %s209
      %s224 = sphi 0, %s210
      %s228 = sphi 0, %s228
      %s230 = sphi 0, %s228
      %s231 = sphi 0, %s230
      %s245 = sphi 0, %s231
      %s249 = sphi 0, %s249
      %s251 = sphi 0, %s249
      %s252 = sphi 0, %s251
      %s266 = sphi 0, %s252
      %s272 = sphi 0, %s274
      %s275 = sphi 0, %s272
      %s276 = sphi 0, %s275
      %s292 = sphi 0, %s276
    $region4: #{tpu_custom_call.1} parent=1 // loop_header_branch
      %29 = sbr.rel (%p27) target = $region8
    $region5: #{tpu_custom_call.1} parent=1 // loop_body
      %s31 = ssub.s32 %s26, 1
      %s32 = ssub.s32 %s26, 2
      %s33 = sadd.s32 %s26, 1
      %s34 = ssub.s32 %s26, %s33
      %p35 = scmp.eq.s32.totalorder %s34, 0
      %s37 = sadd.s32 %s36, 1
      %s38 = scalar_select %p35, %s36, %s37
      %p41 = pneg %p35
      %p42 = scmp.eq.s32.totalorder %s26, 1
      %p43 = por %p41, %p42
      %p44 = scmp.ne.s32.totalorder %s36, %s39
      %p45 = scmp.eq.s32.totalorder %s26, 0
      %p46 = por %p44, %p45
      %p47 = scmp.ne.s32.totalorder %s36, %s39
      %p48 = scmp.eq.s32.totalorder %s31, 1
      %p49 = por %p47, %p48
      %p50 = scmp.ne.s32.totalorder %s39, %s40
      %p51 = scmp.eq.s32.totalorder %s31, 0
      %p52 = por %p50, %p51
      %p53 = scmp.ne.s32.totalorder %s39, %s40
      %p54 = scmp.eq.s32.totalorder %s32, 1
      %p55 = por %p53, %p54
      %p57 = scmp.ne.s32.totalorder %s40, %s56
      %p58 = scmp.eq.s32.totalorder %s32, 0
      %p59 = por %p57, %p58
      %s61 = sadd.s32 %s60, 1
      %p64 = scmp.eq.s32.totalorder %s26, 1
      %p65 = scmp.ne.s32.totalorder %s60, %s62
      %p66 = scmp.eq.s32.totalorder %s26, 0
      %p67 = por %p65, %p66
      %p68 = scmp.ne.s32.totalorder %s60, %s62
      %p69 = scmp.eq.s32.totalorder %s31, 1
      %p70 = por %p68, %p69
      %p71 = scmp.ne.s32.totalorder %s62, %s63
      %p72 = scmp.eq.s32.totalorder %s31, 0
      %p73 = por %p71, %p72
      %p74 = scmp.ne.s32.totalorder %s62, %s63
      %p75 = scmp.eq.s32.totalorder %s32, 1
      %p76 = por %p74, %p75
      %p78 = scmp.ne.s32.totalorder %s63, %s77
      %p79 = scmp.eq.s32.totalorder %s32, 0
      %p80 = por %p78, %p79
      %s82 = sadd.s32 %s81, 1
      %p85 = scmp.eq.s32.totalorder %s26, 1
      %p86 = scmp.ne.s32.totalorder %s81, %s83
      %p87 = scmp.eq.s32.totalorder %s26, 0
      %p88 = por %p86, %p87
      %p89 = scmp.ne.s32.totalorder %s81, %s83
      %p90 = scmp.eq.s32.totalorder %s31, 1
      %p91 = por %p89, %p90
      %p92 = scmp.ne.s32.totalorder %s83, %s84
      %p93 = scmp.eq.s32.totalorder %s31, 0
      %p94 = por %p92, %p93
      %p95 = scmp.ne.s32.totalorder %s83, %s84
      %p96 = scmp.eq.s32.totalorder %s32, 1
      %p97 = por %p95, %p96
      %p99 = scmp.ne.s32.totalorder %s84, %s98
      %p100 = scmp.eq.s32.totalorder %s32, 0
      %p101 = por %p99, %p100
      %s103 = sadd.s32 %s102, 1
      %p106 = scmp.eq.s32.totalorder %s26, 1
      %p107 = scmp.ne.s32.totalorder %s102, %s104
      %p108 = scmp.eq.s32.totalorder %s26, 0
      %p109 = por %p107, %p108
      %p110 = scmp.ne.s32.totalorder %s102, %s104
      %p111 = scmp.eq.s32.totalorder %s31, 1
      %p112 = por %p110, %p111
      %p113 = scmp.ne.s32.totalorder %s104, %s105
      %p114 = scmp.eq.s32.totalorder %s31, 0
      %p115 = por %p113, %p114
      %p116 = scmp.ne.s32.totalorder %s104, %s105
      %p117 = scmp.eq.s32.totalorder %s32, 1
      %p118 = por %p116, %p117
      %p120 = scmp.ne.s32.totalorder %s105, %s119
      %p121 = scmp.eq.s32.totalorder %s32, 0
      %p122 = por %p120, %p121
      %s124 = sadd.s32 %s123, 1
      %p127 = scmp.eq.s32.totalorder %s26, 1
      %p128 = scmp.ne.s32.totalorder %s123, %s125
      %p129 = scmp.eq.s32.totalorder %s26, 0
      %p130 = por %p128, %p129
      %p131 = scmp.ne.s32.totalorder %s123, %s125
      %p132 = scmp.eq.s32.totalorder %s31, 1
      %p133 = por %p131, %p132
      %p134 = scmp.ne.s32.totalorder %s125, %s126
      %p135 = scmp.eq.s32.totalorder %s31, 0
      %p136 = por %p134, %p135
      %p137 = scmp.ne.s32.totalorder %s125, %s126
      %p138 = scmp.eq.s32.totalorder %s32, 1
      %p139 = por %p137, %p138
      %p141 = scmp.ne.s32.totalorder %s126, %s140
      %p142 = scmp.eq.s32.totalorder %s32, 0
      %p143 = por %p141, %p142
      %s145 = sadd.s32 %s144, 1
      %p148 = scmp.eq.s32.totalorder %s26, 1
      %p149 = scmp.ne.s32.totalorder %s144, %s146
      %p150 = scmp.eq.s32.totalorder %s26, 0
      %p151 = por %p149, %p150
      %p152 = scmp.ne.s32.totalorder %s144, %s146
      %p153 = scmp.eq.s32.totalorder %s31, 1
      %p154 = por %p152, %p153
      %p155 = scmp.ne.s32.totalorder %s146, %s147
      %p156 = scmp.eq.s32.totalorder %s31, 0
      %p157 = por %p155, %p156
      %p158 = scmp.ne.s32.totalorder %s146, %s147
      %p159 = scmp.eq.s32.totalorder %s32, 1
      %p160 = por %p158, %p159
      %p162 = scmp.ne.s32.totalorder %s147, %s161
      %p163 = scmp.eq.s32.totalorder %s32, 0
      %p164 = por %p162, %p163
      %s166 = sadd.s32 %s165, 1
      %p169 = scmp.eq.s32.totalorder %s26, 1
      %p170 = scmp.ne.s32.totalorder %s165, %s167
      %p171 = scmp.eq.s32.totalorder %s26, 0
      %p172 = por %p170, %p171
      %p173 = scmp.ne.s32.totalorder %s165, %s167
      %p174 = scmp.eq.s32.totalorder %s31, 1
      %p175 = por %p173, %p174
      %p176 = scmp.ne.s32.totalorder %s167, %s168
      %p177 = scmp.eq.s32.totalorder %s31, 0
      %p178 = por %p176, %p177
      %p179 = scmp.ne.s32.totalorder %s167, %s168
      %p180 = scmp.eq.s32.totalorder %s32, 1
      %p181 = por %p179, %p180
      %p183 = scmp.ne.s32.totalorder %s168, %s182
      %p184 = scmp.eq.s32.totalorder %s32, 0
      %p185 = por %p183, %p184
      %s187 = sadd.s32 %s186, 1
      %p190 = scmp.eq.s32.totalorder %s26, 1
      %p191 = scmp.ne.s32.totalorder %s186, %s188
      %p192 = scmp.eq.s32.totalorder %s26, 0
      %p193 = por %p191, %p192
      %p194 = scmp.ne.s32.totalorder %s186, %s188
      %p195 = scmp.eq.s32.totalorder %s31, 1
      %p196 = por %p194, %p195
      %p197 = scmp.ne.s32.totalorder %s188, %s189
      %p198 = scmp.eq.s32.totalorder %s31, 0
      %p199 = por %p197, %p198
      %p200 = scmp.ne.s32.totalorder %s188, %s189
      %p201 = scmp.eq.s32.totalorder %s32, 1
      %p202 = por %p200, %p201
      %p204 = scmp.ne.s32.totalorder %s189, %s203
      %p205 = scmp.eq.s32.totalorder %s32, 0
      %p206 = por %p204, %p205
      %s208 = sadd.s32 %s207, 1
      %p211 = scmp.eq.s32.totalorder %s26, 1
      %p212 = scmp.ne.s32.totalorder %s207, %s209
      %p213 = scmp.eq.s32.totalorder %s26, 0
      %p214 = por %p212, %p213
      %p215 = scmp.ne.s32.totalorder %s207, %s209
      %p216 = scmp.eq.s32.totalorder %s31, 1
      %p217 = por %p215, %p216
      %p218 = scmp.ne.s32.totalorder %s209, %s210
      %p219 = scmp.eq.s32.totalorder %s31, 0
      %p220 = por %p218, %p219
      %p221 = scmp.ne.s32.totalorder %s209, %s210
      %p222 = scmp.eq.s32.totalorder %s32, 1
      %p223 = por %p221, %p222
      %p225 = scmp.ne.s32.totalorder %s210, %s224
      %p226 = scmp.eq.s32.totalorder %s32, 0
      %p227 = por %p225, %p226
      %s229 = sadd.s32 %s228, 1
      %p232 = scmp.eq.s32.totalorder %s26, 1
      %p233 = scmp.ne.s32.totalorder %s228, %s230
      %p234 = scmp.eq.s32.totalorder %s26, 0
      %p235 = por %p233, %p234
      %p236 = scmp.ne.s32.totalorder %s228, %s230
      %p237 = scmp.eq.s32.totalorder %s31, 1
      %p238 = por %p236, %p237
      %p239 = scmp.ne.s32.totalorder %s230, %s231
      %p240 = scmp.eq.s32.totalorder %s31, 0
      %p241 = por %p239, %p240
      %p242 = scmp.ne.s32.totalorder %s230, %s231
      %p243 = scmp.eq.s32.totalorder %s32, 1
      %p244 = por %p242, %p243
      %p246 = scmp.ne.s32.totalorder %s231, %s245
      %p247 = scmp.eq.s32.totalorder %s32, 0
      %p248 = por %p246, %p247
      %s250 = sadd.s32 %s249, 1
      %p253 = scmp.eq.s32.totalorder %s26, 1
      %p254 = scmp.ne.s32.totalorder %s249, %s251
      %p255 = scmp.eq.s32.totalorder %s26, 0
      %p256 = por %p254, %p255
      %p257 = scmp.ne.s32.totalorder %s249, %s251
      %p258 = scmp.eq.s32.totalorder %s31, 1
      %p259 = por %p257, %p258
      %p260 = scmp.ne.s32.totalorder %s251, %s252
      %p261 = scmp.eq.s32.totalorder %s31, 0
      %p262 = por %p260, %p261
      %p263 = scmp.ne.s32.totalorder %s251, %s252
      %p264 = scmp.eq.s32.totalorder %s32, 1
      %p265 = por %p263, %p264
      %p267 = scmp.ne.s32.totalorder %s252, %s266
      %p268 = scmp.eq.s32.totalorder %s32, 0
      %p269 = por %p267, %p268
      %s270 = ssub.s32 %s26, %s33
      %p271 = scmp.eq.s32.totalorder %s270, 0
      %s273 = sadd.s32 %s272, 1
      %s274 = scalar_select %p271, %s272, %s273
      %p277 = pneg %p271
      %p278 = scmp.eq.s32.totalorder %s26, 1
      %p279 = por %p277, %p278
      %p280 = scmp.ne.s32.totalorder %s272, %s275
      %p281 = scmp.eq.s32.totalorder %s26, 0
      %p282 = por %p280, %p281
      %p283 = scmp.ne.s32.totalorder %s272, %s275
      %p284 = scmp.eq.s32.totalorder %s31, 1
      %p285 = por %p283, %p284
      %p286 = scmp.ne.s32.totalorder %s275, %s276
      %p287 = scmp.eq.s32.totalorder %s31, 0
      %p288 = por %p286, %p287
      %p289 = scmp.ne.s32.totalorder %s275, %s276
      %p290 = scmp.eq.s32.totalorder %s32, 1
      %p291 = por %p289, %p290
      %p293 = scmp.ne.s32.totalorder %s276, %s292
      %p294 = scmp.eq.s32.totalorder %s32, 0
      %p295 = por %p293, %p294
      %p296 = scmp.le.s32.totalorder 1, %s26
      %p297 = scmp.lt.s32.totalorder %s26, 3
      %p298 = pnand %p296, %p297
      %p299 = pneg %p298
      // Predicated region
      $region9: #{tpu_custom_call.1} parent=5 // pred_check
        _
      $region10: #{tpu_custom_call.1} parent=5 // pred_check_branch
        %301 = sbr.rel (%p298) target = $region12
      $region11: #{tpu_custom_call.1} parent=5 // pred_region
        %s302 = ssub.s32 %s26, 1
        // Predicated region
        $region13: #{tpu_custom_call.1} parent=11 // pred_check
          %p303 = pneg %p73
        $region14: #{tpu_custom_call.1} parent=11 // pred_check_branch
          %305 = sbr.rel (%p303) target = $region16
        $region15: #{tpu_custom_call.1} parent=11 // pred_region
          %s307 = ssub.s32 16384, 16384
          %308 = vsyncadd [#allocation6], %s307
          %s309 = sshll.u32 [#allocation5], 4
          %s310 = int_to_ptr.vmem [resolvable:$true] %s309
          %315 = dma.hbm_to_vmem [thread:$0]  %s1, 16384, %s310, [#allocation6], 256, 256, 16
        $region16: #{tpu_custom_call.1} parent=11 // pred_fallthru
          _
        // Predicated region
        $region17: #{tpu_custom_call.1} parent=11 // pred_check
          %p316 = pneg %p94
        $region18: #{tpu_custom_call.1} parent=11 // pred_check_branch
          %318 = sbr.rel (%p316) target = $region20
        $region19: #{tpu_custom_call.1} parent=11 // pred_region
          %s320 = ssub.s32 16384, 16384
          %321 = vsyncadd [#allocation6], %s320
          %s322 = sshll.u32 [#allocation7], 4
          %s323 = int_to_ptr.vmem [resolvable:$true] %s322
          %328 = dma.hbm_to_vmem [thread:$0]  %s2, 16384, %s323, [#allocation6], 256, 256, 16
        $region20: #{tpu_custom_call.1} parent=11 // pred_fallthru
          _
        // Predicated region
        $region21: #{tpu_custom_call.1} parent=11 // pred_check
          %p329 = pneg %p115
        $region22: #{tpu_custom_call.1} parent=11 // pred_check_branch
          %331 = sbr.rel (%p329) target = $region24
        $region23: #{tpu_custom_call.1} parent=11 // pred_region
          %s333 = ssub.s32 16384, 16384
          %334 = vsyncadd [#allocation9], %s333
          %s335 = sshll.u32 [#allocation8], 4
          %s336 = int_to_ptr.vmem [resolvable:$true] %s335
          %341 = dma.hbm_to_vmem [thread:$0]  %s3, 16384, %s336, [#allocation9], 256, 256, 16
        $region24: #{tpu_custom_call.1} parent=11 // pred_fallthru
          _
        // Predicated region
        $region25: #{tpu_custom_call.1} parent=11 // pred_check
          %p342 = pneg %p136
        $region26: #{tpu_custom_call.1} parent=11 // pred_check_branch
          %344 = sbr.rel (%p342) target = $region28
        $region27: #{tpu_custom_call.1} parent=11 // pred_region
          %s346 = ssub.s32 16384, 16384
          %347 = vsyncadd [#allocation9], %s346
          %s348 = sshll.u32 [#allocation10], 4
          %s349 = int_to_ptr.vmem [resolvable:$true] %s348
          %354 = dma.hbm_to_vmem [thread:$0]  %s4, 16384, %s349, [#allocation9], 256, 256, 16
        $region28: #{tpu_custom_call.1} parent=11 // pred_fallthru
          _
        // Predicated region
        $region29: #{tpu_custom_call.1} parent=11 // pred_check
          %p355 = pneg %p157
        $region30: #{tpu_custom_call.1} parent=11 // pred_check_branch
          %357 = sbr.rel (%p355) target = $region32
        $region31: #{tpu_custom_call.1} parent=11 // pred_region
          %s359 = ssub.s32 16384, 16384
          %360 = vsyncadd [#allocation12], %s359
          %s361 = sshll.u32 [#allocation11], 4
          %s362 = int_to_ptr.vmem [resolvable:$true] %s361
          %367 = dma.hbm_to_vmem [thread:$0]  %s5, 16384, %s362, [#allocation12], 256, 256, 16
        $region32: #{tpu_custom_call.1} parent=11 // pred_fallthru
          _
        // Predicated region
        $region33: #{tpu_custom_call.1} parent=11 // pred_check
          %p368 = pneg %p178
        $region34: #{tpu_custom_call.1} parent=11 // pred_check_branch
          %370 = sbr.rel (%p368) target = $region36
        $region35: #{tpu_custom_call.1} parent=11 // pred_region
          _
        $region36: #{tpu_custom_call.1} parent=11 // pred_fallthru
          _
        // Predicated region
        $region37: #{tpu_custom_call.1} parent=11 // pred_check
          %p371 = pneg %p199
        $region38: #{tpu_custom_call.1} parent=11 // pred_check_branch
          %373 = sbr.rel (%p371) target = $region40
        $region39: #{tpu_custom_call.1} parent=11 // pred_region
          _
        $region40: #{tpu_custom_call.1} parent=11 // pred_fallthru
          _
        // Predicated region
        $region41: #{tpu_custom_call.1} parent=11 // pred_check
          %p374 = pneg %p220
        $region42: #{tpu_custom_call.1} parent=11 // pred_check_branch
          %376 = sbr.rel (%p374) target = $region44
        $region43: #{tpu_custom_call.1} parent=11 // pred_region
          _
        $region44: #{tpu_custom_call.1} parent=11 // pred_fallthru
          _
        // Predicated region
        $region45: #{tpu_custom_call.1} parent=11 // pred_check
          %p377 = pneg %p241
        $region46: #{tpu_custom_call.1} parent=11 // pred_check_branch
          %379 = sbr.rel (%p377) target = $region48
        $region47: #{tpu_custom_call.1} parent=11 // pred_region
          _
        $region48: #{tpu_custom_call.1} parent=11 // pred_fallthru
          _
        // Predicated region
        $region49: #{tpu_custom_call.1} parent=11 // pred_check
          %p380 = pneg %p262
        $region50: #{tpu_custom_call.1} parent=11 // pred_check_branch
          %382 = sbr.rel (%p380) target = $region52
        $region51: #{tpu_custom_call.1} parent=11 // pred_region
          _
        $region52: #{tpu_custom_call.1} parent=11 // pred_fallthru
          _
      $region12: #{tpu_custom_call.1} parent=5 // pred_fallthru
        _
      %p383 = scmp.lt.s32.totalorder %s26, 2
      // Predicated region
      $region53: #{tpu_custom_call.1} parent=5 // pred_check
        %p384 = pneg %p383
      $region54: #{tpu_custom_call.1} parent=5 // pred_check_branch
        %386 = sbr.rel (%p384) target = $region56
      $region55: #{tpu_custom_call.1} parent=5 // pred_region
        // Predicated region
        $region57: #{tpu_custom_call.1} parent=55 // pred_check
          %p387 = pneg %p46
        $region58: #{tpu_custom_call.1} parent=55 // pred_check_branch
          %389 = sbr.rel (%p387) target = $region60
        $region59: #{tpu_custom_call.1} parent=55 // pred_region
          %s390 = sand.u32 %s36, 1
          %s391 = scalar_lea.sflag [#allocation3], %s390
          %s392 = sand.u32 %s36, 1
          %s393 = smul.addr %s392, 512
          %s394 = scalar_lea.vmem [#allocation2], %s393
          %s395 = smul.u32 16, %s26
          %s397 = ssub.s32 8192, 8192
          %398 = vsyncadd %s391, %s397
          %s399 = smul.addr %s395, 4
          %s400 = smul.addr %s399, 128
          %s401 = scalar_lea.hbm %s0, %s400
          %s402 = sshll.u32 %s394, 4
          %s403 = int_to_ptr.vmem [resolvable:$true] %s402
          %408 = dma.hbm_to_vmem [thread:$0]  %s401, 8192, %s403, %s391, 512, 512, 32
        $region60: #{tpu_custom_call.1} parent=55 // pred_fallthru
          _
      $region56: #{tpu_custom_call.1} parent=5 // pred_fallthru
        _
      %p409 = scmp.le.s32.totalorder 1, %s26
      %p410 = scmp.lt.s32.totalorder %s26, 3
      %p411 = pnand %p409, %p410
      %p412 = pneg %p411
      // Predicated region
      $region61: #{tpu_custom_call.1} parent=5 // pred_check
        _
      $region62: #{tpu_custom_call.1} parent=5 // pred_check_branch
        %414 = sbr.rel (%p411) target = $region64
      $region63: #{tpu_custom_call.1} parent=5 // pred_region
        %s415 = ssub.s32 %s26, 1
        %s416 = sand.u32 %s39, 1
        %s417 = scalar_lea.sflag [#allocation3], %s416
        %s418 = sand.u32 %s39, 1
        %s419 = smul.addr %s418, 512
        %s420 = scalar_lea.vmem [#allocation2], %s419
        // Predicated region
        $region65: #{tpu_custom_call.1} parent=63 // pred_check
          %p421 = pneg %p52
        $region66: #{tpu_custom_call.1} parent=63 // pred_check_branch
          %423 = sbr.rel (%p421) target = $region68
        $region67: #{tpu_custom_call.1} parent=63 // pred_region
          %424 = dma.done %s417, 8192
        $region68: #{tpu_custom_call.1} parent=63 // pred_fallthru
          _
        // Predicated region
        $region69: #{tpu_custom_call.1} parent=63 // pred_check
          %p425 = pneg %p73
        $region70: #{tpu_custom_call.1} parent=63 // pred_check_branch
          %427 = sbr.rel (%p425) target = $region72
        $region71: #{tpu_custom_call.1} parent=63 // pred_region
          %428 = dma.done [#allocation6], 16384
        $region72: #{tpu_custom_call.1} parent=63 // pred_fallthru
          _
        // Predicated region
        $region73: #{tpu_custom_call.1} parent=63 // pred_check
          %p429 = pneg %p94
        $region74: #{tpu_custom_call.1} parent=63 // pred_check_branch
          %431 = sbr.rel (%p429) target = $region76
        $region75: #{tpu_custom_call.1} parent=63 // pred_region
          %432 = dma.done [#allocation6], 16384
        $region76: #{tpu_custom_call.1} parent=63 // pred_fallthru
          _
        // Predicated region
        $region77: #{tpu_custom_call.1} parent=63 // pred_check
          %p433 = pneg %p115
        $region78: #{tpu_custom_call.1} parent=63 // pred_check_branch
          %435 = sbr.rel (%p433) target = $region80
        $region79: #{tpu_custom_call.1} parent=63 // pred_region
          %436 = dma.done [#allocation9], 16384
        $region80: #{tpu_custom_call.1} parent=63 // pred_fallthru
          _
        // Predicated region
        $region81: #{tpu_custom_call.1} parent=63 // pred_check
          %p437 = pneg %p136
        $region82: #{tpu_custom_call.1} parent=63 // pred_check_branch
          %439 = sbr.rel (%p437) target = $region84
        $region83: #{tpu_custom_call.1} parent=63 // pred_region
          %440 = dma.done [#allocation9], 16384
        $region84: #{tpu_custom_call.1} parent=63 // pred_fallthru
          _
        // Predicated region
        $region85: #{tpu_custom_call.1} parent=63 // pred_check
          %p441 = pneg %p157
        $region86: #{tpu_custom_call.1} parent=63 // pred_check_branch
          %443 = sbr.rel (%p441) target = $region88
        $region87: #{tpu_custom_call.1} parent=63 // pred_region
          %444 = dma.done [#allocation12], 16384
        $region88: #{tpu_custom_call.1} parent=63 // pred_fallthru
          _
        %s445 = sand.u32 %s39, 1
        %s446 = scalar_lea.sflag [#allocation3], %s445
        %s447 = sand.u32 %s39, 1
        %s448 = smul.addr %s447, 512
        %s449 = scalar_lea.vmem [#allocation2], %s448
        %p450 = pneg %p52
        %p451 = pneg %p49
        %p452 = pneg %p73
        %p453 = pneg %p70
        %p454 = pneg %p94
        %p455 = pneg %p91
        %p456 = pneg %p115
        %p457 = pneg %p112
        %p458 = pneg %p136
        %p459 = pneg %p133
        %p460 = pneg %p157
        %p461 = pneg %p154
        %p462 = pneg %p178
        %p463 = pneg %p175
        %p464 = pneg %p199
        %p465 = pneg %p196
        %p466 = pneg %p220
        %p467 = pneg %p217
        %p468 = pneg %p241
        %p469 = pneg %p238
        %p470 = pneg %p262
        %p471 = pneg %p259
        %p472 = pneg %p288
        %p473 = pneg %p285
        %s474 = sand.u32 %s275, 1
        %s475 = scalar_lea.sflag [#allocation4], %s474
        %s476 = sand.u32 %s275, 1
        %s477 = smul.addr %s476, 512
        %s478 = scalar_lea.vmem [#allocation13], %s477
        %s479 = smul.u32 16, %s31
        %s480 = smul.u32 16, %s31
        %v481 = vld [vmem:[%s420] sm:$0xff]
        %v482 = vld [vmem:[%s420 + $0x8] sm:$0xff]
        %v483 = vld [vmem:[%s420 + $0x10] sm:$0xff]
        %v484 = vld [vmem:[%s420 + $0x18] sm:$0xff]
        %v485 = vld [vmem:[%s420 + $0x20] sm:$0xff]
        %v486 = vld [vmem:[%s420 + $0x28] sm:$0xff]
        %v487 = vld [vmem:[%s420 + $0x30] sm:$0xff]
        %v488 = vld [vmem:[%s420 + $0x38] sm:$0xff]
        %v489 = vld [vmem:[%s420 + $0x40] sm:$0xff]
        %v490 = vld [vmem:[%s420 + $0x48] sm:$0xff]
        %v491 = vld [vmem:[%s420 + $0x50] sm:$0xff]
        %v492 = vld [vmem:[%s420 + $0x58] sm:$0xff]
        %v493 = vld [vmem:[%s420 + $0x60] sm:$0xff]
        %v494 = vld [vmem:[%s420 + $0x68] sm:$0xff]
        %v495 = vld [vmem:[%s420 + $0x70] sm:$0xff]
        %v496 = vld [vmem:[%s420 + $0x78] sm:$0xff]
        %v497 = vld [vmem:[%s420 + $0x80] sm:$0xff]
        %v498 = vld [vmem:[%s420 + $0x88] sm:$0xff]
        %v499 = vld [vmem:[%s420 + $0x90] sm:$0xff]
        %v500 = vld [vmem:[%s420 + $0x98] sm:$0xff]
        %v501 = vld [vmem:[%s420 + $0xa0] sm:$0xff]
        %v502 = vld [vmem:[%s420 + $0xa8] sm:$0xff]
        %v503 = vld [vmem:[%s420 + $0xb0] sm:$0xff]
        %v504 = vld [vmem:[%s420 + $0xb8] sm:$0xff]
        %v505 = vld [vmem:[%s420 + $0xc0] sm:$0xff]
        %v506 = vld [vmem:[%s420 + $0xc8] sm:$0xff]
        %v507 = vld [vmem:[%s420 + $0xd0] sm:$0xff]
        %v508 = vld [vmem:[%s420 + $0xd8] sm:$0xff]
        %v509 = vld [vmem:[%s420 + $0xe0] sm:$0xff]
        %v510 = vld [vmem:[%s420 + $0xe8] sm:$0xff]
        %v511 = vld [vmem:[%s420 + $0xf0] sm:$0xff]
        %v512 = vld [vmem:[%s420 + $0xf8] sm:$0xff]
        %v513 = vld [vmem:[%s420 + $0x100] sm:$0xff]
        %v514 = vld [vmem:[%s420 + $0x108] sm:$0xff]
        %v515 = vld [vmem:[%s420 + $0x110] sm:$0xff]
        %v516 = vld [vmem:[%s420 + $0x118] sm:$0xff]
        %v517 = vld [vmem:[%s420 + $0x120] sm:$0xff]
        %v518 = vld [vmem:[%s420 + $0x128] sm:$0xff]
        %v519 = vld [vmem:[%s420 + $0x130] sm:$0xff]
        %v520 = vld [vmem:[%s420 + $0x138] sm:$0xff]
        %v521 = vld [vmem:[%s420 + $0x140] sm:$0xff]
        %v522 = vld [vmem:[%s420 + $0x148] sm:$0xff]
        %v523 = vld [vmem:[%s420 + $0x150] sm:$0xff]
        %v524 = vld [vmem:[%s420 + $0x158] sm:$0xff]
        %v525 = vld [vmem:[%s420 + $0x160] sm:$0xff]
        %v526 = vld [vmem:[%s420 + $0x168] sm:$0xff]
        %v527 = vld [vmem:[%s420 + $0x170] sm:$0xff]
        %v528 = vld [vmem:[%s420 + $0x178] sm:$0xff]
        %v529 = vld [vmem:[%s420 + $0x180] sm:$0xff]
        %v530 = vld [vmem:[%s420 + $0x188] sm:$0xff]
        %v531 = vld [vmem:[%s420 + $0x190] sm:$0xff]
        %v532 = vld [vmem:[%s420 + $0x198] sm:$0xff]
        %v533 = vld [vmem:[%s420 + $0x1a0] sm:$0xff]
        %v534 = vld [vmem:[%s420 + $0x1a8] sm:$0xff]
        %v535 = vld [vmem:[%s420 + $0x1b0] sm:$0xff]
        %v536 = vld [vmem:[%s420 + $0x1b8] sm:$0xff]
        %v537 = vld [vmem:[%s420 + $0x1c0] sm:$0xff]
        %v538 = vld [vmem:[%s420 + $0x1c8] sm:$0xff]
        %v539 = vld [vmem:[%s420 + $0x1d0] sm:$0xff]
        %v540 = vld [vmem:[%s420 + $0x1d8] sm:$0xff]
        %v541 = vld [vmem:[%s420 + $0x1e0] sm:$0xff]
        %v542 = vld [vmem:[%s420 + $0x1e8] sm:$0xff]
        %v543 = vld [vmem:[%s420 + $0x1f0] sm:$0xff]
        %v544 = vld [vmem:[%s420 + $0x1f8] sm:$0xff]
        %v545 = vpack.c.bf16 %v485, %v481
        %v546 = vpack.c.bf16 %v486, %v482
        %v547 = vpack.c.bf16 %v487, %v483
        %v548 = vpack.c.bf16 %v488, %v484
        %v549 = vpack.c.bf16 %v493, %v489
        %v550 = vpack.c.bf16 %v494, %v490
        %v551 = vpack.c.bf16 %v495, %v491
        %v552 = vpack.c.bf16 %v496, %v492
        %v553 = vpack.c.bf16 %v501, %v497
        %v554 = vpack.c.bf16 %v502, %v498
        %v555 = vpack.c.bf16 %v503, %v499
        %v556 = vpack.c.bf16 %v504, %v500
        %v557 = vpack.c.bf16 %v509, %v505
        %v558 = vpack.c.bf16 %v510, %v506
        %v559 = vpack.c.bf16 %v511, %v507
        %v560 = vpack.c.bf16 %v512, %v508
        %v561 = vpack.c.bf16 %v517, %v513
        %v562 = vpack.c.bf16 %v518, %v514
        %v563 = vpack.c.bf16 %v519, %v515
        %v564 = vpack.c.bf16 %v520, %v516
        %v565 = vpack.c.bf16 %v525, %v521
        %v566 = vpack.c.bf16 %v526, %v522
        %v567 = vpack.c.bf16 %v527, %v523
        %v568 = vpack.c.bf16 %v528, %v524
        %v569 = vpack.c.bf16 %v533, %v529
        %v570 = vpack.c.bf16 %v534, %v530
        %v571 = vpack.c.bf16 %v535, %v531
        %v572 = vpack.c.bf16 %v536, %v532
        %v573 = vpack.c.bf16 %v541, %v537
        %v574 = vpack.c.bf16 %v542, %v538
        %v575 = vpack.c.bf16 %v543, %v539
        %v576 = vpack.c.bf16 %v544, %v540
        %v577 = vld [vmem:[#allocation5] sm:$0xff]
        %v578 = vld [vmem:[#allocation5 + $0x8] sm:$0xff]
        %v579 = vld [vmem:[#allocation5 + $0x10] sm:$0xff]
        %v580 = vld [vmem:[#allocation5 + $0x18] sm:$0xff]
        %v581 = vld [vmem:[#allocation5 + $0x20] sm:$0xff]
        %v582 = vld [vmem:[#allocation5 + $0x28] sm:$0xff]
        %v583 = vld [vmem:[#allocation5 + $0x30] sm:$0xff]
        %v584 = vld [vmem:[#allocation5 + $0x38] sm:$0xff]
        %v585 = vld [vmem:[#allocation5 + $0x40] sm:$0xff]
        %v586 = vld [vmem:[#allocation5 + $0x48] sm:$0xff]
        %v587 = vld [vmem:[#allocation5 + $0x50] sm:$0xff]
        %v588 = vld [vmem:[#allocation5 + $0x58] sm:$0xff]
        %v589 = vld [vmem:[#allocation5 + $0x60] sm:$0xff]
        %v590 = vld [vmem:[#allocation5 + $0x68] sm:$0xff]
        %v591 = vld [vmem:[#allocation5 + $0x70] sm:$0xff]
        %v592 = vld [vmem:[#allocation5 + $0x78] sm:$0xff]
        %v593 = vld [vmem:[#allocation5 + $0x80] sm:$0xff]
        %v594 = vld [vmem:[#allocation5 + $0x88] sm:$0xff]
        %v595 = vld [vmem:[#allocation5 + $0x90] sm:$0xff]
        %v596 = vld [vmem:[#allocation5 + $0x98] sm:$0xff]
        %v597 = vld [vmem:[#allocation5 + $0xa0] sm:$0xff]
        %v598 = vld [vmem:[#allocation5 + $0xa8] sm:$0xff]
        %v599 = vld [vmem:[#allocation5 + $0xb0] sm:$0xff]
        %v600 = vld [vmem:[#allocation5 + $0xb8] sm:$0xff]
        %v601 = vld [vmem:[#allocation5 + $0xc0] sm:$0xff]
        %v602 = vld [vmem:[#allocation5 + $0xc8] sm:$0xff]
        %v603 = vld [vmem:[#allocation5 + $0xd0] sm:$0xff]
        %v604 = vld [vmem:[#allocation5 + $0xd8] sm:$0xff]
        %v605 = vld [vmem:[#allocation5 + $0xe0] sm:$0xff]
        %v606 = vld [vmem:[#allocation5 + $0xe8] sm:$0xff]
        %v607 = vld [vmem:[#allocation5 + $0xf0] sm:$0xff]
        %v608 = vld [vmem:[#allocation5 + $0xf8] sm:$0xff]
        %v609 = vld [vmem:[#allocation5 + $0x100] sm:$0xff]
        %v610 = vld [vmem:[#allocation5 + $0x108] sm:$0xff]
        %v611 = vld [vmem:[#allocation5 + $0x110] sm:$0xff]
        %v612 = vld [vmem:[#allocation5 + $0x118] sm:$0xff]
        %v613 = vld [vmem:[#allocation5 + $0x120] sm:$0xff]
        %v614 = vld [vmem:[#allocation5 + $0x128] sm:$0xff]
        %v615 = vld [vmem:[#allocation5 + $0x130] sm:$0xff]
        %v616 = vld [vmem:[#allocation5 + $0x138] sm:$0xff]
        %v617 = vld [vmem:[#allocation5 + $0x140] sm:$0xff]
        %v618 = vld [vmem:[#allocation5 + $0x148] sm:$0xff]
        %v619 = vld [vmem:[#allocation5 + $0x150] sm:$0xff]
        %v620 = vld [vmem:[#allocation5 + $0x158] sm:$0xff]
        %v621 = vld [vmem:[#allocation5 + $0x160] sm:$0xff]
        %v622 = vld [vmem:[#allocation5 + $0x168] sm:$0xff]
        %v623 = vld [vmem:[#allocation5 + $0x170] sm:$0xff]
        %v624 = vld [vmem:[#allocation5 + $0x178] sm:$0xff]
        %v625 = vld [vmem:[#allocation5 + $0x180] sm:$0xff]
        %v626 = vld [vmem:[#allocation5 + $0x188] sm:$0xff]
        %v627 = vld [vmem:[#allocation5 + $0x190] sm:$0xff]
        %v628 = vld [vmem:[#allocation5 + $0x198] sm:$0xff]
        %v629 = vld [vmem:[#allocation5 + $0x1a0] sm:$0xff]
        %v630 = vld [vmem:[#allocation5 + $0x1a8] sm:$0xff]
        %v631 = vld [vmem:[#allocation5 + $0x1b0] sm:$0xff]
        %v632 = vld [vmem:[#allocation5 + $0x1b8] sm:$0xff]
        %v633 = vld [vmem:[#allocation5 + $0x1c0] sm:$0xff]
        %v634 = vld [vmem:[#allocation5 + $0x1c8] sm:$0xff]
        %v635 = vld [vmem:[#allocation5 + $0x1d0] sm:$0xff]
        %v636 = vld [vmem:[#allocation5 + $0x1d8] sm:$0xff]
        %v637 = vld [vmem:[#allocation5 + $0x1e0] sm:$0xff]
        %v638 = vld [vmem:[#allocation5 + $0x1e8] sm:$0xff]
        %v639 = vld [vmem:[#allocation5 + $0x1f0] sm:$0xff]
        %v640 = vld [vmem:[#allocation5 + $0x1f8] sm:$0xff]
        %v641 = vld [vmem:[#allocation5 + $0x200] sm:$0xff]
        %v642 = vld [vmem:[#allocation5 + $0x208] sm:$0xff]
        %v643 = vld [vmem:[#allocation5 + $0x210] sm:$0xff]
        %v644 = vld [vmem:[#allocation5 + $0x218] sm:$0xff]
        %v645 = vld [vmem:[#allocation5 + $0x220] sm:$0xff]
        %v646 = vld [vmem:[#allocation5 + $0x228] sm:$0xff]
        %v647 = vld [vmem:[#allocation5 + $0x230] sm:$0xff]
        %v648 = vld [vmem:[#allocation5 + $0x238] sm:$0xff]
        %v649 = vld [vmem:[#allocation5 + $0x240] sm:$0xff]
        %v650 = vld [vmem:[#allocation5 + $0x248] sm:$0xff]
        %v651 = vld [vmem:[#allocation5 + $0x250] sm:$0xff]
        %v652 = vld [vmem:[#allocation5 + $0x258] sm:$0xff]
        %v653 = vld [vmem:[#allocation5 + $0x260] sm:$0xff]
        %v654 = vld [vmem:[#allocation5 + $0x268] sm:$0xff]
        %v655 = vld [vmem:[#allocation5 + $0x270] sm:$0xff]
        %v656 = vld [vmem:[#allocation5 + $0x278] sm:$0xff]
        %v657 = vld [vmem:[#allocation5 + $0x280] sm:$0xff]
        %v658 = vld [vmem:[#allocation5 + $0x288] sm:$0xff]
        %v659 = vld [vmem:[#allocation5 + $0x290] sm:$0xff]
        %v660 = vld [vmem:[#allocation5 + $0x298] sm:$0xff]
        %v661 = vld [vmem:[#allocation5 + $0x2a0] sm:$0xff]
        %v662 = vld [vmem:[#allocation5 + $0x2a8] sm:$0xff]
        %v663 = vld [vmem:[#allocation5 + $0x2b0] sm:$0xff]
        %v664 = vld [vmem:[#allocation5 + $0x2b8] sm:$0xff]
        %v665 = vld [vmem:[#allocation5 + $0x2c0] sm:$0xff]
        %v666 = vld [vmem:[#allocation5 + $0x2c8] sm:$0xff]
        %v667 = vld [vmem:[#allocation5 + $0x2d0] sm:$0xff]
        %v668 = vld [vmem:[#allocation5 + $0x2d8] sm:$0xff]
        %v669 = vld [vmem:[#allocation5 + $0x2e0] sm:$0xff]
        %v670 = vld [vmem:[#allocation5 + $0x2e8] sm:$0xff]
        %v671 = vld [vmem:[#allocation5 + $0x2f0] sm:$0xff]
        %v672 = vld [vmem:[#allocation5 + $0x2f8] sm:$0xff]
        %v673 = vld [vmem:[#allocation5 + $0x300] sm:$0xff]
        %v674 = vld [vmem:[#allocation5 + $0x308] sm:$0xff]
        %v675 = vld [vmem:[#allocation5 + $0x310] sm:$0xff]
        %v676 = vld [vmem:[#allocation5 + $0x318] sm:$0xff]
        %v677 = vld [vmem:[#allocation5 + $0x320] sm:$0xff]
        %v678 = vld [vmem:[#allocation5 + $0x328] sm:$0xff]
        %v679 = vld [vmem:[#allocation5 + $0x330] sm:$0xff]
        %v680 = vld [vmem:[#allocation5 + $0x338] sm:$0xff]
        %v681 = vld [vmem:[#allocation5 + $0x340] sm:$0xff]
        %v682 = vld [vmem:[#allocation5 + $0x348] sm:$0xff]
        %v683 = vld [vmem:[#allocation5 + $0x350] sm:$0xff]
        %v684 = vld [vmem:[#allocation5 + $0x358] sm:$0xff]
        %v685 = vld [vmem:[#allocation5 + $0x360] sm:$0xff]
        %v686 = vld [vmem:[#allocation5 + $0x368] sm:$0xff]
        %v687 = vld [vmem:[#allocation5 + $0x370] sm:$0xff]
        %v688 = vld [vmem:[#allocation5 + $0x378] sm:$0xff]
        %v689 = vld [vmem:[#allocation5 + $0x380] sm:$0xff]
        %v690 = vld [vmem:[#allocation5 + $0x388] sm:$0xff]
        %v691 = vld [vmem:[#allocation5 + $0x390] sm:$0xff]
        %v692 = vld [vmem:[#allocation5 + $0x398] sm:$0xff]
        %v693 = vld [vmem:[#allocation5 + $0x3a0] sm:$0xff]
        %v694 = vld [vmem:[#allocation5 + $0x3a8] sm:$0xff]
        %v695 = vld [vmem:[#allocation5 + $0x3b0] sm:$0xff]
        %v696 = vld [vmem:[#allocation5 + $0x3b8] sm:$0xff]
        %v697 = vld [vmem:[#allocation5 + $0x3c0] sm:$0xff]
        %v698 = vld [vmem:[#allocation5 + $0x3c8] sm:$0xff]
        %v699 = vld [vmem:[#allocation5 + $0x3d0] sm:$0xff]
        %v700 = vld [vmem:[#allocation5 + $0x3d8] sm:$0xff]
        %v701 = vld [vmem:[#allocation5 + $0x3e0] sm:$0xff]
        %v702 = vld [vmem:[#allocation5 + $0x3e8] sm:$0xff]
        %v703 = vld [vmem:[#allocation5 + $0x3f0] sm:$0xff]
        %v704 = vld [vmem:[#allocation5 + $0x3f8] sm:$0xff]
        %v705 = vld [vmem:[%s6] sm:$0xf]
        %v707 = vlaneseq
        %v708 = vshrl.u32 %v707, 7
        %v709 = vsub.s32 0, %v708
        %v710 = vrot.slane %v705, %v709
        %v711 = vlaneseq
        %v712 = vshrl.u32 %v711, 7
        %v713 = vsub.s32 1, %v712
        %v714 = vrot.slane %v705, %v713
        %v715 = vlaneseq
        %v716 = vshrl.u32 %v715, 7
        %v717 = vsub.s32 2, %v716
        %v718 = vrot.slane %v705, %v717
        %v719 = vlaneseq
        %v720 = vshrl.u32 %v719, 7
        %v721 = vsub.s32 3, %v720
        %v722 = vrot.slane %v705, %v721
        %v855 = vunpack.c.l.b16 %v577
        %v856 = vunpack.c.h.b16 %v577
        %v857 = vunpack.c.l.b16 %v578
        %v858 = vunpack.c.h.b16 %v578
        %v859 = vunpack.c.l.b16 %v579
        %v860 = vunpack.c.h.b16 %v579
        %v861 = vunpack.c.l.b16 %v580
        %v862 = vunpack.c.h.b16 %v580
        %v863 = vunpack.c.l.b16 %v581
        %v864 = vunpack.c.h.b16 %v581
        %v865 = vunpack.c.l.b16 %v582
        %v866 = vunpack.c.h.b16 %v582
        %v867 = vunpack.c.l.b16 %v583
        %v868 = vunpack.c.h.b16 %v583
        %v869 = vunpack.c.l.b16 %v584
        %v870 = vunpack.c.h.b16 %v584
        %v871 = vunpack.c.l.b16 %v585
        %v872 = vunpack.c.h.b16 %v585
        %v873 = vunpack.c.l.b16 %v586
        %v874 = vunpack.c.h.b16 %v586
        %v875 = vunpack.c.l.b16 %v587
        %v876 = vunpack.c.h.b16 %v587
        %v877 = vunpack.c.l.b16 %v588
        %v878 = vunpack.c.h.b16 %v588
        %v879 = vunpack.c.l.b16 %v589
        %v880 = vunpack.c.h.b16 %v589
        %v881 = vunpack.c.l.b16 %v590
        %v882 = vunpack.c.h.b16 %v590
        %v883 = vunpack.c.l.b16 %v591
        %v884 = vunpack.c.h.b16 %v591
        %v885 = vunpack.c.l.b16 %v592
        %v886 = vunpack.c.h.b16 %v592
        %v887 = vunpack.c.l.b16 %v593
        %v888 = vunpack.c.h.b16 %v593
        %v889 = vunpack.c.l.b16 %v594
        %v890 = vunpack.c.h.b16 %v594
        %v891 = vunpack.c.l.b16 %v595
        %v892 = vunpack.c.h.b16 %v595
        %v893 = vunpack.c.l.b16 %v596
        %v894 = vunpack.c.h.b16 %v596
        %v895 = vunpack.c.l.b16 %v597
        %v896 = vunpack.c.h.b16 %v597
        %v897 = vunpack.c.l.b16 %v598
        %v898 = vunpack.c.h.b16 %v598
        %v899 = vunpack.c.l.b16 %v599
        %v900 = vunpack.c.h.b16 %v599
        %v901 = vunpack.c.l.b16 %v600
        %v902 = vunpack.c.h.b16 %v600
        %v903 = vunpack.c.l.b16 %v601
        %v904 = vunpack.c.h.b16 %v601
        %v905 = vunpack.c.l.b16 %v602
        %v906 = vunpack.c.h.b16 %v602
        %v907 = vunpack.c.l.b16 %v603
        %v908 = vunpack.c.h.b16 %v603
        %v909 = vunpack.c.l.b16 %v604
        %v910 = vunpack.c.h.b16 %v604
        %v911 = vunpack.c.l.b16 %v605
        %v912 = vunpack.c.h.b16 %v605
        %v913 = vunpack.c.l.b16 %v606
        %v914 = vunpack.c.h.b16 %v606
        %v915 = vunpack.c.l.b16 %v607
        %v916 = vunpack.c.h.b16 %v607
        %v917 = vunpack.c.l.b16 %v608
        %v918 = vunpack.c.h.b16 %v608
        %v919 = vunpack.c.l.b16 %v609
        %v920 = vunpack.c.h.b16 %v609
        %v921 = vunpack.c.l.b16 %v610
        %v922 = vunpack.c.h.b16 %v610
        %v923 = vunpack.c.l.b16 %v611
        %v924 = vunpack.c.h.b16 %v611
        %v925 = vunpack.c.l.b16 %v612
        %v926 = vunpack.c.h.b16 %v612
        %v927 = vunpack.c.l.b16 %v613
        %v928 = vunpack.c.h.b16 %v613
        %v929 = vunpack.c.l.b16 %v614
        %v930 = vunpack.c.h.b16 %v614
        %v931 = vunpack.c.l.b16 %v615
        %v932 = vunpack.c.h.b16 %v615
        %v933 = vunpack.c.l.b16 %v616
        %v934 = vunpack.c.h.b16 %v616
        %v935 = vunpack.c.l.b16 %v617
        %v936 = vunpack.c.h.b16 %v617
        %v937 = vunpack.c.l.b16 %v618
        %v938 = vunpack.c.h.b16 %v618
        %v939 = vunpack.c.l.b16 %v619
        %v940 = vunpack.c.h.b16 %v619
        %v941 = vunpack.c.l.b16 %v620
        %v942 = vunpack.c.h.b16 %v620
        %v943 = vunpack.c.l.b16 %v621
        %v944 = vunpack.c.h.b16 %v621
        %v945 = vunpack.c.l.b16 %v622
        %v946 = vunpack.c.h.b16 %v622
        %v947 = vunpack.c.l.b16 %v623
        %v948 = vunpack.c.h.b16 %v623
        %v949 = vunpack.c.l.b16 %v624
        %v950 = vunpack.c.h.b16 %v624
        %v951 = vunpack.c.l.b16 %v625
        %v952 = vunpack.c.h.b16 %v625
        %v953 = vunpack.c.l.b16 %v626
        %v954 = vunpack.c.h.b16 %v626
        %v955 = vunpack.c.l.b16 %v627
        %v956 = vunpack.c.h.b16 %v627
        %v957 = vunpack.c.l.b16 %v628
        %v958 = vunpack.c.h.b16 %v628
        %v959 = vunpack.c.l.b16 %v629
        %v960 = vunpack.c.h.b16 %v629
        %v961 = vunpack.c.l.b16 %v630
        %v962 = vunpack.c.h.b16 %v630
        %v963 = vunpack.c.l.b16 %v631
        %v964 = vunpack.c.h.b16 %v631
        %v965 = vunpack.c.l.b16 %v632
        %v966 = vunpack.c.h.b16 %v632
        %v967 = vunpack.c.l.b16 %v633
        %v968 = vunpack.c.h.b16 %v633
        %v969 = vunpack.c.l.b16 %v634
        %v970 = vunpack.c.h.b16 %v634
        %v971 = vunpack.c.l.b16 %v635
        %v972 = vunpack.c.h.b16 %v635
        %v973 = vunpack.c.l.b16 %v636
        %v974 = vunpack.c.h.b16 %v636
        %v975 = vunpack.c.l.b16 %v637
        %v976 = vunpack.c.h.b16 %v637
        %v977 = vunpack.c.l.b16 %v638
        %v978 = vunpack.c.h.b16 %v638
        %v979 = vunpack.c.l.b16 %v639
        %v980 = vunpack.c.h.b16 %v639
        %v981 = vunpack.c.l.b16 %v640
        %v982 = vunpack.c.h.b16 %v640
        %v983 = vunpack.c.l.b16 %v641
        %v984 = vunpack.c.h.b16 %v641
        %v985 = vunpack.c.l.b16 %v642
        %v986 = vunpack.c.h.b16 %v642
        %v987 = vunpack.c.l.b16 %v643
        %v988 = vunpack.c.h.b16 %v643
        %v989 = vunpack.c.l.b16 %v644
        %v990 = vunpack.c.h.b16 %v644
        %v991 = vunpack.c.l.b16 %v645
        %v992 = vunpack.c.h.b16 %v645
        %v993 = vunpack.c.l.b16 %v646
        %v994 = vunpack.c.h.b16 %v646
        %v995 = vunpack.c.l.b16 %v647
        %v996 = vunpack.c.h.b16 %v647
        %v997 = vunpack.c.l.b16 %v648
        %v998 = vunpack.c.h.b16 %v648
        %v999 = vunpack.c.l.b16 %v649
        %v1000 = vunpack.c.h.b16 %v649
        %v1001 = vunpack.c.l.b16 %v650
        %v1002 = vunpack.c.h.b16 %v650
        %v1003 = vunpack.c.l.b16 %v651
        %v1004 = vunpack.c.h.b16 %v651
        %v1005 = vunpack.c.l.b16 %v652
        %v1006 = vunpack.c.h.b16 %v652
        %v1007 = vunpack.c.l.b16 %v653
        %v1008 = vunpack.c.h.b16 %v653
        %v1009 = vunpack.c.l.b16 %v654
        %v1010 = vunpack.c.h.b16 %v654
        %v1011 = vunpack.c.l.b16 %v655
        %v1012 = vunpack.c.h.b16 %v655
        %v1013 = vunpack.c.l.b16 %v656
        %v1014 = vunpack.c.h.b16 %v656
        %v1015 = vunpack.c.l.b16 %v657
        %v1016 = vunpack.c.h.b16 %v657
        %v1017 = vunpack.c.l.b16 %v658
        %v1018 = vunpack.c.h.b16 %v658
        %v1019 = vunpack.c.l.b16 %v659
        %v1020 = vunpack.c.h.b16 %v659
        %v1021 = vunpack.c.l.b16 %v660
        %v1022 = vunpack.c.h.b16 %v660
        %v1023 = vunpack.c.l.b16 %v661
        %v1024 = vunpack.c.h.b16 %v661
        %v1025 = vunpack.c.l.b16 %v662
        %v1026 = vunpack.c.h.b16 %v662
        %v1027 = vunpack.c.l.b16 %v663
        %v1028 = vunpack.c.h.b16 %v663
        %v1029 = vunpack.c.l.b16 %v664
        %v1030 = vunpack.c.h.b16 %v664
        %v1031 = vunpack.c.l.b16 %v665
        %v1032 = vunpack.c.h.b16 %v665
        %v1033 = vunpack.c.l.b16 %v666
        %v1034 = vunpack.c.h.b16 %v666
        %v1035 = vunpack.c.l.b16 %v667
        %v1036 = vunpack.c.h.b16 %v667
        %v1037 = vunpack.c.l.b16 %v668
        %v1038 = vunpack.c.h.b16 %v668
        %v1039 = vunpack.c.l.b16 %v669
        %v1040 = vunpack.c.h.b16 %v669
        %v1041 = vunpack.c.l.b16 %v670
        %v1042 = vunpack.c.h.b16 %v670
        %v1043 = vunpack.c.l.b16 %v671
        %v1044 = vunpack.c.h.b16 %v671
        %v1045 = vunpack.c.l.b16 %v672
        %v1046 = vunpack.c.h.b16 %v672
        %v1047 = vunpack.c.l.b16 %v673
        %v1048 = vunpack.c.h.b16 %v673
        %v1049 = vunpack.c.l.b16 %v674
        %v1050 = vunpack.c.h.b16 %v674
        %v1051 = vunpack.c.l.b16 %v675
        %v1052 = vunpack.c.h.b16 %v675
        %v1053 = vunpack.c.l.b16 %v676
        %v1054 = vunpack.c.h.b16 %v676
        %v1055 = vunpack.c.l.b16 %v677
        %v1056 = vunpack.c.h.b16 %v677
        %v1057 = vunpack.c.l.b16 %v678
        %v1058 = vunpack.c.h.b16 %v678
        %v1059 = vunpack.c.l.b16 %v679
        %v1060 = vunpack.c.h.b16 %v679
        %v1061 = vunpack.c.l.b16 %v680
        %v1062 = vunpack.c.h.b16 %v680
        %v1063 = vunpack.c.l.b16 %v681
        %v1064 = vunpack.c.h.b16 %v681
        %v1065 = vunpack.c.l.b16 %v682
        %v1066 = vunpack.c.h.b16 %v682
        %v1067 = vunpack.c.l.b16 %v683
        %v1068 = vunpack.c.h.b16 %v683
        %v1069 = vunpack.c.l.b16 %v684
        %v1070 = vunpack.c.h.b16 %v684
        %v1071 = vunpack.c.l.b16 %v685
        %v1072 = vunpack.c.h.b16 %v685
        %v1073 = vunpack.c.l.b16 %v686
        %v1074 = vunpack.c.h.b16 %v686
        %v1075 = vunpack.c.l.b16 %v687
        %v1076 = vunpack.c.h.b16 %v687
        %v1077 = vunpack.c.l.b16 %v688
        %v1078 = vunpack.c.h.b16 %v688
        %v1079 = vunpack.c.l.b16 %v689
        %v1080 = vunpack.c.h.b16 %v689
        %v1081 = vunpack.c.l.b16 %v690
        %v1082 = vunpack.c.h.b16 %v690
        %v1083 = vunpack.c.l.b16 %v691
        %v1084 = vunpack.c.h.b16 %v691
        %v1085 = vunpack.c.l.b16 %v692
        %v1086 = vunpack.c.h.b16 %v692
        %v1087 = vunpack.c.l.b16 %v693
        %v1088 = vunpack.c.h.b16 %v693
        %v1089 = vunpack.c.l.b16 %v694
        %v1090 = vunpack.c.h.b16 %v694
        %v1091 = vunpack.c.l.b16 %v695
        %v1092 = vunpack.c.h.b16 %v695
        %v1093 = vunpack.c.l.b16 %v696
        %v1094 = vunpack.c.h.b16 %v696
        %v1095 = vunpack.c.l.b16 %v697
        %v1096 = vunpack.c.h.b16 %v697
        %v1097 = vunpack.c.l.b16 %v698
        %v1098 = vunpack.c.h.b16 %v698
        %v1099 = vunpack.c.l.b16 %v699
        %v1100 = vunpack.c.h.b16 %v699
        %v1101 = vunpack.c.l.b16 %v700
        %v1102 = vunpack.c.h.b16 %v700
        %v1103 = vunpack.c.l.b16 %v701
        %v1104 = vunpack.c.h.b16 %v701
        %v1105 = vunpack.c.l.b16 %v702
        %v1106 = vunpack.c.h.b16 %v702
        %v1107 = vunpack.c.l.b16 %v703
        %v1108 = vunpack.c.h.b16 %v703
        %v1109 = vunpack.c.l.b16 %v704
        %v1110 = vunpack.c.h.b16 %v704
        %v1111 = vpack.c.b16 %v859, %v855
        %v1112 = vpack.c.b16 %v860, %v856
        %v1113 = vpack.c.b16 %v861, %v857
        %v1114 = vpack.c.b16 %v862, %v858
        %v1115 = vpack.c.b16 %v867, %v863
        %v1116 = vpack.c.b16 %v868, %v864
        %v1117 = vpack.c.b16 %v869, %v865
        %v1118 = vpack.c.b16 %v870, %v866
        %v1119 = vpack.c.b16 %v875, %v871
        %v1120 = vpack.c.b16 %v876, %v872
        %v1121 = vpack.c.b16 %v877, %v873
        %v1122 = vpack.c.b16 %v878, %v874
        %v1123 = vpack.c.b16 %v883, %v879
        %v1124 = vpack.c.b16 %v884, %v880
        %v1125 = vpack.c.b16 %v885, %v881
        %v1126 = vpack.c.b16 %v886, %v882
        %v1127 = vpack.c.b16 %v891, %v887
        %v1128 = vpack.c.b16 %v892, %v888
        %v1129 = vpack.c.b16 %v893, %v889
        %v1130 = vpack.c.b16 %v894, %v890
        %v1131 = vpack.c.b16 %v899, %v895
        %v1132 = vpack.c.b16 %v900, %v896
        %v1133 = vpack.c.b16 %v901, %v897
        %v1134 = vpack.c.b16 %v902, %v898
        %v1135 = vpack.c.b16 %v907, %v903
        %v1136 = vpack.c.b16 %v908, %v904
        %v1137 = vpack.c.b16 %v909, %v905
        %v1138 = vpack.c.b16 %v910, %v906
        %v1139 = vpack.c.b16 %v915, %v911
        %v1140 = vpack.c.b16 %v916, %v912
        %v1141 = vpack.c.b16 %v917, %v913
        %v1142 = vpack.c.b16 %v918, %v914
        %v1143 = vpack.c.b16 %v923, %v919
        %v1144 = vpack.c.b16 %v924, %v920
        %v1145 = vpack.c.b16 %v925, %v921
        %v1146 = vpack.c.b16 %v926, %v922
        %v1147 = vpack.c.b16 %v931, %v927
        %v1148 = vpack.c.b16 %v932, %v928
        %v1149 = vpack.c.b16 %v933, %v929
        %v1150 = vpack.c.b16 %v934, %v930
        %v1151 = vpack.c.b16 %v939, %v935
        %v1152 = vpack.c.b16 %v940, %v936
        %v1153 = vpack.c.b16 %v941, %v937
        %v1154 = vpack.c.b16 %v942, %v938
        %v1155 = vpack.c.b16 %v947, %v943
        %v1156 = vpack.c.b16 %v948, %v944
        %v1157 = vpack.c.b16 %v949, %v945
        %v1158 = vpack.c.b16 %v950, %v946
        %v1159 = vpack.c.b16 %v955, %v951
        %v1160 = vpack.c.b16 %v956, %v952
        %v1161 = vpack.c.b16 %v957, %v953
        %v1162 = vpack.c.b16 %v958, %v954
        %v1163 = vpack.c.b16 %v963, %v959
        %v1164 = vpack.c.b16 %v964, %v960
        %v1165 = vpack.c.b16 %v965, %v961
        %v1166 = vpack.c.b16 %v966, %v962
        %v1167 = vpack.c.b16 %v971, %v967
        %v1168 = vpack.c.b16 %v972, %v968
        %v1169 = vpack.c.b16 %v973, %v969
        %v1170 = vpack.c.b16 %v974, %v970
        %v1171 = vpack.c.b16 %v979, %v975
        %v1172 = vpack.c.b16 %v980, %v976
        %v1173 = vpack.c.b16 %v981, %v977
        %v1174 = vpack.c.b16 %v982, %v978
        %v1175 = vpack.c.b16 %v987, %v983
        %v1176 = vpack.c.b16 %v988, %v984
        %v1177 = vpack.c.b16 %v989, %v985
        %v1178 = vpack.c.b16 %v990, %v986
        %v1179 = vpack.c.b16 %v995, %v991
        %v1180 = vpack.c.b16 %v996, %v992
        %v1181 = vpack.c.b16 %v997, %v993
        %v1182 = vpack.c.b16 %v998, %v994
        %v1183 = vpack.c.b16 %v1003, %v999
        %v1184 = vpack.c.b16 %v1004, %v1000
        %v1185 = vpack.c.b16 %v1005, %v1001
        %v1186 = vpack.c.b16 %v1006, %v1002
        %v1187 = vpack.c.b16 %v1011, %v1007
        %v1188 = vpack.c.b16 %v1012, %v1008
        %v1189 = vpack.c.b16 %v1013, %v1009
        %v1190 = vpack.c.b16 %v1014, %v1010
        %v1191 = vpack.c.b16 %v1019, %v1015
        %v1192 = vpack.c.b16 %v1020, %v1016
        %v1193 = vpack.c.b16 %v1021, %v1017
        %v1194 = vpack.c.b16 %v1022, %v1018
        %v1195 = vpack.c.b16 %v1027, %v1023
        %v1196 = vpack.c.b16 %v1028, %v1024
        %v1197 = vpack.c.b16 %v1029, %v1025
        %v1198 = vpack.c.b16 %v1030, %v1026
        %v1199 = vpack.c.b16 %v1035, %v1031
        %v1200 = vpack.c.b16 %v1036, %v1032
        %v1201 = vpack.c.b16 %v1037, %v1033
        %v1202 = vpack.c.b16 %v1038, %v1034
        %v1203 = vpack.c.b16 %v1043, %v1039
        %v1204 = vpack.c.b16 %v1044, %v1040
        %v1205 = vpack.c.b16 %v1045, %v1041
        %v1206 = vpack.c.b16 %v1046, %v1042
        %v1207 = vpack.c.b16 %v1051, %v1047
        %v1208 = vpack.c.b16 %v1052, %v1048
        %v1209 = vpack.c.b16 %v1053, %v1049
        %v1210 = vpack.c.b16 %v1054, %v1050
        %v1211 = vpack.c.b16 %v1059, %v1055
        %v1212 = vpack.c.b16 %v1060, %v1056
        %v1213 = vpack.c.b16 %v1061, %v1057
        %v1214 = vpack.c.b16 %v1062, %v1058
        %v1215 = vpack.c.b16 %v1067, %v1063
        %v1216 = vpack.c.b16 %v1068, %v1064
        %v1217 = vpack.c.b16 %v1069, %v1065
        %v1218 = vpack.c.b16 %v1070, %v1066
        %v1219 = vpack.c.b16 %v1075, %v1071
        %v1220 = vpack.c.b16 %v1076, %v1072
        %v1221 = vpack.c.b16 %v1077, %v1073
        %v1222 = vpack.c.b16 %v1078, %v1074
        %v1223 = vpack.c.b16 %v1083, %v1079
        %v1224 = vpack.c.b16 %v1084, %v1080
        %v1225 = vpack.c.b16 %v1085, %v1081
        %v1226 = vpack.c.b16 %v1086, %v1082
        %v1227 = vpack.c.b16 %v1091, %v1087
        %v1228 = vpack.c.b16 %v1092, %v1088
        %v1229 = vpack.c.b16 %v1093, %v1089
        %v1230 = vpack.c.b16 %v1094, %v1090
        %v1231 = vpack.c.b16 %v1099, %v1095
        %v1232 = vpack.c.b16 %v1100, %v1096
        %v1233 = vpack.c.b16 %v1101, %v1097
        %v1234 = vpack.c.b16 %v1102, %v1098
        %v1235 = vpack.c.b16 %v1107, %v1103
        %v1236 = vpack.c.b16 %v1108, %v1104
        %v1237 = vpack.c.b16 %v1109, %v1105
        %v1238 = vpack.c.b16 %v1110, %v1106
        %1367 = vmatprep.subr.bf16.mxu0 %v1112
        %1368 = vmatpush1.bf16.xpose.msra.mxu0 %v1111
        %1369 = vmatprep.subr.bf16.mxu0 %v1116
        %1370 = vmatpush1.bf16.xpose.msra.mxu0 %v1115
        %1371 = vmatprep.subr.bf16.mxu0 %v1120
        %1372 = vmatpush1.bf16.xpose.msra.mxu0 %v1119
        %1373 = vmatprep.subr.bf16.mxu0 %v1124
        %1374 = vmatpush1.bf16.xpose.msra.mxu0 %v1123
        %1375 = vmatprep.subr.bf16.mxu0 %v1128
        %1376 = vmatpush1.bf16.xpose.msra.mxu0 %v1127
        %1377 = vmatprep.subr.bf16.mxu0 %v1132
        %1378 = vmatpush1.bf16.xpose.msra.mxu0 %v1131
        %1379 = vmatprep.subr.bf16.mxu0 %v1136
        %1380 = vmatpush1.bf16.xpose.msra.mxu0 %v1135
        %1381 = vmatprep.subr.bf16.mxu0 %v1140
        %1382 = vmatpush1.bf16.xpose.msra.mxu0 %v1139
        %1383 = vmatprep.subr.bf16.mxu0 %v1144
        %1384 = vmatpush1.bf16.xpose.msra.mxu0 %v1143
        %1385 = vmatprep.subr.bf16.mxu0 %v1148
        %1386 = vmatpush1.bf16.xpose.msra.mxu0 %v1147
        %1387 = vmatprep.subr.bf16.mxu0 %v1152
        %1388 = vmatpush1.bf16.xpose.msra.mxu0 %v1151
        %1389 = vmatprep.subr.bf16.mxu0 %v1156
        %1390 = vmatpush1.bf16.xpose.msra.mxu0 %v1155
        %1391 = vmatprep.subr.bf16.mxu0 %v1160
        %1392 = vmatpush1.bf16.xpose.msra.mxu0 %v1159
        %1393 = vmatprep.subr.bf16.mxu0 %v1164
        %1394 = vmatpush1.bf16.xpose.msra.mxu0 %v1163
        %1395 = vmatprep.subr.bf16.mxu0 %v1168
        %1396 = vmatpush1.bf16.xpose.msra.mxu0 %v1167
        %1397 = vmatprep.subr.bf16.mxu0 %v1172
        %1398 = vmatpush1.bf16.xpose.msra.mxu0 %v1171
        %1399 = vmatprep.mubr.bf16.mxu0 %v546
        %1400 = vmatmul.mubr.bf16.gmra.mrb[0].mxu0 %v545
        %v1401 = vpop.f32.mrb[0].mxu0
        %v1402 = vadd.f32 %v710, %v1401
        %v1403 = vpop.f32.mrb[0].mxu0
        %v1404 = vadd.f32 %v714, %v1403
        %v1405 = vpop.f32.mrb[0].mxu0
        %v1406 = vadd.f32 %v710, %v1405
        %v1407 = vpop.f32.mrb[0].mxu0
        %v1408 = vadd.f32 %v714, %v1407
        %1409 = vmatprep.mubr.bf16.mxu0 %v550
        %1410 = vmatmul.mubr.bf16.gmra.mrb[0].mxu0 %v549
        %v1411 = vpop.f32.mrb[0].mxu0
        %v1412 = vadd.f32 %v710, %v1411
        %v1413 = vpop.f32.mrb[0].mxu0
        %v1414 = vadd.f32 %v714, %v1413
        %v1415 = vpop.f32.mrb[0].mxu0
        %v1416 = vadd.f32 %v710, %v1415
        %v1417 = vpop.f32.mrb[0].mxu0
        %v1418 = vadd.f32 %v714, %v1417
        %1419 = vmatprep.mubr.bf16.mxu0 %v554
        %1420 = vmatmul.mubr.bf16.gmra.mrb[0].mxu0 %v553
        %v1421 = vpop.f32.mrb[0].mxu0
        %v1422 = vadd.f32 %v710, %v1421
        %v1423 = vpop.f32.mrb[0].mxu0
        %v1424 = vadd.f32 %v714, %v1423
        %v1425 = vpop.f32.mrb[0].mxu0
        %v1426 = vadd.f32 %v710, %v1425
        %v1427 = vpop.f32.mrb[0].mxu0
        %v1428 = vadd.f32 %v714, %v1427
        %1429 = vmatprep.mubr.bf16.mxu0 %v558
        %1430 = vmatmul.mubr.bf16.gmra.mrb[0].mxu0 %v557
        %v1431 = vpop.f32.mrb[0].mxu0
        %v1432 = vadd.f32 %v710, %v1431
        %v1433 = vpop.f32.mrb[0].mxu0
        %v1434 = vadd.f32 %v714, %v1433
        %v1435 = vpop.f32.mrb[0].mxu0
        %v1436 = vadd.f32 %v710, %v1435
        %v1437 = vpop.f32.mrb[0].mxu0
        %v1438 = vadd.f32 %v714, %v1437
        %1439 = vmatprep.mubr.bf16.mxu0 %v562
        %1440 = vmatmul.mubr.bf16.gmra.mrb[0].mxu0 %v561
        %v1441 = vpop.f32.mrb[0].mxu0
        %v1442 = vadd.f32 %v710, %v1441
        %v1443 = vpop.f32.mrb[0].mxu0
        %v1444 = vadd.f32 %v714, %v1443
        %v1445 = vpop.f32.mrb[0].mxu0
        %v1446 = vadd.f32 %v710, %v1445
        %v1447 = vpop.f32.mrb[0].mxu0
        %v1448 = vadd.f32 %v714, %v1447
        %1449 = vmatprep.mubr.bf16.mxu0 %v566
        %1450 = vmatmul.mubr.bf16.gmra.mrb[0].mxu0 %v565
        %v1451 = vpop.f32.mrb[0].mxu0
        %v1452 = vadd.f32 %v710, %v1451
        %v1453 = vpop.f32.mrb[0].mxu0
        %v1454 = vadd.f32 %v714, %v1453
        %v1455 = vpop.f32.mrb[0].mxu0
        %v1456 = vadd.f32 %v710, %v1455
        %v1457 = vpop.f32.mrb[0].mxu0
        %v1458 = vadd.f32 %v714, %v1457
        %1459 = vmatprep.mubr.bf16.mxu0 %v570
        %1460 = vmatmul.mubr.bf16.gmra.mrb[0].mxu0 %v569
        %v1461 = vpop.f32.mrb[0].mxu0
        %v1462 = vadd.f32 %v710, %v1461
        %v1463 = vpop.f32.mrb[0].mxu0
        %v1464 = vadd.f32 %v714, %v1463
        %v1465 = vpop.f32.mrb[0].mxu0
        %v1466 = vadd.f32 %v710, %v1465
        %v1467 = vpop.f32.mrb[0].mxu0
        %v1468 = vadd.f32 %v714, %v1467
        %1469 = vmatprep.mubr.bf16.mxu0 %v574
        %1470 = vmatmul.mubr.bf16.gmra.mrb[0].mxu0 %v573
        %v1471 = vpop.f32.mrb[0].mxu0
        %v1472 = vadd.f32 %v710, %v1471
        %v1473 = vpop.f32.mrb[0].mxu0
        %v1474 = vadd.f32 %v714, %v1473
        %v1475 = vpop.f32.mrb[0].mxu0
        %v1476 = vadd.f32 %v710, %v1475
        %v1477 = vpop.f32.mrb[0].mxu0
        %v1478 = vadd.f32 %v714, %v1477
        %1479 = vdwg.mxu0
        %1480 = vmatprep.subr.bf16.mxu0 %v1114
        %1481 = vmatpush1.bf16.xpose.msra.mxu0 %v1113
        %1482 = vmatprep.subr.bf16.mxu0 %v1118
        %1483 = vmatpush1.bf16.xpose.msra.mxu0 %v1117
        %1484 = vmatprep.subr.bf16.mxu0 %v1122
        %1485 = vmatpush1.bf16.xpose.msra.mxu0 %v1121
        %1486 = vmatprep.subr.bf16.mxu0 %v1126
        %1487 = vmatpush1.bf16.xpose.msra.mxu0 %v1125
        %1488 = vmatprep.subr.bf16.mxu0 %v1130
        %1489 = vmatpush1.bf16.xpose.msra.mxu0 %v1129
        %1490 = vmatprep.subr.bf16.mxu0 %v1134
        %1491 = vmatpush1.bf16.xpose.msra.mxu0 %v1133
        %1492 = vmatprep.subr.bf16.mxu0 %v1138
        %1493 = vmatpush1.bf16.xpose.msra.mxu0 %v1137
        %1494 = vmatprep.subr.bf16.mxu0 %v1142
        %1495 = vmatpush1.bf16.xpose.msra.mxu0 %v1141
        %1496 = vmatprep.subr.bf16.mxu0 %v1146
        %1497 = vmatpush1.bf16.xpose.msra.mxu0 %v1145
        %1498 = vmatprep.subr.bf16.mxu0 %v1150
        %1499 = vmatpush1.bf16.xpose.msra.mxu0 %v1149
        %1500 = vmatprep.subr.bf16.mxu0 %v1154
        %1501 = vmatpush1.bf16.xpose.msra.mxu0 %v1153
        %1502 = vmatprep.subr.bf16.mxu0 %v1158
        %1503 = vmatpush1.bf16.xpose.msra.mxu0 %v1157
        %1504 = vmatprep.subr.bf16.mxu0 %v1162
        %1505 = vmatpush1.bf16.xpose.msra.mxu0 %v1161
        %1506 = vmatprep.subr.bf16.mxu0 %v1166
        %1507 = vmatpush1.bf16.xpose.msra.mxu0 %v1165
        %1508 = vmatprep.subr.bf16.mxu0 %v1170
        %1509 = vmatpush1.bf16.xpose.msra.mxu0 %v1169
        %1510 = vmatprep.subr.bf16.mxu0 %v1174
        %1511 = vmatpush1.bf16.xpose.msra.mxu0 %v1173
        %1512 = vmatprep.mubr.bf16.mxu0 %v548
        %1513 = vmatmul.mubr.bf16.gmra.mrb[0].mxu0 %v547
        %v1514 = vpop.f32.mrb[0].mxu0
        %v1515 = vadd.f32 %v1402, %v1514
        %v1516 = vpop.f32.mrb[0].mxu0
        %v1517 = vadd.f32 %v1404, %v1516
        %v1518 = vpop.f32.mrb[0].mxu0
        %v1519 = vadd.f32 %v1406, %v1518
        %v1520 = vpop.f32.mrb[0].mxu0
        %v1521 = vadd.f32 %v1408, %v1520
        %1522 = vmatprep.mubr.bf16.mxu0 %v552
        %1523 = vmatmul.mubr.bf16.gmra.mrb[0].mxu0 %v551
        %v1524 = vpop.f32.mrb[0].mxu0
        %v1525 = vadd.f32 %v1412, %v1524
        %v1526 = vpop.f32.mrb[0].mxu0
        %v1527 = vadd.f32 %v1414, %v1526
        %v1528 = vpop.f32.mrb[0].mxu0
        %v1529 = vadd.f32 %v1416, %v1528
        %v1530 = vpop.f32.mrb[0].mxu0
        %v1531 = vadd.f32 %v1418, %v1530
        %1532 = vmatprep.mubr.bf16.mxu0 %v556
        %1533 = vmatmul.mubr.bf16.gmra.mrb[0].mxu0 %v555
        %v1534 = vpop.f32.mrb[0].mxu0
        %v1535 = vadd.f32 %v1422, %v1534
        %v1536 = vpop.f32.mrb[0].mxu0
        %v1537 = vadd.f32 %v1424, %v1536
        %v1538 = vpop.f32.mrb[0].mxu0
        %v1539 = vadd.f32 %v1426, %v1538
        %v1540 = vpop.f32.mrb[0].mxu0
        %v1541 = vadd.f32 %v1428, %v1540
        %1542 = vmatprep.mubr.bf16.mxu0 %v560
        %1543 = vmatmul.mubr.bf16.gmra.mrb[0].mxu0 %v559
        %v1544 = vpop.f32.mrb[0].mxu0
        %v1545 = vadd.f32 %v1432, %v1544
        %v1546 = vpop.f32.mrb[0].mxu0
        %v1547 = vadd.f32 %v1434, %v1546
        %v1548 = vpop.f32.mrb[0].mxu0
        %v1549 = vadd.f32 %v1436, %v1548
        %v1550 = vpop.f32.mrb[0].mxu0
        %v1551 = vadd.f32 %v1438, %v1550
        %1552 = vmatprep.mubr.bf16.mxu0 %v564
        %1553 = vmatmul.mubr.bf16.gmra.mrb[0].mxu0 %v563
        %v1554 = vpop.f32.mrb[0].mxu0
        %v1555 = vadd.f32 %v1442, %v1554
        %v1556 = vpop.f32.mrb[0].mxu0
        %v1557 = vadd.f32 %v1444, %v1556
        %v1558 = vpop.f32.mrb[0].mxu0
        %v1559 = vadd.f32 %v1446, %v1558
        %v1560 = vpop.f32.mrb[0].mxu0
        %v1561 = vadd.f32 %v1448, %v1560
        %1562 = vmatprep.mubr.bf16.mxu0 %v568
        %1563 = vmatmul.mubr.bf16.gmra.mrb[0].mxu0 %v567
        %v1564 = vpop.f32.mrb[0].mxu0
        %v1565 = vadd.f32 %v1452, %v1564
        %v1566 = vpop.f32.mrb[0].mxu0
        %v1567 = vadd.f32 %v1454, %v1566
        %v1568 = vpop.f32.mrb[0].mxu0
        %v1569 = vadd.f32 %v1456, %v1568
        %v1570 = vpop.f32.mrb[0].mxu0
        %v1571 = vadd.f32 %v1458, %v1570
        %1572 = vmatprep.mubr.bf16.mxu0 %v572
        %1573 = vmatmul.mubr.bf16.gmra.mrb[0].mxu0 %v571
        %v1574 = vpop.f32.mrb[0].mxu0
        %v1575 = vadd.f32 %v1462, %v1574
        %v1576 = vpop.f32.mrb[0].mxu0
        %v1577 = vadd.f32 %v1464, %v1576
        %v1578 = vpop.f32.mrb[0].mxu0
        %v1579 = vadd.f32 %v1466, %v1578
        %v1580 = vpop.f32.mrb[0].mxu0
        %v1581 = vadd.f32 %v1468, %v1580
        %1582 = vmatprep.mubr.bf16.mxu0 %v576
        %1583 = vmatmul.mubr.bf16.gmra.mrb[0].mxu0 %v575
        %v1584 = vpop.f32.mrb[0].mxu0
        %v1585 = vadd.f32 %v1472, %v1584
        %v1586 = vpop.f32.mrb[0].mxu0
        %v1587 = vadd.f32 %v1474, %v1586
        %v1588 = vpop.f32.mrb[0].mxu0
        %v1589 = vadd.f32 %v1476, %v1588
        %v1590 = vpop.f32.mrb[0].mxu0
        %v1591 = vadd.f32 %v1478, %v1590
        %1592 = vdwg.mxu0
        %1593 = vmatprep.subr.bf16.mxu0 %v1176
        %1594 = vmatpush1.bf16.xpose.msra.mxu0 %v1175
        %1595 = vmatprep.subr.bf16.mxu0 %v1180
        %1596 = vmatpush1.bf16.xpose.msra.mxu0 %v1179
        %1597 = vmatprep.subr.bf16.mxu0 %v1184
        %1598 = vmatpush1.bf16.xpose.msra.mxu0 %v1183
        %1599 = vmatprep.subr.bf16.mxu0 %v1188
        %1600 = vmatpush1.bf16.xpose.msra.mxu0 %v1187
        %1601 = vmatprep.subr.bf16.mxu0 %v1192
        %1602 = vmatpush1.bf16.xpose.msra.mxu0 %v1191
        %1603 = vmatprep.subr.bf16.mxu0 %v1196
        %1604 = vmatpush1.bf16.xpose.msra.mxu0 %v1195
        %1605 = vmatprep.subr.bf16.mxu0 %v1200
        %1606 = vmatpush1.bf16.xpose.msra.mxu0 %v1199
        %1607 = vmatprep.subr.bf16.mxu0 %v1204
        %1608 = vmatpush1.bf16.xpose.msra.mxu0 %v1203
        %1609 = vmatprep.subr.bf16.mxu0 %v1208
        %1610 = vmatpush1.bf16.xpose.msra.mxu0 %v1207
        %1611 = vmatprep.subr.bf16.mxu0 %v1212
        %1612 = vmatpush1.bf16.xpose.msra.mxu0 %v1211
        %1613 = vmatprep.subr.bf16.mxu0 %v1216
        %1614 = vmatpush1.bf16.xpose.msra.mxu0 %v1215
        %1615 = vmatprep.subr.bf16.mxu0 %v1220
        %1616 = vmatpush1.bf16.xpose.msra.mxu0 %v1219
        %1617 = vmatprep.subr.bf16.mxu0 %v1224
        %1618 = vmatpush1.bf16.xpose.msra.mxu0 %v1223
        %1619 = vmatprep.subr.bf16.mxu0 %v1228
        %1620 = vmatpush1.bf16.xpose.msra.mxu0 %v1227
        %1621 = vmatprep.subr.bf16.mxu0 %v1232
        %1622 = vmatpush1.bf16.xpose.msra.mxu0 %v1231
        %1623 = vmatprep.subr.bf16.mxu0 %v1236
        %1624 = vmatpush1.bf16.xpose.msra.mxu0 %v1235
        %1625 = vmatprep.mubr.bf16.mxu0 %v546
        %1626 = vmatmul.mubr.bf16.gmra.mrb[0].mxu0 %v545
        %v1627 = vpop.f32.mrb[0].mxu0
        %v1628 = vadd.f32 %v718, %v1627
        %v1629 = vpop.f32.mrb[0].mxu0
        %v1630 = vadd.f32 %v722, %v1629
        %v1631 = vpop.f32.mrb[0].mxu0
        %v1632 = vadd.f32 %v718, %v1631
        %v1633 = vpop.f32.mrb[0].mxu0
        %v1634 = vadd.f32 %v722, %v1633
        %1635 = vmatprep.mubr.bf16.mxu0 %v550
        %1636 = vmatmul.mubr.bf16.gmra.mrb[0].mxu0 %v549
        %v1637 = vpop.f32.mrb[0].mxu0
        %v1638 = vadd.f32 %v718, %v1637
        %v1639 = vpop.f32.mrb[0].mxu0
        %v1640 = vadd.f32 %v722, %v1639
        %v1641 = vpop.f32.mrb[0].mxu0
        %v1642 = vadd.f32 %v718, %v1641
        %v1643 = vpop.f32.mrb[0].mxu0
        %v1644 = vadd.f32 %v722, %v1643
        %1645 = vmatprep.mubr.bf16.mxu0 %v554
        %1646 = vmatmul.mubr.bf16.gmra.mrb[0].mxu0 %v553
        %v1647 = vpop.f32.mrb[0].mxu0
        %v1648 = vadd.f32 %v718, %v1647
        %v1649 = vpop.f32.mrb[0].mxu0
        %v1650 = vadd.f32 %v722, %v1649
        %v1651 = vpop.f32.mrb[0].mxu0
        %v1652 = vadd.f32 %v718, %v1651
        %v1653 = vpop.f32.mrb[0].mxu0
        %v1654 = vadd.f32 %v722, %v1653
        %1655 = vmatprep.mubr.bf16.mxu0 %v558
        %1656 = vmatmul.mubr.bf16.gmra.mrb[0].mxu0 %v557
        %v1657 = vpop.f32.mrb[0].mxu0
        %v1658 = vadd.f32 %v718, %v1657
        %v1659 = vpop.f32.mrb[0].mxu0
        %v1660 = vadd.f32 %v722, %v1659
        %v1661 = vpop.f32.mrb[0].mxu0
        %v1662 = vadd.f32 %v718, %v1661
        %v1663 = vpop.f32.mrb[0].mxu0
        %v1664 = vadd.f32 %v722, %v1663
        %1665 = vmatprep.mubr.bf16.mxu0 %v562
        %1666 = vmatmul.mubr.bf16.gmra.mrb[0].mxu0 %v561
        %v1667 = vpop.f32.mrb[0].mxu0
        %v1668 = vadd.f32 %v718, %v1667
        %v1669 = vpop.f32.mrb[0].mxu0
        %v1670 = vadd.f32 %v722, %v1669
        %v1671 = vpop.f32.mrb[0].mxu0
        %v1672 = vadd.f32 %v718, %v1671
        %v1673 = vpop.f32.mrb[0].mxu0
        %v1674 = vadd.f32 %v722, %v1673
        %1675 = vmatprep.mubr.bf16.mxu0 %v566
        %1676 = vmatmul.mubr.bf16.gmra.mrb[0].mxu0 %v565
        %v1677 = vpop.f32.mrb[0].mxu0
        %v1678 = vadd.f32 %v718, %v1677
        %v1679 = vpop.f32.mrb[0].mxu0
        %v1680 = vadd.f32 %v722, %v1679
        %v1681 = vpop.f32.mrb[0].mxu0
        %v1682 = vadd.f32 %v718, %v1681
        %v1683 = vpop.f32.mrb[0].mxu0
        %v1684 = vadd.f32 %v722, %v1683
        %1685 = vmatprep.mubr.bf16.mxu0 %v570
        %1686 = vmatmul.mubr.bf16.gmra.mrb[0].mxu0 %v569
        %v1687 = vpop.f32.mrb[0].mxu0
        %v1688 = vadd.f32 %v718, %v1687
        %v1689 = vpop.f32.mrb[0].mxu0
        %v1690 = vadd.f32 %v722, %v1689
        %v1691 = vpop.f32.mrb[0].mxu0
        %v1692 = vadd.f32 %v718, %v1691
        %v1693 = vpop.f32.mrb[0].mxu0
        %v1694 = vadd.f32 %v722, %v1693
        %1695 = vmatprep.mubr.bf16.mxu0 %v574
        %1696 = vmatmul.mubr.bf16.gmra.mrb[0].mxu0 %v573
        %v1697 = vpop.f32.mrb[0].mxu0
        %v1698 = vadd.f32 %v718, %v1697
        %v1699 = vpop.f32.mrb[0].mxu0
        %v1700 = vadd.f32 %v722, %v1699
        %v1701 = vpop.f32.mrb[0].mxu0
        %v1702 = vadd.f32 %v718, %v1701
        %v1703 = vpop.f32.mrb[0].mxu0
        %v1704 = vadd.f32 %v722, %v1703
        %1705 = vdwg.mxu0
        %1706 = vmatprep.subr.bf16.mxu0 %v1178
        %1707 = vmatpush1.bf16.xpose.msra.mxu0 %v1177
        %1708 = vmatprep.subr.bf16.mxu0 %v1182
        %1709 = vmatpush1.bf16.xpose.msra.mxu0 %v1181
        %1710 = vmatprep.subr.bf16.mxu0 %v1186
        %1711 = vmatpush1.bf16.xpose.msra.mxu0 %v1185
        %1712 = vmatprep.subr.bf16.mxu0 %v1190
        %1713 = vmatpush1.bf16.xpose.msra.mxu0 %v1189
        %1714 = vmatprep.subr.bf16.mxu0 %v1194
        %1715 = vmatpush1.bf16.xpose.msra.mxu0 %v1193
        %1716 = vmatprep.subr.bf16.mxu0 %v1198
        %1717 = vmatpush1.bf16.xpose.msra.mxu0 %v1197
        %1718 = vmatprep.subr.bf16.mxu0 %v1202
        %1719 = vmatpush1.bf16.xpose.msra.mxu0 %v1201
        %1720 = vmatprep.subr.bf16.mxu0 %v1206
        %1721 = vmatpush1.bf16.xpose.msra.mxu0 %v1205
        %1722 = vmatprep.subr.bf16.mxu0 %v1210
        %1723 = vmatpush1.bf16.xpose.msra.mxu0 %v1209
        %1724 = vmatprep.subr.bf16.mxu0 %v1214
        %1725 = vmatpush1.bf16.xpose.msra.mxu0 %v1213
        %1726 = vmatprep.subr.bf16.mxu0 %v1218
        %1727 = vmatpush1.bf16.xpose.msra.mxu0 %v1217
        %1728 = vmatprep.subr.bf16.mxu0 %v1222
        %1729 = vmatpush1.bf16.xpose.msra.mxu0 %v1221
        %1730 = vmatprep.subr.bf16.mxu0 %v1226
        %1731 = vmatpush1.bf16.xpose.msra.mxu0 %v1225
        %1732 = vmatprep.subr.bf16.mxu0 %v1230
        %1733 = vmatpush1.bf16.xpose.msra.mxu0 %v1229
        %1734 = vmatprep.subr.bf16.mxu0 %v1234
        %1735 = vmatpush1.bf16.xpose.msra.mxu0 %v1233
        %1736 = vmatprep.subr.bf16.mxu0 %v1238
        %1737 = vmatpush1.bf16.xpose.msra.mxu0 %v1237
        %1738 = vmatprep.mubr.bf16.mxu0 %v548
        %1739 = vmatmul.mubr.bf16.gmra.mrb[0].mxu0 %v547
        %v1740 = vpop.f32.mrb[0].mxu0
        %v1741 = vadd.f32 %v1628, %v1740
        %v1742 = vpop.f32.mrb[0].mxu0
        %v1743 = vadd.f32 %v1630, %v1742
        %v1744 = vpop.f32.mrb[0].mxu0
        %v1745 = vadd.f32 %v1632, %v1744
        %v1746 = vpop.f32.mrb[0].mxu0
        %v1747 = vadd.f32 %v1634, %v1746
        %1748 = vmatprep.mubr.bf16.mxu0 %v552
        %1749 = vmatmul.mubr.bf16.gmra.mrb[0].mxu0 %v551
        %v1750 = vpop.f32.mrb[0].mxu0
        %v1751 = vadd.f32 %v1638, %v1750
        %v1752 = vpop.f32.mrb[0].mxu0
        %v1753 = vadd.f32 %v1640, %v1752
        %v1754 = vpop.f32.mrb[0].mxu0
        %v1755 = vadd.f32 %v1642, %v1754
        %v1756 = vpop.f32.mrb[0].mxu0
        %v1757 = vadd.f32 %v1644, %v1756
        %1758 = vmatprep.mubr.bf16.mxu0 %v556
        %1759 = vmatmul.mubr.bf16.gmra.mrb[0].mxu0 %v555
        %v1760 = vpop.f32.mrb[0].mxu0
        %v1761 = vadd.f32 %v1648, %v1760
        %v1762 = vpop.f32.mrb[0].mxu0
        %v1763 = vadd.f32 %v1650, %v1762
        %v1764 = vpop.f32.mrb[0].mxu0
        %v1765 = vadd.f32 %v1652, %v1764
        %v1766 = vpop.f32.mrb[0].mxu0
        %v1767 = vadd.f32 %v1654, %v1766
        %1768 = vmatprep.mubr.bf16.mxu0 %v560
        %1769 = vmatmul.mubr.bf16.gmra.mrb[0].mxu0 %v559
        %v1770 = vpop.f32.mrb[0].mxu0
        %v1771 = vadd.f32 %v1658, %v1770
        %v1772 = vpop.f32.mrb[0].mxu0
        %v1773 = vadd.f32 %v1660, %v1772
        %v1774 = vpop.f32.mrb[0].mxu0
        %v1775 = vadd.f32 %v1662, %v1774
        %v1776 = vpop.f32.mrb[0].mxu0
        %v1777 = vadd.f32 %v1664, %v1776
        %1778 = vmatprep.mubr.bf16.mxu0 %v564
        %1779 = vmatmul.mubr.bf16.gmra.mrb[0].mxu0 %v563
        %v1780 = vpop.f32.mrb[0].mxu0
        %v1781 = vadd.f32 %v1668, %v1780
        %v1782 = vpop.f32.mrb[0].mxu0
        %v1783 = vadd.f32 %v1670, %v1782
        %v1784 = vpop.f32.mrb[0].mxu0
        %v1785 = vadd.f32 %v1672, %v1784
        %v1786 = vpop.f32.mrb[0].mxu0
        %v1787 = vadd.f32 %v1674, %v1786
        %1788 = vmatprep.mubr.bf16.mxu0 %v568
        %1789 = vmatmul.mubr.bf16.gmra.mrb[0].mxu0 %v567
        %v1790 = vpop.f32.mrb[0].mxu0
        %v1791 = vadd.f32 %v1678, %v1790
        %v1792 = vpop.f32.mrb[0].mxu0
        %v1793 = vadd.f32 %v1680, %v1792
        %v1794 = vpop.f32.mrb[0].mxu0
        %v1795 = vadd.f32 %v1682, %v1794
        %v1796 = vpop.f32.mrb[0].mxu0
        %v1797 = vadd.f32 %v1684, %v1796
        %1798 = vmatprep.mubr.bf16.mxu0 %v572
        %1799 = vmatmul.mubr.bf16.gmra.mrb[0].mxu0 %v571
        %v1800 = vpop.f32.mrb[0].mxu0
        %v1801 = vadd.f32 %v1688, %v1800
        %v1802 = vpop.f32.mrb[0].mxu0
        %v1803 = vadd.f32 %v1690, %v1802
        %v1804 = vpop.f32.mrb[0].mxu0
        %v1805 = vadd.f32 %v1692, %v1804
        %v1806 = vpop.f32.mrb[0].mxu0
        %v1807 = vadd.f32 %v1694, %v1806
        %1808 = vmatprep.mubr.bf16.mxu0 %v576
        %1809 = vmatmul.mubr.bf16.gmra.mrb[0].mxu0 %v575
        %v1810 = vpop.f32.mrb[0].mxu0
        %v1811 = vadd.f32 %v1698, %v1810
        %v1812 = vpop.f32.mrb[0].mxu0
        %v1813 = vadd.f32 %v1700, %v1812
        %v1814 = vpop.f32.mrb[0].mxu0
        %v1815 = vadd.f32 %v1702, %v1814
        %v1816 = vpop.f32.mrb[0].mxu0
        %v1817 = vadd.f32 %v1704, %v1816
        %1818 = vdwg.mxu0
        %v1819 = vmax.f32 %v1515, 0.0
        %v1820 = vmax.f32 %v1517, 0.0
        %v1821 = vmax.f32 %v1741, 0.0
        %v1822 = vmax.f32 %v1743, 0.0
        %v1823 = vmax.f32 %v1519, 0.0
        %v1824 = vmax.f32 %v1521, 0.0
        %v1825 = vmax.f32 %v1745, 0.0
        %v1826 = vmax.f32 %v1747, 0.0
        %v1827 = vmax.f32 %v1525, 0.0
        %v1828 = vmax.f32 %v1527, 0.0
        %v1829 = vmax.f32 %v1751, 0.0
        %v1830 = vmax.f32 %v1753, 0.0
        %v1831 = vmax.f32 %v1529, 0.0
        %v1832 = vmax.f32 %v1531, 0.0
        %v1833 = vmax.f32 %v1755, 0.0
        %v1834 = vmax.f32 %v1757, 0.0
        %v1835 = vmax.f32 %v1535, 0.0
        %v1836 = vmax.f32 %v1537, 0.0
        %v1837 = vmax.f32 %v1761, 0.0
        %v1838 = vmax.f32 %v1763, 0.0
        %v1839 = vmax.f32 %v1539, 0.0
        %v1840 = vmax.f32 %v1541, 0.0
        %v1841 = vmax.f32 %v1765, 0.0
        %v1842 = vmax.f32 %v1767, 0.0
        %v1843 = vmax.f32 %v1545, 0.0
        %v1844 = vmax.f32 %v1547, 0.0
        %v1845 = vmax.f32 %v1771, 0.0
        %v1846 = vmax.f32 %v1773, 0.0
        %v1847 = vmax.f32 %v1549, 0.0
        %v1848 = vmax.f32 %v1551, 0.0
        %v1849 = vmax.f32 %v1775, 0.0
        %v1850 = vmax.f32 %v1777, 0.0
        %v1851 = vmax.f32 %v1555, 0.0
        %v1852 = vmax.f32 %v1557, 0.0
        %v1853 = vmax.f32 %v1781, 0.0
        %v1854 = vmax.f32 %v1783, 0.0
        %v1855 = vmax.f32 %v1559, 0.0
        %v1856 = vmax.f32 %v1561, 0.0
        %v1857 = vmax.f32 %v1785, 0.0
        %v1858 = vmax.f32 %v1787, 0.0
        %v1859 = vmax.f32 %v1565, 0.0
        %v1860 = vmax.f32 %v1567, 0.0
        %v1861 = vmax.f32 %v1791, 0.0
        %v1862 = vmax.f32 %v1793, 0.0
        %v1863 = vmax.f32 %v1569, 0.0
        %v1864 = vmax.f32 %v1571, 0.0
        %v1865 = vmax.f32 %v1795, 0.0
        %v1866 = vmax.f32 %v1797, 0.0
        %v1867 = vmax.f32 %v1575, 0.0
        %v1868 = vmax.f32 %v1577, 0.0
        %v1869 = vmax.f32 %v1801, 0.0
        %v1870 = vmax.f32 %v1803, 0.0
        %v1871 = vmax.f32 %v1579, 0.0
        %v1872 = vmax.f32 %v1581, 0.0
        %v1873 = vmax.f32 %v1805, 0.0
        %v1874 = vmax.f32 %v1807, 0.0
        %v1875 = vmax.f32 %v1585, 0.0
        %v1876 = vmax.f32 %v1587, 0.0
        %v1877 = vmax.f32 %v1811, 0.0
        %v1878 = vmax.f32 %v1813, 0.0
        %v1879 = vmax.f32 %v1589, 0.0
        %v1880 = vmax.f32 %v1591, 0.0
        %v1881 = vmax.f32 %v1815, 0.0
        %v1882 = vmax.f32 %v1817, 0.0
        %v1883 = vpack.c.bf16 %v1823, %v1819
        %v1884 = vpack.c.bf16 %v1824, %v1820
        %v1885 = vpack.c.bf16 %v1825, %v1821
        %v1886 = vpack.c.bf16 %v1826, %v1822
        %v1887 = vpack.c.bf16 %v1831, %v1827
        %v1888 = vpack.c.bf16 %v1832, %v1828
        %v1889 = vpack.c.bf16 %v1833, %v1829
        %v1890 = vpack.c.bf16 %v1834, %v1830
        %v1891 = vpack.c.bf16 %v1839, %v1835
        %v1892 = vpack.c.bf16 %v1840, %v1836
        %v1893 = vpack.c.bf16 %v1841, %v1837
        %v1894 = vpack.c.bf16 %v1842, %v1838
        %v1895 = vpack.c.bf16 %v1847, %v1843
        %v1896 = vpack.c.bf16 %v1848, %v1844
        %v1897 = vpack.c.bf16 %v1849, %v1845
        %v1898 = vpack.c.bf16 %v1850, %v1846
        %v1899 = vpack.c.bf16 %v1855, %v1851
        %v1900 = vpack.c.bf16 %v1856, %v1852
        %v1901 = vpack.c.bf16 %v1857, %v1853
        %v1902 = vpack.c.bf16 %v1858, %v1854
        %v1903 = vpack.c.bf16 %v1863, %v1859
        %v1904 = vpack.c.bf16 %v1864, %v1860
        %v1905 = vpack.c.bf16 %v1865, %v1861
        %v1906 = vpack.c.bf16 %v1866, %v1862
        %v1907 = vpack.c.bf16 %v1871, %v1867
        %v1908 = vpack.c.bf16 %v1872, %v1868
        %v1909 = vpack.c.bf16 %v1873, %v1869
        %v1910 = vpack.c.bf16 %v1874, %v1870
        %v1911 = vpack.c.bf16 %v1879, %v1875
        %v1912 = vpack.c.bf16 %v1880, %v1876
        %v1913 = vpack.c.bf16 %v1881, %v1877
        %v1914 = vpack.c.bf16 %v1882, %v1878
        %v1915 = vld [vmem:[#allocation7] sm:$0xff]
        %v1916 = vld [vmem:[#allocation7 + $0x8] sm:$0xff]
        %v1917 = vld [vmem:[#allocation7 + $0x10] sm:$0xff]
        %v1918 = vld [vmem:[#allocation7 + $0x18] sm:$0xff]
        %v1919 = vld [vmem:[#allocation7 + $0x20] sm:$0xff]
        %v1920 = vld [vmem:[#allocation7 + $0x28] sm:$0xff]
        %v1921 = vld [vmem:[#allocation7 + $0x30] sm:$0xff]
        %v1922 = vld [vmem:[#allocation7 + $0x38] sm:$0xff]
        %v1923 = vld [vmem:[#allocation7 + $0x40] sm:$0xff]
        %v1924 = vld [vmem:[#allocation7 + $0x48] sm:$0xff]
        %v1925 = vld [vmem:[#allocation7 + $0x50] sm:$0xff]
        %v1926 = vld [vmem:[#allocation7 + $0x58] sm:$0xff]
        %v1927 = vld [vmem:[#allocation7 + $0x60] sm:$0xff]
        %v1928 = vld [vmem:[#allocation7 + $0x68] sm:$0xff]
        %v1929 = vld [vmem:[#allocation7 + $0x70] sm:$0xff]
        %v1930 = vld [vmem:[#allocation7 + $0x78] sm:$0xff]
        %v1931 = vld [vmem:[#allocation7 + $0x80] sm:$0xff]
        %v1932 = vld [vmem:[#allocation7 + $0x88] sm:$0xff]
        %v1933 = vld [vmem:[#allocation7 + $0x90] sm:$0xff]
        %v1934 = vld [vmem:[#allocation7 + $0x98] sm:$0xff]
        %v1935 = vld [vmem:[#allocation7 + $0xa0] sm:$0xff]
        %v1936 = vld [vmem:[#allocation7 + $0xa8] sm:$0xff]
        %v1937 = vld [vmem:[#allocation7 + $0xb0] sm:$0xff]
        %v1938 = vld [vmem:[#allocation7 + $0xb8] sm:$0xff]
        %v1939 = vld [vmem:[#allocation7 + $0xc0] sm:$0xff]
        %v1940 = vld [vmem:[#allocation7 + $0xc8] sm:$0xff]
        %v1941 = vld [vmem:[#allocation7 + $0xd0] sm:$0xff]
        %v1942 = vld [vmem:[#allocation7 + $0xd8] sm:$0xff]
        %v1943 = vld [vmem:[#allocation7 + $0xe0] sm:$0xff]
        %v1944 = vld [vmem:[#allocation7 + $0xe8] sm:$0xff]
        %v1945 = vld [vmem:[#allocation7 + $0xf0] sm:$0xff]
        %v1946 = vld [vmem:[#allocation7 + $0xf8] sm:$0xff]
        %v1947 = vld [vmem:[#allocation7 + $0x100] sm:$0xff]
        %v1948 = vld [vmem:[#allocation7 + $0x108] sm:$0xff]
        %v1949 = vld [vmem:[#allocation7 + $0x110] sm:$0xff]
        %v1950 = vld [vmem:[#allocation7 + $0x118] sm:$0xff]
        %v1951 = vld [vmem:[#allocation7 + $0x120] sm:$0xff]
        %v1952 = vld [vmem:[#allocation7 + $0x128] sm:$0xff]
        %v1953 = vld [vmem:[#allocation7 + $0x130] sm:$0xff]
        %v1954 = vld [vmem:[#allocation7 + $0x138] sm:$0xff]
        %v1955 = vld [vmem:[#allocation7 + $0x140] sm:$0xff]
        %v1956 = vld [vmem:[#allocation7 + $0x148] sm:$0xff]
        %v1957 = vld [vmem:[#allocation7 + $0x150] sm:$0xff]
        %v1958 = vld [vmem:[#allocation7 + $0x158] sm:$0xff]
        %v1959 = vld [vmem:[#allocation7 + $0x160] sm:$0xff]
        %v1960 = vld [vmem:[#allocation7 + $0x168] sm:$0xff]
        %v1961 = vld [vmem:[#allocation7 + $0x170] sm:$0xff]
        %v1962 = vld [vmem:[#allocation7 + $0x178] sm:$0xff]
        %v1963 = vld [vmem:[#allocation7 + $0x180] sm:$0xff]
        %v1964 = vld [vmem:[#allocation7 + $0x188] sm:$0xff]
        %v1965 = vld [vmem:[#allocation7 + $0x190] sm:$0xff]
        %v1966 = vld [vmem:[#allocation7 + $0x198] sm:$0xff]
        %v1967 = vld [vmem:[#allocation7 + $0x1a0] sm:$0xff]
        %v1968 = vld [vmem:[#allocation7 + $0x1a8] sm:$0xff]
        %v1969 = vld [vmem:[#allocation7 + $0x1b0] sm:$0xff]
        %v1970 = vld [vmem:[#allocation7 + $0x1b8] sm:$0xff]
        %v1971 = vld [vmem:[#allocation7 + $0x1c0] sm:$0xff]
        %v1972 = vld [vmem:[#allocation7 + $0x1c8] sm:$0xff]
        %v1973 = vld [vmem:[#allocation7 + $0x1d0] sm:$0xff]
        %v1974 = vld [vmem:[#allocation7 + $0x1d8] sm:$0xff]
        %v1975 = vld [vmem:[#allocation7 + $0x1e0] sm:$0xff]
        %v1976 = vld [vmem:[#allocation7 + $0x1e8] sm:$0xff]
        %v1977 = vld [vmem:[#allocation7 + $0x1f0] sm:$0xff]
        %v1978 = vld [vmem:[#allocation7 + $0x1f8] sm:$0xff]
        %v1979 = vld [vmem:[#allocation7 + $0x200] sm:$0xff]
        %v1980 = vld [vmem:[#allocation7 + $0x208] sm:$0xff]
        %v1981 = vld [vmem:[#allocation7 + $0x210] sm:$0xff]
        %v1982 = vld [vmem:[#allocation7 + $0x218] sm:$0xff]
        %v1983 = vld [vmem:[#allocation7 + $0x220] sm:$0xff]
        %v1984 = vld [vmem:[#allocation7 + $0x228] sm:$0xff]
        %v1985 = vld [vmem:[#allocation7 + $0x230] sm:$0xff]
        %v1986 = vld [vmem:[#allocation7 + $0x238] sm:$0xff]
        %v1987 = vld [vmem:[#allocation7 + $0x240] sm:$0xff]
        %v1988 = vld [vmem:[#allocation7 + $0x248] sm:$0xff]
        %v1989 = vld [vmem:[#allocation7 + $0x250] sm:$0xff]
        %v1990 = vld [vmem:[#allocation7 + $0x258] sm:$0xff]
        %v1991 = vld [vmem:[#allocation7 + $0x260] sm:$0xff]
        %v1992 = vld [vmem:[#allocation7 + $0x268] sm:$0xff]
        %v1993 = vld [vmem:[#allocation7 + $0x270] sm:$0xff]
        %v1994 = vld [vmem:[#allocation7 + $0x278] sm:$0xff]
        %v1995 = vld [vmem:[#allocation7 + $0x280] sm:$0xff]
        %v1996 = vld [vmem:[#allocation7 + $0x288] sm:$0xff]
        %v1997 = vld [vmem:[#allocation7 + $0x290] sm:$0xff]
        %v1998 = vld [vmem:[#allocation7 + $0x298] sm:$0xff]
        %v1999 = vld [vmem:[#allocation7 + $0x2a0] sm:$0xff]
        %v2000 = vld [vmem:[#allocation7 + $0x2a8] sm:$0xff]
        %v2001 = vld [vmem:[#allocation7 + $0x2b0] sm:$0xff]
        %v2002 = vld [vmem:[#allocation7 + $0x2b8] sm:$0xff]
        %v2003 = vld [vmem:[#allocation7 + $0x2c0] sm:$0xff]
        %v2004 = vld [vmem:[#allocation7 + $0x2c8] sm:$0xff]
        %v2005 = vld [vmem:[#allocation7 + $0x2d0] sm:$0xff]
        %v2006 = vld [vmem:[#allocation7 + $0x2d8] sm:$0xff]
        %v2007 = vld [vmem:[#allocation7 + $0x2e0] sm:$0xff]
        %v2008 = vld [vmem:[#allocation7 + $0x2e8] sm:$0xff]
        %v2009 = vld [vmem:[#allocation7 + $0x2f0] sm:$0xff]
        %v2010 = vld [vmem:[#allocation7 + $0x2f8] sm:$0xff]
        %v2011 = vld [vmem:[#allocation7 + $0x300] sm:$0xff]
        %v2012 = vld [vmem:[#allocation7 + $0x308] sm:$0xff]
        %v2013 = vld [vmem:[#allocation7 + $0x310] sm:$0xff]
        %v2014 = vld [vmem:[#allocation7 + $0x318] sm:$0xff]
        %v2015 = vld [vmem:[#allocation7 + $0x320] sm:$0xff]
        %v2016 = vld [vmem:[#allocation7 + $0x328] sm:$0xff]
        %v2017 = vld [vmem:[#allocation7 + $0x330] sm:$0xff]
        %v2018 = vld [vmem:[#allocation7 + $0x338] sm:$0xff]
        %v2019 = vld [vmem:[#allocation7 + $0x340] sm:$0xff]
        %v2020 = vld [vmem:[#allocation7 + $0x348] sm:$0xff]
        %v2021 = vld [vmem:[#allocation7 + $0x350] sm:$0xff]
        %v2022 = vld [vmem:[#allocation7 + $0x358] sm:$0xff]
        %v2023 = vld [vmem:[#allocation7 + $0x360] sm:$0xff]
        %v2024 = vld [vmem:[#allocation7 + $0x368] sm:$0xff]
        %v2025 = vld [vmem:[#allocation7 + $0x370] sm:$0xff]
        %v2026 = vld [vmem:[#allocation7 + $0x378] sm:$0xff]
        %v2027 = vld [vmem:[#allocation7 + $0x380] sm:$0xff]
        %v2028 = vld [vmem:[#allocation7 + $0x388] sm:$0xff]
        %v2029 = vld [vmem:[#allocation7 + $0x390] sm:$0xff]
        %v2030 = vld [vmem:[#allocation7 + $0x398] sm:$0xff]
        %v2031 = vld [vmem:[#allocation7 + $0x3a0] sm:$0xff]
        %v2032 = vld [vmem:[#allocation7 + $0x3a8] sm:$0xff]
        %v2033 = vld [vmem:[#allocation7 + $0x3b0] sm:$0xff]
        %v2034 = vld [vmem:[#allocation7 + $0x3b8] sm:$0xff]
        %v2035 = vld [vmem:[#allocation7 + $0x3c0] sm:$0xff]
        %v2036 = vld [vmem:[#allocation7 + $0x3c8] sm:$0xff]
        %v2037 = vld [vmem:[#allocation7 + $0x3d0] sm:$0xff]
        %v2038 = vld [vmem:[#allocation7 + $0x3d8] sm:$0xff]
        %v2039 = vld [vmem:[#allocation7 + $0x3e0] sm:$0xff]
        %v2040 = vld [vmem:[#allocation7 + $0x3e8] sm:$0xff]
        %v2041 = vld [vmem:[#allocation7 + $0x3f0] sm:$0xff]
        %v2042 = vld [vmem:[#allocation7 + $0x3f8] sm:$0xff]
        %v2043 = vld [vmem:[%s7] sm:$0xf]
        %v2045 = vlaneseq
        %v2046 = vshrl.u32 %v2045, 7
        %v2047 = vsub.s32 0, %v2046
        %v2048 = vrot.slane %v2043, %v2047
        %v2049 = vlaneseq
        %v2050 = vshrl.u32 %v2049, 7
        %v2051 = vsub.s32 1, %v2050
        %v2052 = vrot.slane %v2043, %v2051
        %v2053 = vlaneseq
        %v2054 = vshrl.u32 %v2053, 7
        %v2055 = vsub.s32 2, %v2054
        %v2056 = vrot.slane %v2043, %v2055
        %v2057 = vlaneseq
        %v2058 = vshrl.u32 %v2057, 7
        %v2059 = vsub.s32 3, %v2058
        %v2060 = vrot.slane %v2043, %v2059
        %v2193 = vunpack.c.l.b16 %v1915
        %v2194 = vunpack.c.h.b16 %v1915
        %v2195 = vunpack.c.l.b16 %v1916
        %v2196 = vunpack.c.h.b16 %v1916
        %v2197 = vunpack.c.l.b16 %v1917
        %v2198 = vunpack.c.h.b16 %v1917
        %v2199 = vunpack.c.l.b16 %v1918
        %v2200 = vunpack.c.h.b16 %v1918
        %v2201 = vunpack.c.l.b16 %v1919
        %v2202 = vunpack.c.h.b16 %v1919
        %v2203 = vunpack.c.l.b16 %v1920
        %v2204 = vunpack.c.h.b16 %v1920
        %v2205 = vunpack.c.l.b16 %v1921
        %v2206 = vunpack.c.h.b16 %v1921
        %v2207 = vunpack.c.l.b16 %v1922
        %v2208 = vunpack.c.h.b16 %v1922
        %v2209 = vunpack.c.l.b16 %v1923
        %v2210 = vunpack.c.h.b16 %v1923
        %v2211 = vunpack.c.l.b16 %v1924
        %v2212 = vunpack.c.h.b16 %v1924
        %v2213 = vunpack.c.l.b16 %v1925
        %v2214 = vunpack.c.h.b16 %v1925
        %v2215 = vunpack.c.l.b16 %v1926
        %v2216 = vunpack.c.h.b16 %v1926
        %v2217 = vunpack.c.l.b16 %v1927
        %v2218 = vunpack.c.h.b16 %v1927
        %v2219 = vunpack.c.l.b16 %v1928
        %v2220 = vunpack.c.h.b16 %v1928
        %v2221 = vunpack.c.l.b16 %v1929
        %v2222 = vunpack.c.h.b16 %v1929
        %v2223 = vunpack.c.l.b16 %v1930
        %v2224 = vunpack.c.h.b16 %v1930
        %v2225 = vunpack.c.l.b16 %v1931
        %v2226 = vunpack.c.h.b16 %v1931
        %v2227 = vunpack.c.l.b16 %v1932
        %v2228 = vunpack.c.h.b16 %v1932
        %v2229 = vunpack.c.l.b16 %v1933
        %v2230 = vunpack.c.h.b16 %v1933
        %v2231 = vunpack.c.l.b16 %v1934
        %v2232 = vunpack.c.h.b16 %v1934
        %v2233 = vunpack.c.l.b16 %v1935
        %v2234 = vunpack.c.h.b16 %v1935
        %v2235 = vunpack.c.l.b16 %v1936
        %v2236 = vunpack.c.h.b16 %v1936
        %v2237 = vunpack.c.l.b16 %v1937
        %v2238 = vunpack.c.h.b16 %v1937
        %v2239 = vunpack.c.l.b16 %v1938
        %v2240 = vunpack.c.h.b16 %v1938
        %v2241 = vunpack.c.l.b16 %v1939
        %v2242 = vunpack.c.h.b16 %v1939
        %v2243 = vunpack.c.l.b16 %v1940
        %v2244 = vunpack.c.h.b16 %v1940
        %v2245 = vunpack.c.l.b16 %v1941
        %v2246 = vunpack.c.h.b16 %v1941
        %v2247 = vunpack.c.l.b16 %v1942
        %v2248 = vunpack.c.h.b16 %v1942
        %v2249 = vunpack.c.l.b16 %v1943
        %v2250 = vunpack.c.h.b16 %v1943
        %v2251 = vunpack.c.l.b16 %v1944
        %v2252 = vunpack.c.h.b16 %v1944
        %v2253 = vunpack.c.l.b16 %v1945
        %v2254 = vunpack.c.h.b16 %v1945
        %v2255 = vunpack.c.l.b16 %v1946
        %v2256 = vunpack.c.h.b16 %v1946
        %v2257 = vunpack.c.l.b16 %v1947
        %v2258 = vunpack.c.h.b16 %v1947
        %v2259 = vunpack.c.l.b16 %v1948
        %v2260 = vunpack.c.h.b16 %v1948
        %v2261 = vunpack.c.l.b16 %v1949
        %v2262 = vunpack.c.h.b16 %v1949
        %v2263 = vunpack.c.l.b16 %v1950
        %v2264 = vunpack.c.h.b16 %v1950
        %v2265 = vunpack.c.l.b16 %v1951
        %v2266 = vunpack.c.h.b16 %v1951
        %v2267 = vunpack.c.l.b16 %v1952
        %v2268 = vunpack.c.h.b16 %v1952
        %v2269 = vunpack.c.l.b16 %v1953
        %v2270 = vunpack.c.h.b16 %v1953
        %v2271 = vunpack.c.l.b16 %v1954
        %v2272 = vunpack.c.h.b16 %v1954
        %v2273 = vunpack.c.l.b16 %v1955
        %v2274 = vunpack.c.h.b16 %v1955
        %v2275 = vunpack.c.l.b16 %v1956
        %v2276 = vunpack.c.h.b16 %v1956
        %v2277 = vunpack.c.l.b16 %v1957
        %v2278 = vunpack.c.h.b16 %v1957
        %v2279 = vunpack.c.l.b16 %v1958
        %v2280 = vunpack.c.h.b16 %v1958
        %v2281 = vunpack.c.l.b16 %v1959
        %v2282 = vunpack.c.h.b16 %v1959
        %v2283 = vunpack.c.l.b16 %v1960
        %v2284 = vunpack.c.h.b16 %v1960
        %v2285 = vunpack.c.l.b16 %v1961
        %v2286 = vunpack.c.h.b16 %v1961
        %v2287 = vunpack.c.l.b16 %v1962
        %v2288 = vunpack.c.h.b16 %v1962
        %v2289 = vunpack.c.l.b16 %v1963
        %v2290 = vunpack.c.h.b16 %v1963
        %v2291 = vunpack.c.l.b16 %v1964
        %v2292 = vunpack.c.h.b16 %v1964
        %v2293 = vunpack.c.l.b16 %v1965
        %v2294 = vunpack.c.h.b16 %v1965
        %v2295 = vunpack.c.l.b16 %v1966
        %v2296 = vunpack.c.h.b16 %v1966
        %v2297 = vunpack.c.l.b16 %v1967
        %v2298 = vunpack.c.h.b16 %v1967
        %v2299 = vunpack.c.l.b16 %v1968
        %v2300 = vunpack.c.h.b16 %v1968
        %v2301 = vunpack.c.l.b16 %v1969
        %v2302 = vunpack.c.h.b16 %v1969
        %v2303 = vunpack.c.l.b16 %v1970
        %v2304 = vunpack.c.h.b16 %v1970
        %v2305 = vunpack.c.l.b16 %v1971
        %v2306 = vunpack.c.h.b16 %v1971
        %v2307 = vunpack.c.l.b16 %v1972
        %v2308 = vunpack.c.h.b16 %v1972
        %v2309 = vunpack.c.l.b16 %v1973
        %v2310 = vunpack.c.h.b16 %v1973
        %v2311 = vunpack.c.l.b16 %v1974
        %v2312 = vunpack.c.h.b16 %v1974
        %v2313 = vunpack.c.l.b16 %v1975
        %v2314 = vunpack.c.h.b16 %v1975
        %v2315 = vunpack.c.l.b16 %v1976
        %v2316 = vunpack.c.h.b16 %v1976
        %v2317 = vunpack.c.l.b16 %v1977
        %v2318 = vunpack.c.h.b16 %v1977
        %v2319 = vunpack.c.l.b16 %v1978
        %v2320 = vunpack.c.h.b16 %v1978
        %v2321 = vunpack.c.l.b16 %v1979
        %v2322 = vunpack.c.h.b16 %v1979
        %v2323 = vunpack.c.l.b16 %v1980
        %v2324 = vunpack.c.h.b16 %v1980
        %v2325 = vunpack.c.l.b16 %v1981
        %v2326 = vunpack.c.h.b16 %v1981
        %v2327 = vunpack.c.l.b16 %v1982
        %v2328 = vunpack.c.h.b16 %v1982
        %v2329 = vunpack.c.l.b16 %v1983
        %v2330 = vunpack.c.h.b16 %v1983
        %v2331 = vunpack.c.l.b16 %v1984
        %v2332 = vunpack.c.h.b16 %v1984
        %v2333 = vunpack.c.l.b16 %v1985
        %v2334 = vunpack.c.h.b16 %v1985
        %v2335 = vunpack.c.l.b16 %v1986
        %v2336 = vunpack.c.h.b16 %v1986
        %v2337 = vunpack.c.l.b16 %v1987
        %v2338 = vunpack.c.h.b16 %v1987
        %v2339 = vunpack.c.l.b16 %v1988
        %v2340 = vunpack.c.h.b16 %v1988
        %v2341 = vunpack.c.l.b16 %v1989
        %v2342 = vunpack.c.h.b16 %v1989
        %v2343 = vunpack.c.l.b16 %v1990
        %v2344 = vunpack.c.h.b16 %v1990
        %v2345 = vunpack.c.l.b16 %v1991
        %v2346 = vunpack.c.h.b16 %v1991
        %v2347 = vunpack.c.l.b16 %v1992
        %v2348 = vunpack.c.h.b16 %v1992
        %v2349 = vunpack.c.l.b16 %v1993
        %v2350 = vunpack.c.h.b16 %v1993
        %v2351 = vunpack.c.l.b16 %v1994
        %v2352 = vunpack.c.h.b16 %v1994
        %v2353 = vunpack.c.l.b16 %v1995
        %v2354 = vunpack.c.h.b16 %v1995
        %v2355 = vunpack.c.l.b16 %v1996
        %v2356 = vunpack.c.h.b16 %v1996
        %v2357 = vunpack.c.l.b16 %v1997
        %v2358 = vunpack.c.h.b16 %v1997
        %v2359 = vunpack.c.l.b16 %v1998
        %v2360 = vunpack.c.h.b16 %v1998
        %v2361 = vunpack.c.l.b16 %v1999
        %v2362 = vunpack.c.h.b16 %v1999
        %v2363 = vunpack.c.l.b16 %v2000
        %v2364 = vunpack.c.h.b16 %v2000
        %v2365 = vunpack.c.l.b16 %v2001
        %v2366 = vunpack.c.h.b16 %v2001
        %v2367 = vunpack.c.l.b16 %v2002
        %v2368 = vunpack.c.h.b16 %v2002
        %v2369 = vunpack.c.l.b16 %v2003
        %v2370 = vunpack.c.h.b16 %v2003
        %v2371 = vunpack.c.l.b16 %v2004
        %v2372 = vunpack.c.h.b16 %v2004
        %v2373 = vunpack.c.l.b16 %v2005
        %v2374 = vunpack.c.h.b16 %v2005
        %v2375 = vunpack.c.l.b16 %v2006
        %v2376 = vunpack.c.h.b16 %v2006
        %v2377 = vunpack.c.l.b16 %v2007
        %v2378 = vunpack.c.h.b16 %v2007
        %v2379 = vunpack.c.l.b16 %v2008
        %v2380 = vunpack.c.h.b16 %v2008
        %v2381 = vunpack.c.l.b16 %v2009
        %v2382 = vunpack.c.h.b16 %v2009
        %v2383 = vunpack.c.l.b16 %v2010
        %v2384 = vunpack.c.h.b16 %v2010
        %v2385 = vunpack.c.l.b16 %v2011
        %v2386 = vunpack.c.h.b16 %v2011
        %v2387 = vunpack.c.l.b16 %v2012
        %v2388 = vunpack.c.h.b16 %v2012
        %v2389 = vunpack.c.l.b16 %v2013
        %v2390 = vunpack.c.h.b16 %v2013
        %v2391 = vunpack.c.l.b16 %v2014
        %v2392 = vunpack.c.h.b16 %v2014
        %v2393 = vunpack.c.l.b16 %v2015
        %v2394 = vunpack.c.h.b16 %v2015
        %v2395 = vunpack.c.l.b16 %v2016
        %v2396 = vunpack.c.h.b16 %v2016
        %v2397 = vunpack.c.l.b16 %v2017
        %v2398 = vunpack.c.h.b16 %v2017
        %v2399 = vunpack.c.l.b16 %v2018
        %v2400 = vunpack.c.h.b16 %v2018
        %v2401 = vunpack.c.l.b16 %v2019
        %v2402 = vunpack.c.h.b16 %v2019
        %v2403 = vunpack.c.l.b16 %v2020
        %v2404 = vunpack.c.h.b16 %v2020
        %v2405 = vunpack.c.l.b16 %v2021
        %v2406 = vunpack.c.h.b16 %v2021
        %v2407 = vunpack.c.l.b16 %v2022
        %v2408 = vunpack.c.h.b16 %v2022
        %v2409 = vunpack.c.l.b16 %v2023
        %v2410 = vunpack.c.h.b16 %v2023
        %v2411 = vunpack.c.l.b16 %v2024
        %v2412 = vunpack.c.h.b16 %v2024
        %v2413 = vunpack.c.l.b16 %v2025
        %v2414 = vunpack.c.h.b16 %v2025
        %v2415 = vunpack.c.l.b16 %v2026
        %v2416 = vunpack.c.h.b16 %v2026
        %v2417 = vunpack.c.l.b16 %v2027
        %v2418 = vunpack.c.h.b16 %v2027
        %v2419 = vunpack.c.l.b16 %v2028
        %v2420 = vunpack.c.h.b16 %v2028
        %v2421 = vunpack.c.l.b16 %v2029
        %v2422 = vunpack.c.h.b16 %v2029
        %v2423 = vunpack.c.l.b16 %v2030
        %v2424 = vunpack.c.h.b16 %v2030
        %v2425 = vunpack.c.l.b16 %v2031
        %v2426 = vunpack.c.h.b16 %v2031
        %v2427 = vunpack.c.l.b16 %v2032
        %v2428 = vunpack.c.h.b16 %v2032
        %v2429 = vunpack.c.l.b16 %v2033
        %v2430 = vunpack.c.h.b16 %v2033
        %v2431 = vunpack.c.l.b16 %v2034
        %v2432 = vunpack.c.h.b16 %v2034
        %v2433 = vunpack.c.l.b16 %v2035
        %v2434 = vunpack.c.h.b16 %v2035
        %v2435 = vunpack.c.l.b16 %v2036
        %v2436 = vunpack.c.h.b16 %v2036
        %v2437 = vunpack.c.l.b16 %v2037
        %v2438 = vunpack.c.h.b16 %v2037
        %v2439 = vunpack.c.l.b16 %v2038
        %v2440 = vunpack.c.h.b16 %v2038
        %v2441 = vunpack.c.l.b16 %v2039
        %v2442 = vunpack.c.h.b16 %v2039
        %v2443 = vunpack.c.l.b16 %v2040
        %v2444 = vunpack.c.h.b16 %v2040
        %v2445 = vunpack.c.l.b16 %v2041
        %v2446 = vunpack.c.h.b16 %v2041
        %v2447 = vunpack.c.l.b16 %v2042
        %v2448 = vunpack.c.h.b16 %v2042
        %v2449 = vpack.c.b16 %v2197, %v2193
        %v2450 = vpack.c.b16 %v2198, %v2194
        %v2451 = vpack.c.b16 %v2199, %v2195
        %v2452 = vpack.c.b16 %v2200, %v2196
        %v2453 = vpack.c.b16 %v2205, %v2201
        %v2454 = vpack.c.b16 %v2206, %v2202
        %v2455 = vpack.c.b16 %v2207, %v2203
        %v2456 = vpack.c.b16 %v2208, %v2204
        %v2457 = vpack.c.b16 %v2213, %v2209
        %v2458 = vpack.c.b16 %v2214, %v2210
        %v2459 = vpack.c.b16 %v2215, %v2211
        %v2460 = vpack.c.b16 %v2216, %v2212
        %v2461 = vpack.c.b16 %v2221, %v2217
        %v2462 = vpack.c.b16 %v2222, %v2218
        %v2463 = vpack.c.b16 %v2223, %v2219
        %v2464 = vpack.c.b16 %v2224, %v2220
        %v2465 = vpack.c.b16 %v2229, %v2225
        %v2466 = vpack.c.b16 %v2230, %v2226
        %v2467 = vpack.c.b16 %v2231, %v2227
        %v2468 = vpack.c.b16 %v2232, %v2228
        %v2469 = vpack.c.b16 %v2237, %v2233
        %v2470 = vpack.c.b16 %v2238, %v2234
        %v2471 = vpack.c.b16 %v2239, %v2235
        %v2472 = vpack.c.b16 %v2240, %v2236
        %v2473 = vpack.c.b16 %v2245, %v2241
        %v2474 = vpack.c.b16 %v2246, %v2242
        %v2475 = vpack.c.b16 %v2247, %v2243
        %v2476 = vpack.c.b16 %v2248, %v2244
        %v2477 = vpack.c.b16 %v2253, %v2249
        %v2478 = vpack.c.b16 %v2254, %v2250
        %v2479 = vpack.c.b16 %v2255, %v2251
        %v2480 = vpack.c.b16 %v2256, %v2252
        %v2481 = vpack.c.b16 %v2261, %v2257
        %v2482 = vpack.c.b16 %v2262, %v2258
        %v2483 = vpack.c.b16 %v2263, %v2259
        %v2484 = vpack.c.b16 %v2264, %v2260
        %v2485 = vpack.c.b16 %v2269, %v2265
        %v2486 = vpack.c.b16 %v2270, %v2266
        %v2487 = vpack.c.b16 %v2271, %v2267
        %v2488 = vpack.c.b16 %v2272, %v2268
        %v2489 = vpack.c.b16 %v2277, %v2273
        %v2490 = vpack.c.b16 %v2278, %v2274
        %v2491 = vpack.c.b16 %v2279, %v2275
        %v2492 = vpack.c.b16 %v2280, %v2276
        %v2493 = vpack.c.b16 %v2285, %v2281
        %v2494 = vpack.c.b16 %v2286, %v2282
        %v2495 = vpack.c.b16 %v2287, %v2283
        %v2496 = vpack.c.b16 %v2288, %v2284
        %v2497 = vpack.c.b16 %v2293, %v2289
        %v2498 = vpack.c.b16 %v2294, %v2290
        %v2499 = vpack.c.b16 %v2295, %v2291
        %v2500 = vpack.c.b16 %v2296, %v2292
        %v2501 = vpack.c.b16 %v2301, %v2297
        %v2502 = vpack.c.b16 %v2302, %v2298
        %v2503 = vpack.c.b16 %v2303, %v2299
        %v2504 = vpack.c.b16 %v2304, %v2300
        %v2505 = vpack.c.b16 %v2309, %v2305
        %v2506 = vpack.c.b16 %v2310, %v2306
        %v2507 = vpack.c.b16 %v2311, %v2307
        %v2508 = vpack.c.b16 %v2312, %v2308
        %v2509 = vpack.c.b16 %v2317, %v2313
        %v2510 = vpack.c.b16 %v2318, %v2314
        %v2511 = vpack.c.b16 %v2319, %v2315
        %v2512 = vpack.c.b16 %v2320, %v2316
        %v2513 = vpack.c.b16 %v2325, %v2321
        %v2514 = vpack.c.b16 %v2326, %v2322
        %v2515 = vpack.c.b16 %v2327, %v2323
        %v2516 = vpack.c.b16 %v2328, %v2324
        %v2517 = vpack.c.b16 %v2333, %v2329
        %v2518 = vpack.c.b16 %v2334, %v2330
        %v2519 = vpack.c.b16 %v2335, %v2331
        %v2520 = vpack.c.b16 %v2336, %v2332
        %v2521 = vpack.c.b16 %v2341, %v2337
        %v2522 = vpack.c.b16 %v2342, %v2338
        %v2523 = vpack.c.b16 %v2343, %v2339
        %v2524 = vpack.c.b16 %v2344, %v2340
        %v2525 = vpack.c.b16 %v2349, %v2345
        %v2526 = vpack.c.b16 %v2350, %v2346
        %v2527 = vpack.c.b16 %v2351, %v2347
        %v2528 = vpack.c.b16 %v2352, %v2348
        %v2529 = vpack.c.b16 %v2357, %v2353
        %v2530 = vpack.c.b16 %v2358, %v2354
        %v2531 = vpack.c.b16 %v2359, %v2355
        %v2532 = vpack.c.b16 %v2360, %v2356
        %v2533 = vpack.c.b16 %v2365, %v2361
        %v2534 = vpack.c.b16 %v2366, %v2362
        %v2535 = vpack.c.b16 %v2367, %v2363
        %v2536 = vpack.c.b16 %v2368, %v2364
        %v2537 = vpack.c.b16 %v2373, %v2369
        %v2538 = vpack.c.b16 %v2374, %v2370
        %v2539 = vpack.c.b16 %v2375, %v2371
        %v2540 = vpack.c.b16 %v2376, %v2372
        %v2541 = vpack.c.b16 %v2381, %v2377
        %v2542 = vpack.c.b16 %v2382, %v2378
        %v2543 = vpack.c.b16 %v2383, %v2379
        %v2544 = vpack.c.b16 %v2384, %v2380
        %v2545 = vpack.c.b16 %v2389, %v2385
        %v2546 = vpack.c.b16 %v2390, %v2386
        %v2547 = vpack.c.b16 %v2391, %v2387
        %v2548 = vpack.c.b16 %v2392, %v2388
        %v2549 = vpack.c.b16 %v2397, %v2393
        %v2550 = vpack.c.b16 %v2398, %v2394
        %v2551 = vpack.c.b16 %v2399, %v2395
        %v2552 = vpack.c.b16 %v2400, %v2396
        %v2553 = vpack.c.b16 %v2405, %v2401
        %v2554 = vpack.c.b16 %v2406, %v2402
        %v2555 = vpack.c.b16 %v2407, %v2403
        %v2556 = vpack.c.b16 %v2408, %v2404
        %v2557 = vpack.c.b16 %v2413, %v2409
        %v2558 = vpack.c.b16 %v2414, %v2410
        %v2559 = vpack.c.b16 %v2415, %v2411
        %v2560 = vpack.c.b16 %v2416, %v2412
        %v2561 = vpack.c.b16 %v2421, %v2417
        %v2562 = vpack.c.b16 %v2422, %v2418
        %v2563 = vpack.c.b16 %v2423, %v2419
        %v2564 = vpack.c.b16 %v2424, %v2420
        %v2565 = vpack.c.b16 %v2429, %v2425
        %v2566 = vpack.c.b16 %v2430, %v2426
        %v2567 = vpack.c.b16 %v2431, %v2427
        %v2568 = vpack.c.b16 %v2432, %v2428
        %v2569 = vpack.c.b16 %v2437, %v2433
        %v2570 = vpack.c.b16 %v2438, %v2434
        %v2571 = vpack.c.b16 %v2439, %v2435
        %v2572 = vpack.c.b16 %v2440, %v2436
        %v2573 = vpack.c.b16 %v2445, %v2441
        %v2574 = vpack.c.b16 %v2446, %v2442
        %v2575 = vpack.c.b16 %v2447, %v2443
        %v2576 = vpack.c.b16 %v2448, %v2444
        %2705 = vmatprep.subr.bf16.mxu0 %v2450
        %2706 = vmatpush1.bf16.xpose.msra.mxu0 %v2449
        %2707 = vmatprep.subr.bf16.mxu0 %v2454
        %2708 = vmatpush1.bf16.xpose.msra.mxu0 %v2453
        %2709 = vmatprep.subr.bf16.mxu0 %v2458
        %2710 = vmatpush1.bf16.xpose.msra.mxu0 %v2457
        %2711 = vmatprep.subr.bf16.mxu0 %v2462
        %2712 = vmatpush1.bf16.xpose.msra.mxu0 %v2461
        %2713 = vmatprep.subr.bf16.mxu0 %v2466
        %2714 = vmatpush1.bf16.xpose.msra.mxu0 %v2465
        %2715 = vmatprep.subr.bf16.mxu0 %v2470
        %2716 = vmatpush1.bf16.xpose.msra.mxu0 %v2469
        %2717 = vmatprep.subr.bf16.mxu0 %v2474
        %2718 = vmatpush1.bf16.xpose.msra.mxu0 %v2473
        %2719 = vmatprep.subr.bf16.mxu0 %v2478
        %2720 = vmatpush1.bf16.xpose.msra.mxu0 %v2477
        %2721 = vmatprep.subr.bf16.mxu0 %v2482
        %2722 = vmatpush1.bf16.xpose.msra.mxu0 %v2481
        %2723 = vmatprep.subr.bf16.mxu0 %v2486
        %2724 = vmatpush1.bf16.xpose.msra.mxu0 %v2485
        %2725 = vmatprep.subr.bf16.mxu0 %v2490
        %2726 = vmatpush1.bf16.xpose.msra.mxu0 %v2489
        %2727 = vmatprep.subr.bf16.mxu0 %v2494
        %2728 = vmatpush1.bf16.xpose.msra.mxu0 %v2493
        %2729 = vmatprep.subr.bf16.mxu0 %v2498
        %2730 = vmatpush1.bf16.xpose.msra.mxu0 %v2497
        %2731 = vmatprep.subr.bf16.mxu0 %v2502
        %2732 = vmatpush1.bf16.xpose.msra.mxu0 %v2501
        %2733 = vmatprep.subr.bf16.mxu0 %v2506
        %2734 = vmatpush1.bf16.xpose.msra.mxu0 %v2505
        %2735 = vmatprep.subr.bf16.mxu0 %v2510
        %2736 = vmatpush1.bf16.xpose.msra.mxu0 %v2509
        %2737 = vmatprep.mubr.bf16.mxu0 %v1884
        %2738 = vmatmul.mubr.bf16.gmra.mrb[0].mxu0 %v1883
        %v2739 = vpop.f32.mrb[0].mxu0
        %v2740 = vadd.f32 %v2048, %v2739
        %v2741 = vpop.f32.mrb[0].mxu0
        %v2742 = vadd.f32 %v2052, %v2741
        %v2743 = vpop.f32.mrb[0].mxu0
        %v2744 = vadd.f32 %v2048, %v2743
        %v2745 = vpop.f32.mrb[0].mxu0
        %v2746 = vadd.f32 %v2052, %v2745
        %2747 = vmatprep.mubr.bf16.mxu0 %v1888
        %2748 = vmatmul.mubr.bf16.gmra.mrb[0].mxu0 %v1887
        %v2749 = vpop.f32.mrb[0].mxu0
        %v2750 = vadd.f32 %v2048, %v2749
        %v2751 = vpop.f32.mrb[0].mxu0
        %v2752 = vadd.f32 %v2052, %v2751
        %v2753 = vpop.f32.mrb[0].mxu0
        %v2754 = vadd.f32 %v2048, %v2753
        %v2755 = vpop.f32.mrb[0].mxu0
        %v2756 = vadd.f32 %v2052, %v2755
        %2757 = vmatprep.mubr.bf16.mxu0 %v1892
        %2758 = vmatmul.mubr.bf16.gmra.mrb[0].mxu0 %v1891
        %v2759 = vpop.f32.mrb[0].mxu0
        %v2760 = vadd.f32 %v2048, %v2759
        %v2761 = vpop.f32.mrb[0].mxu0
        %v2762 = vadd.f32 %v2052, %v2761
        %v2763 = vpop.f32.mrb[0].mxu0
        %v2764 = vadd.f32 %v2048, %v2763
        %v2765 = vpop.f32.mrb[0].mxu0
        %v2766 = vadd.f32 %v2052, %v2765
        %2767 = vmatprep.mubr.bf16.mxu0 %v1896
        %2768 = vmatmul.mubr.bf16.gmra.mrb[0].mxu0 %v1895
        %v2769 = vpop.f32.mrb[0].mxu0
        %v2770 = vadd.f32 %v2048, %v2769
        %v2771 = vpop.f32.mrb[0].mxu0
        %v2772 = vadd.f32 %v2052, %v2771
        %v2773 = vpop.f32.mrb[0].mxu0
        %v2774 = vadd.f32 %v2048, %v2773
        %v2775 = vpop.f32.mrb[0].mxu0
        %v2776 = vadd.f32 %v2052, %v2775
        %2777 = vmatprep.mubr.bf16.mxu0 %v1900
        %2778 = vmatmul.mubr.bf16.gmra.mrb[0].mxu0 %v1899
        %v2779 = vpop.f32.mrb[0].mxu0
        %v2780 = vadd.f32 %v2048, %v2779
        %v2781 = vpop.f32.mrb[0].mxu0
        %v2782 = vadd.f32 %v2052, %v2781
        %v2783 = vpop.f32.mrb[0].mxu0
        %v2784 = vadd.f32 %v2048, %v2783
        %v2785 = vpop.f32.mrb[0].mxu0
        %v2786 = vadd.f32 %v2052, %v2785
        %2787 = vmatprep.mubr.bf16.mxu0 %v1904
        %2788 = vmatmul.mubr.bf16.gmra.mrb[0].mxu0 %v1903
        %v2789 = vpop.f32.mrb[0].mxu0
        %v2790 = vadd.f32 %v2048, %v2789
        %v2791 = vpop.f32.mrb[0].mxu0
        %v2792 = vadd.f32 %v2052, %v2791
        %v2793 = vpop.f32.mrb[0].mxu0
        %v2794 = vadd.f32 %v2048, %v2793
        %v2795 = vpop.f32.mrb[0].mxu0
        %v2796 = vadd.f32 %v2052, %v2795
        %2797 = vmatprep.mubr.bf16.mxu0 %v1908
        %2798 = vmatmul.mubr.bf16.gmra.mrb[0].mxu0 %v1907
        %v2799 = vpop.f32.mrb[0].mxu0
        %v2800 = vadd.f32 %v2048, %v2799
        %v2801 = vpop.f32.mrb[0].mxu0
        %v2802 = vadd.f32 %v2052, %v2801
        %v2803 = vpop.f32.mrb[0].mxu0
        %v2804 = vadd.f32 %v2048, %v2803
        %v2805 = vpop.f32.mrb[0].mxu0
        %v2806 = vadd.f32 %v2052, %v2805
        %2807 = vmatprep.mubr.bf16.mxu0 %v1912
        %2808 = vmatmul.mubr.bf16.gmra.mrb[0].mxu0 %v1911
        %v2809 = vpop.f32.mrb[0].mxu0
        %v2810 = vadd.f32 %v2048, %v2809
        %v2811 = vpop.f32.mrb[0].mxu0
        %v2812 = vadd.f32 %v2052, %v2811
        %v2813 = vpop.f32.mrb[0].mxu0
        %v2814 = vadd.f32 %v2048, %v2813
        %v2815 = vpop.f32.mrb[0].mxu0
        %v2816 = vadd.f32 %v2052, %v2815
        %2817 = vdwg.mxu0
        %2818 = vmatprep.subr.bf16.mxu0 %v2452
        %2819 = vmatpush1.bf16.xpose.msra.mxu0 %v2451
        %2820 = vmatprep.subr.bf16.mxu0 %v2456
        %2821 = vmatpush1.bf16.xpose.msra.mxu0 %v2455
        %2822 = vmatprep.subr.bf16.mxu0 %v2460
        %2823 = vmatpush1.bf16.xpose.msra.mxu0 %v2459
        %2824 = vmatprep.subr.bf16.mxu0 %v2464
        %2825 = vmatpush1.bf16.xpose.msra.mxu0 %v2463
        %2826 = vmatprep.subr.bf16.mxu0 %v2468
        %2827 = vmatpush1.bf16.xpose.msra.mxu0 %v2467
        %2828 = vmatprep.subr.bf16.mxu0 %v2472
        %2829 = vmatpush1.bf16.xpose.msra.mxu0 %v2471
        %2830 = vmatprep.subr.bf16.mxu0 %v2476
        %2831 = vmatpush1.bf16.xpose.msra.mxu0 %v2475
        %2832 = vmatprep.subr.bf16.mxu0 %v2480
        %2833 = vmatpush1.bf16.xpose.msra.mxu0 %v2479
        %2834 = vmatprep.subr.bf16.mxu0 %v2484
        %2835 = vmatpush1.bf16.xpose.msra.mxu0 %v2483
        %2836 = vmatprep.subr.bf16.mxu0 %v2488
        %2837 = vmatpush1.bf16.xpose.msra.mxu0 %v2487
        %2838 = vmatprep.subr.bf16.mxu0 %v2492
        %2839 = vmatpush1.bf16.xpose.msra.mxu0 %v2491
        %2840 = vmatprep.subr.bf16.mxu0 %v2496
        %2841 = vmatpush1.bf16.xpose.msra.mxu0 %v2495
        %2842 = vmatprep.subr.bf16.mxu0 %v2500
        %2843 = vmatpush1.bf16.xpose.msra.mxu0 %v2499
        %2844 = vmatprep.subr.bf16.mxu0 %v2504
        %2845 = vmatpush1.bf16.xpose.msra.mxu0 %v2503
        %2846 = vmatprep.subr.bf16.mxu0 %v2508
        %2847 = vmatpush1.bf16.xpose.msra.mxu0 %v2507
        %2848 = vmatprep.subr.bf16.mxu0 %v2512
        %2849 = vmatpush1.bf16.xpose.msra.mxu0 %v2511
        %2850 = vmatprep.mubr.bf16.mxu0 %v1886
        %2851 = vmatmul.mubr.bf16.gmra.mrb[0].mxu0 %v1885
        %v2852 = vpop.f32.mrb[0].mxu0
        %v2853 = vadd.f32 %v2740, %v2852
        %v2854 = vpop.f32.mrb[0].mxu0
        %v2855 = vadd.f32 %v2742, %v2854
        %v2856 = vpop.f32.mrb[0].mxu0
        %v2857 = vadd.f32 %v2744, %v2856
        %v2858 = vpop.f32.mrb[0].mxu0
        %v2859 = vadd.f32 %v2746, %v2858
        %2860 = vmatprep.mubr.bf16.mxu0 %v1890
        %2861 = vmatmul.mubr.bf16.gmra.mrb[0].mxu0 %v1889
        %v2862 = vpop.f32.mrb[0].mxu0
        %v2863 = vadd.f32 %v2750, %v2862
        %v2864 = vpop.f32.mrb[0].mxu0
        %v2865 = vadd.f32 %v2752, %v2864
        %v2866 = vpop.f32.mrb[0].mxu0
        %v2867 = vadd.f32 %v2754, %v2866
        %v2868 = vpop.f32.mrb[0].mxu0
        %v2869 = vadd.f32 %v2756, %v2868
        %2870 = vmatprep.mubr.bf16.mxu0 %v1894
        %2871 = vmatmul.mubr.bf16.gmra.mrb[0].mxu0 %v1893
        %v2872 = vpop.f32.mrb[0].mxu0
        %v2873 = vadd.f32 %v2760, %v2872
        %v2874 = vpop.f32.mrb[0].mxu0
        %v2875 = vadd.f32 %v2762, %v2874
        %v2876 = vpop.f32.mrb[0].mxu0
        %v2877 = vadd.f32 %v2764, %v2876
        %v2878 = vpop.f32.mrb[0].mxu0
        %v2879 = vadd.f32 %v2766, %v2878
        %2880 = vmatprep.mubr.bf16.mxu0 %v1898
        %2881 = vmatmul.mubr.bf16.gmra.mrb[0].mxu0 %v1897
        %v2882 = vpop.f32.mrb[0].mxu0
        %v2883 = vadd.f32 %v2770, %v2882
        %v2884 = vpop.f32.mrb[0].mxu0
        %v2885 = vadd.f32 %v2772, %v2884
        %v2886 = vpop.f32.mrb[0].mxu0
        %v2887 = vadd.f32 %v2774, %v2886
        %v2888 = vpop.f32.mrb[0].mxu0
        %v2889 = vadd.f32 %v2776, %v2888
        %2890 = vmatprep.mubr.bf16.mxu0 %v1902
        %2891 = vmatmul.mubr.bf16.gmra.mrb[0].mxu0 %v1901
        %v2892 = vpop.f32.mrb[0].mxu0
        %v2893 = vadd.f32 %v2780, %v2892
        %v2894 = vpop.f32.mrb[0].mxu0
        %v2895 = vadd.f32 %v2782, %v2894
        %v2896 = vpop.f32.mrb[0].mxu0
        %v2897 = vadd.f32 %v2784, %v2896
        %v2898 = vpop.f32.mrb[0].mxu0
        %v2899 = vadd.f32 %v2786, %v2898
        %2900 = vmatprep.mubr.bf16.mxu0 %v1906
        %2901 = vmatmul.mubr.bf16.gmra.mrb[0].mxu0 %v1905
        %v2902 = vpop.f32.mrb[0].mxu0
        %v2903 = vadd.f32 %v2790, %v2902
        %v2904 = vpop.f32.mrb[0].mxu0
        %v2905 = vadd.f32 %v2792, %v2904
        %v2906 = vpop.f32.mrb[0].mxu0
        %v2907 = vadd.f32 %v2794, %v2906
        %v2908 = vpop.f32.mrb[0].mxu0
        %v2909 = vadd.f32 %v2796, %v2908
        %2910 = vmatprep.mubr.bf16.mxu0 %v1910
        %2911 = vmatmul.mubr.bf16.gmra.mrb[0].mxu0 %v1909
        %v2912 = vpop.f32.mrb[0].mxu0
        %v2913 = vadd.f32 %v2800, %v2912
        %v2914 = vpop.f32.mrb[0].mxu0
        %v2915 = vadd.f32 %v2802, %v2914
        %v2916 = vpop.f32.mrb[0].mxu0
        %v2917 = vadd.f32 %v2804, %v2916
        %v2918 = vpop.f32.mrb[0].mxu0
        %v2919 = vadd.f32 %v2806, %v2918
        %2920 = vmatprep.mubr.bf16.mxu0 %v1914
        %2921 = vmatmul.mubr.bf16.gmra.mrb[0].mxu0 %v1913
        %v2922 = vpop.f32.mrb[0].mxu0
        %v2923 = vadd.f32 %v2810, %v2922
        %v2924 = vpop.f32.mrb[0].mxu0
        %v2925 = vadd.f32 %v2812, %v2924
        %v2926 = vpop.f32.mrb[0].mxu0
        %v2927 = vadd.f32 %v2814, %v2926
        %v2928 = vpop.f32.mrb[0].mxu0
        %v2929 = vadd.f32 %v2816, %v2928
        %2930 = vdwg.mxu0
        %2931 = vmatprep.subr.bf16.mxu0 %v2514
        %2932 = vmatpush1.bf16.xpose.msra.mxu0 %v2513
        %2933 = vmatprep.subr.bf16.mxu0 %v2518
        %2934 = vmatpush1.bf16.xpose.msra.mxu0 %v2517
        %2935 = vmatprep.subr.bf16.mxu0 %v2522
        %2936 = vmatpush1.bf16.xpose.msra.mxu0 %v2521
        %2937 = vmatprep.subr.bf16.mxu0 %v2526
        %2938 = vmatpush1.bf16.xpose.msra.mxu0 %v2525
        %2939 = vmatprep.subr.bf16.mxu0 %v2530
        %2940 = vmatpush1.bf16.xpose.msra.mxu0 %v2529
        %2941 = vmatprep.subr.bf16.mxu0 %v2534
        %2942 = vmatpush1.bf16.xpose.msra.mxu0 %v2533
        %2943 = vmatprep.subr.bf16.mxu0 %v2538
        %2944 = vmatpush1.bf16.xpose.msra.mxu0 %v2537
        %2945 = vmatprep.subr.bf16.mxu0 %v2542
        %2946 = vmatpush1.bf16.xpose.msra.mxu0 %v2541
        %2947 = vmatprep.subr.bf16.mxu0 %v2546
        %2948 = vmatpush1.bf16.xpose.msra.mxu0 %v2545
        %2949 = vmatprep.subr.bf16.mxu0 %v2550
        %2950 = vmatpush1.bf16.xpose.msra.mxu0 %v2549
        %2951 = vmatprep.subr.bf16.mxu0 %v2554
        %2952 = vmatpush1.bf16.xpose.msra.mxu0 %v2553
        %2953 = vmatprep.subr.bf16.mxu0 %v2558
        %2954 = vmatpush1.bf16.xpose.msra.mxu0 %v2557
        %2955 = vmatprep.subr.bf16.mxu0 %v2562
        %2956 = vmatpush1.bf16.xpose.msra.mxu0 %v2561
        %2957 = vmatprep.subr.bf16.mxu0 %v2566
        %2958 = vmatpush1.bf16.xpose.msra.mxu0 %v2565
        %2959 = vmatprep.subr.bf16.mxu0 %v2570
        %2960 = vmatpush1.bf16.xpose.msra.mxu0 %v2569
        %2961 = vmatprep.subr.bf16.mxu0 %v2574
        %2962 = vmatpush1.bf16.xpose.msra.mxu0 %v2573
        %2963 = vmatprep.mubr.bf16.mxu0 %v1884
        %2964 = vmatmul.mubr.bf16.gmra.mrb[0].mxu0 %v1883
        %v2965 = vpop.f32.mrb[0].mxu0
        %v2966 = vadd.f32 %v2056, %v2965
        %v2967 = vpop.f32.mrb[0].mxu0
        %v2968 = vadd.f32 %v2060, %v2967
        %v2969 = vpop.f32.mrb[0].mxu0
        %v2970 = vadd.f32 %v2056, %v2969
        %v2971 = vpop.f32.mrb[0].mxu0
        %v2972 = vadd.f32 %v2060, %v2971
        %2973 = vmatprep.mubr.bf16.mxu0 %v1888
        %2974 = vmatmul.mubr.bf16.gmra.mrb[0].mxu0 %v1887
        %v2975 = vpop.f32.mrb[0].mxu0
        %v2976 = vadd.f32 %v2056, %v2975
        %v2977 = vpop.f32.mrb[0].mxu0
        %v2978 = vadd.f32 %v2060, %v2977
        %v2979 = vpop.f32.mrb[0].mxu0
        %v2980 = vadd.f32 %v2056, %v2979
        %v2981 = vpop.f32.mrb[0].mxu0
        %v2982 = vadd.f32 %v2060, %v2981
        %2983 = vmatprep.mubr.bf16.mxu0 %v1892
        %2984 = vmatmul.mubr.bf16.gmra.mrb[0].mxu0 %v1891
        %v2985 = vpop.f32.mrb[0].mxu0
        %v2986 = vadd.f32 %v2056, %v2985
        %v2987 = vpop.f32.mrb[0].mxu0
        %v2988 = vadd.f32 %v2060, %v2987
        %v2989 = vpop.f32.mrb[0].mxu0
        %v2990 = vadd.f32 %v2056, %v2989
        %v2991 = vpop.f32.mrb[0].mxu0
        %v2992 = vadd.f32 %v2060, %v2991
        %2993 = vmatprep.mubr.bf16.mxu0 %v1896
        %2994 = vmatmul.mubr.bf16.gmra.mrb[0].mxu0 %v1895
        %v2995 = vpop.f32.mrb[0].mxu0
        %v2996 = vadd.f32 %v2056, %v2995
        %v2997 = vpop.f32.mrb[0].mxu0
        %v2998 = vadd.f32 %v2060, %v2997
        %v2999 = vpop.f32.mrb[0].mxu0
        %v3000 = vadd.f32 %v2056, %v2999
        %v3001 = vpop.f32.mrb[0].mxu0
        %v3002 = vadd.f32 %v2060, %v3001
        %3003 = vmatprep.mubr.bf16.mxu0 %v1900
        %3004 = vmatmul.mubr.bf16.gmra.mrb[0].mxu0 %v1899
        %v3005 = vpop.f32.mrb[0].mxu0
        %v3006 = vadd.f32 %v2056, %v3005
        %v3007 = vpop.f32.mrb[0].mxu0
        %v3008 = vadd.f32 %v2060, %v3007
        %v3009 = vpop.f32.mrb[0].mxu0
        %v3010 = vadd.f32 %v2056, %v3009
        %v3011 = vpop.f32.mrb[0].mxu0
        %v3012 = vadd.f32 %v2060, %v3011
        %3013 = vmatprep.mubr.bf16.mxu0 %v1904
        %3014 = vmatmul.mubr.bf16.gmra.mrb[0].mxu0 %v1903
        %v3015 = vpop.f32.mrb[0].mxu0
        %v3016 = vadd.f32 %v2056, %v3015
        %v3017 = vpop.f32.mrb[0].mxu0
        %v3018 = vadd.f32 %v2060, %v3017
        %v3019 = vpop.f32.mrb[0].mxu0
        %v3020 = vadd.f32 %v2056, %v3019
        %v3021 = vpop.f32.mrb[0].mxu0
        %v3022 = vadd.f32 %v2060, %v3021
        %3023 = vmatprep.mubr.bf16.mxu0 %v1908
        %3024 = vmatmul.mubr.bf16.gmra.mrb[0].mxu0 %v1907
        %v3025 = vpop.f32.mrb[0].mxu0
        %v3026 = vadd.f32 %v2056, %v3025
        %v3027 = vpop.f32.mrb[0].mxu0
        %v3028 = vadd.f32 %v2060, %v3027
        %v3029 = vpop.f32.mrb[0].mxu0
        %v3030 = vadd.f32 %v2056, %v3029
        %v3031 = vpop.f32.mrb[0].mxu0
        %v3032 = vadd.f32 %v2060, %v3031
        %3033 = vmatprep.mubr.bf16.mxu0 %v1912
        %3034 = vmatmul.mubr.bf16.gmra.mrb[0].mxu0 %v1911
        %v3035 = vpop.f32.mrb[0].mxu0
        %v3036 = vadd.f32 %v2056, %v3035
        %v3037 = vpop.f32.mrb[0].mxu0
        %v3038 = vadd.f32 %v2060, %v3037
        %v3039 = vpop.f32.mrb[0].mxu0
        %v3040 = vadd.f32 %v2056, %v3039
        %v3041 = vpop.f32.mrb[0].mxu0
        %v3042 = vadd.f32 %v2060, %v3041
        %3043 = vdwg.mxu0
        %3044 = vmatprep.subr.bf16.mxu0 %v2516
        %3045 = vmatpush1.bf16.xpose.msra.mxu0 %v2515
        %3046 = vmatprep.subr.bf16.mxu0 %v2520
        %3047 = vmatpush1.bf16.xpose.msra.mxu0 %v2519
        %3048 = vmatprep.subr.bf16.mxu0 %v2524
        %3049 = vmatpush1.bf16.xpose.msra.mxu0 %v2523
        %3050 = vmatprep.subr.bf16.mxu0 %v2528
        %3051 = vmatpush1.bf16.xpose.msra.mxu0 %v2527
        %3052 = vmatprep.subr.bf16.mxu0 %v2532
        %3053 = vmatpush1.bf16.xpose.msra.mxu0 %v2531
        %3054 = vmatprep.subr.bf16.mxu0 %v2536
        %3055 = vmatpush1.bf16.xpose.msra.mxu0 %v2535
        %3056 = vmatprep.subr.bf16.mxu0 %v2540
        %3057 = vmatpush1.bf16.xpose.msra.mxu0 %v2539
        %3058 = vmatprep.subr.bf16.mxu0 %v2544
        %3059 = vmatpush1.bf16.xpose.msra.mxu0 %v2543
        %3060 = vmatprep.subr.bf16.mxu0 %v2548
        %3061 = vmatpush1.bf16.xpose.msra.mxu0 %v2547
        %3062 = vmatprep.subr.bf16.mxu0 %v2552
        %3063 = vmatpush1.bf16.xpose.msra.mxu0 %v2551
        %3064 = vmatprep.subr.bf16.mxu0 %v2556
        %3065 = vmatpush1.bf16.xpose.msra.mxu0 %v2555
        %3066 = vmatprep.subr.bf16.mxu0 %v2560
        %3067 = vmatpush1.bf16.xpose.msra.mxu0 %v2559
        %3068 = vmatprep.subr.bf16.mxu0 %v2564
        %3069 = vmatpush1.bf16.xpose.msra.mxu0 %v2563
        %3070 = vmatprep.subr.bf16.mxu0 %v2568
        %3071 = vmatpush1.bf16.xpose.msra.mxu0 %v2567
        %3072 = vmatprep.subr.bf16.mxu0 %v2572
        %3073 = vmatpush1.bf16.xpose.msra.mxu0 %v2571
        %3074 = vmatprep.subr.bf16.mxu0 %v2576
        %3075 = vmatpush1.bf16.xpose.msra.mxu0 %v2575
        %3076 = vmatprep.mubr.bf16.mxu0 %v1886
        %3077 = vmatmul.mubr.bf16.gmra.mrb[0].mxu0 %v1885
        %v3078 = vpop.f32.mrb[0].mxu0
        %v3079 = vadd.f32 %v2966, %v3078
        %v3080 = vpop.f32.mrb[0].mxu0
        %v3081 = vadd.f32 %v2968, %v3080
        %v3082 = vpop.f32.mrb[0].mxu0
        %v3083 = vadd.f32 %v2970, %v3082
        %v3084 = vpop.f32.mrb[0].mxu0
        %v3085 = vadd.f32 %v2972, %v3084
        %3086 = vmatprep.mubr.bf16.mxu0 %v1890
        %3087 = vmatmul.mubr.bf16.gmra.mrb[0].mxu0 %v1889
        %v3088 = vpop.f32.mrb[0].mxu0
        %v3089 = vadd.f32 %v2976, %v3088
        %v3090 = vpop.f32.mrb[0].mxu0
        %v3091 = vadd.f32 %v2978, %v3090
        %v3092 = vpop.f32.mrb[0].mxu0
        %v3093 = vadd.f32 %v2980, %v3092
        %v3094 = vpop.f32.mrb[0].mxu0
        %v3095 = vadd.f32 %v2982, %v3094
        %3096 = vmatprep.mubr.bf16.mxu0 %v1894
        %3097 = vmatmul.mubr.bf16.gmra.mrb[0].mxu0 %v1893
        %v3098 = vpop.f32.mrb[0].mxu0
        %v3099 = vadd.f32 %v2986, %v3098
        %v3100 = vpop.f32.mrb[0].mxu0
        %v3101 = vadd.f32 %v2988, %v3100
        %v3102 = vpop.f32.mrb[0].mxu0
        %v3103 = vadd.f32 %v2990, %v3102
        %v3104 = vpop.f32.mrb[0].mxu0
        %v3105 = vadd.f32 %v2992, %v3104
        %3106 = vmatprep.mubr.bf16.mxu0 %v1898
        %3107 = vmatmul.mubr.bf16.gmra.mrb[0].mxu0 %v1897
        %v3108 = vpop.f32.mrb[0].mxu0
        %v3109 = vadd.f32 %v2996, %v3108
        %v3110 = vpop.f32.mrb[0].mxu0
        %v3111 = vadd.f32 %v2998, %v3110
        %v3112 = vpop.f32.mrb[0].mxu0
        %v3113 = vadd.f32 %v3000, %v3112
        %v3114 = vpop.f32.mrb[0].mxu0
        %v3115 = vadd.f32 %v3002, %v3114
        %3116 = vmatprep.mubr.bf16.mxu0 %v1902
        %3117 = vmatmul.mubr.bf16.gmra.mrb[0].mxu0 %v1901
        %v3118 = vpop.f32.mrb[0].mxu0
        %v3119 = vadd.f32 %v3006, %v3118
        %v3120 = vpop.f32.mrb[0].mxu0
        %v3121 = vadd.f32 %v3008, %v3120
        %v3122 = vpop.f32.mrb[0].mxu0
        %v3123 = vadd.f32 %v3010, %v3122
        %v3124 = vpop.f32.mrb[0].mxu0
        %v3125 = vadd.f32 %v3012, %v3124
        %3126 = vmatprep.mubr.bf16.mxu0 %v1906
        %3127 = vmatmul.mubr.bf16.gmra.mrb[0].mxu0 %v1905
        %v3128 = vpop.f32.mrb[0].mxu0
        %v3129 = vadd.f32 %v3016, %v3128
        %v3130 = vpop.f32.mrb[0].mxu0
        %v3131 = vadd.f32 %v3018, %v3130
        %v3132 = vpop.f32.mrb[0].mxu0
        %v3133 = vadd.f32 %v3020, %v3132
        %v3134 = vpop.f32.mrb[0].mxu0
        %v3135 = vadd.f32 %v3022, %v3134
        %3136 = vmatprep.mubr.bf16.mxu0 %v1910
        %3137 = vmatmul.mubr.bf16.gmra.mrb[0].mxu0 %v1909
        %v3138 = vpop.f32.mrb[0].mxu0
        %v3139 = vadd.f32 %v3026, %v3138
        %v3140 = vpop.f32.mrb[0].mxu0
        %v3141 = vadd.f32 %v3028, %v3140
        %v3142 = vpop.f32.mrb[0].mxu0
        %v3143 = vadd.f32 %v3030, %v3142
        %v3144 = vpop.f32.mrb[0].mxu0
        %v3145 = vadd.f32 %v3032, %v3144
        %3146 = vmatprep.mubr.bf16.mxu0 %v1914
        %3147 = vmatmul.mubr.bf16.gmra.mrb[0].mxu0 %v1913
        %v3148 = vpop.f32.mrb[0].mxu0
        %v3149 = vadd.f32 %v3036, %v3148
        %v3150 = vpop.f32.mrb[0].mxu0
        %v3151 = vadd.f32 %v3038, %v3150
        %v3152 = vpop.f32.mrb[0].mxu0
        %v3153 = vadd.f32 %v3040, %v3152
        %v3154 = vpop.f32.mrb[0].mxu0
        %v3155 = vadd.f32 %v3042, %v3154
        %3156 = vdwg.mxu0
        %v3157 = vmax.f32 %v2853, 0.0
        %v3158 = vmax.f32 %v2855, 0.0
        %v3159 = vmax.f32 %v3079, 0.0
        %v3160 = vmax.f32 %v3081, 0.0
        %v3161 = vmax.f32 %v2857, 0.0
        %v3162 = vmax.f32 %v2859, 0.0
        %v3163 = vmax.f32 %v3083, 0.0
        %v3164 = vmax.f32 %v3085, 0.0
        %v3165 = vmax.f32 %v2863, 0.0
        %v3166 = vmax.f32 %v2865, 0.0
        %v3167 = vmax.f32 %v3089, 0.0
        %v3168 = vmax.f32 %v3091, 0.0
        %v3169 = vmax.f32 %v2867, 0.0
        %v3170 = vmax.f32 %v2869, 0.0
        %v3171 = vmax.f32 %v3093, 0.0
        %v3172 = vmax.f32 %v3095, 0.0
        %v3173 = vmax.f32 %v2873, 0.0
        %v3174 = vmax.f32 %v2875, 0.0
        %v3175 = vmax.f32 %v3099, 0.0
        %v3176 = vmax.f32 %v3101, 0.0
        %v3177 = vmax.f32 %v2877, 0.0
        %v3178 = vmax.f32 %v2879, 0.0
        %v3179 = vmax.f32 %v3103, 0.0
        %v3180 = vmax.f32 %v3105, 0.0
        %v3181 = vmax.f32 %v2883, 0.0
        %v3182 = vmax.f32 %v2885, 0.0
        %v3183 = vmax.f32 %v3109, 0.0
        %v3184 = vmax.f32 %v3111, 0.0
        %v3185 = vmax.f32 %v2887, 0.0
        %v3186 = vmax.f32 %v2889, 0.0
        %v3187 = vmax.f32 %v3113, 0.0
        %v3188 = vmax.f32 %v3115, 0.0
        %v3189 = vmax.f32 %v2893, 0.0
        %v3190 = vmax.f32 %v2895, 0.0
        %v3191 = vmax.f32 %v3119, 0.0
        %v3192 = vmax.f32 %v3121, 0.0
        %v3193 = vmax.f32 %v2897, 0.0
        %v3194 = vmax.f32 %v2899, 0.0
        %v3195 = vmax.f32 %v3123, 0.0
        %v3196 = vmax.f32 %v3125, 0.0
        %v3197 = vmax.f32 %v2903, 0.0
        %v3198 = vmax.f32 %v2905, 0.0
        %v3199 = vmax.f32 %v3129, 0.0
        %v3200 = vmax.f32 %v3131, 0.0
        %v3201 = vmax.f32 %v2907, 0.0
        %v3202 = vmax.f32 %v2909, 0.0
        %v3203 = vmax.f32 %v3133, 0.0
        %v3204 = vmax.f32 %v3135, 0.0
        %v3205 = vmax.f32 %v2913, 0.0
        %v3206 = vmax.f32 %v2915, 0.0
        %v3207 = vmax.f32 %v3139, 0.0
        %v3208 = vmax.f32 %v3141, 0.0
        %v3209 = vmax.f32 %v2917, 0.0
        %v3210 = vmax.f32 %v2919, 0.0
        %v3211 = vmax.f32 %v3143, 0.0
        %v3212 = vmax.f32 %v3145, 0.0
        %v3213 = vmax.f32 %v2923, 0.0
        %v3214 = vmax.f32 %v2925, 0.0
        %v3215 = vmax.f32 %v3149, 0.0
        %v3216 = vmax.f32 %v3151, 0.0
        %v3217 = vmax.f32 %v2927, 0.0
        %v3218 = vmax.f32 %v2929, 0.0
        %v3219 = vmax.f32 %v3153, 0.0
        %v3220 = vmax.f32 %v3155, 0.0
        %v3221 = vpack.c.bf16 %v3161, %v3157
        %v3222 = vpack.c.bf16 %v3162, %v3158
        %v3223 = vpack.c.bf16 %v3163, %v3159
        %v3224 = vpack.c.bf16 %v3164, %v3160
        %v3225 = vpack.c.bf16 %v3169, %v3165
        %v3226 = vpack.c.bf16 %v3170, %v3166
        %v3227 = vpack.c.bf16 %v3171, %v3167
        %v3228 = vpack.c.bf16 %v3172, %v3168
        %v3229 = vpack.c.bf16 %v3177, %v3173
        %v3230 = vpack.c.bf16 %v3178, %v3174
        %v3231 = vpack.c.bf16 %v3179, %v3175
        %v3232 = vpack.c.bf16 %v3180, %v3176
        %v3233 = vpack.c.bf16 %v3185, %v3181
        %v3234 = vpack.c.bf16 %v3186, %v3182
        %v3235 = vpack.c.bf16 %v3187, %v3183
        %v3236 = vpack.c.bf16 %v3188, %v3184
        %v3237 = vpack.c.bf16 %v3193, %v3189
        %v3238 = vpack.c.bf16 %v3194, %v3190
        %v3239 = vpack.c.bf16 %v3195, %v3191
        %v3240 = vpack.c.bf16 %v3196, %v3192
        %v3241 = vpack.c.bf16 %v3201, %v3197
        %v3242 = vpack.c.bf16 %v3202, %v3198
        %v3243 = vpack.c.bf16 %v3203, %v3199
        %v3244 = vpack.c.bf16 %v3204, %v3200
        %v3245 = vpack.c.bf16 %v3209, %v3205
        %v3246 = vpack.c.bf16 %v3210, %v3206
        %v3247 = vpack.c.bf16 %v3211, %v3207
        %v3248 = vpack.c.bf16 %v3212, %v3208
        %v3249 = vpack.c.bf16 %v3217, %v3213
        %v3250 = vpack.c.bf16 %v3218, %v3214
        %v3251 = vpack.c.bf16 %v3219, %v3215
        %v3252 = vpack.c.bf16 %v3220, %v3216
        %v3253 = vld [vmem:[#allocation8] sm:$0xff]
        %v3254 = vld [vmem:[#allocation8 + $0x8] sm:$0xff]
        %v3255 = vld [vmem:[#allocation8 + $0x10] sm:$0xff]
        %v3256 = vld [vmem:[#allocation8 + $0x18] sm:$0xff]
        %v3257 = vld [vmem:[#allocation8 + $0x20] sm:$0xff]
        %v3258 = vld [vmem:[#allocation8 + $0x28] sm:$0xff]
        %v3259 = vld [vmem:[#allocation8 + $0x30] sm:$0xff]
        %v3260 = vld [vmem:[#allocation8 + $0x38] sm:$0xff]
        %v3261 = vld [vmem:[#allocation8 + $0x40] sm:$0xff]
        %v3262 = vld [vmem:[#allocation8 + $0x48] sm:$0xff]
        %v3263 = vld [vmem:[#allocation8 + $0x50] sm:$0xff]
        %v3264 = vld [vmem:[#allocation8 + $0x58] sm:$0xff]
        %v3265 = vld [vmem:[#allocation8 + $0x60] sm:$0xff]
        %v3266 = vld [vmem:[#allocation8 + $0x68] sm:$0xff]
        %v3267 = vld [vmem:[#allocation8 + $0x70] sm:$0xff]
        %v3268 = vld [vmem:[#allocation8 + $0x78] sm:$0xff]
        %v3269 = vld [vmem:[#allocation8 + $0x80] sm:$0xff]
        %v3270 = vld [vmem:[#allocation8 + $0x88] sm:$0xff]
        %v3271 = vld [vmem:[#allocation8 + $0x90] sm:$0xff]
        %v3272 = vld [vmem:[#allocation8 + $0x98] sm:$0xff]
        %v3273 = vld [vmem:[#allocation8 + $0xa0] sm:$0xff]
        %v3274 = vld [vmem:[#allocation8 + $0xa8] sm:$0xff]
        %v3275 = vld [vmem:[#allocation8 + $0xb0] sm:$0xff]
        %v3276 = vld [vmem:[#allocation8 + $0xb8] sm:$0xff]
        %v3277 = vld [vmem:[#allocation8 + $0xc0] sm:$0xff]
        %v3278 = vld [vmem:[#allocation8 + $0xc8] sm:$0xff]
        %v3279 = vld [vmem:[#allocation8 + $0xd0] sm:$0xff]
        %v3280 = vld [vmem:[#allocation8 + $0xd8] sm:$0xff]
        %v3281 = vld [vmem:[#allocation8 + $0xe0] sm:$0xff]
        %v3282 = vld [vmem:[#allocation8 + $0xe8] sm:$0xff]
        %v3283 = vld [vmem:[#allocation8 + $0xf0] sm:$0xff]
        %v3284 = vld [vmem:[#allocation8 + $0xf8] sm:$0xff]
        %v3285 = vld [vmem:[#allocation8 + $0x100] sm:$0xff]
        %v3286 = vld [vmem:[#allocation8 + $0x108] sm:$0xff]
        %v3287 = vld [vmem:[#allocation8 + $0x110] sm:$0xff]
        %v3288 = vld [vmem:[#allocation8 + $0x118] sm:$0xff]
        %v3289 = vld [vmem:[#allocation8 + $0x120] sm:$0xff]
        %v3290 = vld [vmem:[#allocation8 + $0x128] sm:$0xff]
        %v3291 = vld [vmem:[#allocation8 + $0x130] sm:$0xff]
        %v3292 = vld [vmem:[#allocation8 + $0x138] sm:$0xff]
        %v3293 = vld [vmem:[#allocation8 + $0x140] sm:$0xff]
        %v3294 = vld [vmem:[#allocation8 + $0x148] sm:$0xff]
        %v3295 = vld [vmem:[#allocation8 + $0x150] sm:$0xff]
        %v3296 = vld [vmem:[#allocation8 + $0x158] sm:$0xff]
        %v3297 = vld [vmem:[#allocation8 + $0x160] sm:$0xff]
        %v3298 = vld [vmem:[#allocation8 + $0x168] sm:$0xff]
        %v3299 = vld [vmem:[#allocation8 + $0x170] sm:$0xff]
        %v3300 = vld [vmem:[#allocation8 + $0x178] sm:$0xff]
        %v3301 = vld [vmem:[#allocation8 + $0x180] sm:$0xff]
        %v3302 = vld [vmem:[#allocation8 + $0x188] sm:$0xff]
        %v3303 = vld [vmem:[#allocation8 + $0x190] sm:$0xff]
        %v3304 = vld [vmem:[#allocation8 + $0x198] sm:$0xff]
        %v3305 = vld [vmem:[#allocation8 + $0x1a0] sm:$0xff]
        %v3306 = vld [vmem:[#allocation8 + $0x1a8] sm:$0xff]
        %v3307 = vld [vmem:[#allocation8 + $0x1b0] sm:$0xff]
        %v3308 = vld [vmem:[#allocation8 + $0x1b8] sm:$0xff]
        %v3309 = vld [vmem:[#allocation8 + $0x1c0] sm:$0xff]
        %v3310 = vld [vmem:[#allocation8 + $0x1c8] sm:$0xff]
        %v3311 = vld [vmem:[#allocation8 + $0x1d0] sm:$0xff]
        %v3312 = vld [vmem:[#allocation8 + $0x1d8] sm:$0xff]
        %v3313 = vld [vmem:[#allocation8 + $0x1e0] sm:$0xff]
        %v3314 = vld [vmem:[#allocation8 + $0x1e8] sm:$0xff]
        %v3315 = vld [vmem:[#allocation8 + $0x1f0] sm:$0xff]
        %v3316 = vld [vmem:[#allocation8 + $0x1f8] sm:$0xff]
        %v3317 = vld [vmem:[#allocation8 + $0x200] sm:$0xff]
        %v3318 = vld [vmem:[#allocation8 + $0x208] sm:$0xff]
        %v3319 = vld [vmem:[#allocation8 + $0x210] sm:$0xff]
        %v3320 = vld [vmem:[#allocation8 + $0x218] sm:$0xff]
        %v3321 = vld [vmem:[#allocation8 + $0x220] sm:$0xff]
        %v3322 = vld [vmem:[#allocation8 + $0x228] sm:$0xff]
        %v3323 = vld [vmem:[#allocation8 + $0x230] sm:$0xff]
        %v3324 = vld [vmem:[#allocation8 + $0x238] sm:$0xff]
        %v3325 = vld [vmem:[#allocation8 + $0x240] sm:$0xff]
        %v3326 = vld [vmem:[#allocation8 + $0x248] sm:$0xff]
        %v3327 = vld [vmem:[#allocation8 + $0x250] sm:$0xff]
        %v3328 = vld [vmem:[#allocation8 + $0x258] sm:$0xff]
        %v3329 = vld [vmem:[#allocation8 + $0x260] sm:$0xff]
        %v3330 = vld [vmem:[#allocation8 + $0x268] sm:$0xff]
        %v3331 = vld [vmem:[#allocation8 + $0x270] sm:$0xff]
        %v3332 = vld [vmem:[#allocation8 + $0x278] sm:$0xff]
        %v3333 = vld [vmem:[#allocation8 + $0x280] sm:$0xff]
        %v3334 = vld [vmem:[#allocation8 + $0x288] sm:$0xff]
        %v3335 = vld [vmem:[#allocation8 + $0x290] sm:$0xff]
        %v3336 = vld [vmem:[#allocation8 + $0x298] sm:$0xff]
        %v3337 = vld [vmem:[#allocation8 + $0x2a0] sm:$0xff]
        %v3338 = vld [vmem:[#allocation8 + $0x2a8] sm:$0xff]
        %v3339 = vld [vmem:[#allocation8 + $0x2b0] sm:$0xff]
        %v3340 = vld [vmem:[#allocation8 + $0x2b8] sm:$0xff]
        %v3341 = vld [vmem:[#allocation8 + $0x2c0] sm:$0xff]
        %v3342 = vld [vmem:[#allocation8 + $0x2c8] sm:$0xff]
        %v3343 = vld [vmem:[#allocation8 + $0x2d0] sm:$0xff]
        %v3344 = vld [vmem:[#allocation8 + $0x2d8] sm:$0xff]
        %v3345 = vld [vmem:[#allocation8 + $0x2e0] sm:$0xff]
        %v3346 = vld [vmem:[#allocation8 + $0x2e8] sm:$0xff]
        %v3347 = vld [vmem:[#allocation8 + $0x2f0] sm:$0xff]
        %v3348 = vld [vmem:[#allocation8 + $0x2f8] sm:$0xff]
        %v3349 = vld [vmem:[#allocation8 + $0x300] sm:$0xff]
        %v3350 = vld [vmem:[#allocation8 + $0x308] sm:$0xff]
        %v3351 = vld [vmem:[#allocation8 + $0x310] sm:$0xff]
        %v3352 = vld [vmem:[#allocation8 + $0x318] sm:$0xff]
        %v3353 = vld [vmem:[#allocation8 + $0x320] sm:$0xff]
        %v3354 = vld [vmem:[#allocation8 + $0x328] sm:$0xff]
        %v3355 = vld [vmem:[#allocation8 + $0x330] sm:$0xff]
        %v3356 = vld [vmem:[#allocation8 + $0x338] sm:$0xff]
        %v3357 = vld [vmem:[#allocation8 + $0x340] sm:$0xff]
        %v3358 = vld [vmem:[#allocation8 + $0x348] sm:$0xff]
        %v3359 = vld [vmem:[#allocation8 + $0x350] sm:$0xff]
        %v3360 = vld [vmem:[#allocation8 + $0x358] sm:$0xff]
        %v3361 = vld [vmem:[#allocation8 + $0x360] sm:$0xff]
        %v3362 = vld [vmem:[#allocation8 + $0x368] sm:$0xff]
        %v3363 = vld [vmem:[#allocation8 + $0x370] sm:$0xff]
        %v3364 = vld [vmem:[#allocation8 + $0x378] sm:$0xff]
        %v3365 = vld [vmem:[#allocation8 + $0x380] sm:$0xff]
        %v3366 = vld [vmem:[#allocation8 + $0x388] sm:$0xff]
        %v3367 = vld [vmem:[#allocation8 + $0x390] sm:$0xff]
        %v3368 = vld [vmem:[#allocation8 + $0x398] sm:$0xff]
        %v3369 = vld [vmem:[#allocation8 + $0x3a0] sm:$0xff]
        %v3370 = vld [vmem:[#allocation8 + $0x3a8] sm:$0xff]
        %v3371 = vld [vmem:[#allocation8 + $0x3b0] sm:$0xff]
        %v3372 = vld [vmem:[#allocation8 + $0x3b8] sm:$0xff]
        %v3373 = vld [vmem:[#allocation8 + $0x3c0] sm:$0xff]
        %v3374 = vld [vmem:[#allocation8 + $0x3c8] sm:$0xff]
        %v3375 = vld [vmem:[#allocation8 + $0x3d0] sm:$0xff]
        %v3376 = vld [vmem:[#allocation8 + $0x3d8] sm:$0xff]
        %v3377 = vld [vmem:[#allocation8 + $0x3e0] sm:$0xff]
        %v3378 = vld [vmem:[#allocation8 + $0x3e8] sm:$0xff]
        %v3379 = vld [vmem:[#allocation8 + $0x3f0] sm:$0xff]
        %v3380 = vld [vmem:[#allocation8 + $0x3f8] sm:$0xff]
        %v3381 = vld [vmem:[%s8] sm:$0xf]
        %v3383 = vlaneseq
        %v3384 = vshrl.u32 %v3383, 7
        %v3385 = vsub.s32 0, %v3384
        %v3386 = vrot.slane %v3381, %v3385
        %v3387 = vlaneseq
        %v3388 = vshrl.u32 %v3387, 7
        %v3389 = vsub.s32 1, %v3388
        %v3390 = vrot.slane %v3381, %v3389
        %v3391 = vlaneseq
        %v3392 = vshrl.u32 %v3391, 7
        %v3393 = vsub.s32 2, %v3392
        %v3394 = vrot.slane %v3381, %v3393
        %v3395 = vlaneseq
        %v3396 = vshrl.u32 %v3395, 7
        %v3397 = vsub.s32 3, %v3396
        %v3398 = vrot.slane %v3381, %v3397
        %v3531 = vunpack.c.l.b16 %v3253
        %v3532 = vunpack.c.h.b16 %v3253
        %v3533 = vunpack.c.l.b16 %v3254
        %v3534 = vunpack.c.h.b16 %v3254
        %v3535 = vunpack.c.l.b16 %v3255
        %v3536 = vunpack.c.h.b16 %v3255
        %v3537 = vunpack.c.l.b16 %v3256
        %v3538 = vunpack.c.h.b16 %v3256
        %v3539 = vunpack.c.l.b16 %v3257
        %v3540 = vunpack.c.h.b16 %v3257
        %v3541 = vunpack.c.l.b16 %v3258
        %v3542 = vunpack.c.h.b16 %v3258
        %v3543 = vunpack.c.l.b16 %v3259
        %v3544 = vunpack.c.h.b16 %v3259
        %v3545 = vunpack.c.l.b16 %v3260
        %v3546 = vunpack.c.h.b16 %v3260
        %v3547 = vunpack.c.l.b16 %v3261
        %v3548 = vunpack.c.h.b16 %v3261
        %v3549 = vunpack.c.l.b16 %v3262
        %v3550 = vunpack.c.h.b16 %v3262
        %v3551 = vunpack.c.l.b16 %v3263
        %v3552 = vunpack.c.h.b16 %v3263
        %v3553 = vunpack.c.l.b16 %v3264
        %v3554 = vunpack.c.h.b16 %v3264
        %v3555 = vunpack.c.l.b16 %v3265
        %v3556 = vunpack.c.h.b16 %v3265
        %v3557 = vunpack.c.l.b16 %v3266
        %v3558 = vunpack.c.h.b16 %v3266
        %v3559 = vunpack.c.l.b16 %v3267
        %v3560 = vunpack.c.h.b16 %v3267
        %v3561 = vunpack.c.l.b16 %v3268
        %v3562 = vunpack.c.h.b16 %v3268
        %v3563 = vunpack.c.l.b16 %v3269
        %v3564 = vunpack.c.h.b16 %v3269
        %v3565 = vunpack.c.l.b16 %v3270
        %v3566 = vunpack.c.h.b16 %v3270
        %v3567 = vunpack.c.l.b16 %v3271
        %v3568 = vunpack.c.h.b16 %v3271
        %v3569 = vunpack.c.l.b16 %v3272
        %v3570 = vunpack.c.h.b16 %v3272
        %v3571 = vunpack.c.l.b16 %v3273
        %v3572 = vunpack.c.h.b16 %v3273
        %v3573 = vunpack.c.l.b16 %v3274
        %v3574 = vunpack.c.h.b16 %v3274
        %v3575 = vunpack.c.l.b16 %v3275
        %v3576 = vunpack.c.h.b16 %v3275
        %v3577 = vunpack.c.l.b16 %v3276
        %v3578 = vunpack.c.h.b16 %v3276
        %v3579 = vunpack.c.l.b16 %v3277
        %v3580 = vunpack.c.h.b16 %v3277
        %v3581 = vunpack.c.l.b16 %v3278
        %v3582 = vunpack.c.h.b16 %v3278
        %v3583 = vunpack.c.l.b16 %v3279
        %v3584 = vunpack.c.h.b16 %v3279
        %v3585 = vunpack.c.l.b16 %v3280
        %v3586 = vunpack.c.h.b16 %v3280
        %v3587 = vunpack.c.l.b16 %v3281
        %v3588 = vunpack.c.h.b16 %v3281
        %v3589 = vunpack.c.l.b16 %v3282
        %v3590 = vunpack.c.h.b16 %v3282
        %v3591 = vunpack.c.l.b16 %v3283
        %v3592 = vunpack.c.h.b16 %v3283
        %v3593 = vunpack.c.l.b16 %v3284
        %v3594 = vunpack.c.h.b16 %v3284
        %v3595 = vunpack.c.l.b16 %v3285
        %v3596 = vunpack.c.h.b16 %v3285
        %v3597 = vunpack.c.l.b16 %v3286
        %v3598 = vunpack.c.h.b16 %v3286
        %v3599 = vunpack.c.l.b16 %v3287
        %v3600 = vunpack.c.h.b16 %v3287
        %v3601 = vunpack.c.l.b16 %v3288
        %v3602 = vunpack.c.h.b16 %v3288
        %v3603 = vunpack.c.l.b16 %v3289
        %v3604 = vunpack.c.h.b16 %v3289
        %v3605 = vunpack.c.l.b16 %v3290
        %v3606 = vunpack.c.h.b16 %v3290
        %v3607 = vunpack.c.l.b16 %v3291
        %v3608 = vunpack.c.h.b16 %v3291
        %v3609 = vunpack.c.l.b16 %v3292
        %v3610 = vunpack.c.h.b16 %v3292
        %v3611 = vunpack.c.l.b16 %v3293
        %v3612 = vunpack.c.h.b16 %v3293
        %v3613 = vunpack.c.l.b16 %v3294
        %v3614 = vunpack.c.h.b16 %v3294
        %v3615 = vunpack.c.l.b16 %v3295
        %v3616 = vunpack.c.h.b16 %v3295
        %v3617 = vunpack.c.l.b16 %v3296
        %v3618 = vunpack.c.h.b16 %v3296
        %v3619 = vunpack.c.l.b16 %v3297
        %v3620 = vunpack.c.h.b16 %v3297
        %v3621 = vunpack.c.l.b16 %v3298
        %v3622 = vunpack.c.h.b16 %v3298
        %v3623 = vunpack.c.l.b16 %v3299
        %v3624 = vunpack.c.h.b16 %v3299
        %v3625 = vunpack.c.l.b16 %v3300
        %v3626 = vunpack.c.h.b16 %v3300
        %v3627 = vunpack.c.l.b16 %v3301
        %v3628 = vunpack.c.h.b16 %v3301
        %v3629 = vunpack.c.l.b16 %v3302
        %v3630 = vunpack.c.h.b16 %v3302
        %v3631 = vunpack.c.l.b16 %v3303
        %v3632 = vunpack.c.h.b16 %v3303
        %v3633 = vunpack.c.l.b16 %v3304
        %v3634 = vunpack.c.h.b16 %v3304
        %v3635 = vunpack.c.l.b16 %v3305
        %v3636 = vunpack.c.h.b16 %v3305
        %v3637 = vunpack.c.l.b16 %v3306
        %v3638 = vunpack.c.h.b16 %v3306
        %v3639 = vunpack.c.l.b16 %v3307
        %v3640 = vunpack.c.h.b16 %v3307
        %v3641 = vunpack.c.l.b16 %v3308
        %v3642 = vunpack.c.h.b16 %v3308
        %v3643 = vunpack.c.l.b16 %v3309
        %v3644 = vunpack.c.h.b16 %v3309
        %v3645 = vunpack.c.l.b16 %v3310
        %v3646 = vunpack.c.h.b16 %v3310
        %v3647 = vunpack.c.l.b16 %v3311
        %v3648 = vunpack.c.h.b16 %v3311
        %v3649 = vunpack.c.l.b16 %v3312
        %v3650 = vunpack.c.h.b16 %v3312
        %v3651 = vunpack.c.l.b16 %v3313
        %v3652 = vunpack.c.h.b16 %v3313
        %v3653 = vunpack.c.l.b16 %v3314
        %v3654 = vunpack.c.h.b16 %v3314
        %v3655 = vunpack.c.l.b16 %v3315
        %v3656 = vunpack.c.h.b16 %v3315
        %v3657 = vunpack.c.l.b16 %v3316
        %v3658 = vunpack.c.h.b16 %v3316
        %v3659 = vunpack.c.l.b16 %v3317
        %v3660 = vunpack.c.h.b16 %v3317
        %v3661 = vunpack.c.l.b16 %v3318
        %v3662 = vunpack.c.h.b16 %v3318
        %v3663 = vunpack.c.l.b16 %v3319
        %v3664 = vunpack.c.h.b16 %v3319
        %v3665 = vunpack.c.l.b16 %v3320
        %v3666 = vunpack.c.h.b16 %v3320
        %v3667 = vunpack.c.l.b16 %v3321
        %v3668 = vunpack.c.h.b16 %v3321
        %v3669 = vunpack.c.l.b16 %v3322
        %v3670 = vunpack.c.h.b16 %v3322
        %v3671 = vunpack.c.l.b16 %v3323
        %v3672 = vunpack.c.h.b16 %v3323
        %v3673 = vunpack.c.l.b16 %v3324
        %v3674 = vunpack.c.h.b16 %v3324
        %v3675 = vunpack.c.l.b16 %v3325
        %v3676 = vunpack.c.h.b16 %v3325
        %v3677 = vunpack.c.l.b16 %v3326
        %v3678 = vunpack.c.h.b16 %v3326
        %v3679 = vunpack.c.l.b16 %v3327
        %v3680 = vunpack.c.h.b16 %v3327
        %v3681 = vunpack.c.l.b16 %v3328
        %v3682 = vunpack.c.h.b16 %v3328
        %v3683 = vunpack.c.l.b16 %v3329
        %v3684 = vunpack.c.h.b16 %v3329
        %v3685 = vunpack.c.l.b16 %v3330
        %v3686 = vunpack.c.h.b16 %v3330
        %v3687 = vunpack.c.l.b16 %v3331
        %v3688 = vunpack.c.h.b16 %v3331
        %v3689 = vunpack.c.l.b16 %v3332
        %v3690 = vunpack.c.h.b16 %v3332
        %v3691 = vunpack.c.l.b16 %v3333
        %v3692 = vunpack.c.h.b16 %v3333
        %v3693 = vunpack.c.l.b16 %v3334
        %v3694 = vunpack.c.h.b16 %v3334
        %v3695 = vunpack.c.l.b16 %v3335
        %v3696 = vunpack.c.h.b16 %v3335
        %v3697 = vunpack.c.l.b16 %v3336
        %v3698 = vunpack.c.h.b16 %v3336
        %v3699 = vunpack.c.l.b16 %v3337
        %v3700 = vunpack.c.h.b16 %v3337
        %v3701 = vunpack.c.l.b16 %v3338
        %v3702 = vunpack.c.h.b16 %v3338
        %v3703 = vunpack.c.l.b16 %v3339
        %v3704 = vunpack.c.h.b16 %v3339
        %v3705 = vunpack.c.l.b16 %v3340
        %v3706 = vunpack.c.h.b16 %v3340
        %v3707 = vunpack.c.l.b16 %v3341
        %v3708 = vunpack.c.h.b16 %v3341
        %v3709 = vunpack.c.l.b16 %v3342
        %v3710 = vunpack.c.h.b16 %v3342
        %v3711 = vunpack.c.l.b16 %v3343
        %v3712 = vunpack.c.h.b16 %v3343
        %v3713 = vunpack.c.l.b16 %v3344
        %v3714 = vunpack.c.h.b16 %v3344
        %v3715 = vunpack.c.l.b16 %v3345
        %v3716 = vunpack.c.h.b16 %v3345
        %v3717 = vunpack.c.l.b16 %v3346
        %v3718 = vunpack.c.h.b16 %v3346
        %v3719 = vunpack.c.l.b16 %v3347
        %v3720 = vunpack.c.h.b16 %v3347
        %v3721 = vunpack.c.l.b16 %v3348
        %v3722 = vunpack.c.h.b16 %v3348
        %v3723 = vunpack.c.l.b16 %v3349
        %v3724 = vunpack.c.h.b16 %v3349
        %v3725 = vunpack.c.l.b16 %v3350
        %v3726 = vunpack.c.h.b16 %v3350
        %v3727 = vunpack.c.l.b16 %v3351
        %v3728 = vunpack.c.h.b16 %v3351
        %v3729 = vunpack.c.l.b16 %v3352
        %v3730 = vunpack.c.h.b16 %v3352
        %v3731 = vunpack.c.l.b16 %v3353
        %v3732 = vunpack.c.h.b16 %v3353
        %v3733 = vunpack.c.l.b16 %v3354
        %v3734 = vunpack.c.h.b16 %v3354
        %v3735 = vunpack.c.l.b16 %v3355
        %v3736 = vunpack.c.h.b16 %v3355
        %v3737 = vunpack.c.l.b16 %v3356
        %v3738 = vunpack.c.h.b16 %v3356
        %v3739 = vunpack.c.l.b16 %v3357
        %v3740 = vunpack.c.h.b16 %v3357
        %v3741 = vunpack.c.l.b16 %v3358
        %v3742 = vunpack.c.h.b16 %v3358
        %v3743 = vunpack.c.l.b16 %v3359
        %v3744 = vunpack.c.h.b16 %v3359
        %v3745 = vunpack.c.l.b16 %v3360
        %v3746 = vunpack.c.h.b16 %v3360
        %v3747 = vunpack.c.l.b16 %v3361
        %v3748 = vunpack.c.h.b16 %v3361
        %v3749 = vunpack.c.l.b16 %v3362
        %v3750 = vunpack.c.h.b16 %v3362
        %v3751 = vunpack.c.l.b16 %v3363
        %v3752 = vunpack.c.h.b16 %v3363
        %v3753 = vunpack.c.l.b16 %v3364
        %v3754 = vunpack.c.h.b16 %v3364
        %v3755 = vunpack.c.l.b16 %v3365
        %v3756 = vunpack.c.h.b16 %v3365
        %v3757 = vunpack.c.l.b16 %v3366
        %v3758 = vunpack.c.h.b16 %v3366
        %v3759 = vunpack.c.l.b16 %v3367
        %v3760 = vunpack.c.h.b16 %v3367
        %v3761 = vunpack.c.l.b16 %v3368
        %v3762 = vunpack.c.h.b16 %v3368
        %v3763 = vunpack.c.l.b16 %v3369
        %v3764 = vunpack.c.h.b16 %v3369
        %v3765 = vunpack.c.l.b16 %v3370
        %v3766 = vunpack.c.h.b16 %v3370
        %v3767 = vunpack.c.l.b16 %v3371
        %v3768 = vunpack.c.h.b16 %v3371
        %v3769 = vunpack.c.l.b16 %v3372
        %v3770 = vunpack.c.h.b16 %v3372
        %v3771 = vunpack.c.l.b16 %v3373
        %v3772 = vunpack.c.h.b16 %v3373
        %v3773 = vunpack.c.l.b16 %v3374
        %v3774 = vunpack.c.h.b16 %v3374
        %v3775 = vunpack.c.l.b16 %v3375
        %v3776 = vunpack.c.h.b16 %v3375
        %v3777 = vunpack.c.l.b16 %v3376
        %v3778 = vunpack.c.h.b16 %v3376
        %v3779 = vunpack.c.l.b16 %v3377
        %v3780 = vunpack.c.h.b16 %v3377
        %v3781 = vunpack.c.l.b16 %v3378
        %v3782 = vunpack.c.h.b16 %v3378
        %v3783 = vunpack.c.l.b16 %v3379
        %v3784 = vunpack.c.h.b16 %v3379
        %v3785 = vunpack.c.l.b16 %v3380
        %v3786 = vunpack.c.h.b16 %v3380
        %v3787 = vpack.c.b16 %v3535, %v3531
        %v3788 = vpack.c.b16 %v3536, %v3532
        %v3789 = vpack.c.b16 %v3537, %v3533
        %v3790 = vpack.c.b16 %v3538, %v3534
        %v3791 = vpack.c.b16 %v3543, %v3539
        %v3792 = vpack.c.b16 %v3544, %v3540
        %v3793 = vpack.c.b16 %v3545, %v3541
        %v3794 = vpack.c.b16 %v3546, %v3542
        %v3795 = vpack.c.b16 %v3551, %v3547
        %v3796 = vpack.c.b16 %v3552, %v3548
        %v3797 = vpack.c.b16 %v3553, %v3549
        %v3798 = vpack.c.b16 %v3554, %v3550
        %v3799 = vpack.c.b16 %v3559, %v3555
        %v3800 = vpack.c.b16 %v3560, %v3556
        %v3801 = vpack.c.b16 %v3561, %v3557
        %v3802 = vpack.c.b16 %v3562, %v3558
        %v3803 = vpack.c.b16 %v3567, %v3563
        %v3804 = vpack.c.b16 %v3568, %v3564
        %v3805 = vpack.c.b16 %v3569, %v3565
        %v3806 = vpack.c.b16 %v3570, %v3566
        %v3807 = vpack.c.b16 %v3575, %v3571
        %v3808 = vpack.c.b16 %v3576, %v3572
        %v3809 = vpack.c.b16 %v3577, %v3573
        %v3810 = vpack.c.b16 %v3578, %v3574
        %v3811 = vpack.c.b16 %v3583, %v3579
        %v3812 = vpack.c.b16 %v3584, %v3580
        %v3813 = vpack.c.b16 %v3585, %v3581
        %v3814 = vpack.c.b16 %v3586, %v3582
        %v3815 = vpack.c.b16 %v3591, %v3587
        %v3816 = vpack.c.b16 %v3592, %v3588
        %v3817 = vpack.c.b16 %v3593, %v3589
        %v3818 = vpack.c.b16 %v3594, %v3590
        %v3819 = vpack.c.b16 %v3599, %v3595
        %v3820 = vpack.c.b16 %v3600, %v3596
        %v3821 = vpack.c.b16 %v3601, %v3597
        %v3822 = vpack.c.b16 %v3602, %v3598
        %v3823 = vpack.c.b16 %v3607, %v3603
        %v3824 = vpack.c.b16 %v3608, %v3604
        %v3825 = vpack.c.b16 %v3609, %v3605
        %v3826 = vpack.c.b16 %v3610, %v3606
        %v3827 = vpack.c.b16 %v3615, %v3611
        %v3828 = vpack.c.b16 %v3616, %v3612
        %v3829 = vpack.c.b16 %v3617, %v3613
        %v3830 = vpack.c.b16 %v3618, %v3614
        %v3831 = vpack.c.b16 %v3623, %v3619
        %v3832 = vpack.c.b16 %v3624, %v3620
        %v3833 = vpack.c.b16 %v3625, %v3621
        %v3834 = vpack.c.b16 %v3626, %v3622
        %v3835 = vpack.c.b16 %v3631, %v3627
        %v3836 = vpack.c.b16 %v3632, %v3628
        %v3837 = vpack.c.b16 %v3633, %v3629
        %v3838 = vpack.c.b16 %v3634, %v3630
        %v3839 = vpack.c.b16 %v3639, %v3635
        %v3840 = vpack.c.b16 %v3640, %v3636
        %v3841 = vpack.c.b16 %v3641, %v3637
        %v3842 = vpack.c.b16 %v3642, %v3638
        %v3843 = vpack.c.b16 %v3647, %v3643
        %v3844 = vpack.c.b16 %v3648, %v3644
        %v3845 = vpack.c.b16 %v3649, %v3645
        %v3846 = vpack.c.b16 %v3650, %v3646
        %v3847 = vpack.c.b16 %v3655, %v3651
        %v3848 = vpack.c.b16 %v3656, %v3652
        %v3849 = vpack.c.b16 %v3657, %v3653
        %v3850 = vpack.c.b16 %v3658, %v3654
        %v3851 = vpack.c.b16 %v3663, %v3659
        %v3852 = vpack.c.b16 %v3664, %v3660
        %v3853 = vpack.c.b16 %v3665, %v3661
        %v3854 = vpack.c.b16 %v3666, %v3662
        %v3855 = vpack.c.b16 %v3671, %v3667
        %v3856 = vpack.c.b16 %v3672, %v3668
        %v3857 = vpack.c.b16 %v3673, %v3669
        %v3858 = vpack.c.b16 %v3674, %v3670
        %v3859 = vpack.c.b16 %v3679, %v3675
        %v3860 = vpack.c.b16 %v3680, %v3676
        %v3861 = vpack.c.b16 %v3681, %v3677
        %v3862 = vpack.c.b16 %v3682, %v3678
        %v3863 = vpack.c.b16 %v3687, %v3683
        %v3864 = vpack.c.b16 %v3688, %v3684
        %v3865 = vpack.c.b16 %v3689, %v3685
        %v3866 = vpack.c.b16 %v3690, %v3686
        %v3867 = vpack.c.b16 %v3695, %v3691
        %v3868 = vpack.c.b16 %v3696, %v3692
        %v3869 = vpack.c.b16 %v3697, %v3693
        %v3870 = vpack.c.b16 %v3698, %v3694
        %v3871 = vpack.c.b16 %v3703, %v3699
        %v3872 = vpack.c.b16 %v3704, %v3700
        %v3873 = vpack.c.b16 %v3705, %v3701
        %v3874 = vpack.c.b16 %v3706, %v3702
        %v3875 = vpack.c.b16 %v3711, %v3707
        %v3876 = vpack.c.b16 %v3712, %v3708
        %v3877 = vpack.c.b16 %v3713, %v3709
        %v3878 = vpack.c.b16 %v3714, %v3710
        %v3879 = vpack.c.b16 %v3719, %v3715
        %v3880 = vpack.c.b16 %v3720, %v3716
        %v3881 = vpack.c.b16 %v3721, %v3717
        %v3882 = vpack.c.b16 %v3722, %v3718
        %v3883 = vpack.c.b16 %v3727, %v3723
        %v3884 = vpack.c.b16 %v3728, %v3724
        %v3885 = vpack.c.b16 %v3729, %v3725
        %v3886 = vpack.c.b16 %v3730, %v3726
        %v3887 = vpack.c.b16 %v3735, %v3731
        %v3888 = vpack.c.b16 %v3736, %v3732
        %v3889 = vpack.c.b16 %v3737, %v3733
        %v3890 = vpack.c.b16 %v3738, %v3734
        %v3891 = vpack.c.b16 %v3743, %v3739
        %v3892 = vpack.c.b16 %v3744, %v3740
        %v3893 = vpack.c.b16 %v3745, %v3741
        %v3894 = vpack.c.b16 %v3746, %v3742
        %v3895 = vpack.c.b16 %v3751, %v3747
        %v3896 = vpack.c.b16 %v3752, %v3748
        %v3897 = vpack.c.b16 %v3753, %v3749
        %v3898 = vpack.c.b16 %v3754, %v3750
        %v3899 = vpack.c.b16 %v3759, %v3755
        %v3900 = vpack.c.b16 %v3760, %v3756
        %v3901 = vpack.c.b16 %v3761, %v3757
        %v3902 = vpack.c.b16 %v3762, %v3758
        %v3903 = vpack.c.b16 %v3767, %v3763
        %v3904 = vpack.c.b16 %v3768, %v3764
        %v3905 = vpack.c.b16 %v3769, %v3765
        %v3906 = vpack.c.b16 %v3770, %v3766
        %v3907 = vpack.c.b16 %v3775, %v3771
        %v3908 = vpack.c.b16 %v3776, %v3772
        %v3909 = vpack.c.b16 %v3777, %v3773
        %v3910 = vpack.c.b16 %v3778, %v3774
        %v3911 = vpack.c.b16 %v3783, %v3779
        %v3912 = vpack.c.b16 %v3784, %v3780
        %v3913 = vpack.c.b16 %v3785, %v3781
        %v3914 = vpack.c.b16 %v3786, %v3782
        %4043 = vmatprep.subr.bf16.mxu0 %v3788
        %4044 = vmatpush1.bf16.xpose.msra.mxu0 %v3787
        %4045 = vmatprep.subr.bf16.mxu0 %v3792
        %4046 = vmatpush1.bf16.xpose.msra.mxu0 %v3791
        %4047 = vmatprep.subr.bf16.mxu0 %v3796
        %4048 = vmatpush1.bf16.xpose.msra.mxu0 %v3795
        %4049 = vmatprep.subr.bf16.mxu0 %v3800
        %4050 = vmatpush1.bf16.xpose.msra.mxu0 %v3799
        %4051 = vmatprep.subr.bf16.mxu0 %v3804
        %4052 = vmatpush1.bf16.xpose.msra.mxu0 %v3803
        %4053 = vmatprep.subr.bf16.mxu0 %v3808
        %4054 = vmatpush1.bf16.xpose.msra.mxu0 %v3807
        %4055 = vmatprep.subr.bf16.mxu0 %v3812
        %4056 = vmatpush1.bf16.xpose.msra.mxu0 %v3811
        %4057 = vmatprep.subr.bf16.mxu0 %v3816
        %4058 = vmatpush1.bf16.xpose.msra.mxu0 %v3815
        %4059 = vmatprep.subr.bf16.mxu0 %v3820
        %4060 = vmatpush1.bf16.xpose.msra.mxu0 %v3819
        %4061 = vmatprep.subr.bf16.mxu0 %v3824
        %4062 = vmatpush1.bf16.xpose.msra.mxu0 %v3823
        %4063 = vmatprep.subr.bf16.mxu0 %v3828
        %4064 = vmatpush1.bf16.xpose.msra.mxu0 %v3827
        %4065 = vmatprep.subr.bf16.mxu0 %v3832
        %4066 = vmatpush1.bf16.xpose.msra.mxu0 %v3831
        %4067 = vmatprep.subr.bf16.mxu0 %v3836
        %4068 = vmatpush1.bf16.xpose.msra.mxu0 %v3835
        %4069 = vmatprep.subr.bf16.mxu0 %v3840
        %4070 = vmatpush1.bf16.xpose.msra.mxu0 %v3839
        %4071 = vmatprep.subr.bf16.mxu0 %v3844
        %4072 = vmatpush1.bf16.xpose.msra.mxu0 %v3843
        %4073 = vmatprep.subr.bf16.mxu0 %v3848
        %4074 = vmatpush1.bf16.xpose.msra.mxu0 %v3847
        %4075 = vmatprep.mubr.bf16.mxu0 %v3222
        %4076 = vmatmul.mubr.bf16.gmra.mrb[0].mxu0 %v3221
        %v4077 = vpop.f32.mrb[0].mxu0
        %v4078 = vadd.f32 %v3386, %v4077
        %v4079 = vpop.f32.mrb[0].mxu0
        %v4080 = vadd.f32 %v3390, %v4079
        %v4081 = vpop.f32.mrb[0].mxu0
        %v4082 = vadd.f32 %v3386, %v4081
        %v4083 = vpop.f32.mrb[0].mxu0
        %v4084 = vadd.f32 %v3390, %v4083
        %4085 = vmatprep.mubr.bf16.mxu0 %v3226
        %4086 = vmatmul.mubr.bf16.gmra.mrb[0].mxu0 %v3225
        %v4087 = vpop.f32.mrb[0].mxu0
        %v4088 = vadd.f32 %v3386, %v4087
        %v4089 = vpop.f32.mrb[0].mxu0
        %v4090 = vadd.f32 %v3390, %v4089
        %v4091 = vpop.f32.mrb[0].mxu0
        %v4092 = vadd.f32 %v3386, %v4091
        %v4093 = vpop.f32.mrb[0].mxu0
        %v4094 = vadd.f32 %v3390, %v4093
        %4095 = vmatprep.mubr.bf16.mxu0 %v3230
        %4096 = vmatmul.mubr.bf16.gmra.mrb[0].mxu0 %v3229
        %v4097 = vpop.f32.mrb[0].mxu0
        %v4098 = vadd.f32 %v3386, %v4097
        %v4099 = vpop.f32.mrb[0].mxu0
        %v4100 = vadd.f32 %v3390, %v4099
        %v4101 = vpop.f32.mrb[0].mxu0
        %v4102 = vadd.f32 %v3386, %v4101
        %v4103 = vpop.f32.mrb[0].mxu0
        %v4104 = vadd.f32 %v3390, %v4103
        %4105 = vmatprep.mubr.bf16.mxu0 %v3234
        %4106 = vmatmul.mubr.bf16.gmra.mrb[0].mxu0 %v3233
        %v4107 = vpop.f32.mrb[0].mxu0
        %v4108 = vadd.f32 %v3386, %v4107
        %v4109 = vpop.f32.mrb[0].mxu0
        %v4110 = vadd.f32 %v3390, %v4109
        %v4111 = vpop.f32.mrb[0].mxu0
        %v4112 = vadd.f32 %v3386, %v4111
        %v4113 = vpop.f32.mrb[0].mxu0
        %v4114 = vadd.f32 %v3390, %v4113
        %4115 = vmatprep.mubr.bf16.mxu0 %v3238
        %4116 = vmatmul.mubr.bf16.gmra.mrb[0].mxu0 %v3237
        %v4117 = vpop.f32.mrb[0].mxu0
        %v4118 = vadd.f32 %v3386, %v4117
        %v4119 = vpop.f32.mrb[0].mxu0
        %v4120 = vadd.f32 %v3390, %v4119
        %v4121 = vpop.f32.mrb[0].mxu0
        %v4122 = vadd.f32 %v3386, %v4121
        %v4123 = vpop.f32.mrb[0].mxu0
        %v4124 = vadd.f32 %v3390, %v4123
        %4125 = vmatprep.mubr.bf16.mxu0 %v3242
        %4126 = vmatmul.mubr.bf16.gmra.mrb[0].mxu0 %v3241
        %v4127 = vpop.f32.mrb[0].mxu0
        %v4128 = vadd.f32 %v3386, %v4127
        %v4129 = vpop.f32.mrb[0].mxu0
        %v4130 = vadd.f32 %v3390, %v4129
        %v4131 = vpop.f32.mrb[0].mxu0
        %v4132 = vadd.f32 %v3386, %v4131
        %v4133 = vpop.f32.mrb[0].mxu0
        %v4134 = vadd.f32 %v3390, %v4133
        %4135 = vmatprep.mubr.bf16.mxu0 %v3246
        %4136 = vmatmul.mubr.bf16.gmra.mrb[0].mxu0 %v3245
        %v4137 = vpop.f32.mrb[0].mxu0
        %v4138 = vadd.f32 %v3386, %v4137
        %v4139 = vpop.f32.mrb[0].mxu0
        %v4140 = vadd.f32 %v3390, %v4139
        %v4141 = vpop.f32.mrb[0].mxu0
        %v4142 = vadd.f32 %v3386, %v4141
        %v4143 = vpop.f32.mrb[0].mxu0
        %v4144 = vadd.f32 %v3390, %v4143
        %4145 = vmatprep.mubr.bf16.mxu0 %v3250
        %4146 = vmatmul.mubr.bf16.gmra.mrb[0].mxu0 %v3249
        %v4147 = vpop.f32.mrb[0].mxu0
        %v4148 = vadd.f32 %v3386, %v4147
        %v4149 = vpop.f32.mrb[0].mxu0
        %v4150 = vadd.f32 %v3390, %v4149
        %v4151 = vpop.f32.mrb[0].mxu0
        %v4152 = vadd.f32 %v3386, %v4151
        %v4153 = vpop.f32.mrb[0].mxu0
        %v4154 = vadd.f32 %v3390, %v4153
        %4155 = vdwg.mxu0
        %4156 = vmatprep.subr.bf16.mxu0 %v3790
        %4157 = vmatpush1.bf16.xpose.msra.mxu0 %v3789
        %4158 = vmatprep.subr.bf16.mxu0 %v3794
        %4159 = vmatpush1.bf16.xpose.msra.mxu0 %v3793
        %4160 = vmatprep.subr.bf16.mxu0 %v3798
        %4161 = vmatpush1.bf16.xpose.msra.mxu0 %v3797
        %4162 = vmatprep.subr.bf16.mxu0 %v3802
        %4163 = vmatpush1.bf16.xpose.msra.mxu0 %v3801
        %4164 = vmatprep.subr.bf16.mxu0 %v3806
        %4165 = vmatpush1.bf16.xpose.msra.mxu0 %v3805
        %4166 = vmatprep.subr.bf16.mxu0 %v3810
        %4167 = vmatpush1.bf16.xpose.msra.mxu0 %v3809
        %4168 = vmatprep.subr.bf16.mxu0 %v3814
        %4169 = vmatpush1.bf16.xpose.msra.mxu0 %v3813
        %4170 = vmatprep.subr.bf16.mxu0 %v3818
        %4171 = vmatpush1.bf16.xpose.msra.mxu0 %v3817
        %4172 = vmatprep.subr.bf16.mxu0 %v3822
        %4173 = vmatpush1.bf16.xpose.msra.mxu0 %v3821
        %4174 = vmatprep.subr.bf16.mxu0 %v3826
        %4175 = vmatpush1.bf16.xpose.msra.mxu0 %v3825
        %4176 = vmatprep.subr.bf16.mxu0 %v3830
        %4177 = vmatpush1.bf16.xpose.msra.mxu0 %v3829
        %4178 = vmatprep.subr.bf16.mxu0 %v3834
        %4179 = vmatpush1.bf16.xpose.msra.mxu0 %v3833
        %4180 = vmatprep.subr.bf16.mxu0 %v3838
        %4181 = vmatpush1.bf16.xpose.msra.mxu0 %v3837
        %4182 = vmatprep.subr.bf16.mxu0 %v3842
        %4183 = vmatpush1.bf16.xpose.msra.mxu0 %v3841
        %4184 = vmatprep.subr.bf16.mxu0 %v3846
        %4185 = vmatpush1.bf16.xpose.msra.mxu0 %v3845
        %4186 = vmatprep.subr.bf16.mxu0 %v3850
        %4187 = vmatpush1.bf16.xpose.msra.mxu0 %v3849
        %4188 = vmatprep.mubr.bf16.mxu0 %v3224
        %4189 = vmatmul.mubr.bf16.gmra.mrb[0].mxu0 %v3223
        %v4190 = vpop.f32.mrb[0].mxu0
        %v4191 = vadd.f32 %v4078, %v4190
        %v4192 = vpop.f32.mrb[0].mxu0
        %v4193 = vadd.f32 %v4080, %v4192
        %v4194 = vpop.f32.mrb[0].mxu0
        %v4195 = vadd.f32 %v4082, %v4194
        %v4196 = vpop.f32.mrb[0].mxu0
        %v4197 = vadd.f32 %v4084, %v4196
        %4198 = vmatprep.mubr.bf16.mxu0 %v3228
        %4199 = vmatmul.mubr.bf16.gmra.mrb[0].mxu0 %v3227
        %v4200 = vpop.f32.mrb[0].mxu0
        %v4201 = vadd.f32 %v4088, %v4200
        %v4202 = vpop.f32.mrb[0].mxu0
        %v4203 = vadd.f32 %v4090, %v4202
        %v4204 = vpop.f32.mrb[0].mxu0
        %v4205 = vadd.f32 %v4092, %v4204
        %v4206 = vpop.f32.mrb[0].mxu0
        %v4207 = vadd.f32 %v4094, %v4206
        %4208 = vmatprep.mubr.bf16.mxu0 %v3232
        %4209 = vmatmul.mubr.bf16.gmra.mrb[0].mxu0 %v3231
        %v4210 = vpop.f32.mrb[0].mxu0
        %v4211 = vadd.f32 %v4098, %v4210
        %v4212 = vpop.f32.mrb[0].mxu0
        %v4213 = vadd.f32 %v4100, %v4212
        %v4214 = vpop.f32.mrb[0].mxu0
        %v4215 = vadd.f32 %v4102, %v4214
        %v4216 = vpop.f32.mrb[0].mxu0
        %v4217 = vadd.f32 %v4104, %v4216
        %4218 = vmatprep.mubr.bf16.mxu0 %v3236
        %4219 = vmatmul.mubr.bf16.gmra.mrb[0].mxu0 %v3235
        %v4220 = vpop.f32.mrb[0].mxu0
        %v4221 = vadd.f32 %v4108, %v4220
        %v4222 = vpop.f32.mrb[0].mxu0
        %v4223 = vadd.f32 %v4110, %v4222
        %v4224 = vpop.f32.mrb[0].mxu0
        %v4225 = vadd.f32 %v4112, %v4224
        %v4226 = vpop.f32.mrb[0].mxu0
        %v4227 = vadd.f32 %v4114, %v4226
        %4228 = vmatprep.mubr.bf16.mxu0 %v3240
        %4229 = vmatmul.mubr.bf16.gmra.mrb[0].mxu0 %v3239
        %v4230 = vpop.f32.mrb[0].mxu0
        %v4231 = vadd.f32 %v4118, %v4230
        %v4232 = vpop.f32.mrb[0].mxu0
        %v4233 = vadd.f32 %v4120, %v4232
        %v4234 = vpop.f32.mrb[0].mxu0
        %v4235 = vadd.f32 %v4122, %v4234
        %v4236 = vpop.f32.mrb[0].mxu0
        %v4237 = vadd.f32 %v4124, %v4236
        %4238 = vmatprep.mubr.bf16.mxu0 %v3244
        %4239 = vmatmul.mubr.bf16.gmra.mrb[0].mxu0 %v3243
        %v4240 = vpop.f32.mrb[0].mxu0
        %v4241 = vadd.f32 %v4128, %v4240
        %v4242 = vpop.f32.mrb[0].mxu0
        %v4243 = vadd.f32 %v4130, %v4242
        %v4244 = vpop.f32.mrb[0].mxu0
        %v4245 = vadd.f32 %v4132, %v4244
        %v4246 = vpop.f32.mrb[0].mxu0
        %v4247 = vadd.f32 %v4134, %v4246
        %4248 = vmatprep.mubr.bf16.mxu0 %v3248
        %4249 = vmatmul.mubr.bf16.gmra.mrb[0].mxu0 %v3247
        %v4250 = vpop.f32.mrb[0].mxu0
        %v4251 = vadd.f32 %v4138, %v4250
        %v4252 = vpop.f32.mrb[0].mxu0
        %v4253 = vadd.f32 %v4140, %v4252
        %v4254 = vpop.f32.mrb[0].mxu0
        %v4255 = vadd.f32 %v4142, %v4254
        %v4256 = vpop.f32.mrb[0].mxu0
        %v4257 = vadd.f32 %v4144, %v4256
        %4258 = vmatprep.mubr.bf16.mxu0 %v3252
        %4259 = vmatmul.mubr.bf16.gmra.mrb[0].mxu0 %v3251
        %v4260 = vpop.f32.mrb[0].mxu0
        %v4261 = vadd.f32 %v4148, %v4260
        %v4262 = vpop.f32.mrb[0].mxu0
        %v4263 = vadd.f32 %v4150, %v4262
        %v4264 = vpop.f32.mrb[0].mxu0
        %v4265 = vadd.f32 %v4152, %v4264
        %v4266 = vpop.f32.mrb[0].mxu0
        %v4267 = vadd.f32 %v4154, %v4266
        %4268 = vdwg.mxu0
        %4269 = vmatprep.subr.bf16.mxu0 %v3852
        %4270 = vmatpush1.bf16.xpose.msra.mxu0 %v3851
        %4271 = vmatprep.subr.bf16.mxu0 %v3856
        %4272 = vmatpush1.bf16.xpose.msra.mxu0 %v3855
        %4273 = vmatprep.subr.bf16.mxu0 %v3860
        %4274 = vmatpush1.bf16.xpose.msra.mxu0 %v3859
        %4275 = vmatprep.subr.bf16.mxu0 %v3864
        %4276 = vmatpush1.bf16.xpose.msra.mxu0 %v3863
        %4277 = vmatprep.subr.bf16.mxu0 %v3868
        %4278 = vmatpush1.bf16.xpose.msra.mxu0 %v3867
        %4279 = vmatprep.subr.bf16.mxu0 %v3872
        %4280 = vmatpush1.bf16.xpose.msra.mxu0 %v3871
        %4281 = vmatprep.subr.bf16.mxu0 %v3876
        %4282 = vmatpush1.bf16.xpose.msra.mxu0 %v3875
        %4283 = vmatprep.subr.bf16.mxu0 %v3880
        %4284 = vmatpush1.bf16.xpose.msra.mxu0 %v3879
        %4285 = vmatprep.subr.bf16.mxu0 %v3884
        %4286 = vmatpush1.bf16.xpose.msra.mxu0 %v3883
        %4287 = vmatprep.subr.bf16.mxu0 %v3888
        %4288 = vmatpush1.bf16.xpose.msra.mxu0 %v3887
        %4289 = vmatprep.subr.bf16.mxu0 %v3892
        %4290 = vmatpush1.bf16.xpose.msra.mxu0 %v3891
        %4291 = vmatprep.subr.bf16.mxu0 %v3896
        %4292 = vmatpush1.bf16.xpose.msra.mxu0 %v3895
        %4293 = vmatprep.subr.bf16.mxu0 %v3900
        %4294 = vmatpush1.bf16.xpose.msra.mxu0 %v3899
        %4295 = vmatprep.subr.bf16.mxu0 %v3904
        %4296 = vmatpush1.bf16.xpose.msra.mxu0 %v3903
        %4297 = vmatprep.subr.bf16.mxu0 %v3908
        %4298 = vmatpush1.bf16.xpose.msra.mxu0 %v3907
        %4299 = vmatprep.subr.bf16.mxu0 %v3912
        %4300 = vmatpush1.bf16.xpose.msra.mxu0 %v3911
        %4301 = vmatprep.mubr.bf16.mxu0 %v3222
        %4302 = vmatmul.mubr.bf16.gmra.mrb[0].mxu0 %v3221
        %v4303 = vpop.f32.mrb[0].mxu0
        %v4304 = vadd.f32 %v3394, %v4303
        %v4305 = vpop.f32.mrb[0].mxu0
        %v4306 = vadd.f32 %v3398, %v4305
        %v4307 = vpop.f32.mrb[0].mxu0
        %v4308 = vadd.f32 %v3394, %v4307
        %v4309 = vpop.f32.mrb[0].mxu0
        %v4310 = vadd.f32 %v3398, %v4309
        %4311 = vmatprep.mubr.bf16.mxu0 %v3226
        %4312 = vmatmul.mubr.bf16.gmra.mrb[0].mxu0 %v3225
        %v4313 = vpop.f32.mrb[0].mxu0
        %v4314 = vadd.f32 %v3394, %v4313
        %v4315 = vpop.f32.mrb[0].mxu0
        %v4316 = vadd.f32 %v3398, %v4315
        %v4317 = vpop.f32.mrb[0].mxu0
        %v4318 = vadd.f32 %v3394, %v4317
        %v4319 = vpop.f32.mrb[0].mxu0
        %v4320 = vadd.f32 %v3398, %v4319
        %4321 = vmatprep.mubr.bf16.mxu0 %v3230
        %4322 = vmatmul.mubr.bf16.gmra.mrb[0].mxu0 %v3229
        %v4323 = vpop.f32.mrb[0].mxu0
        %v4324 = vadd.f32 %v3394, %v4323
        %v4325 = vpop.f32.mrb[0].mxu0
        %v4326 = vadd.f32 %v3398, %v4325
        %v4327 = vpop.f32.mrb[0].mxu0
        %v4328 = vadd.f32 %v3394, %v4327
        %v4329 = vpop.f32.mrb[0].mxu0
        %v4330 = vadd.f32 %v3398, %v4329
        %4331 = vmatprep.mubr.bf16.mxu0 %v3234
        %4332 = vmatmul.mubr.bf16.gmra.mrb[0].mxu0 %v3233
        %v4333 = vpop.f32.mrb[0].mxu0
        %v4334 = vadd.f32 %v3394, %v4333
        %v4335 = vpop.f32.mrb[0].mxu0
        %v4336 = vadd.f32 %v3398, %v4335
        %v4337 = vpop.f32.mrb[0].mxu0
        %v4338 = vadd.f32 %v3394, %v4337
        %v4339 = vpop.f32.mrb[0].mxu0
        %v4340 = vadd.f32 %v3398, %v4339
        %4341 = vmatprep.mubr.bf16.mxu0 %v3238
        %4342 = vmatmul.mubr.bf16.gmra.mrb[0].mxu0 %v3237
        %v4343 = vpop.f32.mrb[0].mxu0
        %v4344 = vadd.f32 %v3394, %v4343
        %v4345 = vpop.f32.mrb[0].mxu0
        %v4346 = vadd.f32 %v3398, %v4345
        %v4347 = vpop.f32.mrb[0].mxu0
        %v4348 = vadd.f32 %v3394, %v4347
        %v4349 = vpop.f32.mrb[0].mxu0
        %v4350 = vadd.f32 %v3398, %v4349
        %4351 = vmatprep.mubr.bf16.mxu0 %v3242
        %4352 = vmatmul.mubr.bf16.gmra.mrb[0].mxu0 %v3241
        %v4353 = vpop.f32.mrb[0].mxu0
        %v4354 = vadd.f32 %v3394, %v4353
        %v4355 = vpop.f32.mrb[0].mxu0
        %v4356 = vadd.f32 %v3398, %v4355
        %v4357 = vpop.f32.mrb[0].mxu0
        %v4358 = vadd.f32 %v3394, %v4357
        %v4359 = vpop.f32.mrb[0].mxu0
        %v4360 = vadd.f32 %v3398, %v4359
        %4361 = vmatprep.mubr.bf16.mxu0 %v3246
        %4362 = vmatmul.mubr.bf16.gmra.mrb[0].mxu0 %v3245
        %v4363 = vpop.f32.mrb[0].mxu0
        %v4364 = vadd.f32 %v3394, %v4363
        %v4365 = vpop.f32.mrb[0].mxu0
        %v4366 = vadd.f32 %v3398, %v4365
        %v4367 = vpop.f32.mrb[0].mxu0
        %v4368 = vadd.f32 %v3394, %v4367
        %v4369 = vpop.f32.mrb[0].mxu0
        %v4370 = vadd.f32 %v3398, %v4369
        %4371 = vmatprep.mubr.bf16.mxu0 %v3250
        %4372 = vmatmul.mubr.bf16.gmra.mrb[0].mxu0 %v3249
        %v4373 = vpop.f32.mrb[0].mxu0
        %v4374 = vadd.f32 %v3394, %v4373
        %v4375 = vpop.f32.mrb[0].mxu0
        %v4376 = vadd.f32 %v3398, %v4375
        %v4377 = vpop.f32.mrb[0].mxu0
        %v4378 = vadd.f32 %v3394, %v4377
        %v4379 = vpop.f32.mrb[0].mxu0
        %v4380 = vadd.f32 %v3398, %v4379
        %4381 = vdwg.mxu0
        %4382 = vmatprep.subr.bf16.mxu0 %v3854
        %4383 = vmatpush1.bf16.xpose.msra.mxu0 %v3853
        %4384 = vmatprep.subr.bf16.mxu0 %v3858
        %4385 = vmatpush1.bf16.xpose.msra.mxu0 %v3857
        %4386 = vmatprep.subr.bf16.mxu0 %v3862
        %4387 = vmatpush1.bf16.xpose.msra.mxu0 %v3861
        %4388 = vmatprep.subr.bf16.mxu0 %v3866
        %4389 = vmatpush1.bf16.xpose.msra.mxu0 %v3865
        %4390 = vmatprep.subr.bf16.mxu0 %v3870
        %4391 = vmatpush1.bf16.xpose.msra.mxu0 %v3869
        %4392 = vmatprep.subr.bf16.mxu0 %v3874
        %4393 = vmatpush1.bf16.xpose.msra.mxu0 %v3873
        %4394 = vmatprep.subr.bf16.mxu0 %v3878
        %4395 = vmatpush1.bf16.xpose.msra.mxu0 %v3877
        %4396 = vmatprep.subr.bf16.mxu0 %v3882
        %4397 = vmatpush1.bf16.xpose.msra.mxu0 %v3881
        %4398 = vmatprep.subr.bf16.mxu0 %v3886
        %4399 = vmatpush1.bf16.xpose.msra.mxu0 %v3885
        %4400 = vmatprep.subr.bf16.mxu0 %v3890
        %4401 = vmatpush1.bf16.xpose.msra.mxu0 %v3889
        %4402 = vmatprep.subr.bf16.mxu0 %v3894
        %4403 = vmatpush1.bf16.xpose.msra.mxu0 %v3893
        %4404 = vmatprep.subr.bf16.mxu0 %v3898
        %4405 = vmatpush1.bf16.xpose.msra.mxu0 %v3897
        %4406 = vmatprep.subr.bf16.mxu0 %v3902
        %4407 = vmatpush1.bf16.xpose.msra.mxu0 %v3901
        %4408 = vmatprep.subr.bf16.mxu0 %v3906
        %4409 = vmatpush1.bf16.xpose.msra.mxu0 %v3905
        %4410 = vmatprep.subr.bf16.mxu0 %v3910
        %4411 = vmatpush1.bf16.xpose.msra.mxu0 %v3909
        %4412 = vmatprep.subr.bf16.mxu0 %v3914
        %4413 = vmatpush1.bf16.xpose.msra.mxu0 %v3913
        %4414 = vmatprep.mubr.bf16.mxu0 %v3224
        %4415 = vmatmul.mubr.bf16.gmra.mrb[0].mxu0 %v3223
        %v4416 = vpop.f32.mrb[0].mxu0
        %v4417 = vadd.f32 %v4304, %v4416
        %v4418 = vpop.f32.mrb[0].mxu0
        %v4419 = vadd.f32 %v4306, %v4418
        %v4420 = vpop.f32.mrb[0].mxu0
        %v4421 = vadd.f32 %v4308, %v4420
        %v4422 = vpop.f32.mrb[0].mxu0
        %v4423 = vadd.f32 %v4310, %v4422
        %4424 = vmatprep.mubr.bf16.mxu0 %v3228
        %4425 = vmatmul.mubr.bf16.gmra.mrb[0].mxu0 %v3227
        %v4426 = vpop.f32.mrb[0].mxu0
        %v4427 = vadd.f32 %v4314, %v4426
        %v4428 = vpop.f32.mrb[0].mxu0
        %v4429 = vadd.f32 %v4316, %v4428
        %v4430 = vpop.f32.mrb[0].mxu0
        %v4431 = vadd.f32 %v4318, %v4430
        %v4432 = vpop.f32.mrb[0].mxu0
        %v4433 = vadd.f32 %v4320, %v4432
        %4434 = vmatprep.mubr.bf16.mxu0 %v3232
        %4435 = vmatmul.mubr.bf16.gmra.mrb[0].mxu0 %v3231
        %v4436 = vpop.f32.mrb[0].mxu0
        %v4437 = vadd.f32 %v4324, %v4436
        %v4438 = vpop.f32.mrb[0].mxu0
        %v4439 = vadd.f32 %v4326, %v4438
        %v4440 = vpop.f32.mrb[0].mxu0
        %v4441 = vadd.f32 %v4328, %v4440
        %v4442 = vpop.f32.mrb[0].mxu0
        %v4443 = vadd.f32 %v4330, %v4442
        %4444 = vmatprep.mubr.bf16.mxu0 %v3236
        %4445 = vmatmul.mubr.bf16.gmra.mrb[0].mxu0 %v3235
        %v4446 = vpop.f32.mrb[0].mxu0
        %v4447 = vadd.f32 %v4334, %v4446
        %v4448 = vpop.f32.mrb[0].mxu0
        %v4449 = vadd.f32 %v4336, %v4448
        %v4450 = vpop.f32.mrb[0].mxu0
        %v4451 = vadd.f32 %v4338, %v4450
        %v4452 = vpop.f32.mrb[0].mxu0
        %v4453 = vadd.f32 %v4340, %v4452
        %4454 = vmatprep.mubr.bf16.mxu0 %v3240
        %4455 = vmatmul.mubr.bf16.gmra.mrb[0].mxu0 %v3239
        %v4456 = vpop.f32.mrb[0].mxu0
        %v4457 = vadd.f32 %v4344, %v4456
        %v4458 = vpop.f32.mrb[0].mxu0
        %v4459 = vadd.f32 %v4346, %v4458
        %v4460 = vpop.f32.mrb[0].mxu0
        %v4461 = vadd.f32 %v4348, %v4460
        %v4462 = vpop.f32.mrb[0].mxu0
        %v4463 = vadd.f32 %v4350, %v4462
        %4464 = vmatprep.mubr.bf16.mxu0 %v3244
        %4465 = vmatmul.mubr.bf16.gmra.mrb[0].mxu0 %v3243
        %v4466 = vpop.f32.mrb[0].mxu0
        %v4467 = vadd.f32 %v4354, %v4466
        %v4468 = vpop.f32.mrb[0].mxu0
        %v4469 = vadd.f32 %v4356, %v4468
        %v4470 = vpop.f32.mrb[0].mxu0
        %v4471 = vadd.f32 %v4358, %v4470
        %v4472 = vpop.f32.mrb[0].mxu0
        %v4473 = vadd.f32 %v4360, %v4472
        %4474 = vmatprep.mubr.bf16.mxu0 %v3248
        %4475 = vmatmul.mubr.bf16.gmra.mrb[0].mxu0 %v3247
        %v4476 = vpop.f32.mrb[0].mxu0
        %v4477 = vadd.f32 %v4364, %v4476
        %v4478 = vpop.f32.mrb[0].mxu0
        %v4479 = vadd.f32 %v4366, %v4478
        %v4480 = vpop.f32.mrb[0].mxu0
        %v4481 = vadd.f32 %v4368, %v4480
        %v4482 = vpop.f32.mrb[0].mxu0
        %v4483 = vadd.f32 %v4370, %v4482
        %4484 = vmatprep.mubr.bf16.mxu0 %v3252
        %4485 = vmatmul.mubr.bf16.gmra.mrb[0].mxu0 %v3251
        %v4486 = vpop.f32.mrb[0].mxu0
        %v4487 = vadd.f32 %v4374, %v4486
        %v4488 = vpop.f32.mrb[0].mxu0
        %v4489 = vadd.f32 %v4376, %v4488
        %v4490 = vpop.f32.mrb[0].mxu0
        %v4491 = vadd.f32 %v4378, %v4490
        %v4492 = vpop.f32.mrb[0].mxu0
        %v4493 = vadd.f32 %v4380, %v4492
        %4494 = vdwg.mxu0
        %v4495 = vmax.f32 %v4191, 0.0
        %v4496 = vmax.f32 %v4193, 0.0
        %v4497 = vmax.f32 %v4417, 0.0
        %v4498 = vmax.f32 %v4419, 0.0
        %v4499 = vmax.f32 %v4195, 0.0
        %v4500 = vmax.f32 %v4197, 0.0
        %v4501 = vmax.f32 %v4421, 0.0
        %v4502 = vmax.f32 %v4423, 0.0
        %v4503 = vmax.f32 %v4201, 0.0
        %v4504 = vmax.f32 %v4203, 0.0
        %v4505 = vmax.f32 %v4427, 0.0
        %v4506 = vmax.f32 %v4429, 0.0
        %v4507 = vmax.f32 %v4205, 0.0
        %v4508 = vmax.f32 %v4207, 0.0
        %v4509 = vmax.f32 %v4431, 0.0
        %v4510 = vmax.f32 %v4433, 0.0
        %v4511 = vmax.f32 %v4211, 0.0
        %v4512 = vmax.f32 %v4213, 0.0
        %v4513 = vmax.f32 %v4437, 0.0
        %v4514 = vmax.f32 %v4439, 0.0
        %v4515 = vmax.f32 %v4215, 0.0
        %v4516 = vmax.f32 %v4217, 0.0
        %v4517 = vmax.f32 %v4441, 0.0
        %v4518 = vmax.f32 %v4443, 0.0
        %v4519 = vmax.f32 %v4221, 0.0
        %v4520 = vmax.f32 %v4223, 0.0
        %v4521 = vmax.f32 %v4447, 0.0
        %v4522 = vmax.f32 %v4449, 0.0
        %v4523 = vmax.f32 %v4225, 0.0
        %v4524 = vmax.f32 %v4227, 0.0
        %v4525 = vmax.f32 %v4451, 0.0
        %v4526 = vmax.f32 %v4453, 0.0
        %v4527 = vmax.f32 %v4231, 0.0
        %v4528 = vmax.f32 %v4233, 0.0
        %v4529 = vmax.f32 %v4457, 0.0
        %v4530 = vmax.f32 %v4459, 0.0
        %v4531 = vmax.f32 %v4235, 0.0
        %v4532 = vmax.f32 %v4237, 0.0
        %v4533 = vmax.f32 %v4461, 0.0
        %v4534 = vmax.f32 %v4463, 0.0
        %v4535 = vmax.f32 %v4241, 0.0
        %v4536 = vmax.f32 %v4243, 0.0
        %v4537 = vmax.f32 %v4467, 0.0
        %v4538 = vmax.f32 %v4469, 0.0
        %v4539 = vmax.f32 %v4245, 0.0
        %v4540 = vmax.f32 %v4247, 0.0
        %v4541 = vmax.f32 %v4471, 0.0
        %v4542 = vmax.f32 %v4473, 0.0
        %v4543 = vmax.f32 %v4251, 0.0
        %v4544 = vmax.f32 %v4253, 0.0
        %v4545 = vmax.f32 %v4477, 0.0
        %v4546 = vmax.f32 %v4479, 0.0
        %v4547 = vmax.f32 %v4255, 0.0
        %v4548 = vmax.f32 %v4257, 0.0
        %v4549 = vmax.f32 %v4481, 0.0
        %v4550 = vmax.f32 %v4483, 0.0
        %v4551 = vmax.f32 %v4261, 0.0
        %v4552 = vmax.f32 %v4263, 0.0
        %v4553 = vmax.f32 %v4487, 0.0
        %v4554 = vmax.f32 %v4489, 0.0
        %v4555 = vmax.f32 %v4265, 0.0
        %v4556 = vmax.f32 %v4267, 0.0
        %v4557 = vmax.f32 %v4491, 0.0
        %v4558 = vmax.f32 %v4493, 0.0
        %v4559 = vpack.c.bf16 %v4499, %v4495
        %v4560 = vpack.c.bf16 %v4500, %v4496
        %v4561 = vpack.c.bf16 %v4501, %v4497
        %v4562 = vpack.c.bf16 %v4502, %v4498
        %v4563 = vpack.c.bf16 %v4507, %v4503
        %v4564 = vpack.c.bf16 %v4508, %v4504
        %v4565 = vpack.c.bf16 %v4509, %v4505
        %v4566 = vpack.c.bf16 %v4510, %v4506
        %v4567 = vpack.c.bf16 %v4515, %v4511
        %v4568 = vpack.c.bf16 %v4516, %v4512
        %v4569 = vpack.c.bf16 %v4517, %v4513
        %v4570 = vpack.c.bf16 %v4518, %v4514
        %v4571 = vpack.c.bf16 %v4523, %v4519
        %v4572 = vpack.c.bf16 %v4524, %v4520
        %v4573 = vpack.c.bf16 %v4525, %v4521
        %v4574 = vpack.c.bf16 %v4526, %v4522
        %v4575 = vpack.c.bf16 %v4531, %v4527
        %v4576 = vpack.c.bf16 %v4532, %v4528
        %v4577 = vpack.c.bf16 %v4533, %v4529
        %v4578 = vpack.c.bf16 %v4534, %v4530
        %v4579 = vpack.c.bf16 %v4539, %v4535
        %v4580 = vpack.c.bf16 %v4540, %v4536
        %v4581 = vpack.c.bf16 %v4541, %v4537
        %v4582 = vpack.c.bf16 %v4542, %v4538
        %v4583 = vpack.c.bf16 %v4547, %v4543
        %v4584 = vpack.c.bf16 %v4548, %v4544
        %v4585 = vpack.c.bf16 %v4549, %v4545
        %v4586 = vpack.c.bf16 %v4550, %v4546
        %v4587 = vpack.c.bf16 %v4555, %v4551
        %v4588 = vpack.c.bf16 %v4556, %v4552
        %v4589 = vpack.c.bf16 %v4557, %v4553
        %v4590 = vpack.c.bf16 %v4558, %v4554
        %v4591 = vld [vmem:[#allocation10] sm:$0xff]
        %v4592 = vld [vmem:[#allocation10 + $0x8] sm:$0xff]
        %v4593 = vld [vmem:[#allocation10 + $0x10] sm:$0xff]
        %v4594 = vld [vmem:[#allocation10 + $0x18] sm:$0xff]
        %v4595 = vld [vmem:[#allocation10 + $0x20] sm:$0xff]
        %v4596 = vld [vmem:[#allocation10 + $0x28] sm:$0xff]
        %v4597 = vld [vmem:[#allocation10 + $0x30] sm:$0xff]
        %v4598 = vld [vmem:[#allocation10 + $0x38] sm:$0xff]
        %v4599 = vld [vmem:[#allocation10 + $0x40] sm:$0xff]
        %v4600 = vld [vmem:[#allocation10 + $0x48] sm:$0xff]
        %v4601 = vld [vmem:[#allocation10 + $0x50] sm:$0xff]
        %v4602 = vld [vmem:[#allocation10 + $0x58] sm:$0xff]
        %v4603 = vld [vmem:[#allocation10 + $0x60] sm:$0xff]
        %v4604 = vld [vmem:[#allocation10 + $0x68] sm:$0xff]
        %v4605 = vld [vmem:[#allocation10 + $0x70] sm:$0xff]
        %v4606 = vld [vmem:[#allocation10 + $0x78] sm:$0xff]
        %v4607 = vld [vmem:[#allocation10 + $0x80] sm:$0xff]
        %v4608 = vld [vmem:[#allocation10 + $0x88] sm:$0xff]
        %v4609 = vld [vmem:[#allocation10 + $0x90] sm:$0xff]
        %v4610 = vld [vmem:[#allocation10 + $0x98] sm:$0xff]
        %v4611 = vld [vmem:[#allocation10 + $0xa0] sm:$0xff]
        %v4612 = vld [vmem:[#allocation10 + $0xa8] sm:$0xff]
        %v4613 = vld [vmem:[#allocation10 + $0xb0] sm:$0xff]
        %v4614 = vld [vmem:[#allocation10 + $0xb8] sm:$0xff]
        %v4615 = vld [vmem:[#allocation10 + $0xc0] sm:$0xff]
        %v4616 = vld [vmem:[#allocation10 + $0xc8] sm:$0xff]
        %v4617 = vld [vmem:[#allocation10 + $0xd0] sm:$0xff]
        %v4618 = vld [vmem:[#allocation10 + $0xd8] sm:$0xff]
        %v4619 = vld [vmem:[#allocation10 + $0xe0] sm:$0xff]
        %v4620 = vld [vmem:[#allocation10 + $0xe8] sm:$0xff]
        %v4621 = vld [vmem:[#allocation10 + $0xf0] sm:$0xff]
        %v4622 = vld [vmem:[#allocation10 + $0xf8] sm:$0xff]
        %v4623 = vld [vmem:[#allocation10 + $0x100] sm:$0xff]
        %v4624 = vld [vmem:[#allocation10 + $0x108] sm:$0xff]
        %v4625 = vld [vmem:[#allocation10 + $0x110] sm:$0xff]
        %v4626 = vld [vmem:[#allocation10 + $0x118] sm:$0xff]
        %v4627 = vld [vmem:[#allocation10 + $0x120] sm:$0xff]
        %v4628 = vld [vmem:[#allocation10 + $0x128] sm:$0xff]
        %v4629 = vld [vmem:[#allocation10 + $0x130] sm:$0xff]
        %v4630 = vld [vmem:[#allocation10 + $0x138] sm:$0xff]
        %v4631 = vld [vmem:[#allocation10 + $0x140] sm:$0xff]
        %v4632 = vld [vmem:[#allocation10 + $0x148] sm:$0xff]
        %v4633 = vld [vmem:[#allocation10 + $0x150] sm:$0xff]
        %v4634 = vld [vmem:[#allocation10 + $0x158] sm:$0xff]
        %v4635 = vld [vmem:[#allocation10 + $0x160] sm:$0xff]
        %v4636 = vld [vmem:[#allocation10 + $0x168] sm:$0xff]
        %v4637 = vld [vmem:[#allocation10 + $0x170] sm:$0xff]
        %v4638 = vld [vmem:[#allocation10 + $0x178] sm:$0xff]
        %v4639 = vld [vmem:[#allocation10 + $0x180] sm:$0xff]
        %v4640 = vld [vmem:[#allocation10 + $0x188] sm:$0xff]
        %v4641 = vld [vmem:[#allocation10 + $0x190] sm:$0xff]
        %v4642 = vld [vmem:[#allocation10 + $0x198] sm:$0xff]
        %v4643 = vld [vmem:[#allocation10 + $0x1a0] sm:$0xff]
        %v4644 = vld [vmem:[#allocation10 + $0x1a8] sm:$0xff]
        %v4645 = vld [vmem:[#allocation10 + $0x1b0] sm:$0xff]
        %v4646 = vld [vmem:[#allocation10 + $0x1b8] sm:$0xff]
        %v4647 = vld [vmem:[#allocation10 + $0x1c0] sm:$0xff]
        %v4648 = vld [vmem:[#allocation10 + $0x1c8] sm:$0xff]
        %v4649 = vld [vmem:[#allocation10 + $0x1d0] sm:$0xff]
        %v4650 = vld [vmem:[#allocation10 + $0x1d8] sm:$0xff]
        %v4651 = vld [vmem:[#allocation10 + $0x1e0] sm:$0xff]
        %v4652 = vld [vmem:[#allocation10 + $0x1e8] sm:$0xff]
        %v4653 = vld [vmem:[#allocation10 + $0x1f0] sm:$0xff]
        %v4654 = vld [vmem:[#allocation10 + $0x1f8] sm:$0xff]
        %v4655 = vld [vmem:[#allocation10 + $0x200] sm:$0xff]
        %v4656 = vld [vmem:[#allocation10 + $0x208] sm:$0xff]
        %v4657 = vld [vmem:[#allocation10 + $0x210] sm:$0xff]
        %v4658 = vld [vmem:[#allocation10 + $0x218] sm:$0xff]
        %v4659 = vld [vmem:[#allocation10 + $0x220] sm:$0xff]
        %v4660 = vld [vmem:[#allocation10 + $0x228] sm:$0xff]
        %v4661 = vld [vmem:[#allocation10 + $0x230] sm:$0xff]
        %v4662 = vld [vmem:[#allocation10 + $0x238] sm:$0xff]
        %v4663 = vld [vmem:[#allocation10 + $0x240] sm:$0xff]
        %v4664 = vld [vmem:[#allocation10 + $0x248] sm:$0xff]
        %v4665 = vld [vmem:[#allocation10 + $0x250] sm:$0xff]
        %v4666 = vld [vmem:[#allocation10 + $0x258] sm:$0xff]
        %v4667 = vld [vmem:[#allocation10 + $0x260] sm:$0xff]
        %v4668 = vld [vmem:[#allocation10 + $0x268] sm:$0xff]
        %v4669 = vld [vmem:[#allocation10 + $0x270] sm:$0xff]
        %v4670 = vld [vmem:[#allocation10 + $0x278] sm:$0xff]
        %v4671 = vld [vmem:[#allocation10 + $0x280] sm:$0xff]
        %v4672 = vld [vmem:[#allocation10 + $0x288] sm:$0xff]
        %v4673 = vld [vmem:[#allocation10 + $0x290] sm:$0xff]
        %v4674 = vld [vmem:[#allocation10 + $0x298] sm:$0xff]
        %v4675 = vld [vmem:[#allocation10 + $0x2a0] sm:$0xff]
        %v4676 = vld [vmem:[#allocation10 + $0x2a8] sm:$0xff]
        %v4677 = vld [vmem:[#allocation10 + $0x2b0] sm:$0xff]
        %v4678 = vld [vmem:[#allocation10 + $0x2b8] sm:$0xff]
        %v4679 = vld [vmem:[#allocation10 + $0x2c0] sm:$0xff]
        %v4680 = vld [vmem:[#allocation10 + $0x2c8] sm:$0xff]
        %v4681 = vld [vmem:[#allocation10 + $0x2d0] sm:$0xff]
        %v4682 = vld [vmem:[#allocation10 + $0x2d8] sm:$0xff]
        %v4683 = vld [vmem:[#allocation10 + $0x2e0] sm:$0xff]
        %v4684 = vld [vmem:[#allocation10 + $0x2e8] sm:$0xff]
        %v4685 = vld [vmem:[#allocation10 + $0x2f0] sm:$0xff]
        %v4686 = vld [vmem:[#allocation10 + $0x2f8] sm:$0xff]
        %v4687 = vld [vmem:[#allocation10 + $0x300] sm:$0xff]
        %v4688 = vld [vmem:[#allocation10 + $0x308] sm:$0xff]
        %v4689 = vld [vmem:[#allocation10 + $0x310] sm:$0xff]
        %v4690 = vld [vmem:[#allocation10 + $0x318] sm:$0xff]
        %v4691 = vld [vmem:[#allocation10 + $0x320] sm:$0xff]
        %v4692 = vld [vmem:[#allocation10 + $0x328] sm:$0xff]
        %v4693 = vld [vmem:[#allocation10 + $0x330] sm:$0xff]
        %v4694 = vld [vmem:[#allocation10 + $0x338] sm:$0xff]
        %v4695 = vld [vmem:[#allocation10 + $0x340] sm:$0xff]
        %v4696 = vld [vmem:[#allocation10 + $0x348] sm:$0xff]
        %v4697 = vld [vmem:[#allocation10 + $0x350] sm:$0xff]
        %v4698 = vld [vmem:[#allocation10 + $0x358] sm:$0xff]
        %v4699 = vld [vmem:[#allocation10 + $0x360] sm:$0xff]
        %v4700 = vld [vmem:[#allocation10 + $0x368] sm:$0xff]
        %v4701 = vld [vmem:[#allocation10 + $0x370] sm:$0xff]
        %v4702 = vld [vmem:[#allocation10 + $0x378] sm:$0xff]
        %v4703 = vld [vmem:[#allocation10 + $0x380] sm:$0xff]
        %v4704 = vld [vmem:[#allocation10 + $0x388] sm:$0xff]
        %v4705 = vld [vmem:[#allocation10 + $0x390] sm:$0xff]
        %v4706 = vld [vmem:[#allocation10 + $0x398] sm:$0xff]
        %v4707 = vld [vmem:[#allocation10 + $0x3a0] sm:$0xff]
        %v4708 = vld [vmem:[#allocation10 + $0x3a8] sm:$0xff]
        %v4709 = vld [vmem:[#allocation10 + $0x3b0] sm:$0xff]
        %v4710 = vld [vmem:[#allocation10 + $0x3b8] sm:$0xff]
        %v4711 = vld [vmem:[#allocation10 + $0x3c0] sm:$0xff]
        %v4712 = vld [vmem:[#allocation10 + $0x3c8] sm:$0xff]
        %v4713 = vld [vmem:[#allocation10 + $0x3d0] sm:$0xff]
        %v4714 = vld [vmem:[#allocation10 + $0x3d8] sm:$0xff]
        %v4715 = vld [vmem:[#allocation10 + $0x3e0] sm:$0xff]
        %v4716 = vld [vmem:[#allocation10 + $0x3e8] sm:$0xff]
        %v4717 = vld [vmem:[#allocation10 + $0x3f0] sm:$0xff]
        %v4718 = vld [vmem:[#allocation10 + $0x3f8] sm:$0xff]
        %v4719 = vld [vmem:[%s9] sm:$0xf]
        %v4721 = vlaneseq
        %v4722 = vshrl.u32 %v4721, 7
        %v4723 = vsub.s32 0, %v4722
        %v4724 = vrot.slane %v4719, %v4723
        %v4725 = vlaneseq
        %v4726 = vshrl.u32 %v4725, 7
        %v4727 = vsub.s32 1, %v4726
        %v4728 = vrot.slane %v4719, %v4727
        %v4729 = vlaneseq
        %v4730 = vshrl.u32 %v4729, 7
        %v4731 = vsub.s32 2, %v4730
        %v4732 = vrot.slane %v4719, %v4731
        %v4733 = vlaneseq
        %v4734 = vshrl.u32 %v4733, 7
        %v4735 = vsub.s32 3, %v4734
        %v4736 = vrot.slane %v4719, %v4735
        %v4869 = vunpack.c.l.b16 %v4591
        %v4870 = vunpack.c.h.b16 %v4591
        %v4871 = vunpack.c.l.b16 %v4592
        %v4872 = vunpack.c.h.b16 %v4592
        %v4873 = vunpack.c.l.b16 %v4593
        %v4874 = vunpack.c.h.b16 %v4593
        %v4875 = vunpack.c.l.b16 %v4594
        %v4876 = vunpack.c.h.b16 %v4594
        %v4877 = vunpack.c.l.b16 %v4595
        %v4878 = vunpack.c.h.b16 %v4595
        %v4879 = vunpack.c.l.b16 %v4596
        %v4880 = vunpack.c.h.b16 %v4596
        %v4881 = vunpack.c.l.b16 %v4597
        %v4882 = vunpack.c.h.b16 %v4597
        %v4883 = vunpack.c.l.b16 %v4598
        %v4884 = vunpack.c.h.b16 %v4598
        %v4885 = vunpack.c.l.b16 %v4599
        %v4886 = vunpack.c.h.b16 %v4599
        %v4887 = vunpack.c.l.b16 %v4600
        %v4888 = vunpack.c.h.b16 %v4600
        %v4889 = vunpack.c.l.b16 %v4601
        %v4890 = vunpack.c.h.b16 %v4601
        %v4891 = vunpack.c.l.b16 %v4602
        %v4892 = vunpack.c.h.b16 %v4602
        %v4893 = vunpack.c.l.b16 %v4603
        %v4894 = vunpack.c.h.b16 %v4603
        %v4895 = vunpack.c.l.b16 %v4604
        %v4896 = vunpack.c.h.b16 %v4604
        %v4897 = vunpack.c.l.b16 %v4605
        %v4898 = vunpack.c.h.b16 %v4605
        %v4899 = vunpack.c.l.b16 %v4606
        %v4900 = vunpack.c.h.b16 %v4606
        %v4901 = vunpack.c.l.b16 %v4607
        %v4902 = vunpack.c.h.b16 %v4607
        %v4903 = vunpack.c.l.b16 %v4608
        %v4904 = vunpack.c.h.b16 %v4608
        %v4905 = vunpack.c.l.b16 %v4609
        %v4906 = vunpack.c.h.b16 %v4609
        %v4907 = vunpack.c.l.b16 %v4610
        %v4908 = vunpack.c.h.b16 %v4610
        %v4909 = vunpack.c.l.b16 %v4611
        %v4910 = vunpack.c.h.b16 %v4611
        %v4911 = vunpack.c.l.b16 %v4612
        %v4912 = vunpack.c.h.b16 %v4612
        %v4913 = vunpack.c.l.b16 %v4613
        %v4914 = vunpack.c.h.b16 %v4613
        %v4915 = vunpack.c.l.b16 %v4614
        %v4916 = vunpack.c.h.b16 %v4614
        %v4917 = vunpack.c.l.b16 %v4615
        %v4918 = vunpack.c.h.b16 %v4615
        %v4919 = vunpack.c.l.b16 %v4616
        %v4920 = vunpack.c.h.b16 %v4616
        %v4921 = vunpack.c.l.b16 %v4617
        %v4922 = vunpack.c.h.b16 %v4617
        %v4923 = vunpack.c.l.b16 %v4618
        %v4924 = vunpack.c.h.b16 %v4618
        %v4925 = vunpack.c.l.b16 %v4619
        %v4926 = vunpack.c.h.b16 %v4619
        %v4927 = vunpack.c.l.b16 %v4620
        %v4928 = vunpack.c.h.b16 %v4620
        %v4929 = vunpack.c.l.b16 %v4621
        %v4930 = vunpack.c.h.b16 %v4621
        %v4931 = vunpack.c.l.b16 %v4622
        %v4932 = vunpack.c.h.b16 %v4622
        %v4933 = vunpack.c.l.b16 %v4623
        %v4934 = vunpack.c.h.b16 %v4623
        %v4935 = vunpack.c.l.b16 %v4624
        %v4936 = vunpack.c.h.b16 %v4624
        %v4937 = vunpack.c.l.b16 %v4625
        %v4938 = vunpack.c.h.b16 %v4625
        %v4939 = vunpack.c.l.b16 %v4626
        %v4940 = vunpack.c.h.b16 %v4626
        %v4941 = vunpack.c.l.b16 %v4627
        %v4942 = vunpack.c.h.b16 %v4627
        %v4943 = vunpack.c.l.b16 %v4628
        %v4944 = vunpack.c.h.b16 %v4628
        %v4945 = vunpack.c.l.b16 %v4629
        %v4946 = vunpack.c.h.b16 %v4629
        %v4947 = vunpack.c.l.b16 %v4630
        %v4948 = vunpack.c.h.b16 %v4630
        %v4949 = vunpack.c.l.b16 %v4631
        %v4950 = vunpack.c.h.b16 %v4631
        %v4951 = vunpack.c.l.b16 %v4632
        %v4952 = vunpack.c.h.b16 %v4632
        %v4953 = vunpack.c.l.b16 %v4633
        %v4954 = vunpack.c.h.b16 %v4633
        %v4955 = vunpack.c.l.b16 %v4634
        %v4956 = vunpack.c.h.b16 %v4634
        %v4957 = vunpack.c.l.b16 %v4635
        %v4958 = vunpack.c.h.b16 %v4635
        %v4959 = vunpack.c.l.b16 %v4636
        %v4960 = vunpack.c.h.b16 %v4636
        %v4961 = vunpack.c.l.b16 %v4637
        %v4962 = vunpack.c.h.b16 %v4637
        %v4963 = vunpack.c.l.b16 %v4638
        %v4964 = vunpack.c.h.b16 %v4638
        %v4965 = vunpack.c.l.b16 %v4639
        %v4966 = vunpack.c.h.b16 %v4639
        %v4967 = vunpack.c.l.b16 %v4640
        %v4968 = vunpack.c.h.b16 %v4640
        %v4969 = vunpack.c.l.b16 %v4641
        %v4970 = vunpack.c.h.b16 %v4641
        %v4971 = vunpack.c.l.b16 %v4642
        %v4972 = vunpack.c.h.b16 %v4642
        %v4973 = vunpack.c.l.b16 %v4643
        %v4974 = vunpack.c.h.b16 %v4643
        %v4975 = vunpack.c.l.b16 %v4644
        %v4976 = vunpack.c.h.b16 %v4644
        %v4977 = vunpack.c.l.b16 %v4645
        %v4978 = vunpack.c.h.b16 %v4645
        %v4979 = vunpack.c.l.b16 %v4646
        %v4980 = vunpack.c.h.b16 %v4646
        %v4981 = vunpack.c.l.b16 %v4647
        %v4982 = vunpack.c.h.b16 %v4647
        %v4983 = vunpack.c.l.b16 %v4648
        %v4984 = vunpack.c.h.b16 %v4648
        %v4985 = vunpack.c.l.b16 %v4649
        %v4986 = vunpack.c.h.b16 %v4649
        %v4987 = vunpack.c.l.b16 %v4650
        %v4988 = vunpack.c.h.b16 %v4650
        %v4989 = vunpack.c.l.b16 %v4651
        %v4990 = vunpack.c.h.b16 %v4651
        %v4991 = vunpack.c.l.b16 %v4652
        %v4992 = vunpack.c.h.b16 %v4652
        %v4993 = vunpack.c.l.b16 %v4653
        %v4994 = vunpack.c.h.b16 %v4653
        %v4995 = vunpack.c.l.b16 %v4654
        %v4996 = vunpack.c.h.b16 %v4654
        %v4997 = vunpack.c.l.b16 %v4655
        %v4998 = vunpack.c.h.b16 %v4655
        %v4999 = vunpack.c.l.b16 %v4656
        %v5000 = vunpack.c.h.b16 %v4656
        %v5001 = vunpack.c.l.b16 %v4657
        %v5002 = vunpack.c.h.b16 %v4657
        %v5003 = vunpack.c.l.b16 %v4658
        %v5004 = vunpack.c.h.b16 %v4658
        %v5005 = vunpack.c.l.b16 %v4659
        %v5006 = vunpack.c.h.b16 %v4659
        %v5007 = vunpack.c.l.b16 %v4660
        %v5008 = vunpack.c.h.b16 %v4660
        %v5009 = vunpack.c.l.b16 %v4661
        %v5010 = vunpack.c.h.b16 %v4661
        %v5011 = vunpack.c.l.b16 %v4662
        %v5012 = vunpack.c.h.b16 %v4662
        %v5013 = vunpack.c.l.b16 %v4663
        %v5014 = vunpack.c.h.b16 %v4663
        %v5015 = vunpack.c.l.b16 %v4664
        %v5016 = vunpack.c.h.b16 %v4664
        %v5017 = vunpack.c.l.b16 %v4665
        %v5018 = vunpack.c.h.b16 %v4665
        %v5019 = vunpack.c.l.b16 %v4666
        %v5020 = vunpack.c.h.b16 %v4666
        %v5021 = vunpack.c.l.b16 %v4667
        %v5022 = vunpack.c.h.b16 %v4667
        %v5023 = vunpack.c.l.b16 %v4668
        %v5024 = vunpack.c.h.b16 %v4668
        %v5025 = vunpack.c.l.b16 %v4669
        %v5026 = vunpack.c.h.b16 %v4669
        %v5027 = vunpack.c.l.b16 %v4670
        %v5028 = vunpack.c.h.b16 %v4670
        %v5029 = vunpack.c.l.b16 %v4671
        %v5030 = vunpack.c.h.b16 %v4671
        %v5031 = vunpack.c.l.b16 %v4672
        %v5032 = vunpack.c.h.b16 %v4672
        %v5033 = vunpack.c.l.b16 %v4673
        %v5034 = vunpack.c.h.b16 %v4673
        %v5035 = vunpack.c.l.b16 %v4674
        %v5036 = vunpack.c.h.b16 %v4674
        %v5037 = vunpack.c.l.b16 %v4675
        %v5038 = vunpack.c.h.b16 %v4675
        %v5039 = vunpack.c.l.b16 %v4676
        %v5040 = vunpack.c.h.b16 %v4676
        %v5041 = vunpack.c.l.b16 %v4677
        %v5042 = vunpack.c.h.b16 %v4677
        %v5043 = vunpack.c.l.b16 %v4678
        %v5044 = vunpack.c.h.b16 %v4678
        %v5045 = vunpack.c.l.b16 %v4679
        %v5046 = vunpack.c.h.b16 %v4679
        %v5047 = vunpack.c.l.b16 %v4680
        %v5048 = vunpack.c.h.b16 %v4680
        %v5049 = vunpack.c.l.b16 %v4681
        %v5050 = vunpack.c.h.b16 %v4681
        %v5051 = vunpack.c.l.b16 %v4682
        %v5052 = vunpack.c.h.b16 %v4682
        %v5053 = vunpack.c.l.b16 %v4683
        %v5054 = vunpack.c.h.b16 %v4683
        %v5055 = vunpack.c.l.b16 %v4684
        %v5056 = vunpack.c.h.b16 %v4684
        %v5057 = vunpack.c.l.b16 %v4685
        %v5058 = vunpack.c.h.b16 %v4685
        %v5059 = vunpack.c.l.b16 %v4686
        %v5060 = vunpack.c.h.b16 %v4686
        %v5061 = vunpack.c.l.b16 %v4687
        %v5062 = vunpack.c.h.b16 %v4687
        %v5063 = vunpack.c.l.b16 %v4688
        %v5064 = vunpack.c.h.b16 %v4688
        %v5065 = vunpack.c.l.b16 %v4689
        %v5066 = vunpack.c.h.b16 %v4689
        %v5067 = vunpack.c.l.b16 %v4690
        %v5068 = vunpack.c.h.b16 %v4690
        %v5069 = vunpack.c.l.b16 %v4691
        %v5070 = vunpack.c.h.b16 %v4691
        %v5071 = vunpack.c.l.b16 %v4692
        %v5072 = vunpack.c.h.b16 %v4692
        %v5073 = vunpack.c.l.b16 %v4693
        %v5074 = vunpack.c.h.b16 %v4693
        %v5075 = vunpack.c.l.b16 %v4694
        %v5076 = vunpack.c.h.b16 %v4694
        %v5077 = vunpack.c.l.b16 %v4695
        %v5078 = vunpack.c.h.b16 %v4695
        %v5079 = vunpack.c.l.b16 %v4696
        %v5080 = vunpack.c.h.b16 %v4696
        %v5081 = vunpack.c.l.b16 %v4697
        %v5082 = vunpack.c.h.b16 %v4697
        %v5083 = vunpack.c.l.b16 %v4698
        %v5084 = vunpack.c.h.b16 %v4698
        %v5085 = vunpack.c.l.b16 %v4699
        %v5086 = vunpack.c.h.b16 %v4699
        %v5087 = vunpack.c.l.b16 %v4700
        %v5088 = vunpack.c.h.b16 %v4700
        %v5089 = vunpack.c.l.b16 %v4701
        %v5090 = vunpack.c.h.b16 %v4701
        %v5091 = vunpack.c.l.b16 %v4702
        %v5092 = vunpack.c.h.b16 %v4702
        %v5093 = vunpack.c.l.b16 %v4703
        %v5094 = vunpack.c.h.b16 %v4703
        %v5095 = vunpack.c.l.b16 %v4704
        %v5096 = vunpack.c.h.b16 %v4704
        %v5097 = vunpack.c.l.b16 %v4705
        %v5098 = vunpack.c.h.b16 %v4705
        %v5099 = vunpack.c.l.b16 %v4706
        %v5100 = vunpack.c.h.b16 %v4706
        %v5101 = vunpack.c.l.b16 %v4707
        %v5102 = vunpack.c.h.b16 %v4707
        %v5103 = vunpack.c.l.b16 %v4708
        %v5104 = vunpack.c.h.b16 %v4708
        %v5105 = vunpack.c.l.b16 %v4709
        %v5106 = vunpack.c.h.b16 %v4709
        %v5107 = vunpack.c.l.b16 %v4710
        %v5108 = vunpack.c.h.b16 %v4710
        %v5109 = vunpack.c.l.b16 %v4711
        %v5110 = vunpack.c.h.b16 %v4711
        %v5111 = vunpack.c.l.b16 %v4712
        %v5112 = vunpack.c.h.b16 %v4712
        %v5113 = vunpack.c.l.b16 %v4713
        %v5114 = vunpack.c.h.b16 %v4713
        %v5115 = vunpack.c.l.b16 %v4714
        %v5116 = vunpack.c.h.b16 %v4714
        %v5117 = vunpack.c.l.b16 %v4715
        %v5118 = vunpack.c.h.b16 %v4715
        %v5119 = vunpack.c.l.b16 %v4716
        %v5120 = vunpack.c.h.b16 %v4716
        %v5121 = vunpack.c.l.b16 %v4717
        %v5122 = vunpack.c.h.b16 %v4717
        %v5123 = vunpack.c.l.b16 %v4718
        %v5124 = vunpack.c.h.b16 %v4718
        %v5125 = vpack.c.b16 %v4873, %v4869
        %v5126 = vpack.c.b16 %v4874, %v4870
        %v5127 = vpack.c.b16 %v4875, %v4871
        %v5128 = vpack.c.b16 %v4876, %v4872
        %v5129 = vpack.c.b16 %v4881, %v4877
        %v5130 = vpack.c.b16 %v4882, %v4878
        %v5131 = vpack.c.b16 %v4883, %v4879
        %v5132 = vpack.c.b16 %v4884, %v4880
        %v5133 = vpack.c.b16 %v4889, %v4885
        %v5134 = vpack.c.b16 %v4890, %v4886
        %v5135 = vpack.c.b16 %v4891, %v4887
        %v5136 = vpack.c.b16 %v4892, %v4888
        %v5137 = vpack.c.b16 %v4897, %v4893
        %v5138 = vpack.c.b16 %v4898, %v4894
        %v5139 = vpack.c.b16 %v4899, %v4895
        %v5140 = vpack.c.b16 %v4900, %v4896
        %v5141 = vpack.c.b16 %v4905, %v4901
        %v5142 = vpack.c.b16 %v4906, %v4902
        %v5143 = vpack.c.b16 %v4907, %v4903
        %v5144 = vpack.c.b16 %v4908, %v4904
        %v5145 = vpack.c.b16 %v4913, %v4909
        %v5146 = vpack.c.b16 %v4914, %v4910
        %v5147 = vpack.c.b16 %v4915, %v4911
        %v5148 = vpack.c.b16 %v4916, %v4912
        %v5149 = vpack.c.b16 %v4921, %v4917
        %v5150 = vpack.c.b16 %v4922, %v4918
        %v5151 = vpack.c.b16 %v4923, %v4919
        %v5152 = vpack.c.b16 %v4924, %v4920
        %v5153 = vpack.c.b16 %v4929, %v4925
        %v5154 = vpack.c.b16 %v4930, %v4926
        %v5155 = vpack.c.b16 %v4931, %v4927
        %v5156 = vpack.c.b16 %v4932, %v4928
        %v5157 = vpack.c.b16 %v4937, %v4933
        %v5158 = vpack.c.b16 %v4938, %v4934
        %v5159 = vpack.c.b16 %v4939, %v4935
        %v5160 = vpack.c.b16 %v4940, %v4936
        %v5161 = vpack.c.b16 %v4945, %v4941
        %v5162 = vpack.c.b16 %v4946, %v4942
        %v5163 = vpack.c.b16 %v4947, %v4943
        %v5164 = vpack.c.b16 %v4948, %v4944
        %v5165 = vpack.c.b16 %v4953, %v4949
        %v5166 = vpack.c.b16 %v4954, %v4950
        %v5167 = vpack.c.b16 %v4955, %v4951
        %v5168 = vpack.c.b16 %v4956, %v4952
        %v5169 = vpack.c.b16 %v4961, %v4957
        %v5170 = vpack.c.b16 %v4962, %v4958
        %v5171 = vpack.c.b16 %v4963, %v4959
        %v5172 = vpack.c.b16 %v4964, %v4960
        %v5173 = vpack.c.b16 %v4969, %v4965
        %v5174 = vpack.c.b16 %v4970, %v4966
        %v5175 = vpack.c.b16 %v4971, %v4967
        %v5176 = vpack.c.b16 %v4972, %v4968
        %v5177 = vpack.c.b16 %v4977, %v4973
        %v5178 = vpack.c.b16 %v4978, %v4974
        %v5179 = vpack.c.b16 %v4979, %v4975
        %v5180 = vpack.c.b16 %v4980, %v4976
        %v5181 = vpack.c.b16 %v4985, %v4981
        %v5182 = vpack.c.b16 %v4986, %v4982
        %v5183 = vpack.c.b16 %v4987, %v4983
        %v5184 = vpack.c.b16 %v4988, %v4984
        %v5185 = vpack.c.b16 %v4993, %v4989
        %v5186 = vpack.c.b16 %v4994, %v4990
        %v5187 = vpack.c.b16 %v4995, %v4991
        %v5188 = vpack.c.b16 %v4996, %v4992
        %v5189 = vpack.c.b16 %v5001, %v4997
        %v5190 = vpack.c.b16 %v5002, %v4998
        %v5191 = vpack.c.b16 %v5003, %v4999
        %v5192 = vpack.c.b16 %v5004, %v5000
        %v5193 = vpack.c.b16 %v5009, %v5005
        %v5194 = vpack.c.b16 %v5010, %v5006
        %v5195 = vpack.c.b16 %v5011, %v5007
        %v5196 = vpack.c.b16 %v5012, %v5008
        %v5197 = vpack.c.b16 %v5017, %v5013
        %v5198 = vpack.c.b16 %v5018, %v5014
        %v5199 = vpack.c.b16 %v5019, %v5015
        %v5200 = vpack.c.b16 %v5020, %v5016
        %v5201 = vpack.c.b16 %v5025, %v5021
        %v5202 = vpack.c.b16 %v5026, %v5022
        %v5203 = vpack.c.b16 %v5027, %v5023
        %v5204 = vpack.c.b16 %v5028, %v5024
        %v5205 = vpack.c.b16 %v5033, %v5029
        %v5206 = vpack.c.b16 %v5034, %v5030
        %v5207 = vpack.c.b16 %v5035, %v5031
        %v5208 = vpack.c.b16 %v5036, %v5032
        %v5209 = vpack.c.b16 %v5041, %v5037
        %v5210 = vpack.c.b16 %v5042, %v5038
        %v5211 = vpack.c.b16 %v5043, %v5039
        %v5212 = vpack.c.b16 %v5044, %v5040
        %v5213 = vpack.c.b16 %v5049, %v5045
        %v5214 = vpack.c.b16 %v5050, %v5046
        %v5215 = vpack.c.b16 %v5051, %v5047
        %v5216 = vpack.c.b16 %v5052, %v5048
        %v5217 = vpack.c.b16 %v5057, %v5053
        %v5218 = vpack.c.b16 %v5058, %v5054
        %v5219 = vpack.c.b16 %v5059, %v5055
        %v5220 = vpack.c.b16 %v5060, %v5056
        %v5221 = vpack.c.b16 %v5065, %v5061
        %v5222 = vpack.c.b16 %v5066, %v5062
        %v5223 = vpack.c.b16 %v5067, %v5063
        %v5224 = vpack.c.b16 %v5068, %v5064
        %v5225 = vpack.c.b16 %v5073, %v5069
        %v5226 = vpack.c.b16 %v5074, %v5070
        %v5227 = vpack.c.b16 %v5075, %v5071
        %v5228 = vpack.c.b16 %v5076, %v5072
        %v5229 = vpack.c.b16 %v5081, %v5077
        %v5230 = vpack.c.b16 %v5082, %v5078
        %v5231 = vpack.c.b16 %v5083, %v5079
        %v5232 = vpack.c.b16 %v5084, %v5080
        %v5233 = vpack.c.b16 %v5089, %v5085
        %v5234 = vpack.c.b16 %v5090, %v5086
        %v5235 = vpack.c.b16 %v5091, %v5087
        %v5236 = vpack.c.b16 %v5092, %v5088
        %v5237 = vpack.c.b16 %v5097, %v5093
        %v5238 = vpack.c.b16 %v5098, %v5094
        %v5239 = vpack.c.b16 %v5099, %v5095
        %v5240 = vpack.c.b16 %v5100, %v5096
        %v5241 = vpack.c.b16 %v5105, %v5101
        %v5242 = vpack.c.b16 %v5106, %v5102
        %v5243 = vpack.c.b16 %v5107, %v5103
        %v5244 = vpack.c.b16 %v5108, %v5104
        %v5245 = vpack.c.b16 %v5113, %v5109
        %v5246 = vpack.c.b16 %v5114, %v5110
        %v5247 = vpack.c.b16 %v5115, %v5111
        %v5248 = vpack.c.b16 %v5116, %v5112
        %v5249 = vpack.c.b16 %v5121, %v5117
        %v5250 = vpack.c.b16 %v5122, %v5118
        %v5251 = vpack.c.b16 %v5123, %v5119
        %v5252 = vpack.c.b16 %v5124, %v5120
        %5381 = vmatprep.subr.bf16.mxu0 %v5126
        %5382 = vmatpush1.bf16.xpose.msra.mxu0 %v5125
        %5383 = vmatprep.subr.bf16.mxu0 %v5130
        %5384 = vmatpush1.bf16.xpose.msra.mxu0 %v5129
        %5385 = vmatprep.subr.bf16.mxu0 %v5134
        %5386 = vmatpush1.bf16.xpose.msra.mxu0 %v5133
        %5387 = vmatprep.subr.bf16.mxu0 %v5138
        %5388 = vmatpush1.bf16.xpose.msra.mxu0 %v5137
        %5389 = vmatprep.subr.bf16.mxu0 %v5142
        %5390 = vmatpush1.bf16.xpose.msra.mxu0 %v5141
        %5391 = vmatprep.subr.bf16.mxu0 %v5146
        %5392 = vmatpush1.bf16.xpose.msra.mxu0 %v5145
        %5393 = vmatprep.subr.bf16.mxu0 %v5150
        %5394 = vmatpush1.bf16.xpose.msra.mxu0 %v5149
        %5395 = vmatprep.subr.bf16.mxu0 %v5154
        %5396 = vmatpush1.bf16.xpose.msra.mxu0 %v5153
        %5397 = vmatprep.subr.bf16.mxu0 %v5158
        %5398 = vmatpush1.bf16.xpose.msra.mxu0 %v5157
        %5399 = vmatprep.subr.bf16.mxu0 %v5162
        %5400 = vmatpush1.bf16.xpose.msra.mxu0 %v5161
        %5401 = vmatprep.subr.bf16.mxu0 %v5166
        %5402 = vmatpush1.bf16.xpose.msra.mxu0 %v5165
        %5403 = vmatprep.subr.bf16.mxu0 %v5170
        %5404 = vmatpush1.bf16.xpose.msra.mxu0 %v5169
        %5405 = vmatprep.subr.bf16.mxu0 %v5174
        %5406 = vmatpush1.bf16.xpose.msra.mxu0 %v5173
        %5407 = vmatprep.subr.bf16.mxu0 %v5178
        %5408 = vmatpush1.bf16.xpose.msra.mxu0 %v5177
        %5409 = vmatprep.subr.bf16.mxu0 %v5182
        %5410 = vmatpush1.bf16.xpose.msra.mxu0 %v5181
        %5411 = vmatprep.subr.bf16.mxu0 %v5186
        %5412 = vmatpush1.bf16.xpose.msra.mxu0 %v5185
        %5413 = vmatprep.mubr.bf16.mxu0 %v4560
        %5414 = vmatmul.mubr.bf16.gmra.mrb[0].mxu0 %v4559
        %v5415 = vpop.f32.mrb[0].mxu0
        %v5416 = vadd.f32 %v4724, %v5415
        %v5417 = vpop.f32.mrb[0].mxu0
        %v5418 = vadd.f32 %v4728, %v5417
        %v5419 = vpop.f32.mrb[0].mxu0
        %v5420 = vadd.f32 %v4724, %v5419
        %v5421 = vpop.f32.mrb[0].mxu0
        %v5422 = vadd.f32 %v4728, %v5421
        %5423 = vmatprep.mubr.bf16.mxu0 %v4564
        %5424 = vmatmul.mubr.bf16.gmra.mrb[0].mxu0 %v4563
        %v5425 = vpop.f32.mrb[0].mxu0
        %v5426 = vadd.f32 %v4724, %v5425
        %v5427 = vpop.f32.mrb[0].mxu0
        %v5428 = vadd.f32 %v4728, %v5427
        %v5429 = vpop.f32.mrb[0].mxu0
        %v5430 = vadd.f32 %v4724, %v5429
        %v5431 = vpop.f32.mrb[0].mxu0
        %v5432 = vadd.f32 %v4728, %v5431
        %5433 = vmatprep.mubr.bf16.mxu0 %v4568
        %5434 = vmatmul.mubr.bf16.gmra.mrb[0].mxu0 %v4567
        %v5435 = vpop.f32.mrb[0].mxu0
        %v5436 = vadd.f32 %v4724, %v5435
        %v5437 = vpop.f32.mrb[0].mxu0
        %v5438 = vadd.f32 %v4728, %v5437
        %v5439 = vpop.f32.mrb[0].mxu0
        %v5440 = vadd.f32 %v4724, %v5439
        %v5441 = vpop.f32.mrb[0].mxu0
        %v5442 = vadd.f32 %v4728, %v5441
        %5443 = vmatprep.mubr.bf16.mxu0 %v4572
        %5444 = vmatmul.mubr.bf16.gmra.mrb[0].mxu0 %v4571
        %v5445 = vpop.f32.mrb[0].mxu0
        %v5446 = vadd.f32 %v4724, %v5445
        %v5447 = vpop.f32.mrb[0].mxu0
        %v5448 = vadd.f32 %v4728, %v5447
        %v5449 = vpop.f32.mrb[0].mxu0
        %v5450 = vadd.f32 %v4724, %v5449
        %v5451 = vpop.f32.mrb[0].mxu0
        %v5452 = vadd.f32 %v4728, %v5451
        %5453 = vmatprep.mubr.bf16.mxu0 %v4576
        %5454 = vmatmul.mubr.bf16.gmra.mrb[0].mxu0 %v4575
        %v5455 = vpop.f32.mrb[0].mxu0
        %v5456 = vadd.f32 %v4724, %v5455
        %v5457 = vpop.f32.mrb[0].mxu0
        %v5458 = vadd.f32 %v4728, %v5457
        %v5459 = vpop.f32.mrb[0].mxu0
        %v5460 = vadd.f32 %v4724, %v5459
        %v5461 = vpop.f32.mrb[0].mxu0
        %v5462 = vadd.f32 %v4728, %v5461
        %5463 = vmatprep.mubr.bf16.mxu0 %v4580
        %5464 = vmatmul.mubr.bf16.gmra.mrb[0].mxu0 %v4579
        %v5465 = vpop.f32.mrb[0].mxu0
        %v5466 = vadd.f32 %v4724, %v5465
        %v5467 = vpop.f32.mrb[0].mxu0
        %v5468 = vadd.f32 %v4728, %v5467
        %v5469 = vpop.f32.mrb[0].mxu0
        %v5470 = vadd.f32 %v4724, %v5469
        %v5471 = vpop.f32.mrb[0].mxu0
        %v5472 = vadd.f32 %v4728, %v5471
        %5473 = vmatprep.mubr.bf16.mxu0 %v4584
        %5474 = vmatmul.mubr.bf16.gmra.mrb[0].mxu0 %v4583
        %v5475 = vpop.f32.mrb[0].mxu0
        %v5476 = vadd.f32 %v4724, %v5475
        %v5477 = vpop.f32.mrb[0].mxu0
        %v5478 = vadd.f32 %v4728, %v5477
        %v5479 = vpop.f32.mrb[0].mxu0
        %v5480 = vadd.f32 %v4724, %v5479
        %v5481 = vpop.f32.mrb[0].mxu0
        %v5482 = vadd.f32 %v4728, %v5481
        %5483 = vmatprep.mubr.bf16.mxu0 %v4588
        %5484 = vmatmul.mubr.bf16.gmra.mrb[0].mxu0 %v4587
        %v5485 = vpop.f32.mrb[0].mxu0
        %v5486 = vadd.f32 %v4724, %v5485
        %v5487 = vpop.f32.mrb[0].mxu0
        %v5488 = vadd.f32 %v4728, %v5487
        %v5489 = vpop.f32.mrb[0].mxu0
        %v5490 = vadd.f32 %v4724, %v5489
        %v5491 = vpop.f32.mrb[0].mxu0
        %v5492 = vadd.f32 %v4728, %v5491
        %5493 = vdwg.mxu0
        %5494 = vmatprep.subr.bf16.mxu0 %v5128
        %5495 = vmatpush1.bf16.xpose.msra.mxu0 %v5127
        %5496 = vmatprep.subr.bf16.mxu0 %v5132
        %5497 = vmatpush1.bf16.xpose.msra.mxu0 %v5131
        %5498 = vmatprep.subr.bf16.mxu0 %v5136
        %5499 = vmatpush1.bf16.xpose.msra.mxu0 %v5135
        %5500 = vmatprep.subr.bf16.mxu0 %v5140
        %5501 = vmatpush1.bf16.xpose.msra.mxu0 %v5139
        %5502 = vmatprep.subr.bf16.mxu0 %v5144
        %5503 = vmatpush1.bf16.xpose.msra.mxu0 %v5143
        %5504 = vmatprep.subr.bf16.mxu0 %v5148
        %5505 = vmatpush1.bf16.xpose.msra.mxu0 %v5147
        %5506 = vmatprep.subr.bf16.mxu0 %v5152
        %5507 = vmatpush1.bf16.xpose.msra.mxu0 %v5151
        %5508 = vmatprep.subr.bf16.mxu0 %v5156
        %5509 = vmatpush1.bf16.xpose.msra.mxu0 %v5155
        %5510 = vmatprep.subr.bf16.mxu0 %v5160
        %5511 = vmatpush1.bf16.xpose.msra.mxu0 %v5159
        %5512 = vmatprep.subr.bf16.mxu0 %v5164
        %5513 = vmatpush1.bf16.xpose.msra.mxu0 %v5163
        %5514 = vmatprep.subr.bf16.mxu0 %v5168
        %5515 = vmatpush1.bf16.xpose.msra.mxu0 %v5167
        %5516 = vmatprep.subr.bf16.mxu0 %v5172
        %5517 = vmatpush1.bf16.xpose.msra.mxu0 %v5171
        %5518 = vmatprep.subr.bf16.mxu0 %v5176
        %5519 = vmatpush1.bf16.xpose.msra.mxu0 %v5175
        %5520 = vmatprep.subr.bf16.mxu0 %v5180
        %5521 = vmatpush1.bf16.xpose.msra.mxu0 %v5179
        %5522 = vmatprep.subr.bf16.mxu0 %v5184
        %5523 = vmatpush1.bf16.xpose.msra.mxu0 %v5183
        %5524 = vmatprep.subr.bf16.mxu0 %v5188
        %5525 = vmatpush1.bf16.xpose.msra.mxu0 %v5187
        %5526 = vmatprep.mubr.bf16.mxu0 %v4562
        %5527 = vmatmul.mubr.bf16.gmra.mrb[0].mxu0 %v4561
        %v5528 = vpop.f32.mrb[0].mxu0
        %v5529 = vadd.f32 %v5416, %v5528
        %v5530 = vpop.f32.mrb[0].mxu0
        %v5531 = vadd.f32 %v5418, %v5530
        %v5532 = vpop.f32.mrb[0].mxu0
        %v5533 = vadd.f32 %v5420, %v5532
        %v5534 = vpop.f32.mrb[0].mxu0
        %v5535 = vadd.f32 %v5422, %v5534
        %5536 = vmatprep.mubr.bf16.mxu0 %v4566
        %5537 = vmatmul.mubr.bf16.gmra.mrb[0].mxu0 %v4565
        %v5538 = vpop.f32.mrb[0].mxu0
        %v5539 = vadd.f32 %v5426, %v5538
        %v5540 = vpop.f32.mrb[0].mxu0
        %v5541 = vadd.f32 %v5428, %v5540
        %v5542 = vpop.f32.mrb[0].mxu0
        %v5543 = vadd.f32 %v5430, %v5542
        %v5544 = vpop.f32.mrb[0].mxu0
        %v5545 = vadd.f32 %v5432, %v5544
        %5546 = vmatprep.mubr.bf16.mxu0 %v4570
        %5547 = vmatmul.mubr.bf16.gmra.mrb[0].mxu0 %v4569
        %v5548 = vpop.f32.mrb[0].mxu0
        %v5549 = vadd.f32 %v5436, %v5548
        %v5550 = vpop.f32.mrb[0].mxu0
        %v5551 = vadd.f32 %v5438, %v5550
        %v5552 = vpop.f32.mrb[0].mxu0
        %v5553 = vadd.f32 %v5440, %v5552
        %v5554 = vpop.f32.mrb[0].mxu0
        %v5555 = vadd.f32 %v5442, %v5554
        %5556 = vmatprep.mubr.bf16.mxu0 %v4574
        %5557 = vmatmul.mubr.bf16.gmra.mrb[0].mxu0 %v4573
        %v5558 = vpop.f32.mrb[0].mxu0
        %v5559 = vadd.f32 %v5446, %v5558
        %v5560 = vpop.f32.mrb[0].mxu0
        %v5561 = vadd.f32 %v5448, %v5560
        %v5562 = vpop.f32.mrb[0].mxu0
        %v5563 = vadd.f32 %v5450, %v5562
        %v5564 = vpop.f32.mrb[0].mxu0
        %v5565 = vadd.f32 %v5452, %v5564
        %5566 = vmatprep.mubr.bf16.mxu0 %v4578
        %5567 = vmatmul.mubr.bf16.gmra.mrb[0].mxu0 %v4577
        %v5568 = vpop.f32.mrb[0].mxu0
        %v5569 = vadd.f32 %v5456, %v5568
        %v5570 = vpop.f32.mrb[0].mxu0
        %v5571 = vadd.f32 %v5458, %v5570
        %v5572 = vpop.f32.mrb[0].mxu0
        %v5573 = vadd.f32 %v5460, %v5572
        %v5574 = vpop.f32.mrb[0].mxu0
        %v5575 = vadd.f32 %v5462, %v5574
        %5576 = vmatprep.mubr.bf16.mxu0 %v4582
        %5577 = vmatmul.mubr.bf16.gmra.mrb[0].mxu0 %v4581
        %v5578 = vpop.f32.mrb[0].mxu0
        %v5579 = vadd.f32 %v5466, %v5578
        %v5580 = vpop.f32.mrb[0].mxu0
        %v5581 = vadd.f32 %v5468, %v5580
        %v5582 = vpop.f32.mrb[0].mxu0
        %v5583 = vadd.f32 %v5470, %v5582
        %v5584 = vpop.f32.mrb[0].mxu0
        %v5585 = vadd.f32 %v5472, %v5584
        %5586 = vmatprep.mubr.bf16.mxu0 %v4586
        %5587 = vmatmul.mubr.bf16.gmra.mrb[0].mxu0 %v4585
        %v5588 = vpop.f32.mrb[0].mxu0
        %v5589 = vadd.f32 %v5476, %v5588
        %v5590 = vpop.f32.mrb[0].mxu0
        %v5591 = vadd.f32 %v5478, %v5590
        %v5592 = vpop.f32.mrb[0].mxu0
        %v5593 = vadd.f32 %v5480, %v5592
        %v5594 = vpop.f32.mrb[0].mxu0
        %v5595 = vadd.f32 %v5482, %v5594
        %5596 = vmatprep.mubr.bf16.mxu0 %v4590
        %5597 = vmatmul.mubr.bf16.gmra.mrb[0].mxu0 %v4589
        %v5598 = vpop.f32.mrb[0].mxu0
        %v5599 = vadd.f32 %v5486, %v5598
        %v5600 = vpop.f32.mrb[0].mxu0
        %v5601 = vadd.f32 %v5488, %v5600
        %v5602 = vpop.f32.mrb[0].mxu0
        %v5603 = vadd.f32 %v5490, %v5602
        %v5604 = vpop.f32.mrb[0].mxu0
        %v5605 = vadd.f32 %v5492, %v5604
        %5606 = vdwg.mxu0
        %5607 = vmatprep.subr.bf16.mxu0 %v5190
        %5608 = vmatpush1.bf16.xpose.msra.mxu0 %v5189
        %5609 = vmatprep.subr.bf16.mxu0 %v5194
        %5610 = vmatpush1.bf16.xpose.msra.mxu0 %v5193
        %5611 = vmatprep.subr.bf16.mxu0 %v5198
        %5612 = vmatpush1.bf16.xpose.msra.mxu0 %v5197
        %5613 = vmatprep.subr.bf16.mxu0 %v5202
        %5614 = vmatpush1.bf16.xpose.msra.mxu0 %v5201
        %5615 = vmatprep.subr.bf16.mxu0 %v5206
        %5616 = vmatpush1.bf16.xpose.msra.mxu0 %v5205
        %5617 = vmatprep.subr.bf16.mxu0 %v5210
        %5618 = vmatpush1.bf16.xpose.msra.mxu0 %v5209
        %5619 = vmatprep.subr.bf16.mxu0 %v5214
        %5620 = vmatpush1.bf16.xpose.msra.mxu0 %v5213
        %5621 = vmatprep.subr.bf16.mxu0 %v5218
        %5622 = vmatpush1.bf16.xpose.msra.mxu0 %v5217
        %5623 = vmatprep.subr.bf16.mxu0 %v5222
        %5624 = vmatpush1.bf16.xpose.msra.mxu0 %v5221
        %5625 = vmatprep.subr.bf16.mxu0 %v5226
        %5626 = vmatpush1.bf16.xpose.msra.mxu0 %v5225
        %5627 = vmatprep.subr.bf16.mxu0 %v5230
        %5628 = vmatpush1.bf16.xpose.msra.mxu0 %v5229
        %5629 = vmatprep.subr.bf16.mxu0 %v5234
        %5630 = vmatpush1.bf16.xpose.msra.mxu0 %v5233
        %5631 = vmatprep.subr.bf16.mxu0 %v5238
        %5632 = vmatpush1.bf16.xpose.msra.mxu0 %v5237
        %5633 = vmatprep.subr.bf16.mxu0 %v5242
        %5634 = vmatpush1.bf16.xpose.msra.mxu0 %v5241
        %5635 = vmatprep.subr.bf16.mxu0 %v5246
        %5636 = vmatpush1.bf16.xpose.msra.mxu0 %v5245
        %5637 = vmatprep.subr.bf16.mxu0 %v5250
        %5638 = vmatpush1.bf16.xpose.msra.mxu0 %v5249
        %5639 = vmatprep.mubr.bf16.mxu0 %v4560
        %5640 = vmatmul.mubr.bf16.gmra.mrb[0].mxu0 %v4559
        %v5641 = vpop.f32.mrb[0].mxu0
        %v5642 = vadd.f32 %v4732, %v5641
        %v5643 = vpop.f32.mrb[0].mxu0
        %v5644 = vadd.f32 %v4736, %v5643
        %v5645 = vpop.f32.mrb[0].mxu0
        %v5646 = vadd.f32 %v4732, %v5645
        %v5647 = vpop.f32.mrb[0].mxu0
        %v5648 = vadd.f32 %v4736, %v5647
        %5649 = vmatprep.mubr.bf16.mxu0 %v4564
        %5650 = vmatmul.mubr.bf16.gmra.mrb[0].mxu0 %v4563
        %v5651 = vpop.f32.mrb[0].mxu0
        %v5652 = vadd.f32 %v4732, %v5651
        %v5653 = vpop.f32.mrb[0].mxu0
        %v5654 = vadd.f32 %v4736, %v5653
        %v5655 = vpop.f32.mrb[0].mxu0
        %v5656 = vadd.f32 %v4732, %v5655
        %v5657 = vpop.f32.mrb[0].mxu0
        %v5658 = vadd.f32 %v4736, %v5657
        %5659 = vmatprep.mubr.bf16.mxu0 %v4568
        %5660 = vmatmul.mubr.bf16.gmra.mrb[0].mxu0 %v4567
        %v5661 = vpop.f32.mrb[0].mxu0
        %v5662 = vadd.f32 %v4732, %v5661
        %v5663 = vpop.f32.mrb[0].mxu0
        %v5664 = vadd.f32 %v4736, %v5663
        %v5665 = vpop.f32.mrb[0].mxu0
        %v5666 = vadd.f32 %v4732, %v5665
        %v5667 = vpop.f32.mrb[0].mxu0
        %v5668 = vadd.f32 %v4736, %v5667
        %5669 = vmatprep.mubr.bf16.mxu0 %v4572
        %5670 = vmatmul.mubr.bf16.gmra.mrb[0].mxu0 %v4571
        %v5671 = vpop.f32.mrb[0].mxu0
        %v5672 = vadd.f32 %v4732, %v5671
        %v5673 = vpop.f32.mrb[0].mxu0
        %v5674 = vadd.f32 %v4736, %v5673
        %v5675 = vpop.f32.mrb[0].mxu0
        %v5676 = vadd.f32 %v4732, %v5675
        %v5677 = vpop.f32.mrb[0].mxu0
        %v5678 = vadd.f32 %v4736, %v5677
        %5679 = vmatprep.mubr.bf16.mxu0 %v4576
        %5680 = vmatmul.mubr.bf16.gmra.mrb[0].mxu0 %v4575
        %v5681 = vpop.f32.mrb[0].mxu0
        %v5682 = vadd.f32 %v4732, %v5681
        %v5683 = vpop.f32.mrb[0].mxu0
        %v5684 = vadd.f32 %v4736, %v5683
        %v5685 = vpop.f32.mrb[0].mxu0
        %v5686 = vadd.f32 %v4732, %v5685
        %v5687 = vpop.f32.mrb[0].mxu0
        %v5688 = vadd.f32 %v4736, %v5687
        %5689 = vmatprep.mubr.bf16.mxu0 %v4580
        %5690 = vmatmul.mubr.bf16.gmra.mrb[0].mxu0 %v4579
        %v5691 = vpop.f32.mrb[0].mxu0
        %v5692 = vadd.f32 %v4732, %v5691
        %v5693 = vpop.f32.mrb[0].mxu0
        %v5694 = vadd.f32 %v4736, %v5693
        %v5695 = vpop.f32.mrb[0].mxu0
        %v5696 = vadd.f32 %v4732, %v5695
        %v5697 = vpop.f32.mrb[0].mxu0
        %v5698 = vadd.f32 %v4736, %v5697
        %5699 = vmatprep.mubr.bf16.mxu0 %v4584
        %5700 = vmatmul.mubr.bf16.gmra.mrb[0].mxu0 %v4583
        %v5701 = vpop.f32.mrb[0].mxu0
        %v5702 = vadd.f32 %v4732, %v5701
        %v5703 = vpop.f32.mrb[0].mxu0
        %v5704 = vadd.f32 %v4736, %v5703
        %v5705 = vpop.f32.mrb[0].mxu0
        %v5706 = vadd.f32 %v4732, %v5705
        %v5707 = vpop.f32.mrb[0].mxu0
        %v5708 = vadd.f32 %v4736, %v5707
        %5709 = vmatprep.mubr.bf16.mxu0 %v4588
        %5710 = vmatmul.mubr.bf16.gmra.mrb[0].mxu0 %v4587
        %v5711 = vpop.f32.mrb[0].mxu0
        %v5712 = vadd.f32 %v4732, %v5711
        %v5713 = vpop.f32.mrb[0].mxu0
        %v5714 = vadd.f32 %v4736, %v5713
        %v5715 = vpop.f32.mrb[0].mxu0
        %v5716 = vadd.f32 %v4732, %v5715
        %v5717 = vpop.f32.mrb[0].mxu0
        %v5718 = vadd.f32 %v4736, %v5717
        %5719 = vdwg.mxu0
        %5720 = vmatprep.subr.bf16.mxu0 %v5192
        %5721 = vmatpush1.bf16.xpose.msra.mxu0 %v5191
        %5722 = vmatprep.subr.bf16.mxu0 %v5196
        %5723 = vmatpush1.bf16.xpose.msra.mxu0 %v5195
        %5724 = vmatprep.subr.bf16.mxu0 %v5200
        %5725 = vmatpush1.bf16.xpose.msra.mxu0 %v5199
        %5726 = vmatprep.subr.bf16.mxu0 %v5204
        %5727 = vmatpush1.bf16.xpose.msra.mxu0 %v5203
        %5728 = vmatprep.subr.bf16.mxu0 %v5208
        %5729 = vmatpush1.bf16.xpose.msra.mxu0 %v5207
        %5730 = vmatprep.subr.bf16.mxu0 %v5212
        %5731 = vmatpush1.bf16.xpose.msra.mxu0 %v5211
        %5732 = vmatprep.subr.bf16.mxu0 %v5216
        %5733 = vmatpush1.bf16.xpose.msra.mxu0 %v5215
        %5734 = vmatprep.subr.bf16.mxu0 %v5220
        %5735 = vmatpush1.bf16.xpose.msra.mxu0 %v5219
        %5736 = vmatprep.subr.bf16.mxu0 %v5224
        %5737 = vmatpush1.bf16.xpose.msra.mxu0 %v5223
        %5738 = vmatprep.subr.bf16.mxu0 %v5228
        %5739 = vmatpush1.bf16.xpose.msra.mxu0 %v5227
        %5740 = vmatprep.subr.bf16.mxu0 %v5232
        %5741 = vmatpush1.bf16.xpose.msra.mxu0 %v5231
        %5742 = vmatprep.subr.bf16.mxu0 %v5236
        %5743 = vmatpush1.bf16.xpose.msra.mxu0 %v5235
        %5744 = vmatprep.subr.bf16.mxu0 %v5240
        %5745 = vmatpush1.bf16.xpose.msra.mxu0 %v5239
        %5746 = vmatprep.subr.bf16.mxu0 %v5244
        %5747 = vmatpush1.bf16.xpose.msra.mxu0 %v5243
        %5748 = vmatprep.subr.bf16.mxu0 %v5248
        %5749 = vmatpush1.bf16.xpose.msra.mxu0 %v5247
        %5750 = vmatprep.subr.bf16.mxu0 %v5252
        %5751 = vmatpush1.bf16.xpose.msra.mxu0 %v5251
        %5752 = vmatprep.mubr.bf16.mxu0 %v4562
        %5753 = vmatmul.mubr.bf16.gmra.mrb[0].mxu0 %v4561
        %v5754 = vpop.f32.mrb[0].mxu0
        %v5755 = vadd.f32 %v5642, %v5754
        %v5756 = vpop.f32.mrb[0].mxu0
        %v5757 = vadd.f32 %v5644, %v5756
        %v5758 = vpop.f32.mrb[0].mxu0
        %v5759 = vadd.f32 %v5646, %v5758
        %v5760 = vpop.f32.mrb[0].mxu0
        %v5761 = vadd.f32 %v5648, %v5760
        %5762 = vmatprep.mubr.bf16.mxu0 %v4566
        %5763 = vmatmul.mubr.bf16.gmra.mrb[0].mxu0 %v4565
        %v5764 = vpop.f32.mrb[0].mxu0
        %v5765 = vadd.f32 %v5652, %v5764
        %v5766 = vpop.f32.mrb[0].mxu0
        %v5767 = vadd.f32 %v5654, %v5766
        %v5768 = vpop.f32.mrb[0].mxu0
        %v5769 = vadd.f32 %v5656, %v5768
        %v5770 = vpop.f32.mrb[0].mxu0
        %v5771 = vadd.f32 %v5658, %v5770
        %5772 = vmatprep.mubr.bf16.mxu0 %v4570
        %5773 = vmatmul.mubr.bf16.gmra.mrb[0].mxu0 %v4569
        %v5774 = vpop.f32.mrb[0].mxu0
        %v5775 = vadd.f32 %v5662, %v5774
        %v5776 = vpop.f32.mrb[0].mxu0
        %v5777 = vadd.f32 %v5664, %v5776
        %v5778 = vpop.f32.mrb[0].mxu0
        %v5779 = vadd.f32 %v5666, %v5778
        %v5780 = vpop.f32.mrb[0].mxu0
        %v5781 = vadd.f32 %v5668, %v5780
        %5782 = vmatprep.mubr.bf16.mxu0 %v4574
        %5783 = vmatmul.mubr.bf16.gmra.mrb[0].mxu0 %v4573
        %v5784 = vpop.f32.mrb[0].mxu0
        %v5785 = vadd.f32 %v5672, %v5784
        %v5786 = vpop.f32.mrb[0].mxu0
        %v5787 = vadd.f32 %v5674, %v5786
        %v5788 = vpop.f32.mrb[0].mxu0
        %v5789 = vadd.f32 %v5676, %v5788
        %v5790 = vpop.f32.mrb[0].mxu0
        %v5791 = vadd.f32 %v5678, %v5790
        %5792 = vmatprep.mubr.bf16.mxu0 %v4578
        %5793 = vmatmul.mubr.bf16.gmra.mrb[0].mxu0 %v4577
        %v5794 = vpop.f32.mrb[0].mxu0
        %v5795 = vadd.f32 %v5682, %v5794
        %v5796 = vpop.f32.mrb[0].mxu0
        %v5797 = vadd.f32 %v5684, %v5796
        %v5798 = vpop.f32.mrb[0].mxu0
        %v5799 = vadd.f32 %v5686, %v5798
        %v5800 = vpop.f32.mrb[0].mxu0
        %v5801 = vadd.f32 %v5688, %v5800
        %5802 = vmatprep.mubr.bf16.mxu0 %v4582
        %5803 = vmatmul.mubr.bf16.gmra.mrb[0].mxu0 %v4581
        %v5804 = vpop.f32.mrb[0].mxu0
        %v5805 = vadd.f32 %v5692, %v5804
        %v5806 = vpop.f32.mrb[0].mxu0
        %v5807 = vadd.f32 %v5694, %v5806
        %v5808 = vpop.f32.mrb[0].mxu0
        %v5809 = vadd.f32 %v5696, %v5808
        %v5810 = vpop.f32.mrb[0].mxu0
        %v5811 = vadd.f32 %v5698, %v5810
        %5812 = vmatprep.mubr.bf16.mxu0 %v4586
        %5813 = vmatmul.mubr.bf16.gmra.mrb[0].mxu0 %v4585
        %v5814 = vpop.f32.mrb[0].mxu0
        %v5815 = vadd.f32 %v5702, %v5814
        %v5816 = vpop.f32.mrb[0].mxu0
        %v5817 = vadd.f32 %v5704, %v5816
        %v5818 = vpop.f32.mrb[0].mxu0
        %v5819 = vadd.f32 %v5706, %v5818
        %v5820 = vpop.f32.mrb[0].mxu0
        %v5821 = vadd.f32 %v5708, %v5820
        %5822 = vmatprep.mubr.bf16.mxu0 %v4590
        %5823 = vmatmul.mubr.bf16.gmra.mrb[0].mxu0 %v4589
        %v5824 = vpop.f32.mrb[0].mxu0
        %v5825 = vadd.f32 %v5712, %v5824
        %v5826 = vpop.f32.mrb[0].mxu0
        %v5827 = vadd.f32 %v5714, %v5826
        %v5828 = vpop.f32.mrb[0].mxu0
        %v5829 = vadd.f32 %v5716, %v5828
        %v5830 = vpop.f32.mrb[0].mxu0
        %v5831 = vadd.f32 %v5718, %v5830
        %5832 = vdwg.mxu0
        %v5833 = vmax.f32 %v5529, 0.0
        %v5834 = vmax.f32 %v5531, 0.0
        %v5835 = vmax.f32 %v5755, 0.0
        %v5836 = vmax.f32 %v5757, 0.0
        %v5837 = vmax.f32 %v5533, 0.0
        %v5838 = vmax.f32 %v5535, 0.0
        %v5839 = vmax.f32 %v5759, 0.0
        %v5840 = vmax.f32 %v5761, 0.0
        %v5841 = vmax.f32 %v5539, 0.0
        %v5842 = vmax.f32 %v5541, 0.0
        %v5843 = vmax.f32 %v5765, 0.0
        %v5844 = vmax.f32 %v5767, 0.0
        %v5845 = vmax.f32 %v5543, 0.0
        %v5846 = vmax.f32 %v5545, 0.0
        %v5847 = vmax.f32 %v5769, 0.0
        %v5848 = vmax.f32 %v5771, 0.0
        %v5849 = vmax.f32 %v5549, 0.0
        %v5850 = vmax.f32 %v5551, 0.0
        %v5851 = vmax.f32 %v5775, 0.0
        %v5852 = vmax.f32 %v5777, 0.0
        %v5853 = vmax.f32 %v5553, 0.0
        %v5854 = vmax.f32 %v5555, 0.0
        %v5855 = vmax.f32 %v5779, 0.0
        %v5856 = vmax.f32 %v5781, 0.0
        %v5857 = vmax.f32 %v5559, 0.0
        %v5858 = vmax.f32 %v5561, 0.0
        %v5859 = vmax.f32 %v5785, 0.0
        %v5860 = vmax.f32 %v5787, 0.0
        %v5861 = vmax.f32 %v5563, 0.0
        %v5862 = vmax.f32 %v5565, 0.0
        %v5863 = vmax.f32 %v5789, 0.0
        %v5864 = vmax.f32 %v5791, 0.0
        %v5865 = vmax.f32 %v5569, 0.0
        %v5866 = vmax.f32 %v5571, 0.0
        %v5867 = vmax.f32 %v5795, 0.0
        %v5868 = vmax.f32 %v5797, 0.0
        %v5869 = vmax.f32 %v5573, 0.0
        %v5870 = vmax.f32 %v5575, 0.0
        %v5871 = vmax.f32 %v5799, 0.0
        %v5872 = vmax.f32 %v5801, 0.0
        %v5873 = vmax.f32 %v5579, 0.0
        %v5874 = vmax.f32 %v5581, 0.0
        %v5875 = vmax.f32 %v5805, 0.0
        %v5876 = vmax.f32 %v5807, 0.0
        %v5877 = vmax.f32 %v5583, 0.0
        %v5878 = vmax.f32 %v5585, 0.0
        %v5879 = vmax.f32 %v5809, 0.0
        %v5880 = vmax.f32 %v5811, 0.0
        %v5881 = vmax.f32 %v5589, 0.0
        %v5882 = vmax.f32 %v5591, 0.0
        %v5883 = vmax.f32 %v5815, 0.0
        %v5884 = vmax.f32 %v5817, 0.0
        %v5885 = vmax.f32 %v5593, 0.0
        %v5886 = vmax.f32 %v5595, 0.0
        %v5887 = vmax.f32 %v5819, 0.0
        %v5888 = vmax.f32 %v5821, 0.0
        %v5889 = vmax.f32 %v5599, 0.0
        %v5890 = vmax.f32 %v5601, 0.0
        %v5891 = vmax.f32 %v5825, 0.0
        %v5892 = vmax.f32 %v5827, 0.0
        %v5893 = vmax.f32 %v5603, 0.0
        %v5894 = vmax.f32 %v5605, 0.0
        %v5895 = vmax.f32 %v5829, 0.0
        %v5896 = vmax.f32 %v5831, 0.0
        %v5897 = vpack.c.bf16 %v5837, %v5833
        %v5898 = vpack.c.bf16 %v5838, %v5834
        %v5899 = vpack.c.bf16 %v5839, %v5835
        %v5900 = vpack.c.bf16 %v5840, %v5836
        %v5901 = vpack.c.bf16 %v5845, %v5841
        %v5902 = vpack.c.bf16 %v5846, %v5842
        %v5903 = vpack.c.bf16 %v5847, %v5843
        %v5904 = vpack.c.bf16 %v5848, %v5844
        %v5905 = vpack.c.bf16 %v5853, %v5849
        %v5906 = vpack.c.bf16 %v5854, %v5850
        %v5907 = vpack.c.bf16 %v5855, %v5851
        %v5908 = vpack.c.bf16 %v5856, %v5852
        %v5909 = vpack.c.bf16 %v5861, %v5857
        %v5910 = vpack.c.bf16 %v5862, %v5858
        %v5911 = vpack.c.bf16 %v5863, %v5859
        %v5912 = vpack.c.bf16 %v5864, %v5860
        %v5913 = vpack.c.bf16 %v5869, %v5865
        %v5914 = vpack.c.bf16 %v5870, %v5866
        %v5915 = vpack.c.bf16 %v5871, %v5867
        %v5916 = vpack.c.bf16 %v5872, %v5868
        %v5917 = vpack.c.bf16 %v5877, %v5873
        %v5918 = vpack.c.bf16 %v5878, %v5874
        %v5919 = vpack.c.bf16 %v5879, %v5875
        %v5920 = vpack.c.bf16 %v5880, %v5876
        %v5921 = vpack.c.bf16 %v5885, %v5881
        %v5922 = vpack.c.bf16 %v5886, %v5882
        %v5923 = vpack.c.bf16 %v5887, %v5883
        %v5924 = vpack.c.bf16 %v5888, %v5884
        %v5925 = vpack.c.bf16 %v5893, %v5889
        %v5926 = vpack.c.bf16 %v5894, %v5890
        %v5927 = vpack.c.bf16 %v5895, %v5891
        %v5928 = vpack.c.bf16 %v5896, %v5892
        %v5929 = vld [vmem:[#allocation11] sm:$0xff]
        %v5930 = vld [vmem:[#allocation11 + $0x8] sm:$0xff]
        %v5931 = vld [vmem:[#allocation11 + $0x10] sm:$0xff]
        %v5932 = vld [vmem:[#allocation11 + $0x18] sm:$0xff]
        %v5933 = vld [vmem:[#allocation11 + $0x20] sm:$0xff]
        %v5934 = vld [vmem:[#allocation11 + $0x28] sm:$0xff]
        %v5935 = vld [vmem:[#allocation11 + $0x30] sm:$0xff]
        %v5936 = vld [vmem:[#allocation11 + $0x38] sm:$0xff]
        %v5937 = vld [vmem:[#allocation11 + $0x40] sm:$0xff]
        %v5938 = vld [vmem:[#allocation11 + $0x48] sm:$0xff]
        %v5939 = vld [vmem:[#allocation11 + $0x50] sm:$0xff]
        %v5940 = vld [vmem:[#allocation11 + $0x58] sm:$0xff]
        %v5941 = vld [vmem:[#allocation11 + $0x60] sm:$0xff]
        %v5942 = vld [vmem:[#allocation11 + $0x68] sm:$0xff]
        %v5943 = vld [vmem:[#allocation11 + $0x70] sm:$0xff]
        %v5944 = vld [vmem:[#allocation11 + $0x78] sm:$0xff]
        %v5945 = vld [vmem:[#allocation11 + $0x80] sm:$0xff]
        %v5946 = vld [vmem:[#allocation11 + $0x88] sm:$0xff]
        %v5947 = vld [vmem:[#allocation11 + $0x90] sm:$0xff]
        %v5948 = vld [vmem:[#allocation11 + $0x98] sm:$0xff]
        %v5949 = vld [vmem:[#allocation11 + $0xa0] sm:$0xff]
        %v5950 = vld [vmem:[#allocation11 + $0xa8] sm:$0xff]
        %v5951 = vld [vmem:[#allocation11 + $0xb0] sm:$0xff]
        %v5952 = vld [vmem:[#allocation11 + $0xb8] sm:$0xff]
        %v5953 = vld [vmem:[#allocation11 + $0xc0] sm:$0xff]
        %v5954 = vld [vmem:[#allocation11 + $0xc8] sm:$0xff]
        %v5955 = vld [vmem:[#allocation11 + $0xd0] sm:$0xff]
        %v5956 = vld [vmem:[#allocation11 + $0xd8] sm:$0xff]
        %v5957 = vld [vmem:[#allocation11 + $0xe0] sm:$0xff]
        %v5958 = vld [vmem:[#allocation11 + $0xe8] sm:$0xff]
        %v5959 = vld [vmem:[#allocation11 + $0xf0] sm:$0xff]
        %v5960 = vld [vmem:[#allocation11 + $0xf8] sm:$0xff]
        %v5961 = vld [vmem:[#allocation11 + $0x100] sm:$0xff]
        %v5962 = vld [vmem:[#allocation11 + $0x108] sm:$0xff]
        %v5963 = vld [vmem:[#allocation11 + $0x110] sm:$0xff]
        %v5964 = vld [vmem:[#allocation11 + $0x118] sm:$0xff]
        %v5965 = vld [vmem:[#allocation11 + $0x120] sm:$0xff]
        %v5966 = vld [vmem:[#allocation11 + $0x128] sm:$0xff]
        %v5967 = vld [vmem:[#allocation11 + $0x130] sm:$0xff]
        %v5968 = vld [vmem:[#allocation11 + $0x138] sm:$0xff]
        %v5969 = vld [vmem:[#allocation11 + $0x140] sm:$0xff]
        %v5970 = vld [vmem:[#allocation11 + $0x148] sm:$0xff]
        %v5971 = vld [vmem:[#allocation11 + $0x150] sm:$0xff]
        %v5972 = vld [vmem:[#allocation11 + $0x158] sm:$0xff]
        %v5973 = vld [vmem:[#allocation11 + $0x160] sm:$0xff]
        %v5974 = vld [vmem:[#allocation11 + $0x168] sm:$0xff]
        %v5975 = vld [vmem:[#allocation11 + $0x170] sm:$0xff]
        %v5976 = vld [vmem:[#allocation11 + $0x178] sm:$0xff]
        %v5977 = vld [vmem:[#allocation11 + $0x180] sm:$0xff]
        %v5978 = vld [vmem:[#allocation11 + $0x188] sm:$0xff]
        %v5979 = vld [vmem:[#allocation11 + $0x190] sm:$0xff]
        %v5980 = vld [vmem:[#allocation11 + $0x198] sm:$0xff]
        %v5981 = vld [vmem:[#allocation11 + $0x1a0] sm:$0xff]
        %v5982 = vld [vmem:[#allocation11 + $0x1a8] sm:$0xff]
        %v5983 = vld [vmem:[#allocation11 + $0x1b0] sm:$0xff]
        %v5984 = vld [vmem:[#allocation11 + $0x1b8] sm:$0xff]
        %v5985 = vld [vmem:[#allocation11 + $0x1c0] sm:$0xff]
        %v5986 = vld [vmem:[#allocation11 + $0x1c8] sm:$0xff]
        %v5987 = vld [vmem:[#allocation11 + $0x1d0] sm:$0xff]
        %v5988 = vld [vmem:[#allocation11 + $0x1d8] sm:$0xff]
        %v5989 = vld [vmem:[#allocation11 + $0x1e0] sm:$0xff]
        %v5990 = vld [vmem:[#allocation11 + $0x1e8] sm:$0xff]
        %v5991 = vld [vmem:[#allocation11 + $0x1f0] sm:$0xff]
        %v5992 = vld [vmem:[#allocation11 + $0x1f8] sm:$0xff]
        %v5993 = vld [vmem:[#allocation11 + $0x200] sm:$0xff]
        %v5994 = vld [vmem:[#allocation11 + $0x208] sm:$0xff]
        %v5995 = vld [vmem:[#allocation11 + $0x210] sm:$0xff]
        %v5996 = vld [vmem:[#allocation11 + $0x218] sm:$0xff]
        %v5997 = vld [vmem:[#allocation11 + $0x220] sm:$0xff]
        %v5998 = vld [vmem:[#allocation11 + $0x228] sm:$0xff]
        %v5999 = vld [vmem:[#allocation11 + $0x230] sm:$0xff]
        %v6000 = vld [vmem:[#allocation11 + $0x238] sm:$0xff]
        %v6001 = vld [vmem:[#allocation11 + $0x240] sm:$0xff]
        %v6002 = vld [vmem:[#allocation11 + $0x248] sm:$0xff]
        %v6003 = vld [vmem:[#allocation11 + $0x250] sm:$0xff]
        %v6004 = vld [vmem:[#allocation11 + $0x258] sm:$0xff]
        %v6005 = vld [vmem:[#allocation11 + $0x260] sm:$0xff]
        %v6006 = vld [vmem:[#allocation11 + $0x268] sm:$0xff]
        %v6007 = vld [vmem:[#allocation11 + $0x270] sm:$0xff]
        %v6008 = vld [vmem:[#allocation11 + $0x278] sm:$0xff]
        %v6009 = vld [vmem:[#allocation11 + $0x280] sm:$0xff]
        %v6010 = vld [vmem:[#allocation11 + $0x288] sm:$0xff]
        %v6011 = vld [vmem:[#allocation11 + $0x290] sm:$0xff]
        %v6012 = vld [vmem:[#allocation11 + $0x298] sm:$0xff]
        %v6013 = vld [vmem:[#allocation11 + $0x2a0] sm:$0xff]
        %v6014 = vld [vmem:[#allocation11 + $0x2a8] sm:$0xff]
        %v6015 = vld [vmem:[#allocation11 + $0x2b0] sm:$0xff]
        %v6016 = vld [vmem:[#allocation11 + $0x2b8] sm:$0xff]
        %v6017 = vld [vmem:[#allocation11 + $0x2c0] sm:$0xff]
        %v6018 = vld [vmem:[#allocation11 + $0x2c8] sm:$0xff]
        %v6019 = vld [vmem:[#allocation11 + $0x2d0] sm:$0xff]
        %v6020 = vld [vmem:[#allocation11 + $0x2d8] sm:$0xff]
        %v6021 = vld [vmem:[#allocation11 + $0x2e0] sm:$0xff]
        %v6022 = vld [vmem:[#allocation11 + $0x2e8] sm:$0xff]
        %v6023 = vld [vmem:[#allocation11 + $0x2f0] sm:$0xff]
        %v6024 = vld [vmem:[#allocation11 + $0x2f8] sm:$0xff]
        %v6025 = vld [vmem:[#allocation11 + $0x300] sm:$0xff]
        %v6026 = vld [vmem:[#allocation11 + $0x308] sm:$0xff]
        %v6027 = vld [vmem:[#allocation11 + $0x310] sm:$0xff]
        %v6028 = vld [vmem:[#allocation11 + $0x318] sm:$0xff]
        %v6029 = vld [vmem:[#allocation11 + $0x320] sm:$0xff]
        %v6030 = vld [vmem:[#allocation11 + $0x328] sm:$0xff]
        %v6031 = vld [vmem:[#allocation11 + $0x330] sm:$0xff]
        %v6032 = vld [vmem:[#allocation11 + $0x338] sm:$0xff]
        %v6033 = vld [vmem:[#allocation11 + $0x340] sm:$0xff]
        %v6034 = vld [vmem:[#allocation11 + $0x348] sm:$0xff]
        %v6035 = vld [vmem:[#allocation11 + $0x350] sm:$0xff]
        %v6036 = vld [vmem:[#allocation11 + $0x358] sm:$0xff]
        %v6037 = vld [vmem:[#allocation11 + $0x360] sm:$0xff]
        %v6038 = vld [vmem:[#allocation11 + $0x368] sm:$0xff]
        %v6039 = vld [vmem:[#allocation11 + $0x370] sm:$0xff]
        %v6040 = vld [vmem:[#allocation11 + $0x378] sm:$0xff]
        %v6041 = vld [vmem:[#allocation11 + $0x380] sm:$0xff]
        %v6042 = vld [vmem:[#allocation11 + $0x388] sm:$0xff]
        %v6043 = vld [vmem:[#allocation11 + $0x390] sm:$0xff]
        %v6044 = vld [vmem:[#allocation11 + $0x398] sm:$0xff]
        %v6045 = vld [vmem:[#allocation11 + $0x3a0] sm:$0xff]
        %v6046 = vld [vmem:[#allocation11 + $0x3a8] sm:$0xff]
        %v6047 = vld [vmem:[#allocation11 + $0x3b0] sm:$0xff]
        %v6048 = vld [vmem:[#allocation11 + $0x3b8] sm:$0xff]
        %v6049 = vld [vmem:[#allocation11 + $0x3c0] sm:$0xff]
        %v6050 = vld [vmem:[#allocation11 + $0x3c8] sm:$0xff]
        %v6051 = vld [vmem:[#allocation11 + $0x3d0] sm:$0xff]
        %v6052 = vld [vmem:[#allocation11 + $0x3d8] sm:$0xff]
        %v6053 = vld [vmem:[#allocation11 + $0x3e0] sm:$0xff]
        %v6054 = vld [vmem:[#allocation11 + $0x3e8] sm:$0xff]
        %v6055 = vld [vmem:[#allocation11 + $0x3f0] sm:$0xff]
        %v6056 = vld [vmem:[#allocation11 + $0x3f8] sm:$0xff]
        %v6057 = vld [vmem:[%s10] sm:$0xf]
        %v6059 = vlaneseq
        %v6060 = vshrl.u32 %v6059, 7
        %v6061 = vsub.s32 0, %v6060
        %v6062 = vrot.slane %v6057, %v6061
        %v6063 = vlaneseq
        %v6064 = vshrl.u32 %v6063, 7
        %v6065 = vsub.s32 1, %v6064
        %v6066 = vrot.slane %v6057, %v6065
        %v6067 = vlaneseq
        %v6068 = vshrl.u32 %v6067, 7
        %v6069 = vsub.s32 2, %v6068
        %v6070 = vrot.slane %v6057, %v6069
        %v6071 = vlaneseq
        %v6072 = vshrl.u32 %v6071, 7
        %v6073 = vsub.s32 3, %v6072
        %v6074 = vrot.slane %v6057, %v6073
        %v6207 = vunpack.c.l.b16 %v5929
        %v6208 = vunpack.c.h.b16 %v5929
        %v6209 = vunpack.c.l.b16 %v5930
        %v6210 = vunpack.c.h.b16 %v5930
        %v6211 = vunpack.c.l.b16 %v5931
        %v6212 = vunpack.c.h.b16 %v5931
        %v6213 = vunpack.c.l.b16 %v5932
        %v6214 = vunpack.c.h.b16 %v5932
        %v6215 = vunpack.c.l.b16 %v5933
        %v6216 = vunpack.c.h.b16 %v5933
        %v6217 = vunpack.c.l.b16 %v5934
        %v6218 = vunpack.c.h.b16 %v5934
        %v6219 = vunpack.c.l.b16 %v5935
        %v6220 = vunpack.c.h.b16 %v5935
        %v6221 = vunpack.c.l.b16 %v5936
        %v6222 = vunpack.c.h.b16 %v5936
        %v6223 = vunpack.c.l.b16 %v5937
        %v6224 = vunpack.c.h.b16 %v5937
        %v6225 = vunpack.c.l.b16 %v5938
        %v6226 = vunpack.c.h.b16 %v5938
        %v6227 = vunpack.c.l.b16 %v5939
        %v6228 = vunpack.c.h.b16 %v5939
        %v6229 = vunpack.c.l.b16 %v5940
        %v6230 = vunpack.c.h.b16 %v5940
        %v6231 = vunpack.c.l.b16 %v5941
        %v6232 = vunpack.c.h.b16 %v5941
        %v6233 = vunpack.c.l.b16 %v5942
        %v6234 = vunpack.c.h.b16 %v5942
        %v6235 = vunpack.c.l.b16 %v5943
        %v6236 = vunpack.c.h.b16 %v5943
        %v6237 = vunpack.c.l.b16 %v5944
        %v6238 = vunpack.c.h.b16 %v5944
        %v6239 = vunpack.c.l.b16 %v5945
        %v6240 = vunpack.c.h.b16 %v5945
        %v6241 = vunpack.c.l.b16 %v5946
        %v6242 = vunpack.c.h.b16 %v5946
        %v6243 = vunpack.c.l.b16 %v5947
        %v6244 = vunpack.c.h.b16 %v5947
        %v6245 = vunpack.c.l.b16 %v5948
        %v6246 = vunpack.c.h.b16 %v5948
        %v6247 = vunpack.c.l.b16 %v5949
        %v6248 = vunpack.c.h.b16 %v5949
        %v6249 = vunpack.c.l.b16 %v5950
        %v6250 = vunpack.c.h.b16 %v5950
        %v6251 = vunpack.c.l.b16 %v5951
        %v6252 = vunpack.c.h.b16 %v5951
        %v6253 = vunpack.c.l.b16 %v5952
        %v6254 = vunpack.c.h.b16 %v5952
        %v6255 = vunpack.c.l.b16 %v5953
        %v6256 = vunpack.c.h.b16 %v5953
        %v6257 = vunpack.c.l.b16 %v5954
        %v6258 = vunpack.c.h.b16 %v5954
        %v6259 = vunpack.c.l.b16 %v5955
        %v6260 = vunpack.c.h.b16 %v5955
        %v6261 = vunpack.c.l.b16 %v5956
        %v6262 = vunpack.c.h.b16 %v5956
        %v6263 = vunpack.c.l.b16 %v5957
        %v6264 = vunpack.c.h.b16 %v5957
        %v6265 = vunpack.c.l.b16 %v5958
        %v6266 = vunpack.c.h.b16 %v5958
        %v6267 = vunpack.c.l.b16 %v5959
        %v6268 = vunpack.c.h.b16 %v5959
        %v6269 = vunpack.c.l.b16 %v5960
        %v6270 = vunpack.c.h.b16 %v5960
        %v6271 = vunpack.c.l.b16 %v5961
        %v6272 = vunpack.c.h.b16 %v5961
        %v6273 = vunpack.c.l.b16 %v5962
        %v6274 = vunpack.c.h.b16 %v5962
        %v6275 = vunpack.c.l.b16 %v5963
        %v6276 = vunpack.c.h.b16 %v5963
        %v6277 = vunpack.c.l.b16 %v5964
        %v6278 = vunpack.c.h.b16 %v5964
        %v6279 = vunpack.c.l.b16 %v5965
        %v6280 = vunpack.c.h.b16 %v5965
        %v6281 = vunpack.c.l.b16 %v5966
        %v6282 = vunpack.c.h.b16 %v5966
        %v6283 = vunpack.c.l.b16 %v5967
        %v6284 = vunpack.c.h.b16 %v5967
        %v6285 = vunpack.c.l.b16 %v5968
        %v6286 = vunpack.c.h.b16 %v5968
        %v6287 = vunpack.c.l.b16 %v5969
        %v6288 = vunpack.c.h.b16 %v5969
        %v6289 = vunpack.c.l.b16 %v5970
        %v6290 = vunpack.c.h.b16 %v5970
        %v6291 = vunpack.c.l.b16 %v5971
        %v6292 = vunpack.c.h.b16 %v5971
        %v6293 = vunpack.c.l.b16 %v5972
        %v6294 = vunpack.c.h.b16 %v5972
        %v6295 = vunpack.c.l.b16 %v5973
        %v6296 = vunpack.c.h.b16 %v5973
        %v6297 = vunpack.c.l.b16 %v5974
        %v6298 = vunpack.c.h.b16 %v5974
        %v6299 = vunpack.c.l.b16 %v5975
        %v6300 = vunpack.c.h.b16 %v5975
        %v6301 = vunpack.c.l.b16 %v5976
        %v6302 = vunpack.c.h.b16 %v5976
        %v6303 = vunpack.c.l.b16 %v5977
        %v6304 = vunpack.c.h.b16 %v5977
        %v6305 = vunpack.c.l.b16 %v5978
        %v6306 = vunpack.c.h.b16 %v5978
        %v6307 = vunpack.c.l.b16 %v5979
        %v6308 = vunpack.c.h.b16 %v5979
        %v6309 = vunpack.c.l.b16 %v5980
        %v6310 = vunpack.c.h.b16 %v5980
        %v6311 = vunpack.c.l.b16 %v5981
        %v6312 = vunpack.c.h.b16 %v5981
        %v6313 = vunpack.c.l.b16 %v5982
        %v6314 = vunpack.c.h.b16 %v5982
        %v6315 = vunpack.c.l.b16 %v5983
        %v6316 = vunpack.c.h.b16 %v5983
        %v6317 = vunpack.c.l.b16 %v5984
        %v6318 = vunpack.c.h.b16 %v5984
        %v6319 = vunpack.c.l.b16 %v5985
        %v6320 = vunpack.c.h.b16 %v5985
        %v6321 = vunpack.c.l.b16 %v5986
        %v6322 = vunpack.c.h.b16 %v5986
        %v6323 = vunpack.c.l.b16 %v5987
        %v6324 = vunpack.c.h.b16 %v5987
        %v6325 = vunpack.c.l.b16 %v5988
        %v6326 = vunpack.c.h.b16 %v5988
        %v6327 = vunpack.c.l.b16 %v5989
        %v6328 = vunpack.c.h.b16 %v5989
        %v6329 = vunpack.c.l.b16 %v5990
        %v6330 = vunpack.c.h.b16 %v5990
        %v6331 = vunpack.c.l.b16 %v5991
        %v6332 = vunpack.c.h.b16 %v5991
        %v6333 = vunpack.c.l.b16 %v5992
        %v6334 = vunpack.c.h.b16 %v5992
        %v6335 = vunpack.c.l.b16 %v5993
        %v6336 = vunpack.c.h.b16 %v5993
        %v6337 = vunpack.c.l.b16 %v5994
        %v6338 = vunpack.c.h.b16 %v5994
        %v6339 = vunpack.c.l.b16 %v5995
        %v6340 = vunpack.c.h.b16 %v5995
        %v6341 = vunpack.c.l.b16 %v5996
        %v6342 = vunpack.c.h.b16 %v5996
        %v6343 = vunpack.c.l.b16 %v5997
        %v6344 = vunpack.c.h.b16 %v5997
        %v6345 = vunpack.c.l.b16 %v5998
        %v6346 = vunpack.c.h.b16 %v5998
        %v6347 = vunpack.c.l.b16 %v5999
        %v6348 = vunpack.c.h.b16 %v5999
        %v6349 = vunpack.c.l.b16 %v6000
        %v6350 = vunpack.c.h.b16 %v6000
        %v6351 = vunpack.c.l.b16 %v6001
        %v6352 = vunpack.c.h.b16 %v6001
        %v6353 = vunpack.c.l.b16 %v6002
        %v6354 = vunpack.c.h.b16 %v6002
        %v6355 = vunpack.c.l.b16 %v6003
        %v6356 = vunpack.c.h.b16 %v6003
        %v6357 = vunpack.c.l.b16 %v6004
        %v6358 = vunpack.c.h.b16 %v6004
        %v6359 = vunpack.c.l.b16 %v6005
        %v6360 = vunpack.c.h.b16 %v6005
        %v6361 = vunpack.c.l.b16 %v6006
        %v6362 = vunpack.c.h.b16 %v6006
        %v6363 = vunpack.c.l.b16 %v6007
        %v6364 = vunpack.c.h.b16 %v6007
        %v6365 = vunpack.c.l.b16 %v6008
        %v6366 = vunpack.c.h.b16 %v6008
        %v6367 = vunpack.c.l.b16 %v6009
        %v6368 = vunpack.c.h.b16 %v6009
        %v6369 = vunpack.c.l.b16 %v6010
        %v6370 = vunpack.c.h.b16 %v6010
        %v6371 = vunpack.c.l.b16 %v6011
        %v6372 = vunpack.c.h.b16 %v6011
        %v6373 = vunpack.c.l.b16 %v6012
        %v6374 = vunpack.c.h.b16 %v6012
        %v6375 = vunpack.c.l.b16 %v6013
        %v6376 = vunpack.c.h.b16 %v6013
        %v6377 = vunpack.c.l.b16 %v6014
        %v6378 = vunpack.c.h.b16 %v6014
        %v6379 = vunpack.c.l.b16 %v6015
        %v6380 = vunpack.c.h.b16 %v6015
        %v6381 = vunpack.c.l.b16 %v6016
        %v6382 = vunpack.c.h.b16 %v6016
        %v6383 = vunpack.c.l.b16 %v6017
        %v6384 = vunpack.c.h.b16 %v6017
        %v6385 = vunpack.c.l.b16 %v6018
        %v6386 = vunpack.c.h.b16 %v6018
        %v6387 = vunpack.c.l.b16 %v6019
        %v6388 = vunpack.c.h.b16 %v6019
        %v6389 = vunpack.c.l.b16 %v6020
        %v6390 = vunpack.c.h.b16 %v6020
        %v6391 = vunpack.c.l.b16 %v6021
        %v6392 = vunpack.c.h.b16 %v6021
        %v6393 = vunpack.c.l.b16 %v6022
        %v6394 = vunpack.c.h.b16 %v6022
        %v6395 = vunpack.c.l.b16 %v6023
        %v6396 = vunpack.c.h.b16 %v6023
        %v6397 = vunpack.c.l.b16 %v6024
        %v6398 = vunpack.c.h.b16 %v6024
        %v6399 = vunpack.c.l.b16 %v6025
        %v6400 = vunpack.c.h.b16 %v6025
        %v6401 = vunpack.c.l.b16 %v6026
        %v6402 = vunpack.c.h.b16 %v6026
        %v6403 = vunpack.c.l.b16 %v6027
        %v6404 = vunpack.c.h.b16 %v6027
        %v6405 = vunpack.c.l.b16 %v6028
        %v6406 = vunpack.c.h.b16 %v6028
        %v6407 = vunpack.c.l.b16 %v6029
        %v6408 = vunpack.c.h.b16 %v6029
        %v6409 = vunpack.c.l.b16 %v6030
        %v6410 = vunpack.c.h.b16 %v6030
        %v6411 = vunpack.c.l.b16 %v6031
        %v6412 = vunpack.c.h.b16 %v6031
        %v6413 = vunpack.c.l.b16 %v6032
        %v6414 = vunpack.c.h.b16 %v6032
        %v6415 = vunpack.c.l.b16 %v6033
        %v6416 = vunpack.c.h.b16 %v6033
        %v6417 = vunpack.c.l.b16 %v6034
        %v6418 = vunpack.c.h.b16 %v6034
        %v6419 = vunpack.c.l.b16 %v6035
        %v6420 = vunpack.c.h.b16 %v6035
        %v6421 = vunpack.c.l.b16 %v6036
        %v6422 = vunpack.c.h.b16 %v6036
        %v6423 = vunpack.c.l.b16 %v6037
        %v6424 = vunpack.c.h.b16 %v6037
        %v6425 = vunpack.c.l.b16 %v6038
        %v6426 = vunpack.c.h.b16 %v6038
        %v6427 = vunpack.c.l.b16 %v6039
        %v6428 = vunpack.c.h.b16 %v6039
        %v6429 = vunpack.c.l.b16 %v6040
        %v6430 = vunpack.c.h.b16 %v6040
        %v6431 = vunpack.c.l.b16 %v6041
        %v6432 = vunpack.c.h.b16 %v6041
        %v6433 = vunpack.c.l.b16 %v6042
        %v6434 = vunpack.c.h.b16 %v6042
        %v6435 = vunpack.c.l.b16 %v6043
        %v6436 = vunpack.c.h.b16 %v6043
        %v6437 = vunpack.c.l.b16 %v6044
        %v6438 = vunpack.c.h.b16 %v6044
        %v6439 = vunpack.c.l.b16 %v6045
        %v6440 = vunpack.c.h.b16 %v6045
        %v6441 = vunpack.c.l.b16 %v6046
        %v6442 = vunpack.c.h.b16 %v6046
        %v6443 = vunpack.c.l.b16 %v6047
        %v6444 = vunpack.c.h.b16 %v6047
        %v6445 = vunpack.c.l.b16 %v6048
        %v6446 = vunpack.c.h.b16 %v6048
        %v6447 = vunpack.c.l.b16 %v6049
        %v6448 = vunpack.c.h.b16 %v6049
        %v6449 = vunpack.c.l.b16 %v6050
        %v6450 = vunpack.c.h.b16 %v6050
        %v6451 = vunpack.c.l.b16 %v6051
        %v6452 = vunpack.c.h.b16 %v6051
        %v6453 = vunpack.c.l.b16 %v6052
        %v6454 = vunpack.c.h.b16 %v6052
        %v6455 = vunpack.c.l.b16 %v6053
        %v6456 = vunpack.c.h.b16 %v6053
        %v6457 = vunpack.c.l.b16 %v6054
        %v6458 = vunpack.c.h.b16 %v6054
        %v6459 = vunpack.c.l.b16 %v6055
        %v6460 = vunpack.c.h.b16 %v6055
        %v6461 = vunpack.c.l.b16 %v6056
        %v6462 = vunpack.c.h.b16 %v6056
        %v6463 = vpack.c.b16 %v6211, %v6207
        %v6464 = vpack.c.b16 %v6212, %v6208
        %v6465 = vpack.c.b16 %v6213, %v6209
        %v6466 = vpack.c.b16 %v6214, %v6210
        %v6467 = vpack.c.b16 %v6219, %v6215
        %v6468 = vpack.c.b16 %v6220, %v6216
        %v6469 = vpack.c.b16 %v6221, %v6217
        %v6470 = vpack.c.b16 %v6222, %v6218
        %v6471 = vpack.c.b16 %v6227, %v6223
        %v6472 = vpack.c.b16 %v6228, %v6224
        %v6473 = vpack.c.b16 %v6229, %v6225
        %v6474 = vpack.c.b16 %v6230, %v6226
        %v6475 = vpack.c.b16 %v6235, %v6231
        %v6476 = vpack.c.b16 %v6236, %v6232
        %v6477 = vpack.c.b16 %v6237, %v6233
        %v6478 = vpack.c.b16 %v6238, %v6234
        %v6479 = vpack.c.b16 %v6243, %v6239
        %v6480 = vpack.c.b16 %v6244, %v6240
        %v6481 = vpack.c.b16 %v6245, %v6241
        %v6482 = vpack.c.b16 %v6246, %v6242
        %v6483 = vpack.c.b16 %v6251, %v6247
        %v6484 = vpack.c.b16 %v6252, %v6248
        %v6485 = vpack.c.b16 %v6253, %v6249
        %v6486 = vpack.c.b16 %v6254, %v6250
        %v6487 = vpack.c.b16 %v6259, %v6255
        %v6488 = vpack.c.b16 %v6260, %v6256
        %v6489 = vpack.c.b16 %v6261, %v6257
        %v6490 = vpack.c.b16 %v6262, %v6258
        %v6491 = vpack.c.b16 %v6267, %v6263
        %v6492 = vpack.c.b16 %v6268, %v6264
        %v6493 = vpack.c.b16 %v6269, %v6265
        %v6494 = vpack.c.b16 %v6270, %v6266
        %v6495 = vpack.c.b16 %v6275, %v6271
        %v6496 = vpack.c.b16 %v6276, %v6272
        %v6497 = vpack.c.b16 %v6277, %v6273
        %v6498 = vpack.c.b16 %v6278, %v6274
        %v6499 = vpack.c.b16 %v6283, %v6279
        %v6500 = vpack.c.b16 %v6284, %v6280
        %v6501 = vpack.c.b16 %v6285, %v6281
        %v6502 = vpack.c.b16 %v6286, %v6282
        %v6503 = vpack.c.b16 %v6291, %v6287
        %v6504 = vpack.c.b16 %v6292, %v6288
        %v6505 = vpack.c.b16 %v6293, %v6289
        %v6506 = vpack.c.b16 %v6294, %v6290
        %v6507 = vpack.c.b16 %v6299, %v6295
        %v6508 = vpack.c.b16 %v6300, %v6296
        %v6509 = vpack.c.b16 %v6301, %v6297
        %v6510 = vpack.c.b16 %v6302, %v6298
        %v6511 = vpack.c.b16 %v6307, %v6303
        %v6512 = vpack.c.b16 %v6308, %v6304
        %v6513 = vpack.c.b16 %v6309, %v6305
        %v6514 = vpack.c.b16 %v6310, %v6306
        %v6515 = vpack.c.b16 %v6315, %v6311
        %v6516 = vpack.c.b16 %v6316, %v6312
        %v6517 = vpack.c.b16 %v6317, %v6313
        %v6518 = vpack.c.b16 %v6318, %v6314
        %v6519 = vpack.c.b16 %v6323, %v6319
        %v6520 = vpack.c.b16 %v6324, %v6320
        %v6521 = vpack.c.b16 %v6325, %v6321
        %v6522 = vpack.c.b16 %v6326, %v6322
        %v6523 = vpack.c.b16 %v6331, %v6327
        %v6524 = vpack.c.b16 %v6332, %v6328
        %v6525 = vpack.c.b16 %v6333, %v6329
        %v6526 = vpack.c.b16 %v6334, %v6330
        %v6527 = vpack.c.b16 %v6339, %v6335
        %v6528 = vpack.c.b16 %v6340, %v6336
        %v6529 = vpack.c.b16 %v6341, %v6337
        %v6530 = vpack.c.b16 %v6342, %v6338
        %v6531 = vpack.c.b16 %v6347, %v6343
        %v6532 = vpack.c.b16 %v6348, %v6344
        %v6533 = vpack.c.b16 %v6349, %v6345
        %v6534 = vpack.c.b16 %v6350, %v6346
        %v6535 = vpack.c.b16 %v6355, %v6351
        %v6536 = vpack.c.b16 %v6356, %v6352
        %v6537 = vpack.c.b16 %v6357, %v6353
        %v6538 = vpack.c.b16 %v6358, %v6354
        %v6539 = vpack.c.b16 %v6363, %v6359
        %v6540 = vpack.c.b16 %v6364, %v6360
        %v6541 = vpack.c.b16 %v6365, %v6361
        %v6542 = vpack.c.b16 %v6366, %v6362
        %v6543 = vpack.c.b16 %v6371, %v6367
        %v6544 = vpack.c.b16 %v6372, %v6368
        %v6545 = vpack.c.b16 %v6373, %v6369
        %v6546 = vpack.c.b16 %v6374, %v6370
        %v6547 = vpack.c.b16 %v6379, %v6375
        %v6548 = vpack.c.b16 %v6380, %v6376
        %v6549 = vpack.c.b16 %v6381, %v6377
        %v6550 = vpack.c.b16 %v6382, %v6378
        %v6551 = vpack.c.b16 %v6387, %v6383
        %v6552 = vpack.c.b16 %v6388, %v6384
        %v6553 = vpack.c.b16 %v6389, %v6385
        %v6554 = vpack.c.b16 %v6390, %v6386
        %v6555 = vpack.c.b16 %v6395, %v6391
        %v6556 = vpack.c.b16 %v6396, %v6392
        %v6557 = vpack.c.b16 %v6397, %v6393
        %v6558 = vpack.c.b16 %v6398, %v6394
        %v6559 = vpack.c.b16 %v6403, %v6399
        %v6560 = vpack.c.b16 %v6404, %v6400
        %v6561 = vpack.c.b16 %v6405, %v6401
        %v6562 = vpack.c.b16 %v6406, %v6402
        %v6563 = vpack.c.b16 %v6411, %v6407
        %v6564 = vpack.c.b16 %v6412, %v6408
        %v6565 = vpack.c.b16 %v6413, %v6409
        %v6566 = vpack.c.b16 %v6414, %v6410
        %v6567 = vpack.c.b16 %v6419, %v6415
        %v6568 = vpack.c.b16 %v6420, %v6416
        %v6569 = vpack.c.b16 %v6421, %v6417
        %v6570 = vpack.c.b16 %v6422, %v6418
        %v6571 = vpack.c.b16 %v6427, %v6423
        %v6572 = vpack.c.b16 %v6428, %v6424
        %v6573 = vpack.c.b16 %v6429, %v6425
        %v6574 = vpack.c.b16 %v6430, %v6426
        %v6575 = vpack.c.b16 %v6435, %v6431
        %v6576 = vpack.c.b16 %v6436, %v6432
        %v6577 = vpack.c.b16 %v6437, %v6433
        %v6578 = vpack.c.b16 %v6438, %v6434
        %v6579 = vpack.c.b16 %v6443, %v6439
        %v6580 = vpack.c.b16 %v6444, %v6440
        %v6581 = vpack.c.b16 %v6445, %v6441
        %v6582 = vpack.c.b16 %v6446, %v6442
        %v6583 = vpack.c.b16 %v6451, %v6447
        %v6584 = vpack.c.b16 %v6452, %v6448
        %v6585 = vpack.c.b16 %v6453, %v6449
        %v6586 = vpack.c.b16 %v6454, %v6450
        %v6587 = vpack.c.b16 %v6459, %v6455
        %v6588 = vpack.c.b16 %v6460, %v6456
        %v6589 = vpack.c.b16 %v6461, %v6457
        %v6590 = vpack.c.b16 %v6462, %v6458
        %6719 = vmatprep.subr.bf16.mxu0 %v6464
        %6720 = vmatpush1.bf16.xpose.msra.mxu0 %v6463
        %6721 = vmatprep.subr.bf16.mxu0 %v6468
        %6722 = vmatpush1.bf16.xpose.msra.mxu0 %v6467
        %6723 = vmatprep.subr.bf16.mxu0 %v6472
        %6724 = vmatpush1.bf16.xpose.msra.mxu0 %v6471
        %6725 = vmatprep.subr.bf16.mxu0 %v6476
        %6726 = vmatpush1.bf16.xpose.msra.mxu0 %v6475
        %6727 = vmatprep.subr.bf16.mxu0 %v6480
        %6728 = vmatpush1.bf16.xpose.msra.mxu0 %v6479
        %6729 = vmatprep.subr.bf16.mxu0 %v6484
        %6730 = vmatpush1.bf16.xpose.msra.mxu0 %v6483
        %6731 = vmatprep.subr.bf16.mxu0 %v6488
        %6732 = vmatpush1.bf16.xpose.msra.mxu0 %v6487
        %6733 = vmatprep.subr.bf16.mxu0 %v6492
        %6734 = vmatpush1.bf16.xpose.msra.mxu0 %v6491
        %6735 = vmatprep.subr.bf16.mxu0 %v6496
        %6736 = vmatpush1.bf16.xpose.msra.mxu0 %v6495
        %6737 = vmatprep.subr.bf16.mxu0 %v6500
        %6738 = vmatpush1.bf16.xpose.msra.mxu0 %v6499
        %6739 = vmatprep.subr.bf16.mxu0 %v6504
        %6740 = vmatpush1.bf16.xpose.msra.mxu0 %v6503
        %6741 = vmatprep.subr.bf16.mxu0 %v6508
        %6742 = vmatpush1.bf16.xpose.msra.mxu0 %v6507
        %6743 = vmatprep.subr.bf16.mxu0 %v6512
        %6744 = vmatpush1.bf16.xpose.msra.mxu0 %v6511
        %6745 = vmatprep.subr.bf16.mxu0 %v6516
        %6746 = vmatpush1.bf16.xpose.msra.mxu0 %v6515
        %6747 = vmatprep.subr.bf16.mxu0 %v6520
        %6748 = vmatpush1.bf16.xpose.msra.mxu0 %v6519
        %6749 = vmatprep.subr.bf16.mxu0 %v6524
        %6750 = vmatpush1.bf16.xpose.msra.mxu0 %v6523
        %6751 = vmatprep.mubr.bf16.mxu0 %v5898
        %6752 = vmatmul.mubr.bf16.gmra.mrb[0].mxu0 %v5897
        %v6753 = vpop.f32.mrb[0].mxu0
        %v6754 = vadd.f32 %v6062, %v6753
        %v6755 = vpop.f32.mrb[0].mxu0
        %v6756 = vadd.f32 %v6066, %v6755
        %v6757 = vpop.f32.mrb[0].mxu0
        %v6758 = vadd.f32 %v6062, %v6757
        %v6759 = vpop.f32.mrb[0].mxu0
        %v6760 = vadd.f32 %v6066, %v6759
        %6761 = vmatprep.mubr.bf16.mxu0 %v5902
        %6762 = vmatmul.mubr.bf16.gmra.mrb[0].mxu0 %v5901
        %v6763 = vpop.f32.mrb[0].mxu0
        %v6764 = vadd.f32 %v6062, %v6763
        %v6765 = vpop.f32.mrb[0].mxu0
        %v6766 = vadd.f32 %v6066, %v6765
        %v6767 = vpop.f32.mrb[0].mxu0
        %v6768 = vadd.f32 %v6062, %v6767
        %v6769 = vpop.f32.mrb[0].mxu0
        %v6770 = vadd.f32 %v6066, %v6769
        %6771 = vmatprep.mubr.bf16.mxu0 %v5906
        %6772 = vmatmul.mubr.bf16.gmra.mrb[0].mxu0 %v5905
        %v6773 = vpop.f32.mrb[0].mxu0
        %v6774 = vadd.f32 %v6062, %v6773
        %v6775 = vpop.f32.mrb[0].mxu0
        %v6776 = vadd.f32 %v6066, %v6775
        %v6777 = vpop.f32.mrb[0].mxu0
        %v6778 = vadd.f32 %v6062, %v6777
        %v6779 = vpop.f32.mrb[0].mxu0
        %v6780 = vadd.f32 %v6066, %v6779
        %6781 = vmatprep.mubr.bf16.mxu0 %v5910
        %6782 = vmatmul.mubr.bf16.gmra.mrb[0].mxu0 %v5909
        %v6783 = vpop.f32.mrb[0].mxu0
        %v6784 = vadd.f32 %v6062, %v6783
        %v6785 = vpop.f32.mrb[0].mxu0
        %v6786 = vadd.f32 %v6066, %v6785
        %v6787 = vpop.f32.mrb[0].mxu0
        %v6788 = vadd.f32 %v6062, %v6787
        %v6789 = vpop.f32.mrb[0].mxu0
        %v6790 = vadd.f32 %v6066, %v6789
        %6791 = vmatprep.mubr.bf16.mxu0 %v5914
        %6792 = vmatmul.mubr.bf16.gmra.mrb[0].mxu0 %v5913
        %v6793 = vpop.f32.mrb[0].mxu0
        %v6794 = vadd.f32 %v6062, %v6793
        %v6795 = vpop.f32.mrb[0].mxu0
        %v6796 = vadd.f32 %v6066, %v6795
        %v6797 = vpop.f32.mrb[0].mxu0
        %v6798 = vadd.f32 %v6062, %v6797
        %v6799 = vpop.f32.mrb[0].mxu0
        %v6800 = vadd.f32 %v6066, %v6799
        %6801 = vmatprep.mubr.bf16.mxu0 %v5918
        %6802 = vmatmul.mubr.bf16.gmra.mrb[0].mxu0 %v5917
        %v6803 = vpop.f32.mrb[0].mxu0
        %v6804 = vadd.f32 %v6062, %v6803
        %v6805 = vpop.f32.mrb[0].mxu0
        %v6806 = vadd.f32 %v6066, %v6805
        %v6807 = vpop.f32.mrb[0].mxu0
        %v6808 = vadd.f32 %v6062, %v6807
        %v6809 = vpop.f32.mrb[0].mxu0
        %v6810 = vadd.f32 %v6066, %v6809
        %6811 = vmatprep.mubr.bf16.mxu0 %v5922
        %6812 = vmatmul.mubr.bf16.gmra.mrb[0].mxu0 %v5921
        %v6813 = vpop.f32.mrb[0].mxu0
        %v6814 = vadd.f32 %v6062, %v6813
        %v6815 = vpop.f32.mrb[0].mxu0
        %v6816 = vadd.f32 %v6066, %v6815
        %v6817 = vpop.f32.mrb[0].mxu0
        %v6818 = vadd.f32 %v6062, %v6817
        %v6819 = vpop.f32.mrb[0].mxu0
        %v6820 = vadd.f32 %v6066, %v6819
        %6821 = vmatprep.mubr.bf16.mxu0 %v5926
        %6822 = vmatmul.mubr.bf16.gmra.mrb[0].mxu0 %v5925
        %v6823 = vpop.f32.mrb[0].mxu0
        %v6824 = vadd.f32 %v6062, %v6823
        %v6825 = vpop.f32.mrb[0].mxu0
        %v6826 = vadd.f32 %v6066, %v6825
        %v6827 = vpop.f32.mrb[0].mxu0
        %v6828 = vadd.f32 %v6062, %v6827
        %v6829 = vpop.f32.mrb[0].mxu0
        %v6830 = vadd.f32 %v6066, %v6829
        %6831 = vdwg.mxu0
        %6832 = vmatprep.subr.bf16.mxu0 %v6466
        %6833 = vmatpush1.bf16.xpose.msra.mxu0 %v6465
        %6834 = vmatprep.subr.bf16.mxu0 %v6470
        %6835 = vmatpush1.bf16.xpose.msra.mxu0 %v6469
        %6836 = vmatprep.subr.bf16.mxu0 %v6474
        %6837 = vmatpush1.bf16.xpose.msra.mxu0 %v6473
        %6838 = vmatprep.subr.bf16.mxu0 %v6478
        %6839 = vmatpush1.bf16.xpose.msra.mxu0 %v6477
        %6840 = vmatprep.subr.bf16.mxu0 %v6482
        %6841 = vmatpush1.bf16.xpose.msra.mxu0 %v6481
        %6842 = vmatprep.subr.bf16.mxu0 %v6486
        %6843 = vmatpush1.bf16.xpose.msra.mxu0 %v6485
        %6844 = vmatprep.subr.bf16.mxu0 %v6490
        %6845 = vmatpush1.bf16.xpose.msra.mxu0 %v6489
        %6846 = vmatprep.subr.bf16.mxu0 %v6494
        %6847 = vmatpush1.bf16.xpose.msra.mxu0 %v6493
        %6848 = vmatprep.subr.bf16.mxu0 %v6498
        %6849 = vmatpush1.bf16.xpose.msra.mxu0 %v6497
        %6850 = vmatprep.subr.bf16.mxu0 %v6502
        %6851 = vmatpush1.bf16.xpose.msra.mxu0 %v6501
        %6852 = vmatprep.subr.bf16.mxu0 %v6506
        %6853 = vmatpush1.bf16.xpose.msra.mxu0 %v6505
        %6854 = vmatprep.subr.bf16.mxu0 %v6510
        %6855 = vmatpush1.bf16.xpose.msra.mxu0 %v6509
        %6856 = vmatprep.subr.bf16.mxu0 %v6514
        %6857 = vmatpush1.bf16.xpose.msra.mxu0 %v6513
        %6858 = vmatprep.subr.bf16.mxu0 %v6518
        %6859 = vmatpush1.bf16.xpose.msra.mxu0 %v6517
        %6860 = vmatprep.subr.bf16.mxu0 %v6522
        %6861 = vmatpush1.bf16.xpose.msra.mxu0 %v6521
        %6862 = vmatprep.subr.bf16.mxu0 %v6526
        %6863 = vmatpush1.bf16.xpose.msra.mxu0 %v6525
        %6864 = vmatprep.mubr.bf16.mxu0 %v5900
        %6865 = vmatmul.mubr.bf16.gmra.mrb[0].mxu0 %v5899
        %v6866 = vpop.f32.mrb[0].mxu0
        %v6867 = vadd.f32 %v6754, %v6866
        %v6868 = vpop.f32.mrb[0].mxu0
        %v6869 = vadd.f32 %v6756, %v6868
        %v6870 = vpop.f32.mrb[0].mxu0
        %v6871 = vadd.f32 %v6758, %v6870
        %v6872 = vpop.f32.mrb[0].mxu0
        %v6873 = vadd.f32 %v6760, %v6872
        %6874 = vmatprep.mubr.bf16.mxu0 %v5904
        %6875 = vmatmul.mubr.bf16.gmra.mrb[0].mxu0 %v5903
        %v6876 = vpop.f32.mrb[0].mxu0
        %v6877 = vadd.f32 %v6764, %v6876
        %v6878 = vpop.f32.mrb[0].mxu0
        %v6879 = vadd.f32 %v6766, %v6878
        %v6880 = vpop.f32.mrb[0].mxu0
        %v6881 = vadd.f32 %v6768, %v6880
        %v6882 = vpop.f32.mrb[0].mxu0
        %v6883 = vadd.f32 %v6770, %v6882
        %6884 = vmatprep.mubr.bf16.mxu0 %v5908
        %6885 = vmatmul.mubr.bf16.gmra.mrb[0].mxu0 %v5907
        %v6886 = vpop.f32.mrb[0].mxu0
        %v6887 = vadd.f32 %v6774, %v6886
        %v6888 = vpop.f32.mrb[0].mxu0
        %v6889 = vadd.f32 %v6776, %v6888
        %v6890 = vpop.f32.mrb[0].mxu0
        %v6891 = vadd.f32 %v6778, %v6890
        %v6892 = vpop.f32.mrb[0].mxu0
        %v6893 = vadd.f32 %v6780, %v6892
        %6894 = vmatprep.mubr.bf16.mxu0 %v5912
        %6895 = vmatmul.mubr.bf16.gmra.mrb[0].mxu0 %v5911
        %v6896 = vpop.f32.mrb[0].mxu0
        %v6897 = vadd.f32 %v6784, %v6896
        %v6898 = vpop.f32.mrb[0].mxu0
        %v6899 = vadd.f32 %v6786, %v6898
        %v6900 = vpop.f32.mrb[0].mxu0
        %v6901 = vadd.f32 %v6788, %v6900
        %v6902 = vpop.f32.mrb[0].mxu0
        %v6903 = vadd.f32 %v6790, %v6902
        %6904 = vmatprep.mubr.bf16.mxu0 %v5916
        %6905 = vmatmul.mubr.bf16.gmra.mrb[0].mxu0 %v5915
        %v6906 = vpop.f32.mrb[0].mxu0
        %v6907 = vadd.f32 %v6794, %v6906
        %v6908 = vpop.f32.mrb[0].mxu0
        %v6909 = vadd.f32 %v6796, %v6908
        %v6910 = vpop.f32.mrb[0].mxu0
        %v6911 = vadd.f32 %v6798, %v6910
        %v6912 = vpop.f32.mrb[0].mxu0
        %v6913 = vadd.f32 %v6800, %v6912
        %6914 = vmatprep.mubr.bf16.mxu0 %v5920
        %6915 = vmatmul.mubr.bf16.gmra.mrb[0].mxu0 %v5919
        %v6916 = vpop.f32.mrb[0].mxu0
        %v6917 = vadd.f32 %v6804, %v6916
        %v6918 = vpop.f32.mrb[0].mxu0
        %v6919 = vadd.f32 %v6806, %v6918
        %v6920 = vpop.f32.mrb[0].mxu0
        %v6921 = vadd.f32 %v6808, %v6920
        %v6922 = vpop.f32.mrb[0].mxu0
        %v6923 = vadd.f32 %v6810, %v6922
        %6924 = vmatprep.mubr.bf16.mxu0 %v5924
        %6925 = vmatmul.mubr.bf16.gmra.mrb[0].mxu0 %v5923
        %v6926 = vpop.f32.mrb[0].mxu0
        %v6927 = vadd.f32 %v6814, %v6926
        %v6928 = vpop.f32.mrb[0].mxu0
        %v6929 = vadd.f32 %v6816, %v6928
        %v6930 = vpop.f32.mrb[0].mxu0
        %v6931 = vadd.f32 %v6818, %v6930
        %v6932 = vpop.f32.mrb[0].mxu0
        %v6933 = vadd.f32 %v6820, %v6932
        %6934 = vmatprep.mubr.bf16.mxu0 %v5928
        %6935 = vmatmul.mubr.bf16.gmra.mrb[0].mxu0 %v5927
        %v6936 = vpop.f32.mrb[0].mxu0
        %v6937 = vadd.f32 %v6824, %v6936
        %v6938 = vpop.f32.mrb[0].mxu0
        %v6939 = vadd.f32 %v6826, %v6938
        %v6940 = vpop.f32.mrb[0].mxu0
        %v6941 = vadd.f32 %v6828, %v6940
        %v6942 = vpop.f32.mrb[0].mxu0
        %v6943 = vadd.f32 %v6830, %v6942
        %6944 = vdwg.mxu0
        %6945 = vmatprep.subr.bf16.mxu0 %v6528
        %6946 = vmatpush1.bf16.xpose.msra.mxu0 %v6527
        %6947 = vmatprep.subr.bf16.mxu0 %v6532
        %6948 = vmatpush1.bf16.xpose.msra.mxu0 %v6531
        %6949 = vmatprep.subr.bf16.mxu0 %v6536
        %6950 = vmatpush1.bf16.xpose.msra.mxu0 %v6535
        %6951 = vmatprep.subr.bf16.mxu0 %v6540
        %6952 = vmatpush1.bf16.xpose.msra.mxu0 %v6539
        %6953 = vmatprep.subr.bf16.mxu0 %v6544
        %6954 = vmatpush1.bf16.xpose.msra.mxu0 %v6543
        %6955 = vmatprep.subr.bf16.mxu0 %v6548
        %6956 = vmatpush1.bf16.xpose.msra.mxu0 %v6547
        %6957 = vmatprep.subr.bf16.mxu0 %v6552
        %6958 = vmatpush1.bf16.xpose.msra.mxu0 %v6551
        %6959 = vmatprep.subr.bf16.mxu0 %v6556
        %6960 = vmatpush1.bf16.xpose.msra.mxu0 %v6555
        %6961 = vmatprep.subr.bf16.mxu0 %v6560
        %6962 = vmatpush1.bf16.xpose.msra.mxu0 %v6559
        %6963 = vmatprep.subr.bf16.mxu0 %v6564
        %6964 = vmatpush1.bf16.xpose.msra.mxu0 %v6563
        %6965 = vmatprep.subr.bf16.mxu0 %v6568
        %6966 = vmatpush1.bf16.xpose.msra.mxu0 %v6567
        %6967 = vmatprep.subr.bf16.mxu0 %v6572
        %6968 = vmatpush1.bf16.xpose.msra.mxu0 %v6571
        %6969 = vmatprep.subr.bf16.mxu0 %v6576
        %6970 = vmatpush1.bf16.xpose.msra.mxu0 %v6575
        %6971 = vmatprep.subr.bf16.mxu0 %v6580
        %6972 = vmatpush1.bf16.xpose.msra.mxu0 %v6579
        %6973 = vmatprep.subr.bf16.mxu0 %v6584
        %6974 = vmatpush1.bf16.xpose.msra.mxu0 %v6583
        %6975 = vmatprep.subr.bf16.mxu0 %v6588
        %6976 = vmatpush1.bf16.xpose.msra.mxu0 %v6587
        %6977 = vmatprep.mubr.bf16.mxu0 %v5898
        %6978 = vmatmul.mubr.bf16.gmra.mrb[0].mxu0 %v5897
        %v6979 = vpop.f32.mrb[0].mxu0
        %v6980 = vadd.f32 %v6070, %v6979
        %v6981 = vpop.f32.mrb[0].mxu0
        %v6982 = vadd.f32 %v6074, %v6981
        %v6983 = vpop.f32.mrb[0].mxu0
        %v6984 = vadd.f32 %v6070, %v6983
        %v6985 = vpop.f32.mrb[0].mxu0
        %v6986 = vadd.f32 %v6074, %v6985
        %6987 = vmatprep.mubr.bf16.mxu0 %v5902
        %6988 = vmatmul.mubr.bf16.gmra.mrb[0].mxu0 %v5901
        %v6989 = vpop.f32.mrb[0].mxu0
        %v6990 = vadd.f32 %v6070, %v6989
        %v6991 = vpop.f32.mrb[0].mxu0
        %v6992 = vadd.f32 %v6074, %v6991
        %v6993 = vpop.f32.mrb[0].mxu0
        %v6994 = vadd.f32 %v6070, %v6993
        %v6995 = vpop.f32.mrb[0].mxu0
        %v6996 = vadd.f32 %v6074, %v6995
        %6997 = vmatprep.mubr.bf16.mxu0 %v5906
        %6998 = vmatmul.mubr.bf16.gmra.mrb[0].mxu0 %v5905
        %v6999 = vpop.f32.mrb[0].mxu0
        %v7000 = vadd.f32 %v6070, %v6999
        %v7001 = vpop.f32.mrb[0].mxu0
        %v7002 = vadd.f32 %v6074, %v7001
        %v7003 = vpop.f32.mrb[0].mxu0
        %v7004 = vadd.f32 %v6070, %v7003
        %v7005 = vpop.f32.mrb[0].mxu0
        %v7006 = vadd.f32 %v6074, %v7005
        %7007 = vmatprep.mubr.bf16.mxu0 %v5910
        %7008 = vmatmul.mubr.bf16.gmra.mrb[0].mxu0 %v5909
        %v7009 = vpop.f32.mrb[0].mxu0
        %v7010 = vadd.f32 %v6070, %v7009
        %v7011 = vpop.f32.mrb[0].mxu0
        %v7012 = vadd.f32 %v6074, %v7011
        %v7013 = vpop.f32.mrb[0].mxu0
        %v7014 = vadd.f32 %v6070, %v7013
        %v7015 = vpop.f32.mrb[0].mxu0
        %v7016 = vadd.f32 %v6074, %v7015
        %7017 = vmatprep.mubr.bf16.mxu0 %v5914
        %7018 = vmatmul.mubr.bf16.gmra.mrb[0].mxu0 %v5913
        %v7019 = vpop.f32.mrb[0].mxu0
        %v7020 = vadd.f32 %v6070, %v7019
        %v7021 = vpop.f32.mrb[0].mxu0
        %v7022 = vadd.f32 %v6074, %v7021
        %v7023 = vpop.f32.mrb[0].mxu0
        %v7024 = vadd.f32 %v6070, %v7023
        %v7025 = vpop.f32.mrb[0].mxu0
        %v7026 = vadd.f32 %v6074, %v7025
        %7027 = vmatprep.mubr.bf16.mxu0 %v5918
        %7028 = vmatmul.mubr.bf16.gmra.mrb[0].mxu0 %v5917
        %v7029 = vpop.f32.mrb[0].mxu0
        %v7030 = vadd.f32 %v6070, %v7029
        %v7031 = vpop.f32.mrb[0].mxu0
        %v7032 = vadd.f32 %v6074, %v7031
        %v7033 = vpop.f32.mrb[0].mxu0
        %v7034 = vadd.f32 %v6070, %v7033
        %v7035 = vpop.f32.mrb[0].mxu0
        %v7036 = vadd.f32 %v6074, %v7035
        %7037 = vmatprep.mubr.bf16.mxu0 %v5922
        %7038 = vmatmul.mubr.bf16.gmra.mrb[0].mxu0 %v5921
        %v7039 = vpop.f32.mrb[0].mxu0
        %v7040 = vadd.f32 %v6070, %v7039
        %v7041 = vpop.f32.mrb[0].mxu0
        %v7042 = vadd.f32 %v6074, %v7041
        %v7043 = vpop.f32.mrb[0].mxu0
        %v7044 = vadd.f32 %v6070, %v7043
        %v7045 = vpop.f32.mrb[0].mxu0
        %v7046 = vadd.f32 %v6074, %v7045
        %7047 = vmatprep.mubr.bf16.mxu0 %v5926
        %7048 = vmatmul.mubr.bf16.gmra.mrb[0].mxu0 %v5925
        %v7049 = vpop.f32.mrb[0].mxu0
        %v7050 = vadd.f32 %v6070, %v7049
        %v7051 = vpop.f32.mrb[0].mxu0
        %v7052 = vadd.f32 %v6074, %v7051
        %v7053 = vpop.f32.mrb[0].mxu0
        %v7054 = vadd.f32 %v6070, %v7053
        %v7055 = vpop.f32.mrb[0].mxu0
        %v7056 = vadd.f32 %v6074, %v7055
        %7057 = vdwg.mxu0
        %7058 = vmatprep.subr.bf16.mxu0 %v6530
        %7059 = vmatpush1.bf16.xpose.msra.mxu0 %v6529
        %7060 = vmatprep.subr.bf16.mxu0 %v6534
        %7061 = vmatpush1.bf16.xpose.msra.mxu0 %v6533
        %7062 = vmatprep.subr.bf16.mxu0 %v6538
        %7063 = vmatpush1.bf16.xpose.msra.mxu0 %v6537
        %7064 = vmatprep.subr.bf16.mxu0 %v6542
        %7065 = vmatpush1.bf16.xpose.msra.mxu0 %v6541
        %7066 = vmatprep.subr.bf16.mxu0 %v6546
        %7067 = vmatpush1.bf16.xpose.msra.mxu0 %v6545
        %7068 = vmatprep.subr.bf16.mxu0 %v6550
        %7069 = vmatpush1.bf16.xpose.msra.mxu0 %v6549
        %7070 = vmatprep.subr.bf16.mxu0 %v6554
        %7071 = vmatpush1.bf16.xpose.msra.mxu0 %v6553
        %7072 = vmatprep.subr.bf16.mxu0 %v6558
        %7073 = vmatpush1.bf16.xpose.msra.mxu0 %v6557
        %7074 = vmatprep.subr.bf16.mxu0 %v6562
        %7075 = vmatpush1.bf16.xpose.msra.mxu0 %v6561
        %7076 = vmatprep.subr.bf16.mxu0 %v6566
        %7077 = vmatpush1.bf16.xpose.msra.mxu0 %v6565
        %7078 = vmatprep.subr.bf16.mxu0 %v6570
        %7079 = vmatpush1.bf16.xpose.msra.mxu0 %v6569
        %7080 = vmatprep.subr.bf16.mxu0 %v6574
        %7081 = vmatpush1.bf16.xpose.msra.mxu0 %v6573
        %7082 = vmatprep.subr.bf16.mxu0 %v6578
        %7083 = vmatpush1.bf16.xpose.msra.mxu0 %v6577
        %7084 = vmatprep.subr.bf16.mxu0 %v6582
        %7085 = vmatpush1.bf16.xpose.msra.mxu0 %v6581
        %7086 = vmatprep.subr.bf16.mxu0 %v6586
        %7087 = vmatpush1.bf16.xpose.msra.mxu0 %v6585
        %7088 = vmatprep.subr.bf16.mxu0 %v6590
        %7089 = vmatpush1.bf16.xpose.msra.mxu0 %v6589
        %7090 = vmatprep.mubr.bf16.mxu0 %v5900
        %7091 = vmatmul.mubr.bf16.gmra.mrb[0].mxu0 %v5899
        %v7092 = vpop.f32.mrb[0].mxu0
        %v7093 = vadd.f32 %v6980, %v7092
        %v7094 = vpop.f32.mrb[0].mxu0
        %v7095 = vadd.f32 %v6982, %v7094
        %v7096 = vpop.f32.mrb[0].mxu0
        %v7097 = vadd.f32 %v6984, %v7096
        %v7098 = vpop.f32.mrb[0].mxu0
        %v7099 = vadd.f32 %v6986, %v7098
        %7100 = vmatprep.mubr.bf16.mxu0 %v5904
        %7101 = vmatmul.mubr.bf16.gmra.mrb[0].mxu0 %v5903
        %v7102 = vpop.f32.mrb[0].mxu0
        %v7103 = vadd.f32 %v6990, %v7102
        %v7104 = vpop.f32.mrb[0].mxu0
        %v7105 = vadd.f32 %v6992, %v7104
        %v7106 = vpop.f32.mrb[0].mxu0
        %v7107 = vadd.f32 %v6994, %v7106
        %v7108 = vpop.f32.mrb[0].mxu0
        %v7109 = vadd.f32 %v6996, %v7108
        %7110 = vmatprep.mubr.bf16.mxu0 %v5908
        %7111 = vmatmul.mubr.bf16.gmra.mrb[0].mxu0 %v5907
        %v7112 = vpop.f32.mrb[0].mxu0
        %v7113 = vadd.f32 %v7000, %v7112
        %v7114 = vpop.f32.mrb[0].mxu0
        %v7115 = vadd.f32 %v7002, %v7114
        %v7116 = vpop.f32.mrb[0].mxu0
        %v7117 = vadd.f32 %v7004, %v7116
        %v7118 = vpop.f32.mrb[0].mxu0
        %v7119 = vadd.f32 %v7006, %v7118
        %7120 = vmatprep.mubr.bf16.mxu0 %v5912
        %7121 = vmatmul.mubr.bf16.gmra.mrb[0].mxu0 %v5911
        %v7122 = vpop.f32.mrb[0].mxu0
        %v7123 = vadd.f32 %v7010, %v7122
        %v7124 = vpop.f32.mrb[0].mxu0
        %v7125 = vadd.f32 %v7012, %v7124
        %v7126 = vpop.f32.mrb[0].mxu0
        %v7127 = vadd.f32 %v7014, %v7126
        %v7128 = vpop.f32.mrb[0].mxu0
        %v7129 = vadd.f32 %v7016, %v7128
        %7130 = vmatprep.mubr.bf16.mxu0 %v5916
        %7131 = vmatmul.mubr.bf16.gmra.mrb[0].mxu0 %v5915
        %v7132 = vpop.f32.mrb[0].mxu0
        %v7133 = vadd.f32 %v7020, %v7132
        %v7134 = vpop.f32.mrb[0].mxu0
        %v7135 = vadd.f32 %v7022, %v7134
        %v7136 = vpop.f32.mrb[0].mxu0
        %v7137 = vadd.f32 %v7024, %v7136
        %v7138 = vpop.f32.mrb[0].mxu0
        %v7139 = vadd.f32 %v7026, %v7138
        %7140 = vmatprep.mubr.bf16.mxu0 %v5920
        %7141 = vmatmul.mubr.bf16.gmra.mrb[0].mxu0 %v5919
        %v7142 = vpop.f32.mrb[0].mxu0
        %v7143 = vadd.f32 %v7030, %v7142
        %v7144 = vpop.f32.mrb[0].mxu0
        %v7145 = vadd.f32 %v7032, %v7144
        %v7146 = vpop.f32.mrb[0].mxu0
        %v7147 = vadd.f32 %v7034, %v7146
        %v7148 = vpop.f32.mrb[0].mxu0
        %v7149 = vadd.f32 %v7036, %v7148
        %7150 = vmatprep.mubr.bf16.mxu0 %v5924
        %7151 = vmatmul.mubr.bf16.gmra.mrb[0].mxu0 %v5923
        %v7152 = vpop.f32.mrb[0].mxu0
        %v7153 = vadd.f32 %v7040, %v7152
        %v7154 = vpop.f32.mrb[0].mxu0
        %v7155 = vadd.f32 %v7042, %v7154
        %v7156 = vpop.f32.mrb[0].mxu0
        %v7157 = vadd.f32 %v7044, %v7156
        %v7158 = vpop.f32.mrb[0].mxu0
        %v7159 = vadd.f32 %v7046, %v7158
        %7160 = vmatprep.mubr.bf16.mxu0 %v5928
        %7161 = vmatmul.mubr.bf16.gmra.mrb[0].mxu0 %v5927
        %v7162 = vpop.f32.mrb[0].mxu0
        %v7163 = vadd.f32 %v7050, %v7162
        %v7164 = vpop.f32.mrb[0].mxu0
        %v7165 = vadd.f32 %v7052, %v7164
        %v7166 = vpop.f32.mrb[0].mxu0
        %v7167 = vadd.f32 %v7054, %v7166
        %v7168 = vpop.f32.mrb[0].mxu0
        %v7169 = vadd.f32 %v7056, %v7168
        %7170 = vdwg.mxu0
        %7171 = vst [vmem:[%s478] sm:$0xff] %v6867
        %7172 = vst [vmem:[%s478 + $0x8] sm:$0xff] %v6869
        %7173 = vst [vmem:[%s478 + $0x10] sm:$0xff] %v7093
        %7174 = vst [vmem:[%s478 + $0x18] sm:$0xff] %v7095
        %7175 = vst [vmem:[%s478 + $0x20] sm:$0xff] %v6871
        %7176 = vst [vmem:[%s478 + $0x28] sm:$0xff] %v6873
        %7177 = vst [vmem:[%s478 + $0x30] sm:$0xff] %v7097
        %7178 = vst [vmem:[%s478 + $0x38] sm:$0xff] %v7099
        %7179 = vst [vmem:[%s478 + $0x40] sm:$0xff] %v6877
        %7180 = vst [vmem:[%s478 + $0x48] sm:$0xff] %v6879
        %7181 = vst [vmem:[%s478 + $0x50] sm:$0xff] %v7103
        %7182 = vst [vmem:[%s478 + $0x58] sm:$0xff] %v7105
        %7183 = vst [vmem:[%s478 + $0x60] sm:$0xff] %v6881
        %7184 = vst [vmem:[%s478 + $0x68] sm:$0xff] %v6883
        %7185 = vst [vmem:[%s478 + $0x70] sm:$0xff] %v7107
        %7186 = vst [vmem:[%s478 + $0x78] sm:$0xff] %v7109
        %7187 = vst [vmem:[%s478 + $0x80] sm:$0xff] %v6887
        %7188 = vst [vmem:[%s478 + $0x88] sm:$0xff] %v6889
        %7189 = vst [vmem:[%s478 + $0x90] sm:$0xff] %v7113
        %7190 = vst [vmem:[%s478 + $0x98] sm:$0xff] %v7115
        %7191 = vst [vmem:[%s478 + $0xa0] sm:$0xff] %v6891
        %7192 = vst [vmem:[%s478 + $0xa8] sm:$0xff] %v6893
        %7193 = vst [vmem:[%s478 + $0xb0] sm:$0xff] %v7117
        %7194 = vst [vmem:[%s478 + $0xb8] sm:$0xff] %v7119
        %7195 = vst [vmem:[%s478 + $0xc0] sm:$0xff] %v6897
        %7196 = vst [vmem:[%s478 + $0xc8] sm:$0xff] %v6899
        %7197 = vst [vmem:[%s478 + $0xd0] sm:$0xff] %v7123
        %7198 = vst [vmem:[%s478 + $0xd8] sm:$0xff] %v7125
        %7199 = vst [vmem:[%s478 + $0xe0] sm:$0xff] %v6901
        %7200 = vst [vmem:[%s478 + $0xe8] sm:$0xff] %v6903
        %7201 = vst [vmem:[%s478 + $0xf0] sm:$0xff] %v7127
        %7202 = vst [vmem:[%s478 + $0xf8] sm:$0xff] %v7129
        %7203 = vst [vmem:[%s478 + $0x100] sm:$0xff] %v6907
        %7204 = vst [vmem:[%s478 + $0x108] sm:$0xff] %v6909
        %7205 = vst [vmem:[%s478 + $0x110] sm:$0xff] %v7133
        %7206 = vst [vmem:[%s478 + $0x118] sm:$0xff] %v7135
        %7207 = vst [vmem:[%s478 + $0x120] sm:$0xff] %v6911
        %7208 = vst [vmem:[%s478 + $0x128] sm:$0xff] %v6913
        %7209 = vst [vmem:[%s478 + $0x130] sm:$0xff] %v7137
        %7210 = vst [vmem:[%s478 + $0x138] sm:$0xff] %v7139
        %7211 = vst [vmem:[%s478 + $0x140] sm:$0xff] %v6917
        %7212 = vst [vmem:[%s478 + $0x148] sm:$0xff] %v6919
        %7213 = vst [vmem:[%s478 + $0x150] sm:$0xff] %v7143
        %7214 = vst [vmem:[%s478 + $0x158] sm:$0xff] %v7145
        %7215 = vst [vmem:[%s478 + $0x160] sm:$0xff] %v6921
        %7216 = vst [vmem:[%s478 + $0x168] sm:$0xff] %v6923
        %7217 = vst [vmem:[%s478 + $0x170] sm:$0xff] %v7147
        %7218 = vst [vmem:[%s478 + $0x178] sm:$0xff] %v7149
        %7219 = vst [vmem:[%s478 + $0x180] sm:$0xff] %v6927
        %7220 = vst [vmem:[%s478 + $0x188] sm:$0xff] %v6929
        %7221 = vst [vmem:[%s478 + $0x190] sm:$0xff] %v7153
        %7222 = vst [vmem:[%s478 + $0x198] sm:$0xff] %v7155
        %7223 = vst [vmem:[%s478 + $0x1a0] sm:$0xff] %v6931
        %7224 = vst [vmem:[%s478 + $0x1a8] sm:$0xff] %v6933
        %7225 = vst [vmem:[%s478 + $0x1b0] sm:$0xff] %v7157
        %7226 = vst [vmem:[%s478 + $0x1b8] sm:$0xff] %v7159
        %7227 = vst [vmem:[%s478 + $0x1c0] sm:$0xff] %v6937
        %7228 = vst [vmem:[%s478 + $0x1c8] sm:$0xff] %v6939
        %7229 = vst [vmem:[%s478 + $0x1d0] sm:$0xff] %v7163
        %7230 = vst [vmem:[%s478 + $0x1d8] sm:$0xff] %v7165
        %7231 = vst [vmem:[%s478 + $0x1e0] sm:$0xff] %v6941
        %7232 = vst [vmem:[%s478 + $0x1e8] sm:$0xff] %v6943
        %7233 = vst [vmem:[%s478 + $0x1f0] sm:$0xff] %v7167
        %7234 = vst [vmem:[%s478 + $0x1f8] sm:$0xff] %v7169
        %s7235 = sand.u32 %s275, 1
        %s7236 = scalar_lea.sflag [#allocation4], %s7235
        %s7237 = sand.u32 %s275, 1
        %s7238 = smul.addr %s7237, 512
        %s7239 = scalar_lea.vmem [#allocation13], %s7238
        // Predicated region
        $region89: #{tpu_custom_call.1} parent=63 // pred_check
          %p7240 = pneg %p285
        $region90: #{tpu_custom_call.1} parent=63 // pred_check_branch
          %7242 = sbr.rel (%p7240) target = $region92
        $region91: #{tpu_custom_call.1} parent=63 // pred_region
          %s7243 = smul.u32 16, %s31
          %s7245 = ssub.s32 8192, 8192
          %7246 = vsyncadd %s7236, %s7245
          %s7247 = smul.addr %s7243, 4
          %s7248 = smul.addr %s7247, 128
          %s7249 = scalar_lea.hbm %s11, %s7248
          %s7250 = sshll.u32 %s7239, 4
          %s7251 = int_to_ptr.vmem [resolvable:$true] %s7250
          %7256 = dma.vmem_to_hbm [thread:$0]  %s7251, 8192, %s7249, %s7236, 512, 512, 32
        $region92: #{tpu_custom_call.1} parent=63 // pred_fallthru
          _
      $region64: #{tpu_custom_call.1} parent=5 // pred_fallthru
        _
      %p7257 = scmp.le.s32.totalorder 2, %s26
      // Predicated region
      $region93: #{tpu_custom_call.1} parent=5 // pred_check
        %p7258 = pneg %p7257
      $region94: #{tpu_custom_call.1} parent=5 // pred_check_branch
        %7260 = sbr.rel (%p7258) target = $region96
      $region95: #{tpu_custom_call.1} parent=5 // pred_region
        %s7261 = ssub.s32 %s26, 2
        // Predicated region
        $region97: #{tpu_custom_call.1} parent=95 // pred_check
          %p7262 = pneg %p291
        $region98: #{tpu_custom_call.1} parent=95 // pred_check_branch
          %7264 = sbr.rel (%p7262) target = $region100
        $region99: #{tpu_custom_call.1} parent=95 // pred_region
          %s7265 = sand.u32 %s276, 1
          %s7266 = scalar_lea.sflag [#allocation4], %s7265
          %s7267 = sand.u32 %s276, 1
          %s7268 = smul.addr %s7267, 512
          %s7269 = scalar_lea.vmem [#allocation13], %s7268
          %7270 = dma.done %s7266, 8192
        $region100: #{tpu_custom_call.1} parent=95 // pred_fallthru
          _
      $region96: #{tpu_custom_call.1} parent=5 // pred_fallthru
        _
    $region6: #{tpu_custom_call.1} parent=1 // loop_footer
      %s30 = sadd.s32 1, %s26
    $region7: #{tpu_custom_call.1} parent=1 // loop_footer_branch
      %25 = sbr.rel target = $region3
    $region8: #{tpu_custom_call.1} parent=1 // loop_exit
      _
    %7271 = vsyncpa [#allocation3], 1
    %s7272 = scalar_lea.sflag [#allocation3], 1
    %7273 = vsyncpa %s7272, 1
    %7274 = vsyncpa [#allocation6], 1
    %7275 = vsyncpa [#allocation9], 1
    %7276 = vsyncpa [#allocation12], 1
    %7277 = vsyncpa [#allocation4], 1
    %s7278 = scalar_lea.sflag [#allocation4], 1
    %7279 = vsyncpa %s7278, 1

</llo_original>
